<compile_context>
chip_gen: v5e
topology: v5e:2x2
jax: 0.10.0
libtpu: 0.0.40
codegen_flags: <defaults>
</compile_context>

<pallas_src>
import jax
import jax.numpy as jnp
import numpy as np
from jax.experimental import pallas as pl
from jax.experimental.pallas import tpu as pltpu


# Static hyper-parameters of the module.
K1, K3, KT = 3, 7, 5          # conv1 / conv3 / conv_transpose kernel sizes
STRIDE, PAD = 3, 2            # conv_transpose stride / padding


# ----------------------------------------------------------------------------
# Polyphase tap table for ConvTranspose2d(stride=S, kernel=K, padding=P):
# output row i = S*m + r gets contributions from kernel rows `a` with
# (r + a - (K-1-P)) % S == 0, reading input row m + d, d = (r+a-(K-1-P))//S.
# ----------------------------------------------------------------------------
def _phase_taps(stride, ksize, padding):
    pe = ksize - 1 - padding
    assert pe >= 0, "requires padding <= kernel_size - 1"
    taps = []
    for r in range(stride):
        lst = tuple((a, (r + a - pe) // stride)
                    for a in range(ksize) if (r + a - pe) % stride == 0)
        assert all(d >= 0 for _, d in lst), "negative input offset unsupported"
        taps.append(lst)
    return tuple(taps)


# ----------------------------------------------------------------------------
# Single fused kernel: conv1 -> conv3 -> polyphase conv_transpose + SiLU.
# All activations are lane-dense 2-D (rows = H, lanes = W*C, channel minor).
# ----------------------------------------------------------------------------
def _make_fused_kernel(H, W, CIN, C1, C3, CT):
    H1, W1 = H - (K1 - 1), W - (K1 - 1)      # conv1 output
    H3, W3 = H1 - (K3 - 1), W1 - (K3 - 1)    # conv3 output
    taps = _phase_taps(STRIDE, KT, PAD)
    max_d = max(d for lst in taps for _, d in lst)

    def kernel(x_ref, w1_ref, b1_ref, w3_ref, b3_ref, wt_ref, bt_ref,
               v1_ref, v3_ref, v2_ref, v5_ref):
        f32 = jnp.float32

        # ---- conv1 (valid, k=3): K1 row-band matmuls, bias as acc init ----
        acc1 = jnp.broadcast_to(b1_ref[...], (H1, W1 * C1))
        for ky in range(K1):
            acc1 = acc1 + jnp.dot(x_ref[ky:ky + H1, :], w1_ref[ky, :, :],
                                  preferred_element_type=f32)
        v1_ref[...] = acc1                              # (H1, W1*C1), one store

        # ---- conv3 (valid, k=7): K3 row-band matmuls on acc1 (no reload) ----
        acc3 = jnp.broadcast_to(b3_ref[...], (H3, W3 * C3))
        for ky in range(K3):
            acc3 = acc3 + jnp.dot(acc1[ky:ky + H3, :], w3_ref[ky, :, :],
                                  preferred_element_type=f32)
        v3_ref[...] = acc3                              # (H3, W3*C3), one store

        # ---- conv_transpose (stride 3, k=5, pad 2), polyphase + SiLU ----
        # Row-shifted views of v3 (da = 0..max_d); the appended zero rows only
        # feed output rows that the wrapper crops away.  Hoisted out of the
        # 9-phase loop.
        v3_shift = [acc3]
        for d in range(1, max_d + 1):
            v3_shift.append(jnp.concatenate(
                [acc3[d:H3, :], jnp.zeros((d, W3 * C3), f32)], axis=0))
        bt_b = jnp.broadcast_to(bt_ref[...], (H3, W3 * CT))  # hoisted broadcast

        for ri in range(STRIDE):
            for rj in range(STRIDE):
                acc = bt_b
                for (a, da) in taps[ri]:                # 1-2 terms per phase
                    acc = acc + jnp.dot(v3_shift[da], wt_ref[rj * KT + a, :, :],
                                        preferred_element_type=f32)
                idx = ri * STRIDE + rj
                v2_ref[idx, :, :] = acc                 # lane-dense (H3, W3*CT)
                # SiLU: divide on the EUP instead of the VALU path.
                sig = pl.reciprocal(1.0 + jnp.exp(-acc), approx=True)
                v5_ref[idx, :, :] = acc * sig

    return kernel


# ----------------------------------------------------------------------------
# Parameters (PyTorch-style init / layouts)
# ----------------------------------------------------------------------------
def init_params(key):
    def uniform(k, shape, fan_in):
        bound = 1.0 / np.sqrt(fan_in)
        return jax.random.uniform(k, shape, jnp.float32, -bound, bound)

    ks = jax.random.split(key, 6)
    return {
        # conv1: Conv2d(7 -> 8, k=3), stored HWIO
        "w1": uniform(ks[0], (K1, K1, 7, 8), 7 * K1 * K1),
        "b1": uniform(ks[1], (8,), 7 * K1 * K1),
        # conv3: Conv2d(8 -> 6, k=7), stored HWIO
        "w3": uniform(ks[2], (K3, K3, 8, 6), 8 * K3 * K3),
        "b3": uniform(ks[3], (6,), 8 * K3 * K3),
        # conv_transpose2: ConvTranspose2d(6 -> 24, k=5, s=3, p=2),
        # stored in PyTorch layout (Cin, Cout, KH, KW)
        "wt": uniform(ks[4], (6, 24, KT, KT), 6 * KT * KT),
        "bt": uniform(ks[5], (24,), 6 * KT * KT),
    }


def prepare_kernel_params(params, H, W):
    """One-time weight restructuring into lane-dense block-Toeplitz ("band")
    matrices so that the in-kernel work is pure row-shifted matmuls."""
    H1, W1 = H - (K1 - 1), W - (K1 - 1)
    H3, W3 = H1 - (K3 - 1), W1 - (K3 - 1)

    def band(w_hwio, w_in, w_out):
        # B[ky][(w+kx)*Cin + ci, w*Cout + co] = w[ky, kx, ci, co]
        kh, kw, ci, co = w_hwio.shape
        B = np.zeros((kh, w_in * ci, w_out * co), np.float32)
        for ky in range(kh):
            for kx in range(kw):
                blk = w_hwio[ky, kx]
                for wo in range(w_out):
                    B[ky, (wo + kx) * ci:(wo + kx + 1) * ci,
                      wo * co:(wo + 1) * co] = blk
        return B

    w1 = np.asarray(params["w1"], np.float32)
    w3 = np.asarray(params["w3"], np.float32)
    wt = np.asarray(params["wt"], np.float32)

    w1b = band(w1, W, W1)            # (K1, W*7,   W1*8)
    w3b = band(w3, W1, W3)           # (K3, W1*8,  W3*6)

    # ConvTranspose -> equivalent forward-conv weight: flip spatial, swap i/o.
    wc = np.transpose(wt[:, :, ::-1, ::-1], (2, 3, 0, 1))   # (KT,KT,Cin,Cout)
    taps = _phase_taps(STRIDE, KT, PAD)
    ci, co = wc.shape[2], wc.shape[3]
    # Bt[rj*KT + a][(n+db)*Cin + ci, n*Cout + co] = wc[a, b, ci, co]
    # Entries with n+db >= W3 are dropped: they only feed output columns the
    # wrapper crops away.
    wtb = np.zeros((STRIDE * KT, W3 * ci, W3 * co), np.float32)
    for rj in range(STRIDE):
        for a in range(KT):
            for (b, db) in taps[rj]:
                blk = wc[a, b]
                for n in range(W3):
                    if n + db < W3:
                        wtb[rj * KT + a,
                            (n + db) * ci:(n + db + 1) * ci,
                            n * co:(n + 1) * co] = blk

    def bias_row(b, rep):            # bias tiled along the lane-dense W*C axis
        return jnp.asarray(np.tile(np.asarray(b, np.float32), rep)[None, :])

    return {
        "w1b": jnp.asarray(w1b), "b1row": bias_row(params["b1"], W1),
        "w3b": jnp.asarray(w3b), "b3row": bias_row(params["b3"], W3),
        "wtb": jnp.asarray(wtb), "btrow": bias_row(params["bt"], W3),
    }


# ----------------------------------------------------------------------------
# Forward pass (single fused pallas_call)
# ----------------------------------------------------------------------------
@jax.jit
def model_forward(kp, x_nchw):
    n, cin, H, W = x_nchw.shape
    assert n == 1   # TODO(synk): batch hard-coded to 1, as in the module input
    H1, W1 = H - (K1 - 1), W - (K1 - 1)
    H3, W3 = H1 - (K3 - 1), W1 - (K3 - 1)
    HT = (H3 - 1) * STRIDE - 2 * PAD + KT
    WT = (W3 - 1) * STRIDE - 2 * PAD + KT
    C1 = kp["b1row"].shape[1] // W1
    C3 = kp["b3row"].shape[1] // W3
    CT = kp["btrow"].shape[1] // W3

    # NCHW -> lane-dense (H, W*Cin), channel minor on lanes.
    x2d = jnp.transpose(x_nchw[0], (1, 2, 0)).reshape(H, W * cin)

    out_shapes = (
        jax.ShapeDtypeStruct((H1, W1 * C1), jnp.float32),                  # v1
        jax.ShapeDtypeStruct((H3, W3 * C3), jnp.float32),                  # v3
        jax.ShapeDtypeStruct((STRIDE * STRIDE, H3, W3 * CT), jnp.float32), # v2
        jax.ShapeDtypeStruct((STRIDE * STRIDE, H3, W3 * CT), jnp.float32), # v5
    )
    vmem_spec = pl.BlockSpec(memory_space=pltpu.MemorySpace.VMEM)
    kernel = _make_fused_kernel(H, W, cin, C1, C3, CT)
    v1f, v3f, v2p, v5p = pl.pallas_call(
        kernel,
        out_shape=out_shapes,
        in_specs=[vmem_spec] * 7,
        out_specs=(vmem_spec,) * 4,
        compiler_params=pltpu.CompilerParams(
            vmem_limit_bytes=48 * 1024 * 1024),
    )(x2d, kp["w1b"], kp["b1row"], kp["w3b"], kp["b3row"],
      kp["wtb"], kp["btrow"])

    def to_nchw(flat, hh, ww, cc):
        return jnp.transpose(flat.reshape(hh, ww, cc), (2, 0, 1))[None]

    v1 = to_nchw(v1f, H1, W1, C1)
    v3 = to_nchw(v3f, H3, W3, C3)

    def deinterleave(vp):   # (ri*rj, m, n*c) -> (1, c, 3m+ri, 3n+rj), cropped
        y = vp.reshape(STRIDE, STRIDE, H3, W3, CT)
        y = jnp.transpose(y, (4, 2, 0, 3, 1)).reshape(CT, STRIDE * H3, STRIDE * W3)
        return y[None, :, :HT, :WT]

    return deinterleave(v5p), v1, v3, deinterleave(v2p)


# ----------------------------------------------------------------------------
# Pure-JAX reference (for correctness checking)
# ----------------------------------------------------------------------------
def reference_forward(params, x_nchw):
    x = jnp.transpose(x_nchw, (0, 2, 3, 1))
    dn = ("NHWC", "HWIO", "NHWC")
    hp = jax.lax.Precision.HIGHEST
    v1 = jax.lax.conv_general_dilated(x, params["w1"], (1, 1), "VALID",
                                      dimension_numbers=dn,
                                      precision=hp) + params["b1"]
    v3 = jax.lax.conv_general_dilated(v1, params["w3"], (1, 1), "VALID",
                                      dimension_numbers=dn,
                                      precision=hp) + params["b3"]
    w_conv = jnp.transpose(params["wt"][:, :, ::-1, ::-1], (2, 3, 0, 1))
    pad = KT - 1 - PAD
    v2 = jax.lax.conv_general_dilated(v3, w_conv, (1, 1), [(pad, pad)] * 2,
                                      lhs_dilation=(STRIDE, STRIDE),
                                      dimension_numbers=dn,
                                      precision=hp) + params["bt"]
    v5 = v2 * jax.nn.sigmoid(v2)
    to_nchw = lambda a: jnp.transpose(a, (0, 3, 1, 2))
    return to_nchw(v5), to_nchw(v1), to_nchw(v3), to_nchw(v2)


if __name__ == "__main__":
    key = jax.random.PRNGKey(0)
    pkey, xkey = jax.random.split(key)
    params = init_params(pkey)

    # Small input consistent with the module (original was (1, 7, 224, 224)).
    H = W = 32
    kparams = prepare_kernel_params(params, H, W)        # one-time weight prep
    x = jax.random.normal(xkey, (1, 7, H, W), jnp.float32)   # NCHW

    outs = model_forward(kparams, x)
    outs = jax.block_until_ready(outs)
    refs = reference_forward(params, x)

    for got, ref in zip(outs, refs):
        assert got.shape == ref.shape, (got.shape, ref.shape)
        np.testing.assert_allclose(np.asarray(got), np.asarray(ref),
                                   rtol=1e-2, atol=1e-2)

    print("KERNEL_OK")
</pallas_src>

<mosaic_0001>
module attributes {stable_mosaic.version = 11 : i64} {
  func.func @kernel(%arg0: memref<32x224xf32, #tpu.memory_space<vmem>>, %arg1: memref<3x224x240xf32, #tpu.memory_space<vmem>>, %arg2: memref<1x240xf32, #tpu.memory_space<vmem>>, %arg3: memref<7x240x144xf32, #tpu.memory_space<vmem>>, %arg4: memref<1x144xf32, #tpu.memory_space<vmem>>, %arg5: memref<15x144x576xf32, #tpu.memory_space<vmem>>, %arg6: memref<1x576xf32, #tpu.memory_space<vmem>>, %arg7: memref<30x240xf32, #tpu.memory_space<vmem>>, %arg8: memref<24x144xf32, #tpu.memory_space<vmem>>, %arg9: memref<9x24x576xf32, #tpu.memory_space<vmem>>, %arg10: memref<9x24x576xf32, #tpu.memory_space<vmem>>) attributes {dimension_semantics = [], scalar_prefetch = 0 : i64, scratch_operands = 0 : i64, tpu.core_type = #tpu.core_type<tc>} {
    %c0 = arith.constant 0 : index
    %c0_0 = arith.constant 0 : index
    %0 = vector.load %arg2[%c0, %c0_0] : memref<1x240xf32, #tpu.memory_space<vmem>>, vector<1x240xf32>
    %1 = vector.shape_cast %0 : vector<1x240xf32> to vector<1x240xf32>
    %2 = vector.broadcast %1 : vector<1x240xf32> to vector<30x240xf32>
    %c0_1 = arith.constant 0 : index
    %c0_2 = arith.constant 0 : index
    %3 = vector.load %arg0[%c0_1, %c0_2] : memref<32x224xf32, #tpu.memory_space<vmem>>, vector<30x224xf32>
    %c0_3 = arith.constant 0 : index
    %c0_4 = arith.constant 0 : index
    %c0_5 = arith.constant 0 : index
    %4 = vector.load %arg1[%c0_3, %c0_4, %c0_5] : memref<3x224x240xf32, #tpu.memory_space<vmem>>, vector<1x224x240xf32>
    %5 = vector.shape_cast %4 : vector<1x224x240xf32> to vector<224x240xf32>
    %cst = arith.constant dense<0.000000e+00> : vector<30x240xf32>
    %6 = tpu.matmul %3, %5, %cst {dimension_numbers = #tpu.dot_dimension_numbers<[1], [0], [0], [1], [0, 0, 1, 1], [], []>} : vector<30x224xf32>, vector<224x240xf32>, vector<30x240xf32> -> vector<30x240xf32>
    %7 = arith.addf %2, %6 : vector<30x240xf32>
    %c1 = arith.constant 1 : index
    %c0_6 = arith.constant 0 : index
    %8 = vector.load %arg0[%c1, %c0_6] : memref<32x224xf32, #tpu.memory_space<vmem>>, vector<30x224xf32>
    %c1_7 = arith.constant 1 : index
    %c0_8 = arith.constant 0 : index
    %c0_9 = arith.constant 0 : index
    %9 = vector.load %arg1[%c1_7, %c0_8, %c0_9] : memref<3x224x240xf32, #tpu.memory_space<vmem>>, vector<1x224x240xf32>
    %10 = vector.shape_cast %9 : vector<1x224x240xf32> to vector<224x240xf32>
    %cst_10 = arith.constant dense<0.000000e+00> : vector<30x240xf32>
    %11 = tpu.matmul %8, %10, %cst_10 {dimension_numbers = #tpu.dot_dimension_numbers<[1], [0], [0], [1], [0, 0, 1, 1], [], []>} : vector<30x224xf32>, vector<224x240xf32>, vector<30x240xf32> -> vector<30x240xf32>
    %12 = arith.addf %7, %11 : vector<30x240xf32>
    %c2 = arith.constant 2 : index
    %c0_11 = arith.constant 0 : index
    %13 = vector.load %arg0[%c2, %c0_11] : memref<32x224xf32, #tpu.memory_space<vmem>>, vector<30x224xf32>
    %c2_12 = arith.constant 2 : index
    %c0_13 = arith.constant 0 : index
    %c0_14 = arith.constant 0 : index
    %14 = vector.load %arg1[%c2_12, %c0_13, %c0_14] : memref<3x224x240xf32, #tpu.memory_space<vmem>>, vector<1x224x240xf32>
    %15 = vector.shape_cast %14 : vector<1x224x240xf32> to vector<224x240xf32>
    %cst_15 = arith.constant dense<0.000000e+00> : vector<30x240xf32>
    %16 = tpu.matmul %13, %15, %cst_15 {dimension_numbers = #tpu.dot_dimension_numbers<[1], [0], [0], [1], [0, 0, 1, 1], [], []>} : vector<30x224xf32>, vector<224x240xf32>, vector<30x240xf32> -> vector<30x240xf32>
    %17 = arith.addf %12, %16 : vector<30x240xf32>
    %c0_16 = arith.constant 0 : index
    %c0_17 = arith.constant 0 : index
    %18 = vector.load %arg7[%c0_16, %c0_17] : memref<30x240xf32, #tpu.memory_space<vmem>>, vector<30x240xf32>
    tpu.vector_store %arg7[%c0_16, %c0_17], %17 {strides = array<i32>} : memref<30x240xf32, #tpu.memory_space<vmem>>, vector<30x240xf32>,
    %c0_18 = arith.constant 0 : index
    %c0_19 = arith.constant 0 : index
    %19 = vector.load %arg4[%c0_18, %c0_19] : memref<1x144xf32, #tpu.memory_space<vmem>>, vector<1x144xf32>
    %20 = vector.shape_cast %19 : vector<1x144xf32> to vector<1x144xf32>
    %21 = vector.broadcast %20 : vector<1x144xf32> to vector<24x144xf32>
    %22 = vector.extract_strided_slice %17 {offsets = [0, 0], sizes = [24, 240], strides = [1, 1]} : vector<30x240xf32> to vector<24x240xf32>
    %c0_20 = arith.constant 0 : index
    %c0_21 = arith.constant 0 : index
    %c0_22 = arith.constant 0 : index
    %23 = vector.load %arg3[%c0_20, %c0_21, %c0_22] : memref<7x240x144xf32, #tpu.memory_space<vmem>>, vector<1x240x144xf32>
    %24 = vector.shape_cast %23 : vector<1x240x144xf32> to vector<240x144xf32>
    %cst_23 = arith.constant dense<0.000000e+00> : vector<24x144xf32>
    %25 = tpu.matmul %22, %24, %cst_23 {dimension_numbers = #tpu.dot_dimension_numbers<[1], [0], [0], [1], [0, 0, 1, 1], [], []>} : vector<24x240xf32>, vector<240x144xf32>, vector<24x144xf32> -> vector<24x144xf32>
    %26 = arith.addf %21, %25 : vector<24x144xf32>
    %27 = vector.extract_strided_slice %17 {offsets = [1, 0], sizes = [24, 240], strides = [1, 1]} : vector<30x240xf32> to vector<24x240xf32>
    %c1_24 = arith.constant 1 : index
    %c0_25 = arith.constant 0 : index
    %c0_26 = arith.constant 0 : index
    %28 = vector.load %arg3[%c1_24, %c0_25, %c0_26] : memref<7x240x144xf32, #tpu.memory_space<vmem>>, vector<1x240x144xf32>
    %29 = vector.shape_cast %28 : vector<1x240x144xf32> to vector<240x144xf32>
    %cst_27 = arith.constant dense<0.000000e+00> : vector<24x144xf32>
    %30 = tpu.matmul %27, %29, %cst_27 {dimension_numbers = #tpu.dot_dimension_numbers<[1], [0], [0], [1], [0, 0, 1, 1], [], []>} : vector<24x240xf32>, vector<240x144xf32>, vector<24x144xf32> -> vector<24x144xf32>
    %31 = arith.addf %26, %30 : vector<24x144xf32>
    %32 = vector.extract_strided_slice %17 {offsets = [2, 0], sizes = [24, 240], strides = [1, 1]} : vector<30x240xf32> to vector<24x240xf32>
    %c2_28 = arith.constant 2 : index
    %c0_29 = arith.constant 0 : index
    %c0_30 = arith.constant 0 : index
    %33 = vector.load %arg3[%c2_28, %c0_29, %c0_30] : memref<7x240x144xf32, #tpu.memory_space<vmem>>, vector<1x240x144xf32>
    %34 = vector.shape_cast %33 : vector<1x240x144xf32> to vector<240x144xf32>
    %cst_31 = arith.constant dense<0.000000e+00> : vector<24x144xf32>
    %35 = tpu.matmul %32, %34, %cst_31 {dimension_numbers = #tpu.dot_dimension_numbers<[1], [0], [0], [1], [0, 0, 1, 1], [], []>} : vector<24x240xf32>, vector<240x144xf32>, vector<24x144xf32> -> vector<24x144xf32>
    %36 = arith.addf %31, %35 : vector<24x144xf32>
    %37 = vector.extract_strided_slice %17 {offsets = [3, 0], sizes = [24, 240], strides = [1, 1]} : vector<30x240xf32> to vector<24x240xf32>
    %c3 = arith.constant 3 : index
    %c0_32 = arith.constant 0 : index
    %c0_33 = arith.constant 0 : index
    %38 = vector.load %arg3[%c3, %c0_32, %c0_33] : memref<7x240x144xf32, #tpu.memory_space<vmem>>, vector<1x240x144xf32>
    %39 = vector.shape_cast %38 : vector<1x240x144xf32> to vector<240x144xf32>
    %cst_34 = arith.constant dense<0.000000e+00> : vector<24x144xf32>
    %40 = tpu.matmul %37, %39, %cst_34 {dimension_numbers = #tpu.dot_dimension_numbers<[1], [0], [0], [1], [0, 0, 1, 1], [], []>} : vector<24x240xf32>, vector<240x144xf32>, vector<24x144xf32> -> vector<24x144xf32>
    %41 = arith.addf %36, %40 : vector<24x144xf32>
    %42 = vector.extract_strided_slice %17 {offsets = [4, 0], sizes = [24, 240], strides = [1, 1]} : vector<30x240xf32> to vector<24x240xf32>
    %c4 = arith.constant 4 : index
    %c0_35 = arith.constant 0 : index
    %c0_36 = arith.constant 0 : index
    %43 = vector.load %arg3[%c4, %c0_35, %c0_36] : memref<7x240x144xf32, #tpu.memory_space<vmem>>, vector<1x240x144xf32>
    %44 = vector.shape_cast %43 : vector<1x240x144xf32> to vector<240x144xf32>
    %cst_37 = arith.constant dense<0.000000e+00> : vector<24x144xf32>
    %45 = tpu.matmul %42, %44, %cst_37 {dimension_numbers = #tpu.dot_dimension_numbers<[1], [0], [0], [1], [0, 0, 1, 1], [], []>} : vector<24x240xf32>, vector<240x144xf32>, vector<24x144xf32> -> vector<24x144xf32>
    %46 = arith.addf %41, %45 : vector<24x144xf32>
    %47 = vector.extract_strided_slice %17 {offsets = [5, 0], sizes = [24, 240], strides = [1, 1]} : vector<30x240xf32> to vector<24x240xf32>
    %c5 = arith.constant 5 : index
    %c0_38 = arith.constant 0 : index
    %c0_39 = arith.constant 0 : index
    %48 = vector.load %arg3[%c5, %c0_38, %c0_39] : memref<7x240x144xf32, #tpu.memory_space<vmem>>, vector<1x240x144xf32>
    %49 = vector.shape_cast %48 : vector<1x240x144xf32> to vector<240x144xf32>
    %cst_40 = arith.constant dense<0.000000e+00> : vector<24x144xf32>
    %50 = tpu.matmul %47, %49, %cst_40 {dimension_numbers = #tpu.dot_dimension_numbers<[1], [0], [0], [1], [0, 0, 1, 1], [], []>} : vector<24x240xf32>, vector<240x144xf32>, vector<24x144xf32> -> vector<24x144xf32>
    %51 = arith.addf %46, %50 : vector<24x144xf32>
    %52 = vector.extract_strided_slice %17 {offsets = [6, 0], sizes = [24, 240], strides = [1, 1]} : vector<30x240xf32> to vector<24x240xf32>
    %c6 = arith.constant 6 : index
    %c0_41 = arith.constant 0 : index
    %c0_42 = arith.constant 0 : index
    %53 = vector.load %arg3[%c6, %c0_41, %c0_42] : memref<7x240x144xf32, #tpu.memory_space<vmem>>, vector<1x240x144xf32>
    %54 = vector.shape_cast %53 : vector<1x240x144xf32> to vector<240x144xf32>
    %cst_43 = arith.constant dense<0.000000e+00> : vector<24x144xf32>
    %55 = tpu.matmul %52, %54, %cst_43 {dimension_numbers = #tpu.dot_dimension_numbers<[1], [0], [0], [1], [0, 0, 1, 1], [], []>} : vector<24x240xf32>, vector<240x144xf32>, vector<24x144xf32> -> vector<24x144xf32>
    %56 = arith.addf %51, %55 : vector<24x144xf32>
    %c0_44 = arith.constant 0 : index
    %c0_45 = arith.constant 0 : index
    %57 = vector.load %arg8[%c0_44, %c0_45] : memref<24x144xf32, #tpu.memory_space<vmem>>, vector<24x144xf32>
    tpu.vector_store %arg8[%c0_44, %c0_45], %56 {strides = array<i32>} : memref<24x144xf32, #tpu.memory_space<vmem>>, vector<24x144xf32>,
    %58 = vector.extract_strided_slice %56 {offsets = [1, 0], sizes = [23, 144], strides = [1, 1]} : vector<24x144xf32> to vector<23x144xf32>
    %cst_46 = arith.constant 0.000000e+00 : f32
    %59 = vector.broadcast %cst_46 : f32 to vector<1x144xf32>
    %60 = tpu.concatenate %58, %59 in 0 : vector<23x144xf32>, vector<1x144xf32> -> vector<24x144xf32>
    %c0_47 = arith.constant 0 : index
    %c0_48 = arith.constant 0 : index
    %61 = vector.load %arg6[%c0_47, %c0_48] : memref<1x576xf32, #tpu.memory_space<vmem>>, vector<1x576xf32>
    %62 = vector.shape_cast %61 : vector<1x576xf32> to vector<1x576xf32>
    %63 = vector.broadcast %62 : vector<1x576xf32> to vector<24x576xf32>
    %c2_49 = arith.constant 2 : index
    %c0_50 = arith.constant 0 : index
    %c0_51 = arith.constant 0 : index
    %64 = vector.load %arg5[%c2_49, %c0_50, %c0_51] : memref<15x144x576xf32, #tpu.memory_space<vmem>>, vector<1x144x576xf32>
    %65 = vector.shape_cast %64 : vector<1x144x576xf32> to vector<144x576xf32>
    %cst_52 = arith.constant dense<0.000000e+00> : vector<24x576xf32>
    %66 = tpu.matmul %56, %65, %cst_52 {dimension_numbers = #tpu.dot_dimension_numbers<[1], [0], [0], [1], [0, 0, 1, 1], [], []>} : vector<24x144xf32>, vector<144x576xf32>, vector<24x576xf32> -> vector<24x576xf32>
    %67 = arith.addf %63, %66 : vector<24x576xf32>
    %c0_53 = arith.constant 0 : index
    %c0_54 = arith.constant 0 : index
    %c0_55 = arith.constant 0 : index
    %68 = vector.load %arg9[%c0_53, %c0_54, %c0_55] : memref<9x24x576xf32, #tpu.memory_space<vmem>>, vector<1x24x576xf32>
    %69 = vector.shape_cast %68 : vector<1x24x576xf32> to vector<24x576xf32>
    %70 = vector.shape_cast %67 : vector<24x576xf32> to vector<1x24x576xf32>
    tpu.vector_store %arg9[%c0_53, %c0_54, %c0_55], %70 {strides = array<i32>} : memref<9x24x576xf32, #tpu.memory_space<vmem>>, vector<1x24x576xf32>,
    %cst_56 = arith.constant 0.000000e+00 : f32
    %71 = vector.broadcast %cst_56 : f32 to vector<24x576xf32>
    %72 = arith.subf %71, %67 : vector<24x576xf32>
    %73 = math.exp %72 : vector<24x576xf32>
    %cst_57 = arith.constant 1.000000e+00 : f32
    %74 = vector.broadcast %cst_57 : f32 to vector<24x576xf32>
    %75 = arith.addf %74, %73 : vector<24x576xf32>
    %76 = tpu.reciprocal %75 {approx = true} : vector<24x576xf32> -> vector<24x576xf32>
    %77 = arith.mulf %67, %76 : vector<24x576xf32>
    %c0_58 = arith.constant 0 : index
    %c0_59 = arith.constant 0 : index
    %c0_60 = arith.constant 0 : index
    %78 = vector.load %arg10[%c0_58, %c0_59, %c0_60] : memref<9x24x576xf32, #tpu.memory_space<vmem>>, vector<1x24x576xf32>
    %79 = vector.shape_cast %78 : vector<1x24x576xf32> to vector<24x576xf32>
    %80 = vector.shape_cast %77 : vector<24x576xf32> to vector<1x24x576xf32>
    tpu.vector_store %arg10[%c0_58, %c0_59, %c0_60], %80 {strides = array<i32>} : memref<9x24x576xf32, #tpu.memory_space<vmem>>, vector<1x24x576xf32>,
    %c7 = arith.constant 7 : index
    %c0_61 = arith.constant 0 : index
    %c0_62 = arith.constant 0 : index
    %81 = vector.load %arg5[%c7, %c0_61, %c0_62] : memref<15x144x576xf32, #tpu.memory_space<vmem>>, vector<1x144x576xf32>
    %82 = vector.shape_cast %81 : vector<1x144x576xf32> to vector<144x576xf32>
    %cst_63 = arith.constant dense<0.000000e+00> : vector<24x576xf32>
    %83 = tpu.matmul %56, %82, %cst_63 {dimension_numbers = #tpu.dot_dimension_numbers<[1], [0], [0], [1], [0, 0, 1, 1], [], []>} : vector<24x144xf32>, vector<144x576xf32>, vector<24x576xf32> -> vector<24x576xf32>
    %84 = arith.addf %63, %83 : vector<24x576xf32>
    %c1_64 = arith.constant 1 : index
    %c0_65 = arith.constant 0 : index
    %c0_66 = arith.constant 0 : index
    %85 = vector.load %arg9[%c1_64, %c0_65, %c0_66] : memref<9x24x576xf32, #tpu.memory_space<vmem>>, vector<1x24x576xf32>
    %86 = vector.shape_cast %85 : vector<1x24x576xf32> to vector<24x576xf32>
    %87 = vector.shape_cast %84 : vector<24x576xf32> to vector<1x24x576xf32>
    tpu.vector_store %arg9[%c1_64, %c0_65, %c0_66], %87 {strides = array<i32>} : memref<9x24x576xf32, #tpu.memory_space<vmem>>, vector<1x24x576xf32>,
    %cst_67 = arith.constant 0.000000e+00 : f32
    %88 = vector.broadcast %cst_67 : f32 to vector<24x576xf32>
    %89 = arith.subf %88, %84 : vector<24x576xf32>
    %90 = math.exp %89 : vector<24x576xf32>
    %cst_68 = arith.constant 1.000000e+00 : f32
    %91 = vector.broadcast %cst_68 : f32 to vector<24x576xf32>
    %92 = arith.addf %91, %90 : vector<24x576xf32>
    %93 = tpu.reciprocal %92 {approx = true} : vector<24x576xf32> -> vector<24x576xf32>
    %94 = arith.mulf %84, %93 : vector<24x576xf32>
    %c1_69 = arith.constant 1 : index
    %c0_70 = arith.constant 0 : index
    %c0_71 = arith.constant 0 : index
    %95 = vector.load %arg10[%c1_69, %c0_70, %c0_71] : memref<9x24x576xf32, #tpu.memory_space<vmem>>, vector<1x24x576xf32>
    %96 = vector.shape_cast %95 : vector<1x24x576xf32> to vector<24x576xf32>
    %97 = vector.shape_cast %94 : vector<24x576xf32> to vector<1x24x576xf32>
    tpu.vector_store %arg10[%c1_69, %c0_70, %c0_71], %97 {strides = array<i32>} : memref<9x24x576xf32, #tpu.memory_space<vmem>>, vector<1x24x576xf32>,
    %c12 = arith.constant 12 : index
    %c0_72 = arith.constant 0 : index
    %c0_73 = arith.constant 0 : index
    %98 = vector.load %arg5[%c12, %c0_72, %c0_73] : memref<15x144x576xf32, #tpu.memory_space<vmem>>, vector<1x144x576xf32>
    %99 = vector.shape_cast %98 : vector<1x144x576xf32> to vector<144x576xf32>
    %cst_74 = arith.constant dense<0.000000e+00> : vector<24x576xf32>
    %100 = tpu.matmul %56, %99, %cst_74 {dimension_numbers = #tpu.dot_dimension_numbers<[1], [0], [0], [1], [0, 0, 1, 1], [], []>} : vector<24x144xf32>, vector<144x576xf32>, vector<24x576xf32> -> vector<24x576xf32>
    %101 = arith.addf %63, %100 : vector<24x576xf32>
    %c2_75 = arith.constant 2 : index
    %c0_76 = arith.constant 0 : index
    %c0_77 = arith.constant 0 : index
    %102 = vector.load %arg9[%c2_75, %c0_76, %c0_77] : memref<9x24x576xf32, #tpu.memory_space<vmem>>, vector<1x24x576xf32>
    %103 = vector.shape_cast %102 : vector<1x24x576xf32> to vector<24x576xf32>
    %104 = vector.shape_cast %101 : vector<24x576xf32> to vector<1x24x576xf32>
    tpu.vector_store %arg9[%c2_75, %c0_76, %c0_77], %104 {strides = array<i32>} : memref<9x24x576xf32, #tpu.memory_space<vmem>>, vector<1x24x576xf32>,
    %cst_78 = arith.constant 0.000000e+00 : f32
    %105 = vector.broadcast %cst_78 : f32 to vector<24x576xf32>
    %106 = arith.subf %105, %101 : vector<24x576xf32>
    %107 = math.exp %106 : vector<24x576xf32>
    %cst_79 = arith.constant 1.000000e+00 : f32
    %108 = vector.broadcast %cst_79 : f32 to vector<24x576xf32>
    %109 = arith.addf %108, %107 : vector<24x576xf32>
    %110 = tpu.reciprocal %109 {approx = true} : vector<24x576xf32> -> vector<24x576xf32>
    %111 = arith.mulf %101, %110 : vector<24x576xf32>
    %c2_80 = arith.constant 2 : index
    %c0_81 = arith.constant 0 : index
    %c0_82 = arith.constant 0 : index
    %112 = vector.load %arg10[%c2_80, %c0_81, %c0_82] : memref<9x24x576xf32, #tpu.memory_space<vmem>>, vector<1x24x576xf32>
    %113 = vector.shape_cast %112 : vector<1x24x576xf32> to vector<24x576xf32>
    %114 = vector.shape_cast %111 : vector<24x576xf32> to vector<1x24x576xf32>
    tpu.vector_store %arg10[%c2_80, %c0_81, %c0_82], %114 {strides = array<i32>} : memref<9x24x576xf32, #tpu.memory_space<vmem>>, vector<1x24x576xf32>,
    %c1_83 = arith.constant 1 : index
    %c0_84 = arith.constant 0 : index
    %c0_85 = arith.constant 0 : index
    %115 = vector.load %arg5[%c1_83, %c0_84, %c0_85] : memref<15x144x576xf32, #tpu.memory_space<vmem>>, vector<1x144x576xf32>
    %116 = vector.shape_cast %115 : vector<1x144x576xf32> to vector<144x576xf32>
    %cst_86 = arith.constant dense<0.000000e+00> : vector<24x576xf32>
    %117 = tpu.matmul %56, %116, %cst_86 {dimension_numbers = #tpu.dot_dimension_numbers<[1], [0], [0], [1], [0, 0, 1, 1], [], []>} : vector<24x144xf32>, vector<144x576xf32>, vector<24x576xf32> -> vector<24x576xf32>
    %118 = arith.addf %63, %117 : vector<24x576xf32>
    %c4_87 = arith.constant 4 : index
    %c0_88 = arith.constant 0 : index
    %c0_89 = arith.constant 0 : index
    %119 = vector.load %arg5[%c4_87, %c0_88, %c0_89] : memref<15x144x576xf32, #tpu.memory_space<vmem>>, vector<1x144x576xf32>
    %120 = vector.shape_cast %119 : vector<1x144x576xf32> to vector<144x576xf32>
    %cst_90 = arith.constant dense<0.000000e+00> : vector<24x576xf32>
    %121 = tpu.matmul %60, %120, %cst_90 {dimension_numbers = #tpu.dot_dimension_numbers<[1], [0], [0], [1], [0, 0, 1, 1], [], []>} : vector<24x144xf32>, vector<144x576xf32>, vector<24x576xf32> -> vector<24x576xf32>
    %122 = arith.addf %118, %121 : vector<24x576xf32>
    %c3_91 = arith.constant 3 : index
    %c0_92 = arith.constant 0 : index
    %c0_93 = arith.constant 0 : index
    %123 = vector.load %arg9[%c3_91, %c0_92, %c0_93] : memref<9x24x576xf32, #tpu.memory_space<vmem>>, vector<1x24x576xf32>
    %124 = vector.shape_cast %123 : vector<1x24x576xf32> to vector<24x576xf32>
    %125 = vector.shape_cast %122 : vector<24x576xf32> to vector<1x24x576xf32>
    tpu.vector_store %arg9[%c3_91, %c0_92, %c0_93], %125 {strides = array<i32>} : memref<9x24x576xf32, #tpu.memory_space<vmem>>, vector<1x24x576xf32>,
    %cst_94 = arith.constant 0.000000e+00 : f32
    %126 = vector.broadcast %cst_94 : f32 to vector<24x576xf32>
    %127 = arith.subf %126, %122 : vector<24x576xf32>
    %128 = math.exp %127 : vector<24x576xf32>
    %cst_95 = arith.constant 1.000000e+00 : f32
    %129 = vector.broadcast %cst_95 : f32 to vector<24x576xf32>
    %130 = arith.addf %129, %128 : vector<24x576xf32>
    %131 = tpu.reciprocal %130 {approx = true} : vector<24x576xf32> -> vector<24x576xf32>
    %132 = arith.mulf %122, %131 : vector<24x576xf32>
    %c3_96 = arith.constant 3 : index
    %c0_97 = arith.constant 0 : index
    %c0_98 = arith.constant 0 : index
    %133 = vector.load %arg10[%c3_96, %c0_97, %c0_98] : memref<9x24x576xf32, #tpu.memory_space<vmem>>, vector<1x24x576xf32>
    %134 = vector.shape_cast %133 : vector<1x24x576xf32> to vector<24x576xf32>
    %135 = vector.shape_cast %132 : vector<24x576xf32> to vector<1x24x576xf32>
    tpu.vector_store %arg10[%c3_96, %c0_97, %c0_98], %135 {strides = array<i32>} : memref<9x24x576xf32, #tpu.memory_space<vmem>>, vector<1x24x576xf32>,
    %c6_99 = arith.constant 6 : index
    %c0_100 = arith.constant 0 : index
    %c0_101 = arith.constant 0 : index
    %136 = vector.load %arg5[%c6_99, %c0_100, %c0_101] : memref<15x144x576xf32, #tpu.memory_space<vmem>>, vector<1x144x576xf32>
    %137 = vector.shape_cast %136 : vector<1x144x576xf32> to vector<144x576xf32>
    %cst_102 = arith.constant dense<0.000000e+00> : vector<24x576xf32>
    %138 = tpu.matmul %56, %137, %cst_102 {dimension_numbers = #tpu.dot_dimension_numbers<[1], [0], [0], [1], [0, 0, 1, 1], [], []>} : vector<24x144xf32>, vector<144x576xf32>, vector<24x576xf32> -> vector<24x576xf32>
    %139 = arith.addf %63, %138 : vector<24x576xf32>
    %c9 = arith.constant 9 : index
    %c0_103 = arith.constant 0 : index
    %c0_104 = arith.constant 0 : index
    %140 = vector.load %arg5[%c9, %c0_103, %c0_104] : memref<15x144x576xf32, #tpu.memory_space<vmem>>, vector<1x144x576xf32>
    %141 = vector.shape_cast %140 : vector<1x144x576xf32> to vector<144x576xf32>
    %cst_105 = arith.constant dense<0.000000e+00> : vector<24x576xf32>
    %142 = tpu.matmul %60, %141, %cst_105 {dimension_numbers = #tpu.dot_dimension_numbers<[1], [0], [0], [1], [0, 0, 1, 1], [], []>} : vector<24x144xf32>, vector<144x576xf32>, vector<24x576xf32> -> vector<24x576xf32>
    %143 = arith.addf %139, %142 : vector<24x576xf32>
    %c4_106 = arith.constant 4 : index
    %c0_107 = arith.constant 0 : index
    %c0_108 = arith.constant 0 : index
    %144 = vector.load %arg9[%c4_106, %c0_107, %c0_108] : memref<9x24x576xf32, #tpu.memory_space<vmem>>, vector<1x24x576xf32>
    %145 = vector.shape_cast %144 : vector<1x24x576xf32> to vector<24x576xf32>
    %146 = vector.shape_cast %143 : vector<24x576xf32> to vector<1x24x576xf32>
    tpu.vector_store %arg9[%c4_106, %c0_107, %c0_108], %146 {strides = array<i32>} : memref<9x24x576xf32, #tpu.memory_space<vmem>>, vector<1x24x576xf32>,
    %cst_109 = arith.constant 0.000000e+00 : f32
    %147 = vector.broadcast %cst_109 : f32 to vector<24x576xf32>
    %148 = arith.subf %147, %143 : vector<24x576xf32>
    %149 = math.exp %148 : vector<24x576xf32>
    %cst_110 = arith.constant 1.000000e+00 : f32
    %150 = vector.broadcast %cst_110 : f32 to vector<24x576xf32>
    %151 = arith.addf %150, %149 : vector<24x576xf32>
    %152 = tpu.reciprocal %151 {approx = true} : vector<24x576xf32> -> vector<24x576xf32>
    %153 = arith.mulf %143, %152 : vector<24x576xf32>
    %c4_111 = arith.constant 4 : index
    %c0_112 = arith.constant 0 : index
    %c0_113 = arith.constant 0 : index
    %154 = vector.load %arg10[%c4_111, %c0_112, %c0_113] : memref<9x24x576xf32, #tpu.memory_space<vmem>>, vector<1x24x576xf32>
    %155 = vector.shape_cast %154 : vector<1x24x576xf32> to vector<24x576xf32>
    %156 = vector.shape_cast %153 : vector<24x576xf32> to vector<1x24x576xf32>
    tpu.vector_store %arg10[%c4_111, %c0_112, %c0_113], %156 {strides = array<i32>} : memref<9x24x576xf32, #tpu.memory_space<vmem>>, vector<1x24x576xf32>,
    %c11 = arith.constant 11 : index
    %c0_114 = arith.constant 0 : index
    %c0_115 = arith.constant 0 : index
    %157 = vector.load %arg5[%c11, %c0_114, %c0_115] : memref<15x144x576xf32, #tpu.memory_space<vmem>>, vector<1x144x576xf32>
    %158 = vector.shape_cast %157 : vector<1x144x576xf32> to vector<144x576xf32>
    %cst_116 = arith.constant dense<0.000000e+00> : vector<24x576xf32>
    %159 = tpu.matmul %56, %158, %cst_116 {dimension_numbers = #tpu.dot_dimension_numbers<[1], [0], [0], [1], [0, 0, 1, 1], [], []>} : vector<24x144xf32>, vector<144x576xf32>, vector<24x576xf32> -> vector<24x576xf32>
    %160 = arith.addf %63, %159 : vector<24x576xf32>
    %c14 = arith.constant 14 : index
    %c0_117 = arith.constant 0 : index
    %c0_118 = arith.constant 0 : index
    %161 = vector.load %arg5[%c14, %c0_117, %c0_118] : memref<15x144x576xf32, #tpu.memory_space<vmem>>, vector<1x144x576xf32>
    %162 = vector.shape_cast %161 : vector<1x144x576xf32> to vector<144x576xf32>
    %cst_119 = arith.constant dense<0.000000e+00> : vector<24x576xf32>
    %163 = tpu.matmul %60, %162, %cst_119 {dimension_numbers = #tpu.dot_dimension_numbers<[1], [0], [0], [1], [0, 0, 1, 1], [], []>} : vector<24x144xf32>, vector<144x576xf32>, vector<24x576xf32> -> vector<24x576xf32>
    %164 = arith.addf %160, %163 : vector<24x576xf32>
    %c5_120 = arith.constant 5 : index
    %c0_121 = arith.constant 0 : index
    %c0_122 = arith.constant 0 : index
    %165 = vector.load %arg9[%c5_120, %c0_121, %c0_122] : memref<9x24x576xf32, #tpu.memory_space<vmem>>, vector<1x24x576xf32>
    %166 = vector.shape_cast %165 : vector<1x24x576xf32> to vector<24x576xf32>
    %167 = vector.shape_cast %164 : vector<24x576xf32> to vector<1x24x576xf32>
    tpu.vector_store %arg9[%c5_120, %c0_121, %c0_122], %167 {strides = array<i32>} : memref<9x24x576xf32, #tpu.memory_space<vmem>>, vector<1x24x576xf32>,
    %cst_123 = arith.constant 0.000000e+00 : f32
    %168 = vector.broadcast %cst_123 : f32 to vector<24x576xf32>
    %169 = arith.subf %168, %164 : vector<24x576xf32>
    %170 = math.exp %169 : vector<24x576xf32>
    %cst_124 = arith.constant 1.000000e+00 : f32
    %171 = vector.broadcast %cst_124 : f32 to vector<24x576xf32>
    %172 = arith.addf %171, %170 : vector<24x576xf32>
    %173 = tpu.reciprocal %172 {approx = true} : vector<24x576xf32> -> vector<24x576xf32>
    %174 = arith.mulf %164, %173 : vector<24x576xf32>
    %c5_125 = arith.constant 5 : index
    %c0_126 = arith.constant 0 : index
    %c0_127 = arith.constant 0 : index
    %175 = vector.load %arg10[%c5_125, %c0_126, %c0_127] : memref<9x24x576xf32, #tpu.memory_space<vmem>>, vector<1x24x576xf32>
    %176 = vector.shape_cast %175 : vector<1x24x576xf32> to vector<24x576xf32>
    %177 = vector.shape_cast %174 : vector<24x576xf32> to vector<1x24x576xf32>
    tpu.vector_store %arg10[%c5_125, %c0_126, %c0_127], %177 {strides = array<i32>} : memref<9x24x576xf32, #tpu.memory_space<vmem>>, vector<1x24x576xf32>,
    %c0_128 = arith.constant 0 : index
    %c0_129 = arith.constant 0 : index
    %c0_130 = arith.constant 0 : index
    %178 = vector.load %arg5[%c0_128, %c0_129, %c0_130] : memref<15x144x576xf32, #tpu.memory_space<vmem>>, vector<1x144x576xf32>
    %179 = vector.shape_cast %178 : vector<1x144x576xf32> to vector<144x576xf32>
    %cst_131 = arith.constant dense<0.000000e+00> : vector<24x576xf32>
    %180 = tpu.matmul %56, %179, %cst_131 {dimension_numbers = #tpu.dot_dimension_numbers<[1], [0], [0], [1], [0, 0, 1, 1], [], []>} : vector<24x144xf32>, vector<144x576xf32>, vector<24x576xf32> -> vector<24x576xf32>
    %181 = arith.addf %63, %180 : vector<24x576xf32>
    %c3_132 = arith.constant 3 : index
    %c0_133 = arith.constant 0 : index
    %c0_134 = arith.constant 0 : index
    %182 = vector.load %arg5[%c3_132, %c0_133, %c0_134] : memref<15x144x576xf32, #tpu.memory_space<vmem>>, vector<1x144x576xf32>
    %183 = vector.shape_cast %182 : vector<1x144x576xf32> to vector<144x576xf32>
    %cst_135 = arith.constant dense<0.000000e+00> : vector<24x576xf32>
    %184 = tpu.matmul %60, %183, %cst_135 {dimension_numbers = #tpu.dot_dimension_numbers<[1], [0], [0], [1], [0, 0, 1, 1], [], []>} : vector<24x144xf32>, vector<144x576xf32>, vector<24x576xf32> -> vector<24x576xf32>
    %185 = arith.addf %181, %184 : vector<24x576xf32>
    %c6_136 = arith.constant 6 : index
    %c0_137 = arith.constant 0 : index
    %c0_138 = arith.constant 0 : index
    %186 = vector.load %arg9[%c6_136, %c0_137, %c0_138] : memref<9x24x576xf32, #tpu.memory_space<vmem>>, vector<1x24x576xf32>
    %187 = vector.shape_cast %186 : vector<1x24x576xf32> to vector<24x576xf32>
    %188 = vector.shape_cast %185 : vector<24x576xf32> to vector<1x24x576xf32>
    tpu.vector_store %arg9[%c6_136, %c0_137, %c0_138], %188 {strides = array<i32>} : memref<9x24x576xf32, #tpu.memory_space<vmem>>, vector<1x24x576xf32>,
    %cst_139 = arith.constant 0.000000e+00 : f32
    %189 = vector.broadcast %cst_139 : f32 to vector<24x576xf32>
    %190 = arith.subf %189, %185 : vector<24x576xf32>
    %191 = math.exp %190 : vector<24x576xf32>
    %cst_140 = arith.constant 1.000000e+00 : f32
    %192 = vector.broadcast %cst_140 : f32 to vector<24x576xf32>
    %193 = arith.addf %192, %191 : vector<24x576xf32>
    %194 = tpu.reciprocal %193 {approx = true} : vector<24x576xf32> -> vector<24x576xf32>
    %195 = arith.mulf %185, %194 : vector<24x576xf32>
    %c6_141 = arith.constant 6 : index
    %c0_142 = arith.constant 0 : index
    %c0_143 = arith.constant 0 : index
    %196 = vector.load %arg10[%c6_141, %c0_142, %c0_143] : memref<9x24x576xf32, #tpu.memory_space<vmem>>, vector<1x24x576xf32>
    %197 = vector.shape_cast %196 : vector<1x24x576xf32> to vector<24x576xf32>
    %198 = vector.shape_cast %195 : vector<24x576xf32> to vector<1x24x576xf32>
    tpu.vector_store %arg10[%c6_141, %c0_142, %c0_143], %198 {strides = array<i32>} : memref<9x24x576xf32, #tpu.memory_space<vmem>>, vector<1x24x576xf32>,
    %c5_144 = arith.constant 5 : index
    %c0_145 = arith.constant 0 : index
    %c0_146 = arith.constant 0 : index
    %199 = vector.load %arg5[%c5_144, %c0_145, %c0_146] : memref<15x144x576xf32, #tpu.memory_space<vmem>>, vector<1x144x576xf32>
    %200 = vector.shape_cast %199 : vector<1x144x576xf32> to vector<144x576xf32>
    %cst_147 = arith.constant dense<0.000000e+00> : vector<24x576xf32>
    %201 = tpu.matmul %56, %200, %cst_147 {dimension_numbers = #tpu.dot_dimension_numbers<[1], [0], [0], [1], [0, 0, 1, 1], [], []>} : vector<24x144xf32>, vector<144x576xf32>, vector<24x576xf32> -> vector<24x576xf32>
    %202 = arith.addf %63, %201 : vector<24x576xf32>
    %c8 = arith.constant 8 : index
    %c0_148 = arith.constant 0 : index
    %c0_149 = arith.constant 0 : index
    %203 = vector.load %arg5[%c8, %c0_148, %c0_149] : memref<15x144x576xf32, #tpu.memory_space<vmem>>, vector<1x144x576xf32>
    %204 = vector.shape_cast %203 : vector<1x144x576xf32> to vector<144x576xf32>
    %cst_150 = arith.constant dense<0.000000e+00> : vector<24x576xf32>
    %205 = tpu.matmul %60, %204, %cst_150 {dimension_numbers = #tpu.dot_dimension_numbers<[1], [0], [0], [1], [0, 0, 1, 1], [], []>} : vector<24x144xf32>, vector<144x576xf32>, vector<24x576xf32> -> vector<24x576xf32>
    %206 = arith.addf %202, %205 : vector<24x576xf32>
    %c7_151 = arith.constant 7 : index
    %c0_152 = arith.constant 0 : index
    %c0_153 = arith.constant 0 : index
    %207 = vector.load %arg9[%c7_151, %c0_152, %c0_153] : memref<9x24x576xf32, #tpu.memory_space<vmem>>, vector<1x24x576xf32>
    %208 = vector.shape_cast %207 : vector<1x24x576xf32> to vector<24x576xf32>
    %209 = vector.shape_cast %206 : vector<24x576xf32> to vector<1x24x576xf32>
    tpu.vector_store %arg9[%c7_151, %c0_152, %c0_153], %209 {strides = array<i32>} : memref<9x24x576xf32, #tpu.memory_space<vmem>>, vector<1x24x576xf32>,
    %cst_154 = arith.constant 0.000000e+00 : f32
    %210 = vector.broadcast %cst_154 : f32 to vector<24x576xf32>
    %211 = arith.subf %210, %206 : vector<24x576xf32>
    %212 = math.exp %211 : vector<24x576xf32>
    %cst_155 = arith.constant 1.000000e+00 : f32
    %213 = vector.broadcast %cst_155 : f32 to vector<24x576xf32>
    %214 = arith.addf %213, %212 : vector<24x576xf32>
    %215 = tpu.reciprocal %214 {approx = true} : vector<24x576xf32> -> vector<24x576xf32>
    %216 = arith.mulf %206, %215 : vector<24x576xf32>
    %c7_156 = arith.constant 7 : index
    %c0_157 = arith.constant 0 : index
    %c0_158 = arith.constant 0 : index
    %217 = vector.load %arg10[%c7_156, %c0_157, %c0_158] : memref<9x24x576xf32, #tpu.memory_space<vmem>>, vector<1x24x576xf32>
    %218 = vector.shape_cast %217 : vector<1x24x576xf32> to vector<24x576xf32>
    %219 = vector.shape_cast %216 : vector<24x576xf32> to vector<1x24x576xf32>
    tpu.vector_store %arg10[%c7_156, %c0_157, %c0_158], %219 {strides = array<i32>} : memref<9x24x576xf32, #tpu.memory_space<vmem>>, vector<1x24x576xf32>,
    %c10 = arith.constant 10 : index
    %c0_159 = arith.constant 0 : index
    %c0_160 = arith.constant 0 : index
    %220 = vector.load %arg5[%c10, %c0_159, %c0_160] : memref<15x144x576xf32, #tpu.memory_space<vmem>>, vector<1x144x576xf32>
    %221 = vector.shape_cast %220 : vector<1x144x576xf32> to vector<144x576xf32>
    %cst_161 = arith.constant dense<0.000000e+00> : vector<24x576xf32>
    %222 = tpu.matmul %56, %221, %cst_161 {dimension_numbers = #tpu.dot_dimension_numbers<[1], [0], [0], [1], [0, 0, 1, 1], [], []>} : vector<24x144xf32>, vector<144x576xf32>, vector<24x576xf32> -> vector<24x576xf32>
    %223 = arith.addf %63, %222 : vector<24x576xf32>
    %c13 = arith.constant 13 : index
    %c0_162 = arith.constant 0 : index
    %c0_163 = arith.constant 0 : index
    %224 = vector.load %arg5[%c13, %c0_162, %c0_163] : memref<15x144x576xf32, #tpu.memory_space<vmem>>, vector<1x144x576xf32>
    %225 = vector.shape_cast %224 : vector<1x144x576xf32> to vector<144x576xf32>
    %cst_164 = arith.constant dense<0.000000e+00> : vector<24x576xf32>
    %226 = tpu.matmul %60, %225, %cst_164 {dimension_numbers = #tpu.dot_dimension_numbers<[1], [0], [0], [1], [0, 0, 1, 1], [], []>} : vector<24x144xf32>, vector<144x576xf32>, vector<24x576xf32> -> vector<24x576xf32>
    %227 = arith.addf %223, %226 : vector<24x576xf32>
    %c8_165 = arith.constant 8 : index
    %c0_166 = arith.constant 0 : index
    %c0_167 = arith.constant 0 : index
    %228 = vector.load %arg9[%c8_165, %c0_166, %c0_167] : memref<9x24x576xf32, #tpu.memory_space<vmem>>, vector<1x24x576xf32>
    %229 = vector.shape_cast %228 : vector<1x24x576xf32> to vector<24x576xf32>
    %230 = vector.shape_cast %227 : vector<24x576xf32> to vector<1x24x576xf32>
    tpu.vector_store %arg9[%c8_165, %c0_166, %c0_167], %230 {strides = array<i32>} : memref<9x24x576xf32, #tpu.memory_space<vmem>>, vector<1x24x576xf32>,
    %cst_168 = arith.constant 0.000000e+00 : f32
    %231 = vector.broadcast %cst_168 : f32 to vector<24x576xf32>
    %232 = arith.subf %231, %227 : vector<24x576xf32>
    %233 = math.exp %232 : vector<24x576xf32>
    %cst_169 = arith.constant 1.000000e+00 : f32
    %234 = vector.broadcast %cst_169 : f32 to vector<24x576xf32>
    %235 = arith.addf %234, %233 : vector<24x576xf32>
    %236 = tpu.reciprocal %235 {approx = true} : vector<24x576xf32> -> vector<24x576xf32>
    %237 = arith.mulf %227, %236 : vector<24x576xf32>
    %c8_170 = arith.constant 8 : index
    %c0_171 = arith.constant 0 : index
    %c0_172 = arith.constant 0 : index
    %238 = vector.load %arg10[%c8_170, %c0_171, %c0_172] : memref<9x24x576xf32, #tpu.memory_space<vmem>>, vector<1x24x576xf32>
    %239 = vector.shape_cast %238 : vector<1x24x576xf32> to vector<24x576xf32>
    %240 = vector.shape_cast %237 : vector<24x576xf32> to vector<1x24x576xf32>
    tpu.vector_store %arg10[%c8_170, %c0_171, %c0_172], %240 {strides = array<i32>} : memref<9x24x576xf32, #tpu.memory_space<vmem>>, vector<1x24x576xf32>,
    return
  }
}

</mosaic_0001>

<llo_original>
// kernel: model_forward.1
$region0: #{model_forward.1}
  #allocation0 [shape = 'u32[]', space=smem, size = 0x4, offset = 0x4, fixed_abs, tag = 'smem constant byte address 0x4 - core index']
  #allocation1 [shape = 'u32[72,128]{1,0:T(1,128)}', space=vmem, size = 0x9000, scoped, tag = 'internal scratch']
  %s0 = inlined_call_operand.vmem [shape: f32[32,224], index: 0, kind: input, shape index: {}]
  %s1 = inlined_call_operand.vmem [shape: f32[3,224,240], index: 1, kind: input, shape index: {}]
  %s2 = inlined_call_operand.vmem [shape: f32[1,240], index: 2, kind: input, shape index: {}]
  %s3 = inlined_call_operand.vmem [shape: f32[7,240,144], index: 3, kind: input, shape index: {}]
  %s4 = inlined_call_operand.vmem [shape: f32[1,144], index: 4, kind: input, shape index: {}]
  %s5 = inlined_call_operand.hbm [shape: f32[15,144,576], index: 5, kind: input, shape index: {}]
  %s6 = inlined_call_operand.vmem [shape: f32[1,576], index: 6, kind: input, shape index: {}]
  %s7 = inlined_call_operand.vmem [shape: f32[30,240], index: 7, kind: output, shape index: {0}]
  %s8 = inlined_call_operand.vmem [shape: f32[24,144], index: 8, kind: output, shape index: {1}]
  %s9 = inlined_call_operand.vmem [shape: f32[9,24,576], index: 9, kind: output, shape index: {2}]
  %s10 = inlined_call_operand.vmem [shape: f32[9,24,576], index: 10, kind: output, shape index: {3}]
  %11 = xla_tuple %s7, %s8, %s9, %s10
  %s12 = sld [smem:[#allocation0]]
  $region66: #{model_forward.1} parent=0
    _
  %s14 = ssub.s32 1, %s12
  %s15 = scalar_select 0, %s14, %s12
  $region1: #{model_forward.1} parent=0
    #allocation2 [shape = 'u8[5529600]{0}', space=vmem, size = 0x546000, scoped, tag = 'input window, operand 5, single buffered']
    #allocation3 [shape = 's32[1]{0}', space=sflag, size = 0x4, scoped, tag = 'scoped memory for model_forward.1']
    %16 = vsyncpa [#allocation3], 0
    // Predicated region
    $region2: #{model_forward.1} parent=1 // pred_check
      _
    $region3: #{model_forward.1} parent=1 // pred_check_branch
      %18 = sbr.rel (0) target = $region5
    $region4: #{model_forward.1} parent=1 // pred_region
      _
    $region5: #{model_forward.1} parent=1 // pred_fallthru
      _
    // Predicated region
    $region6: #{model_forward.1} parent=1 // pred_check
      _
    $region7: #{model_forward.1} parent=1 // pred_check_branch
      %20 = sbr.rel (0) target = $region9
    $region8: #{model_forward.1} parent=1 // pred_region
      _
    $region9: #{model_forward.1} parent=1 // pred_fallthru
      _
    // Predicated region
    $region10: #{model_forward.1} parent=1 // pred_check
      _
    $region11: #{model_forward.1} parent=1 // pred_check_branch
      %22 = sbr.rel (0) target = $region13
    $region12: #{model_forward.1} parent=1 // pred_region
      _
    $region13: #{model_forward.1} parent=1 // pred_fallthru
      _
    // Predicated region
    $region14: #{model_forward.1} parent=1 // pred_check
      _
    $region15: #{model_forward.1} parent=1 // pred_check_branch
      %24 = sbr.rel (0) target = $region17
    $region16: #{model_forward.1} parent=1 // pred_region
      _
    $region17: #{model_forward.1} parent=1 // pred_fallthru
      _
    // Predicated region
    $region18: #{model_forward.1} parent=1 // pred_check
      _
    $region19: #{model_forward.1} parent=1 // pred_check_branch
      %26 = sbr.rel (0) target = $region21
    $region20: #{model_forward.1} parent=1 // pred_region
      _
    $region21: #{model_forward.1} parent=1 // pred_fallthru
      _
    // Predicated region
    $region22: #{model_forward.1} parent=1 // pred_check
      _
    $region23: #{model_forward.1} parent=1 // pred_check_branch
      %28 = sbr.rel (0) target = $region25
    $region24: #{model_forward.1} parent=1 // pred_region
      %30 = vsyncadd [#allocation3], 0
      %s31 = sshll.u32 %s5, 4
      %s32 = int_to_ptr.hbm [resolvable:$true] %s31
      %s33 = sshll.u32 [#allocation2], 4
      %s34 = int_to_ptr.vmem [resolvable:$true] %s33
      %39 = dma.hbm_to_vmem [thread:$0]  %s32, 172800, %s34, [#allocation3], 640, 640, 40
    $region25: #{model_forward.1} parent=1 // pred_fallthru
      _
    // Predicated region
    $region26: #{model_forward.1} parent=1 // pred_check
      _
    $region27: #{model_forward.1} parent=1 // pred_check_branch
      %41 = sbr.rel (0) target = $region29
    $region28: #{model_forward.1} parent=1 // pred_region
      _
    $region29: #{model_forward.1} parent=1 // pred_fallthru
      _
    // Predicated region
    $region30: #{model_forward.1} parent=1 // pred_check
      _
    $region31: #{model_forward.1} parent=1 // pred_check_branch
      %43 = sbr.rel (0) target = $region33
    $region32: #{model_forward.1} parent=1 // pred_region
      %45 = dma.done [#allocation3], 172800
    $region33: #{model_forward.1} parent=1 // pred_fallthru
      _
    %v46 = vld [vmem:[%s2] sm:$0x3]
    %v48 = vperm.slane %v46, 0
    %v49 = vperm.slane %v46, 1
    %v52 = vld [vmem:[%s0] sm:$0xff]
    %v53 = vld [vmem:[%s0 + $0x8] sm:$0xff]
    %v54 = vld [vmem:[%s0 + $0x10] sm:$0xff]
    %v55 = vld [vmem:[%s0 + $0x18] sm:$0xff]
    %v56 = vld [vmem:[%s0 + $0x20] sm:$0xff]
    %v57 = vld [vmem:[%s0 + $0x28] sm:$0xff]
    %v58 = vld [vmem:[%s0 + $0x30] sm:$0x3f]
    %v59 = vld [vmem:[%s0 + $0x38] sm:$0x3f]
    %v60 = vld [vmem:[%s1] sm:$0xff]
    %v61 = vld [vmem:[%s1 + $0x8] sm:$0xff]
    %v62 = vld [vmem:[%s1 + $0x10] sm:$0xff]
    %v63 = vld [vmem:[%s1 + $0x18] sm:$0xff]
    %v64 = vld [vmem:[%s1 + $0x20] sm:$0xff]
    %v65 = vld [vmem:[%s1 + $0x28] sm:$0xff]
    %v66 = vld [vmem:[%s1 + $0x30] sm:$0xff]
    %v67 = vld [vmem:[%s1 + $0x38] sm:$0xff]
    %v68 = vld [vmem:[%s1 + $0x40] sm:$0xff]
    %v69 = vld [vmem:[%s1 + $0x48] sm:$0xff]
    %v70 = vld [vmem:[%s1 + $0x50] sm:$0xff]
    %v71 = vld [vmem:[%s1 + $0x58] sm:$0xff]
    %v72 = vld [vmem:[%s1 + $0x60] sm:$0xff]
    %v73 = vld [vmem:[%s1 + $0x68] sm:$0xff]
    %v74 = vld [vmem:[%s1 + $0x70] sm:$0xff]
    %v75 = vld [vmem:[%s1 + $0x78] sm:$0xff]
    %v76 = vld [vmem:[%s1 + $0x80] sm:$0xff]
    %v77 = vld [vmem:[%s1 + $0x88] sm:$0xff]
    %v78 = vld [vmem:[%s1 + $0x90] sm:$0xff]
    %v79 = vld [vmem:[%s1 + $0x98] sm:$0xff]
    %v80 = vld [vmem:[%s1 + $0xa0] sm:$0xff]
    %v81 = vld [vmem:[%s1 + $0xa8] sm:$0xff]
    %v82 = vld [vmem:[%s1 + $0xb0] sm:$0xff]
    %v83 = vld [vmem:[%s1 + $0xb8] sm:$0xff]
    %v84 = vld [vmem:[%s1 + $0xc0] sm:$0xff]
    %v85 = vld [vmem:[%s1 + $0xc8] sm:$0xff]
    %v86 = vld [vmem:[%s1 + $0xd0] sm:$0xff]
    %v87 = vld [vmem:[%s1 + $0xd8] sm:$0xff]
    %v88 = vld [vmem:[%s1 + $0xe0] sm:$0xff]
    %v89 = vld [vmem:[%s1 + $0xe8] sm:$0xff]
    %v90 = vld [vmem:[%s1 + $0xf0] sm:$0xff]
    %v91 = vld [vmem:[%s1 + $0xf8] sm:$0xff]
    %v92 = vld [vmem:[%s1 + $0x100] sm:$0xff]
    %v93 = vld [vmem:[%s1 + $0x108] sm:$0xff]
    %v94 = vld [vmem:[%s1 + $0x110] sm:$0xff]
    %v95 = vld [vmem:[%s1 + $0x118] sm:$0xff]
    %v96 = vld [vmem:[%s1 + $0x120] sm:$0xff]
    %v97 = vld [vmem:[%s1 + $0x128] sm:$0xff]
    %v98 = vld [vmem:[%s1 + $0x130] sm:$0xff]
    %v99 = vld [vmem:[%s1 + $0x138] sm:$0xff]
    %v100 = vld [vmem:[%s1 + $0x140] sm:$0xff]
    %v101 = vld [vmem:[%s1 + $0x148] sm:$0xff]
    %v102 = vld [vmem:[%s1 + $0x150] sm:$0xff]
    %v103 = vld [vmem:[%s1 + $0x158] sm:$0xff]
    %v104 = vld [vmem:[%s1 + $0x160] sm:$0xff]
    %v105 = vld [vmem:[%s1 + $0x168] sm:$0xff]
    %v106 = vld [vmem:[%s1 + $0x170] sm:$0xff]
    %v107 = vld [vmem:[%s1 + $0x178] sm:$0xff]
    %v108 = vld [vmem:[%s1 + $0x180] sm:$0xff]
    %v109 = vld [vmem:[%s1 + $0x188] sm:$0xff]
    %v110 = vld [vmem:[%s1 + $0x190] sm:$0xff]
    %v111 = vld [vmem:[%s1 + $0x198] sm:$0xff]
    %v112 = vld [vmem:[%s1 + $0x1a0] sm:$0xff]
    %v113 = vld [vmem:[%s1 + $0x1a8] sm:$0xff]
    %v114 = vld [vmem:[%s1 + $0x1b0] sm:$0xff]
    %v115 = vld [vmem:[%s1 + $0x1b8] sm:$0xff]
    %vm116 = vcmask 785408
    %v118 = vsel %vm116, %v53, 0
    %v121 = vsel %vm116, %v55, 0
    %v124 = vsel %vm116, %v57, 0
    %v127 = vsel %vm116, %v59, 0
    %129 = vmatpush.msra.mxu0 %v90
    %130 = vmatpush.msra.mxu0 %v88
    %131 = vmatpush.msra.mxu0 %v86
    %132 = vmatpush.msra.mxu0 %v84
    %133 = vmatpush.msra.mxu0 %v82
    %134 = vmatpush.msra.mxu0 %v80
    %135 = vmatpush.msra.mxu0 %v78
    %136 = vmatpush.msra.mxu0 %v76
    %137 = vmatpush.msra.mxu0 %v74
    %138 = vmatpush.msra.mxu0 %v72
    %139 = vmatpush.msra.mxu0 %v70
    %140 = vmatpush.msra.mxu0 %v68
    %141 = vmatpush.msra.mxu0 %v66
    %142 = vmatpush.msra.mxu0 %v64
    %143 = vmatpush.msra.mxu0 %v62
    %144 = vmatpush.msra.mxu0 %v60
    %145 = vmatmul.f32.gmra.mxu0 %v52
    %v146 = vpop.f32.mrf.mxu0
    %v147 = vadd.f32 0.0, %v146
    %148 = vmatmul.f32.gmra.mxu0 %v54
    %v149 = vpop.f32.mrf.mxu0
    %v150 = vadd.f32 0.0, %v149
    %151 = vmatmul.f32.gmra.mxu0 %v56
    %v152 = vpop.f32.mrf.mxu0
    %v153 = vadd.f32 0.0, %v152
    %154 = vmatmul.f32.gmra.mxu0 %v58
    %v155 = vpop.f32.mrf.mxu0
    %v156 = vadd.f32 0.0, %v155
    %157 = vdwg.mxu0
    %158 = vmatpush.msra.mxu0 0.0
    %159 = vmatpush.msra.mxu0 0.0
    %160 = vmatpush.msra.mxu0 0.0
    %161 = vmatpush.msra.mxu0 0.0
    %162 = vmatpush.msra.mxu0 %v114
    %163 = vmatpush.msra.mxu0 %v112
    %164 = vmatpush.msra.mxu0 %v110
    %165 = vmatpush.msra.mxu0 %v108
    %166 = vmatpush.msra.mxu0 %v106
    %167 = vmatpush.msra.mxu0 %v104
    %168 = vmatpush.msra.mxu0 %v102
    %169 = vmatpush.msra.mxu0 %v100
    %170 = vmatpush.msra.mxu0 %v98
    %171 = vmatpush.msra.mxu0 %v96
    %172 = vmatpush.msra.mxu0 %v94
    %173 = vmatpush.msra.mxu0 %v92
    %174 = vmatmul.f32.gmra.mxu0 %v118
    %v175 = vpop.f32.mrf.mxu0
    %v176 = vadd.f32 %v147, %v175
    %177 = vmatmul.f32.gmra.mxu0 %v121
    %v178 = vpop.f32.mrf.mxu0
    %v179 = vadd.f32 %v150, %v178
    %180 = vmatmul.f32.gmra.mxu0 %v124
    %v181 = vpop.f32.mrf.mxu0
    %v182 = vadd.f32 %v153, %v181
    %183 = vmatmul.f32.gmra.mxu0 %v127
    %v184 = vpop.f32.mrf.mxu0
    %v185 = vadd.f32 %v156, %v184
    %186 = vdwg.mxu0
    %187 = vmatpush.msra.mxu0 %v91
    %188 = vmatpush.msra.mxu0 %v89
    %189 = vmatpush.msra.mxu0 %v87
    %190 = vmatpush.msra.mxu0 %v85
    %191 = vmatpush.msra.mxu0 %v83
    %192 = vmatpush.msra.mxu0 %v81
    %193 = vmatpush.msra.mxu0 %v79
    %194 = vmatpush.msra.mxu0 %v77
    %195 = vmatpush.msra.mxu0 %v75
    %196 = vmatpush.msra.mxu0 %v73
    %197 = vmatpush.msra.mxu0 %v71
    %198 = vmatpush.msra.mxu0 %v69
    %199 = vmatpush.msra.mxu0 %v67
    %200 = vmatpush.msra.mxu0 %v65
    %201 = vmatpush.msra.mxu0 %v63
    %202 = vmatpush.msra.mxu0 %v61
    %203 = vmatmul.f32.gmra.mxu0 %v52
    %v204 = vpop.f32.mrf.mxu0
    %v205 = vadd.f32 0.0, %v204
    %206 = vmatmul.f32.gmra.mxu0 %v54
    %v207 = vpop.f32.mrf.mxu0
    %v208 = vadd.f32 0.0, %v207
    %209 = vmatmul.f32.gmra.mxu0 %v56
    %v210 = vpop.f32.mrf.mxu0
    %v211 = vadd.f32 0.0, %v210
    %212 = vmatmul.f32.gmra.mxu0 %v58
    %v213 = vpop.f32.mrf.mxu0
    %v214 = vadd.f32 0.0, %v213
    %215 = vdwg.mxu0
    %216 = vmatpush.msra.mxu0 0.0
    %217 = vmatpush.msra.mxu0 0.0
    %218 = vmatpush.msra.mxu0 0.0
    %219 = vmatpush.msra.mxu0 0.0
    %220 = vmatpush.msra.mxu0 %v115
    %221 = vmatpush.msra.mxu0 %v113
    %222 = vmatpush.msra.mxu0 %v111
    %223 = vmatpush.msra.mxu0 %v109
    %224 = vmatpush.msra.mxu0 %v107
    %225 = vmatpush.msra.mxu0 %v105
    %226 = vmatpush.msra.mxu0 %v103
    %227 = vmatpush.msra.mxu0 %v101
    %228 = vmatpush.msra.mxu0 %v99
    %229 = vmatpush.msra.mxu0 %v97
    %230 = vmatpush.msra.mxu0 %v95
    %231 = vmatpush.msra.mxu0 %v93
    %232 = vmatmul.f32.gmra.mxu0 %v118
    %v233 = vpop.f32.mrf.mxu0
    %v234 = vadd.f32 %v205, %v233
    %235 = vmatmul.f32.gmra.mxu0 %v121
    %v236 = vpop.f32.mrf.mxu0
    %v237 = vadd.f32 %v208, %v236
    %238 = vmatmul.f32.gmra.mxu0 %v124
    %v239 = vpop.f32.mrf.mxu0
    %v240 = vadd.f32 %v211, %v239
    %241 = vmatmul.f32.gmra.mxu0 %v127
    %v242 = vpop.f32.mrf.mxu0
    %v243 = vadd.f32 %v214, %v242
    %244 = vdwg.mxu0
    %v245 = vadd.f32 %v48, %v176
    %v246 = vadd.f32 %v49, %v234
    %v247 = vadd.f32 %v48, %v179
    %v248 = vadd.f32 %v49, %v237
    %v249 = vadd.f32 %v48, %v182
    %v250 = vadd.f32 %v49, %v240
    %v251 = vadd.f32 %v48, %v185
    %v252 = vadd.f32 %v49, %v243
    %v253 = vld [vmem:[%s0] sm:$0xfe]
    %v254 = vld [vmem:[%s0 + $0x8] sm:$0xfe]
    %v255 = vld [vmem:[%s0 + $0x30] sm:$0x7f]
    %v256 = vld [vmem:[%s0 + $0x38] sm:$0x7f]
    %s257 = scalar_lea.vmem %s1, 448
    %v258 = vld [vmem:[%s257] sm:$0xff]
    %v259 = vld [vmem:[%s257 + $0x8] sm:$0xff]
    %v260 = vld [vmem:[%s257 + $0x10] sm:$0xff]
    %v261 = vld [vmem:[%s257 + $0x18] sm:$0xff]
    %v262 = vld [vmem:[%s257 + $0x20] sm:$0xff]
    %v263 = vld [vmem:[%s257 + $0x28] sm:$0xff]
    %v264 = vld [vmem:[%s257 + $0x30] sm:$0xff]
    %v265 = vld [vmem:[%s257 + $0x38] sm:$0xff]
    %v266 = vld [vmem:[%s257 + $0x40] sm:$0xff]
    %v267 = vld [vmem:[%s257 + $0x48] sm:$0xff]
    %v268 = vld [vmem:[%s257 + $0x50] sm:$0xff]
    %v269 = vld [vmem:[%s257 + $0x58] sm:$0xff]
    %v270 = vld [vmem:[%s257 + $0x60] sm:$0xff]
    %v271 = vld [vmem:[%s257 + $0x68] sm:$0xff]
    %v272 = vld [vmem:[%s257 + $0x70] sm:$0xff]
    %v273 = vld [vmem:[%s257 + $0x78] sm:$0xff]
    %v274 = vld [vmem:[%s257 + $0x80] sm:$0xff]
    %v275 = vld [vmem:[%s257 + $0x88] sm:$0xff]
    %v276 = vld [vmem:[%s257 + $0x90] sm:$0xff]
    %v277 = vld [vmem:[%s257 + $0x98] sm:$0xff]
    %v278 = vld [vmem:[%s257 + $0xa0] sm:$0xff]
    %v279 = vld [vmem:[%s257 + $0xa8] sm:$0xff]
    %v280 = vld [vmem:[%s257 + $0xb0] sm:$0xff]
    %v281 = vld [vmem:[%s257 + $0xb8] sm:$0xff]
    %v282 = vld [vmem:[%s257 + $0xc0] sm:$0xff]
    %v283 = vld [vmem:[%s257 + $0xc8] sm:$0xff]
    %v284 = vld [vmem:[%s257 + $0xd0] sm:$0xff]
    %v285 = vld [vmem:[%s257 + $0xd8] sm:$0xff]
    %v286 = vld [vmem:[%s257 + $0xe0] sm:$0xff]
    %v287 = vld [vmem:[%s257 + $0xe8] sm:$0xff]
    %v288 = vld [vmem:[%s257 + $0xf0] sm:$0xff]
    %v289 = vld [vmem:[%s257 + $0xf8] sm:$0xff]
    %v290 = vld [vmem:[%s257 + $0x100] sm:$0xff]
    %v291 = vld [vmem:[%s257 + $0x108] sm:$0xff]
    %v292 = vld [vmem:[%s257 + $0x110] sm:$0xff]
    %v293 = vld [vmem:[%s257 + $0x118] sm:$0xff]
    %v294 = vld [vmem:[%s257 + $0x120] sm:$0xff]
    %v295 = vld [vmem:[%s257 + $0x128] sm:$0xff]
    %v296 = vld [vmem:[%s257 + $0x130] sm:$0xff]
    %v297 = vld [vmem:[%s257 + $0x138] sm:$0xff]
    %v298 = vld [vmem:[%s257 + $0x140] sm:$0xff]
    %v299 = vld [vmem:[%s257 + $0x148] sm:$0xff]
    %v300 = vld [vmem:[%s257 + $0x150] sm:$0xff]
    %v301 = vld [vmem:[%s257 + $0x158] sm:$0xff]
    %v302 = vld [vmem:[%s257 + $0x160] sm:$0xff]
    %v303 = vld [vmem:[%s257 + $0x168] sm:$0xff]
    %v304 = vld [vmem:[%s257 + $0x170] sm:$0xff]
    %v305 = vld [vmem:[%s257 + $0x178] sm:$0xff]
    %v306 = vld [vmem:[%s257 + $0x180] sm:$0xff]
    %v307 = vld [vmem:[%s257 + $0x188] sm:$0xff]
    %v308 = vld [vmem:[%s257 + $0x190] sm:$0xff]
    %v309 = vld [vmem:[%s257 + $0x198] sm:$0xff]
    %v310 = vld [vmem:[%s257 + $0x1a0] sm:$0xff]
    %v311 = vld [vmem:[%s257 + $0x1a8] sm:$0xff]
    %v312 = vld [vmem:[%s257 + $0x1b0] sm:$0xff]
    %v313 = vld [vmem:[%s257 + $0x1b8] sm:$0xff]
    %vm320 = vcmask 1046528
    %v321 = vrot.slane %v253, 1
    %v322 = vrot.slane %v54, 1
    %v323 = vsel %vm320, %v321, %v322
    %v324 = vrot.slane %v254, 1
    %v325 = vrot.slane %v55, 1
    %v326 = vsel %vm320, %v324, %v325
    %v327 = vrot.slane %v56, 1
    %v328 = vsel %vm320, %v322, %v327
    %v329 = vrot.slane %v57, 1
    %v330 = vsel %vm320, %v325, %v329
    %v331 = vrot.slane %v255, 1
    %v332 = vsel %vm320, %v327, %v331
    %v333 = vrot.slane %v256, 1
    %v334 = vsel %vm320, %v329, %v333
    %v339 = vsel %vm116, %v326, 0
    %v341 = vsel %vm116, %v330, 0
    %v343 = vsel %vm116, %v334, 0
    %v345 = vsel %vm116, %v333, 0
    %347 = vmatpush.msra.mxu0 %v288
    %348 = vmatpush.msra.mxu0 %v286
    %349 = vmatpush.msra.mxu0 %v284
    %350 = vmatpush.msra.mxu0 %v282
    %351 = vmatpush.msra.mxu0 %v280
    %352 = vmatpush.msra.mxu0 %v278
    %353 = vmatpush.msra.mxu0 %v276
    %354 = vmatpush.msra.mxu0 %v274
    %355 = vmatpush.msra.mxu0 %v272
    %356 = vmatpush.msra.mxu0 %v270
    %357 = vmatpush.msra.mxu0 %v268
    %358 = vmatpush.msra.mxu0 %v266
    %359 = vmatpush.msra.mxu0 %v264
    %360 = vmatpush.msra.mxu0 %v262
    %361 = vmatpush.msra.mxu0 %v260
    %362 = vmatpush.msra.mxu0 %v258
    %363 = vmatmul.f32.gmra.mxu0 %v323
    %v364 = vpop.f32.mrf.mxu0
    %v365 = vadd.f32 0.0, %v364
    %366 = vmatmul.f32.gmra.mxu0 %v328
    %v367 = vpop.f32.mrf.mxu0
    %v368 = vadd.f32 0.0, %v367
    %369 = vmatmul.f32.gmra.mxu0 %v332
    %v370 = vpop.f32.mrf.mxu0
    %v371 = vadd.f32 0.0, %v370
    %372 = vmatmul.f32.gmra.mxu0 %v331
    %v373 = vpop.f32.mrf.mxu0
    %v374 = vadd.f32 0.0, %v373
    %375 = vdwg.mxu0
    %376 = vmatpush.msra.mxu0 0.0
    %377 = vmatpush.msra.mxu0 0.0
    %378 = vmatpush.msra.mxu0 0.0
    %379 = vmatpush.msra.mxu0 0.0
    %380 = vmatpush.msra.mxu0 %v312
    %381 = vmatpush.msra.mxu0 %v310
    %382 = vmatpush.msra.mxu0 %v308
    %383 = vmatpush.msra.mxu0 %v306
    %384 = vmatpush.msra.mxu0 %v304
    %385 = vmatpush.msra.mxu0 %v302
    %386 = vmatpush.msra.mxu0 %v300
    %387 = vmatpush.msra.mxu0 %v298
    %388 = vmatpush.msra.mxu0 %v296
    %389 = vmatpush.msra.mxu0 %v294
    %390 = vmatpush.msra.mxu0 %v292
    %391 = vmatpush.msra.mxu0 %v290
    %392 = vmatmul.f32.gmra.mxu0 %v339
    %v393 = vpop.f32.mrf.mxu0
    %v394 = vadd.f32 %v365, %v393
    %395 = vmatmul.f32.gmra.mxu0 %v341
    %v396 = vpop.f32.mrf.mxu0
    %v397 = vadd.f32 %v368, %v396
    %398 = vmatmul.f32.gmra.mxu0 %v343
    %v399 = vpop.f32.mrf.mxu0
    %v400 = vadd.f32 %v371, %v399
    %401 = vmatmul.f32.gmra.mxu0 %v345
    %v402 = vpop.f32.mrf.mxu0
    %v403 = vadd.f32 %v374, %v402
    %404 = vdwg.mxu0
    %405 = vmatpush.msra.mxu0 %v289
    %406 = vmatpush.msra.mxu0 %v287
    %407 = vmatpush.msra.mxu0 %v285
    %408 = vmatpush.msra.mxu0 %v283
    %409 = vmatpush.msra.mxu0 %v281
    %410 = vmatpush.msra.mxu0 %v279
    %411 = vmatpush.msra.mxu0 %v277
    %412 = vmatpush.msra.mxu0 %v275
    %413 = vmatpush.msra.mxu0 %v273
    %414 = vmatpush.msra.mxu0 %v271
    %415 = vmatpush.msra.mxu0 %v269
    %416 = vmatpush.msra.mxu0 %v267
    %417 = vmatpush.msra.mxu0 %v265
    %418 = vmatpush.msra.mxu0 %v263
    %419 = vmatpush.msra.mxu0 %v261
    %420 = vmatpush.msra.mxu0 %v259
    %421 = vmatmul.f32.gmra.mxu0 %v323
    %v422 = vpop.f32.mrf.mxu0
    %v423 = vadd.f32 0.0, %v422
    %424 = vmatmul.f32.gmra.mxu0 %v328
    %v425 = vpop.f32.mrf.mxu0
    %v426 = vadd.f32 0.0, %v425
    %427 = vmatmul.f32.gmra.mxu0 %v332
    %v428 = vpop.f32.mrf.mxu0
    %v429 = vadd.f32 0.0, %v428
    %430 = vmatmul.f32.gmra.mxu0 %v331
    %v431 = vpop.f32.mrf.mxu0
    %v432 = vadd.f32 0.0, %v431
    %433 = vdwg.mxu0
    %434 = vmatpush.msra.mxu0 0.0
    %435 = vmatpush.msra.mxu0 0.0
    %436 = vmatpush.msra.mxu0 0.0
    %437 = vmatpush.msra.mxu0 0.0
    %438 = vmatpush.msra.mxu0 %v313
    %439 = vmatpush.msra.mxu0 %v311
    %440 = vmatpush.msra.mxu0 %v309
    %441 = vmatpush.msra.mxu0 %v307
    %442 = vmatpush.msra.mxu0 %v305
    %443 = vmatpush.msra.mxu0 %v303
    %444 = vmatpush.msra.mxu0 %v301
    %445 = vmatpush.msra.mxu0 %v299
    %446 = vmatpush.msra.mxu0 %v297
    %447 = vmatpush.msra.mxu0 %v295
    %448 = vmatpush.msra.mxu0 %v293
    %449 = vmatpush.msra.mxu0 %v291
    %450 = vmatmul.f32.gmra.mxu0 %v339
    %v451 = vpop.f32.mrf.mxu0
    %v452 = vadd.f32 %v423, %v451
    %453 = vmatmul.f32.gmra.mxu0 %v341
    %v454 = vpop.f32.mrf.mxu0
    %v455 = vadd.f32 %v426, %v454
    %456 = vmatmul.f32.gmra.mxu0 %v343
    %v457 = vpop.f32.mrf.mxu0
    %v458 = vadd.f32 %v429, %v457
    %459 = vmatmul.f32.gmra.mxu0 %v345
    %v460 = vpop.f32.mrf.mxu0
    %v461 = vadd.f32 %v432, %v460
    %462 = vdwg.mxu0
    %v463 = vadd.f32 %v245, %v394
    %v464 = vadd.f32 %v246, %v452
    %v465 = vadd.f32 %v247, %v397
    %v466 = vadd.f32 %v248, %v455
    %v467 = vadd.f32 %v249, %v400
    %v468 = vadd.f32 %v250, %v458
    %v469 = vadd.f32 %v251, %v403
    %v470 = vadd.f32 %v252, %v461
    %v471 = vld [vmem:[%s0] sm:$0xfc]
    %v472 = vld [vmem:[%s0 + $0x8] sm:$0xfc]
    %v473 = vld [vmem:[%s0 + $0x30] sm:$0xff]
    %v474 = vld [vmem:[%s0 + $0x38] sm:$0xff]
    %s475 = scalar_lea.vmem %s1, 896
    %v476 = vld [vmem:[%s475] sm:$0xff]
    %v477 = vld [vmem:[%s475 + $0x8] sm:$0xff]
    %v478 = vld [vmem:[%s475 + $0x10] sm:$0xff]
    %v479 = vld [vmem:[%s475 + $0x18] sm:$0xff]
    %v480 = vld [vmem:[%s475 + $0x20] sm:$0xff]
    %v481 = vld [vmem:[%s475 + $0x28] sm:$0xff]
    %v482 = vld [vmem:[%s475 + $0x30] sm:$0xff]
    %v483 = vld [vmem:[%s475 + $0x38] sm:$0xff]
    %v484 = vld [vmem:[%s475 + $0x40] sm:$0xff]
    %v485 = vld [vmem:[%s475 + $0x48] sm:$0xff]
    %v486 = vld [vmem:[%s475 + $0x50] sm:$0xff]
    %v487 = vld [vmem:[%s475 + $0x58] sm:$0xff]
    %v488 = vld [vmem:[%s475 + $0x60] sm:$0xff]
    %v489 = vld [vmem:[%s475 + $0x68] sm:$0xff]
    %v490 = vld [vmem:[%s475 + $0x70] sm:$0xff]
    %v491 = vld [vmem:[%s475 + $0x78] sm:$0xff]
    %v492 = vld [vmem:[%s475 + $0x80] sm:$0xff]
    %v493 = vld [vmem:[%s475 + $0x88] sm:$0xff]
    %v494 = vld [vmem:[%s475 + $0x90] sm:$0xff]
    %v495 = vld [vmem:[%s475 + $0x98] sm:$0xff]
    %v496 = vld [vmem:[%s475 + $0xa0] sm:$0xff]
    %v497 = vld [vmem:[%s475 + $0xa8] sm:$0xff]
    %v498 = vld [vmem:[%s475 + $0xb0] sm:$0xff]
    %v499 = vld [vmem:[%s475 + $0xb8] sm:$0xff]
    %v500 = vld [vmem:[%s475 + $0xc0] sm:$0xff]
    %v501 = vld [vmem:[%s475 + $0xc8] sm:$0xff]
    %v502 = vld [vmem:[%s475 + $0xd0] sm:$0xff]
    %v503 = vld [vmem:[%s475 + $0xd8] sm:$0xff]
    %v504 = vld [vmem:[%s475 + $0xe0] sm:$0xff]
    %v505 = vld [vmem:[%s475 + $0xe8] sm:$0xff]
    %v506 = vld [vmem:[%s475 + $0xf0] sm:$0xff]
    %v507 = vld [vmem:[%s475 + $0xf8] sm:$0xff]
    %v508 = vld [vmem:[%s475 + $0x100] sm:$0xff]
    %v509 = vld [vmem:[%s475 + $0x108] sm:$0xff]
    %v510 = vld [vmem:[%s475 + $0x110] sm:$0xff]
    %v511 = vld [vmem:[%s475 + $0x118] sm:$0xff]
    %v512 = vld [vmem:[%s475 + $0x120] sm:$0xff]
    %v513 = vld [vmem:[%s475 + $0x128] sm:$0xff]
    %v514 = vld [vmem:[%s475 + $0x130] sm:$0xff]
    %v515 = vld [vmem:[%s475 + $0x138] sm:$0xff]
    %v516 = vld [vmem:[%s475 + $0x140] sm:$0xff]
    %v517 = vld [vmem:[%s475 + $0x148] sm:$0xff]
    %v518 = vld [vmem:[%s475 + $0x150] sm:$0xff]
    %v519 = vld [vmem:[%s475 + $0x158] sm:$0xff]
    %v520 = vld [vmem:[%s475 + $0x160] sm:$0xff]
    %v521 = vld [vmem:[%s475 + $0x168] sm:$0xff]
    %v522 = vld [vmem:[%s475 + $0x170] sm:$0xff]
    %v523 = vld [vmem:[%s475 + $0x178] sm:$0xff]
    %v524 = vld [vmem:[%s475 + $0x180] sm:$0xff]
    %v525 = vld [vmem:[%s475 + $0x188] sm:$0xff]
    %v526 = vld [vmem:[%s475 + $0x190] sm:$0xff]
    %v527 = vld [vmem:[%s475 + $0x198] sm:$0xff]
    %v528 = vld [vmem:[%s475 + $0x1a0] sm:$0xff]
    %v529 = vld [vmem:[%s475 + $0x1a8] sm:$0xff]
    %v530 = vld [vmem:[%s475 + $0x1b0] sm:$0xff]
    %v531 = vld [vmem:[%s475 + $0x1b8] sm:$0xff]
    %vm536 = vcmask 1045504
    %v537 = vrot.slane %v471, 2
    %v538 = vrot.slane %v54, 2
    %v539 = vsel %vm536, %v537, %v538
    %v540 = vrot.slane %v472, 2
    %v541 = vrot.slane %v55, 2
    %v542 = vsel %vm536, %v540, %v541
    %v543 = vrot.slane %v56, 2
    %v544 = vsel %vm536, %v538, %v543
    %v545 = vrot.slane %v57, 2
    %v546 = vsel %vm536, %v541, %v545
    %v547 = vrot.slane %v473, 2
    %v548 = vsel %vm536, %v543, %v547
    %v549 = vrot.slane %v474, 2
    %v550 = vsel %vm536, %v545, %v549
    %v555 = vsel %vm116, %v542, 0
    %v557 = vsel %vm116, %v546, 0
    %v559 = vsel %vm116, %v550, 0
    %v561 = vsel %vm116, %v549, 0
    %563 = vmatpush.msra.mxu0 %v506
    %564 = vmatpush.msra.mxu0 %v504
    %565 = vmatpush.msra.mxu0 %v502
    %566 = vmatpush.msra.mxu0 %v500
    %567 = vmatpush.msra.mxu0 %v498
    %568 = vmatpush.msra.mxu0 %v496
    %569 = vmatpush.msra.mxu0 %v494
    %570 = vmatpush.msra.mxu0 %v492
    %571 = vmatpush.msra.mxu0 %v490
    %572 = vmatpush.msra.mxu0 %v488
    %573 = vmatpush.msra.mxu0 %v486
    %574 = vmatpush.msra.mxu0 %v484
    %575 = vmatpush.msra.mxu0 %v482
    %576 = vmatpush.msra.mxu0 %v480
    %577 = vmatpush.msra.mxu0 %v478
    %578 = vmatpush.msra.mxu0 %v476
    %579 = vmatmul.f32.gmra.mxu0 %v539
    %v580 = vpop.f32.mrf.mxu0
    %v581 = vadd.f32 0.0, %v580
    %582 = vmatmul.f32.gmra.mxu0 %v544
    %v583 = vpop.f32.mrf.mxu0
    %v584 = vadd.f32 0.0, %v583
    %585 = vmatmul.f32.gmra.mxu0 %v548
    %v586 = vpop.f32.mrf.mxu0
    %v587 = vadd.f32 0.0, %v586
    %588 = vmatmul.f32.gmra.mxu0 %v547
    %v589 = vpop.f32.mrf.mxu0
    %v590 = vadd.f32 0.0, %v589
    %591 = vdwg.mxu0
    %592 = vmatpush.msra.mxu0 0.0
    %593 = vmatpush.msra.mxu0 0.0
    %594 = vmatpush.msra.mxu0 0.0
    %595 = vmatpush.msra.mxu0 0.0
    %596 = vmatpush.msra.mxu0 %v530
    %597 = vmatpush.msra.mxu0 %v528
    %598 = vmatpush.msra.mxu0 %v526
    %599 = vmatpush.msra.mxu0 %v524
    %600 = vmatpush.msra.mxu0 %v522
    %601 = vmatpush.msra.mxu0 %v520
    %602 = vmatpush.msra.mxu0 %v518
    %603 = vmatpush.msra.mxu0 %v516
    %604 = vmatpush.msra.mxu0 %v514
    %605 = vmatpush.msra.mxu0 %v512
    %606 = vmatpush.msra.mxu0 %v510
    %607 = vmatpush.msra.mxu0 %v508
    %608 = vmatmul.f32.gmra.mxu0 %v555
    %v609 = vpop.f32.mrf.mxu0
    %v610 = vadd.f32 %v581, %v609
    %611 = vmatmul.f32.gmra.mxu0 %v557
    %v612 = vpop.f32.mrf.mxu0
    %v613 = vadd.f32 %v584, %v612
    %614 = vmatmul.f32.gmra.mxu0 %v559
    %v615 = vpop.f32.mrf.mxu0
    %v616 = vadd.f32 %v587, %v615
    %617 = vmatmul.f32.gmra.mxu0 %v561
    %v618 = vpop.f32.mrf.mxu0
    %v619 = vadd.f32 %v590, %v618
    %620 = vdwg.mxu0
    %621 = vmatpush.msra.mxu0 %v507
    %622 = vmatpush.msra.mxu0 %v505
    %623 = vmatpush.msra.mxu0 %v503
    %624 = vmatpush.msra.mxu0 %v501
    %625 = vmatpush.msra.mxu0 %v499
    %626 = vmatpush.msra.mxu0 %v497
    %627 = vmatpush.msra.mxu0 %v495
    %628 = vmatpush.msra.mxu0 %v493
    %629 = vmatpush.msra.mxu0 %v491
    %630 = vmatpush.msra.mxu0 %v489
    %631 = vmatpush.msra.mxu0 %v487
    %632 = vmatpush.msra.mxu0 %v485
    %633 = vmatpush.msra.mxu0 %v483
    %634 = vmatpush.msra.mxu0 %v481
    %635 = vmatpush.msra.mxu0 %v479
    %636 = vmatpush.msra.mxu0 %v477
    %637 = vmatmul.f32.gmra.mxu0 %v539
    %v638 = vpop.f32.mrf.mxu0
    %v639 = vadd.f32 0.0, %v638
    %640 = vmatmul.f32.gmra.mxu0 %v544
    %v641 = vpop.f32.mrf.mxu0
    %v642 = vadd.f32 0.0, %v641
    %643 = vmatmul.f32.gmra.mxu0 %v548
    %v644 = vpop.f32.mrf.mxu0
    %v645 = vadd.f32 0.0, %v644
    %646 = vmatmul.f32.gmra.mxu0 %v547
    %v647 = vpop.f32.mrf.mxu0
    %v648 = vadd.f32 0.0, %v647
    %649 = vdwg.mxu0
    %650 = vmatpush.msra.mxu0 0.0
    %651 = vmatpush.msra.mxu0 0.0
    %652 = vmatpush.msra.mxu0 0.0
    %653 = vmatpush.msra.mxu0 0.0
    %654 = vmatpush.msra.mxu0 %v531
    %655 = vmatpush.msra.mxu0 %v529
    %656 = vmatpush.msra.mxu0 %v527
    %657 = vmatpush.msra.mxu0 %v525
    %658 = vmatpush.msra.mxu0 %v523
    %659 = vmatpush.msra.mxu0 %v521
    %660 = vmatpush.msra.mxu0 %v519
    %661 = vmatpush.msra.mxu0 %v517
    %662 = vmatpush.msra.mxu0 %v515
    %663 = vmatpush.msra.mxu0 %v513
    %664 = vmatpush.msra.mxu0 %v511
    %665 = vmatpush.msra.mxu0 %v509
    %666 = vmatmul.f32.gmra.mxu0 %v555
    %v667 = vpop.f32.mrf.mxu0
    %v668 = vadd.f32 %v639, %v667
    %669 = vmatmul.f32.gmra.mxu0 %v557
    %v670 = vpop.f32.mrf.mxu0
    %v671 = vadd.f32 %v642, %v670
    %672 = vmatmul.f32.gmra.mxu0 %v559
    %v673 = vpop.f32.mrf.mxu0
    %v674 = vadd.f32 %v645, %v673
    %675 = vmatmul.f32.gmra.mxu0 %v561
    %v676 = vpop.f32.mrf.mxu0
    %v677 = vadd.f32 %v648, %v676
    %678 = vdwg.mxu0
    %v679 = vadd.f32 %v463, %v610
    %v680 = vadd.f32 %v464, %v668
    %v681 = vadd.f32 %v465, %v613
    %v682 = vadd.f32 %v466, %v671
    %v683 = vadd.f32 %v467, %v616
    %v684 = vadd.f32 %v468, %v674
    %v685 = vadd.f32 %v469, %v619
    %v686 = vadd.f32 %v470, %v677
    %687 = vst [vmem:[%s7] sm:$0xff] %v679
    %vm688 = vcmask 916480
    %689 = vst.msk [vmem:[%s7 + $0x8] sm:$0xff] %vm688, %v680
    %690 = vst [vmem:[%s7 + $0x10] sm:$0xff] %v681
    %691 = vst.msk [vmem:[%s7 + $0x18] sm:$0xff] %vm688, %v682
    %692 = vst [vmem:[%s7 + $0x20] sm:$0xff] %v683
    %693 = vst.msk [vmem:[%s7 + $0x28] sm:$0xff] %vm688, %v684
    %694 = vst [vmem:[%s7 + $0x30] sm:$0x3f] %v685
    %vm695 = vcmask 914432
    %696 = vst.msk [vmem:[%s7 + $0x38] sm:$0x3f] %vm695, %v686
    %v697 = vld [vmem:[%s4] sm:$0x3]
    %v699 = vperm.slane %v697, 0
    %v700 = vperm.slane %v697, 1
    %v703 = vld [vmem:[%s3] sm:$0xff]
    %v704 = vld [vmem:[%s3 + $0x8] sm:$0xff]
    %v705 = vld [vmem:[%s3 + $0x10] sm:$0xff]
    %v706 = vld [vmem:[%s3 + $0x18] sm:$0xff]
    %v707 = vld [vmem:[%s3 + $0x20] sm:$0xff]
    %v708 = vld [vmem:[%s3 + $0x28] sm:$0xff]
    %v709 = vld [vmem:[%s3 + $0x30] sm:$0xff]
    %v710 = vld [vmem:[%s3 + $0x38] sm:$0xff]
    %v711 = vld [vmem:[%s3 + $0x40] sm:$0xff]
    %v712 = vld [vmem:[%s3 + $0x48] sm:$0xff]
    %v713 = vld [vmem:[%s3 + $0x50] sm:$0xff]
    %v714 = vld [vmem:[%s3 + $0x58] sm:$0xff]
    %v715 = vld [vmem:[%s3 + $0x60] sm:$0xff]
    %v716 = vld [vmem:[%s3 + $0x68] sm:$0xff]
    %v717 = vld [vmem:[%s3 + $0x70] sm:$0xff]
    %v718 = vld [vmem:[%s3 + $0x78] sm:$0xff]
    %v719 = vld [vmem:[%s3 + $0x80] sm:$0xff]
    %v720 = vld [vmem:[%s3 + $0x88] sm:$0xff]
    %v721 = vld [vmem:[%s3 + $0x90] sm:$0xff]
    %v722 = vld [vmem:[%s3 + $0x98] sm:$0xff]
    %v723 = vld [vmem:[%s3 + $0xa0] sm:$0xff]
    %v724 = vld [vmem:[%s3 + $0xa8] sm:$0xff]
    %v725 = vld [vmem:[%s3 + $0xb0] sm:$0xff]
    %v726 = vld [vmem:[%s3 + $0xb8] sm:$0xff]
    %v727 = vld [vmem:[%s3 + $0xc0] sm:$0xff]
    %v728 = vld [vmem:[%s3 + $0xc8] sm:$0xff]
    %v729 = vld [vmem:[%s3 + $0xd0] sm:$0xff]
    %v730 = vld [vmem:[%s3 + $0xd8] sm:$0xff]
    %v731 = vld [vmem:[%s3 + $0xe0] sm:$0xff]
    %v732 = vld [vmem:[%s3 + $0xe8] sm:$0xff]
    %v733 = vld [vmem:[%s3 + $0xf0] sm:$0xff]
    %v734 = vld [vmem:[%s3 + $0xf8] sm:$0xff]
    %v735 = vld [vmem:[%s3 + $0x100] sm:$0xff]
    %v736 = vld [vmem:[%s3 + $0x108] sm:$0xff]
    %v737 = vld [vmem:[%s3 + $0x110] sm:$0xff]
    %v738 = vld [vmem:[%s3 + $0x118] sm:$0xff]
    %v739 = vld [vmem:[%s3 + $0x120] sm:$0xff]
    %v740 = vld [vmem:[%s3 + $0x128] sm:$0xff]
    %v741 = vld [vmem:[%s3 + $0x130] sm:$0xff]
    %v742 = vld [vmem:[%s3 + $0x138] sm:$0xff]
    %v743 = vld [vmem:[%s3 + $0x140] sm:$0xff]
    %v744 = vld [vmem:[%s3 + $0x148] sm:$0xff]
    %v745 = vld [vmem:[%s3 + $0x150] sm:$0xff]
    %v746 = vld [vmem:[%s3 + $0x158] sm:$0xff]
    %v747 = vld [vmem:[%s3 + $0x160] sm:$0xff]
    %v748 = vld [vmem:[%s3 + $0x168] sm:$0xff]
    %v749 = vld [vmem:[%s3 + $0x170] sm:$0xff]
    %v750 = vld [vmem:[%s3 + $0x178] sm:$0xff]
    %v751 = vld [vmem:[%s3 + $0x180] sm:$0xff]
    %v752 = vld [vmem:[%s3 + $0x188] sm:$0xff]
    %v753 = vld [vmem:[%s3 + $0x190] sm:$0xff]
    %v754 = vld [vmem:[%s3 + $0x198] sm:$0xff]
    %v755 = vld [vmem:[%s3 + $0x1a0] sm:$0xff]
    %v756 = vld [vmem:[%s3 + $0x1a8] sm:$0xff]
    %v757 = vld [vmem:[%s3 + $0x1b0] sm:$0xff]
    %v758 = vld [vmem:[%s3 + $0x1b8] sm:$0xff]
    %v759 = vld [vmem:[%s3 + $0x1c0] sm:$0xff]
    %v760 = vld [vmem:[%s3 + $0x1c8] sm:$0xff]
    %v761 = vld [vmem:[%s3 + $0x1d0] sm:$0xff]
    %v762 = vld [vmem:[%s3 + $0x1d8] sm:$0xff]
    %v764 = vsel %vm688, %v680, 0
    %v767 = vsel %vm688, %v682, 0
    %v770 = vsel %vm688, %v684, 0
    %772 = vmatpush.msra.mxu0 %v733
    %773 = vmatpush.msra.mxu0 %v731
    %774 = vmatpush.msra.mxu0 %v729
    %775 = vmatpush.msra.mxu0 %v727
    %776 = vmatpush.msra.mxu0 %v725
    %777 = vmatpush.msra.mxu0 %v723
    %778 = vmatpush.msra.mxu0 %v721
    %779 = vmatpush.msra.mxu0 %v719
    %780 = vmatpush.msra.mxu0 %v717
    %781 = vmatpush.msra.mxu0 %v715
    %782 = vmatpush.msra.mxu0 %v713
    %783 = vmatpush.msra.mxu0 %v711
    %784 = vmatpush.msra.mxu0 %v709
    %785 = vmatpush.msra.mxu0 %v707
    %786 = vmatpush.msra.mxu0 %v705
    %787 = vmatpush.msra.mxu0 %v703
    %788 = vmatmul.f32.gmra.mxu0 %v679
    %v789 = vpop.f32.mrf.mxu0
    %v790 = vadd.f32 0.0, %v789
    %791 = vmatmul.f32.gmra.mxu0 %v681
    %v792 = vpop.f32.mrf.mxu0
    %v793 = vadd.f32 0.0, %v792
    %794 = vmatmul.f32.gmra.mxu0 %v683
    %v795 = vpop.f32.mrf.mxu0
    %v796 = vadd.f32 0.0, %v795
    %797 = vdwg.mxu0
    %798 = vmatpush.msra.mxu0 0.0
    %799 = vmatpush.msra.mxu0 0.0
    %800 = vmatpush.msra.mxu0 %v761
    %801 = vmatpush.msra.mxu0 %v759
    %802 = vmatpush.msra.mxu0 %v757
    %803 = vmatpush.msra.mxu0 %v755
    %804 = vmatpush.msra.mxu0 %v753
    %805 = vmatpush.msra.mxu0 %v751
    %806 = vmatpush.msra.mxu0 %v749
    %807 = vmatpush.msra.mxu0 %v747
    %808 = vmatpush.msra.mxu0 %v745
    %809 = vmatpush.msra.mxu0 %v743
    %810 = vmatpush.msra.mxu0 %v741
    %811 = vmatpush.msra.mxu0 %v739
    %812 = vmatpush.msra.mxu0 %v737
    %813 = vmatpush.msra.mxu0 %v735
    %814 = vmatmul.f32.gmra.mxu0 %v764
    %v815 = vpop.f32.mrf.mxu0
    %v816 = vadd.f32 %v790, %v815
    %817 = vmatmul.f32.gmra.mxu0 %v767
    %v818 = vpop.f32.mrf.mxu0
    %v819 = vadd.f32 %v793, %v818
    %820 = vmatmul.f32.gmra.mxu0 %v770
    %v821 = vpop.f32.mrf.mxu0
    %v822 = vadd.f32 %v796, %v821
    %823 = vdwg.mxu0
    %824 = vmatpush.msra.mxu0 %v734
    %825 = vmatpush.msra.mxu0 %v732
    %826 = vmatpush.msra.mxu0 %v730
    %827 = vmatpush.msra.mxu0 %v728
    %828 = vmatpush.msra.mxu0 %v726
    %829 = vmatpush.msra.mxu0 %v724
    %830 = vmatpush.msra.mxu0 %v722
    %831 = vmatpush.msra.mxu0 %v720
    %832 = vmatpush.msra.mxu0 %v718
    %833 = vmatpush.msra.mxu0 %v716
    %834 = vmatpush.msra.mxu0 %v714
    %835 = vmatpush.msra.mxu0 %v712
    %836 = vmatpush.msra.mxu0 %v710
    %837 = vmatpush.msra.mxu0 %v708
    %838 = vmatpush.msra.mxu0 %v706
    %839 = vmatpush.msra.mxu0 %v704
    %840 = vmatmul.f32.gmra.mxu0 %v679
    %v841 = vpop.f32.mrf.mxu0
    %v842 = vadd.f32 0.0, %v841
    %843 = vmatmul.f32.gmra.mxu0 %v681
    %v844 = vpop.f32.mrf.mxu0
    %v845 = vadd.f32 0.0, %v844
    %846 = vmatmul.f32.gmra.mxu0 %v683
    %v847 = vpop.f32.mrf.mxu0
    %v848 = vadd.f32 0.0, %v847
    %849 = vdwg.mxu0
    %850 = vmatpush.msra.mxu0 0.0
    %851 = vmatpush.msra.mxu0 0.0
    %852 = vmatpush.msra.mxu0 %v762
    %853 = vmatpush.msra.mxu0 %v760
    %854 = vmatpush.msra.mxu0 %v758
    %855 = vmatpush.msra.mxu0 %v756
    %856 = vmatpush.msra.mxu0 %v754
    %857 = vmatpush.msra.mxu0 %v752
    %858 = vmatpush.msra.mxu0 %v750
    %859 = vmatpush.msra.mxu0 %v748
    %860 = vmatpush.msra.mxu0 %v746
    %861 = vmatpush.msra.mxu0 %v744
    %862 = vmatpush.msra.mxu0 %v742
    %863 = vmatpush.msra.mxu0 %v740
    %864 = vmatpush.msra.mxu0 %v738
    %865 = vmatpush.msra.mxu0 %v736
    %866 = vmatmul.f32.gmra.mxu0 %v764
    %v867 = vpop.f32.mrf.mxu0
    %v868 = vadd.f32 %v842, %v867
    %869 = vmatmul.f32.gmra.mxu0 %v767
    %v870 = vpop.f32.mrf.mxu0
    %v871 = vadd.f32 %v845, %v870
    %872 = vmatmul.f32.gmra.mxu0 %v770
    %v873 = vpop.f32.mrf.mxu0
    %v874 = vadd.f32 %v848, %v873
    %875 = vdwg.mxu0
    %v876 = vadd.f32 %v699, %v816
    %v877 = vadd.f32 %v700, %v868
    %v878 = vadd.f32 %v699, %v819
    %v879 = vadd.f32 %v700, %v871
    %v880 = vadd.f32 %v699, %v822
    %v881 = vadd.f32 %v700, %v874
    %s882 = scalar_lea.vmem %s3, 480
    %v883 = vld [vmem:[%s882] sm:$0xff]
    %v884 = vld [vmem:[%s882 + $0x8] sm:$0xff]
    %v885 = vld [vmem:[%s882 + $0x10] sm:$0xff]
    %v886 = vld [vmem:[%s882 + $0x18] sm:$0xff]
    %v887 = vld [vmem:[%s882 + $0x20] sm:$0xff]
    %v888 = vld [vmem:[%s882 + $0x28] sm:$0xff]
    %v889 = vld [vmem:[%s882 + $0x30] sm:$0xff]
    %v890 = vld [vmem:[%s882 + $0x38] sm:$0xff]
    %v891 = vld [vmem:[%s882 + $0x40] sm:$0xff]
    %v892 = vld [vmem:[%s882 + $0x48] sm:$0xff]
    %v893 = vld [vmem:[%s882 + $0x50] sm:$0xff]
    %v894 = vld [vmem:[%s882 + $0x58] sm:$0xff]
    %v895 = vld [vmem:[%s882 + $0x60] sm:$0xff]
    %v896 = vld [vmem:[%s882 + $0x68] sm:$0xff]
    %v897 = vld [vmem:[%s882 + $0x70] sm:$0xff]
    %v898 = vld [vmem:[%s882 + $0x78] sm:$0xff]
    %v899 = vld [vmem:[%s882 + $0x80] sm:$0xff]
    %v900 = vld [vmem:[%s882 + $0x88] sm:$0xff]
    %v901 = vld [vmem:[%s882 + $0x90] sm:$0xff]
    %v902 = vld [vmem:[%s882 + $0x98] sm:$0xff]
    %v903 = vld [vmem:[%s882 + $0xa0] sm:$0xff]
    %v904 = vld [vmem:[%s882 + $0xa8] sm:$0xff]
    %v905 = vld [vmem:[%s882 + $0xb0] sm:$0xff]
    %v906 = vld [vmem:[%s882 + $0xb8] sm:$0xff]
    %v907 = vld [vmem:[%s882 + $0xc0] sm:$0xff]
    %v908 = vld [vmem:[%s882 + $0xc8] sm:$0xff]
    %v909 = vld [vmem:[%s882 + $0xd0] sm:$0xff]
    %v910 = vld [vmem:[%s882 + $0xd8] sm:$0xff]
    %v911 = vld [vmem:[%s882 + $0xe0] sm:$0xff]
    %v912 = vld [vmem:[%s882 + $0xe8] sm:$0xff]
    %v913 = vld [vmem:[%s882 + $0xf0] sm:$0xff]
    %v914 = vld [vmem:[%s882 + $0xf8] sm:$0xff]
    %v915 = vld [vmem:[%s882 + $0x100] sm:$0xff]
    %v916 = vld [vmem:[%s882 + $0x108] sm:$0xff]
    %v917 = vld [vmem:[%s882 + $0x110] sm:$0xff]
    %v918 = vld [vmem:[%s882 + $0x118] sm:$0xff]
    %v919 = vld [vmem:[%s882 + $0x120] sm:$0xff]
    %v920 = vld [vmem:[%s882 + $0x128] sm:$0xff]
    %v921 = vld [vmem:[%s882 + $0x130] sm:$0xff]
    %v922 = vld [vmem:[%s882 + $0x138] sm:$0xff]
    %v923 = vld [vmem:[%s882 + $0x140] sm:$0xff]
    %v924 = vld [vmem:[%s882 + $0x148] sm:$0xff]
    %v925 = vld [vmem:[%s882 + $0x150] sm:$0xff]
    %v926 = vld [vmem:[%s882 + $0x158] sm:$0xff]
    %v927 = vld [vmem:[%s882 + $0x160] sm:$0xff]
    %v928 = vld [vmem:[%s882 + $0x168] sm:$0xff]
    %v929 = vld [vmem:[%s882 + $0x170] sm:$0xff]
    %v930 = vld [vmem:[%s882 + $0x178] sm:$0xff]
    %v931 = vld [vmem:[%s882 + $0x180] sm:$0xff]
    %v932 = vld [vmem:[%s882 + $0x188] sm:$0xff]
    %v933 = vld [vmem:[%s882 + $0x190] sm:$0xff]
    %v934 = vld [vmem:[%s882 + $0x198] sm:$0xff]
    %v935 = vld [vmem:[%s882 + $0x1a0] sm:$0xff]
    %v936 = vld [vmem:[%s882 + $0x1a8] sm:$0xff]
    %v937 = vld [vmem:[%s882 + $0x1b0] sm:$0xff]
    %v938 = vld [vmem:[%s882 + $0x1b8] sm:$0xff]
    %v939 = vld [vmem:[%s882 + $0x1c0] sm:$0xff]
    %v940 = vld [vmem:[%s882 + $0x1c8] sm:$0xff]
    %v941 = vld [vmem:[%s882 + $0x1d0] sm:$0xff]
    %v942 = vld [vmem:[%s882 + $0x1d8] sm:$0xff]
    %v948 = vrot.slane %v679, 1
    %v949 = vrot.slane %v681, 1
    %v950 = vsel %vm320, %v948, %v949
    %v951 = vrot.slane %v680, 1
    %v952 = vrot.slane %v682, 1
    %v953 = vsel %vm320, %v951, %v952
    %v954 = vrot.slane %v683, 1
    %v955 = vsel %vm320, %v949, %v954
    %v956 = vrot.slane %v684, 1
    %v957 = vsel %vm320, %v952, %v956
    %v958 = vrot.slane %v685, 1
    %v959 = vsel %vm320, %v954, %v958
    %v960 = vrot.slane %v686, 1
    %v961 = vsel %vm320, %v956, %v960
    %v965 = vsel %vm688, %v953, 0
    %v967 = vsel %vm688, %v957, 0
    %v969 = vsel %vm688, %v961, 0
    %971 = vmatpush.msra.mxu0 %v913
    %972 = vmatpush.msra.mxu0 %v911
    %973 = vmatpush.msra.mxu0 %v909
    %974 = vmatpush.msra.mxu0 %v907
    %975 = vmatpush.msra.mxu0 %v905
    %976 = vmatpush.msra.mxu0 %v903
    %977 = vmatpush.msra.mxu0 %v901
    %978 = vmatpush.msra.mxu0 %v899
    %979 = vmatpush.msra.mxu0 %v897
    %980 = vmatpush.msra.mxu0 %v895
    %981 = vmatpush.msra.mxu0 %v893
    %982 = vmatpush.msra.mxu0 %v891
    %983 = vmatpush.msra.mxu0 %v889
    %984 = vmatpush.msra.mxu0 %v887
    %985 = vmatpush.msra.mxu0 %v885
    %986 = vmatpush.msra.mxu0 %v883
    %987 = vmatmul.f32.gmra.mxu0 %v950
    %v988 = vpop.f32.mrf.mxu0
    %v989 = vadd.f32 0.0, %v988
    %990 = vmatmul.f32.gmra.mxu0 %v955
    %v991 = vpop.f32.mrf.mxu0
    %v992 = vadd.f32 0.0, %v991
    %993 = vmatmul.f32.gmra.mxu0 %v959
    %v994 = vpop.f32.mrf.mxu0
    %v995 = vadd.f32 0.0, %v994
    %996 = vdwg.mxu0
    %997 = vmatpush.msra.mxu0 0.0
    %998 = vmatpush.msra.mxu0 0.0
    %999 = vmatpush.msra.mxu0 %v941
    %1000 = vmatpush.msra.mxu0 %v939
    %1001 = vmatpush.msra.mxu0 %v937
    %1002 = vmatpush.msra.mxu0 %v935
    %1003 = vmatpush.msra.mxu0 %v933
    %1004 = vmatpush.msra.mxu0 %v931
    %1005 = vmatpush.msra.mxu0 %v929
    %1006 = vmatpush.msra.mxu0 %v927
    %1007 = vmatpush.msra.mxu0 %v925
    %1008 = vmatpush.msra.mxu0 %v923
    %1009 = vmatpush.msra.mxu0 %v921
    %1010 = vmatpush.msra.mxu0 %v919
    %1011 = vmatpush.msra.mxu0 %v917
    %1012 = vmatpush.msra.mxu0 %v915
    %1013 = vmatmul.f32.gmra.mxu0 %v965
    %v1014 = vpop.f32.mrf.mxu0
    %v1015 = vadd.f32 %v989, %v1014
    %1016 = vmatmul.f32.gmra.mxu0 %v967
    %v1017 = vpop.f32.mrf.mxu0
    %v1018 = vadd.f32 %v992, %v1017
    %1019 = vmatmul.f32.gmra.mxu0 %v969
    %v1020 = vpop.f32.mrf.mxu0
    %v1021 = vadd.f32 %v995, %v1020
    %1022 = vdwg.mxu0
    %1023 = vmatpush.msra.mxu0 %v914
    %1024 = vmatpush.msra.mxu0 %v912
    %1025 = vmatpush.msra.mxu0 %v910
    %1026 = vmatpush.msra.mxu0 %v908
    %1027 = vmatpush.msra.mxu0 %v906
    %1028 = vmatpush.msra.mxu0 %v904
    %1029 = vmatpush.msra.mxu0 %v902
    %1030 = vmatpush.msra.mxu0 %v900
    %1031 = vmatpush.msra.mxu0 %v898
    %1032 = vmatpush.msra.mxu0 %v896
    %1033 = vmatpush.msra.mxu0 %v894
    %1034 = vmatpush.msra.mxu0 %v892
    %1035 = vmatpush.msra.mxu0 %v890
    %1036 = vmatpush.msra.mxu0 %v888
    %1037 = vmatpush.msra.mxu0 %v886
    %1038 = vmatpush.msra.mxu0 %v884
    %1039 = vmatmul.f32.gmra.mxu0 %v950
    %v1040 = vpop.f32.mrf.mxu0
    %v1041 = vadd.f32 0.0, %v1040
    %1042 = vmatmul.f32.gmra.mxu0 %v955
    %v1043 = vpop.f32.mrf.mxu0
    %v1044 = vadd.f32 0.0, %v1043
    %1045 = vmatmul.f32.gmra.mxu0 %v959
    %v1046 = vpop.f32.mrf.mxu0
    %v1047 = vadd.f32 0.0, %v1046
    %1048 = vdwg.mxu0
    %1049 = vmatpush.msra.mxu0 0.0
    %1050 = vmatpush.msra.mxu0 0.0
    %1051 = vmatpush.msra.mxu0 %v942
    %1052 = vmatpush.msra.mxu0 %v940
    %1053 = vmatpush.msra.mxu0 %v938
    %1054 = vmatpush.msra.mxu0 %v936
    %1055 = vmatpush.msra.mxu0 %v934
    %1056 = vmatpush.msra.mxu0 %v932
    %1057 = vmatpush.msra.mxu0 %v930
    %1058 = vmatpush.msra.mxu0 %v928
    %1059 = vmatpush.msra.mxu0 %v926
    %1060 = vmatpush.msra.mxu0 %v924
    %1061 = vmatpush.msra.mxu0 %v922
    %1062 = vmatpush.msra.mxu0 %v920
    %1063 = vmatpush.msra.mxu0 %v918
    %1064 = vmatpush.msra.mxu0 %v916
    %1065 = vmatmul.f32.gmra.mxu0 %v965
    %v1066 = vpop.f32.mrf.mxu0
    %v1067 = vadd.f32 %v1041, %v1066
    %1068 = vmatmul.f32.gmra.mxu0 %v967
    %v1069 = vpop.f32.mrf.mxu0
    %v1070 = vadd.f32 %v1044, %v1069
    %1071 = vmatmul.f32.gmra.mxu0 %v969
    %v1072 = vpop.f32.mrf.mxu0
    %v1073 = vadd.f32 %v1047, %v1072
    %1074 = vdwg.mxu0
    %v1075 = vadd.f32 %v876, %v1015
    %v1076 = vadd.f32 %v877, %v1067
    %v1077 = vadd.f32 %v878, %v1018
    %v1078 = vadd.f32 %v879, %v1070
    %v1079 = vadd.f32 %v880, %v1021
    %v1080 = vadd.f32 %v881, %v1073
    %s1081 = scalar_lea.vmem %s3, 960
    %v1082 = vld [vmem:[%s1081] sm:$0xff]
    %v1083 = vld [vmem:[%s1081 + $0x8] sm:$0xff]
    %v1084 = vld [vmem:[%s1081 + $0x10] sm:$0xff]
    %v1085 = vld [vmem:[%s1081 + $0x18] sm:$0xff]
    %v1086 = vld [vmem:[%s1081 + $0x20] sm:$0xff]
    %v1087 = vld [vmem:[%s1081 + $0x28] sm:$0xff]
    %v1088 = vld [vmem:[%s1081 + $0x30] sm:$0xff]
    %v1089 = vld [vmem:[%s1081 + $0x38] sm:$0xff]
    %v1090 = vld [vmem:[%s1081 + $0x40] sm:$0xff]
    %v1091 = vld [vmem:[%s1081 + $0x48] sm:$0xff]
    %v1092 = vld [vmem:[%s1081 + $0x50] sm:$0xff]
    %v1093 = vld [vmem:[%s1081 + $0x58] sm:$0xff]
    %v1094 = vld [vmem:[%s1081 + $0x60] sm:$0xff]
    %v1095 = vld [vmem:[%s1081 + $0x68] sm:$0xff]
    %v1096 = vld [vmem:[%s1081 + $0x70] sm:$0xff]
    %v1097 = vld [vmem:[%s1081 + $0x78] sm:$0xff]
    %v1098 = vld [vmem:[%s1081 + $0x80] sm:$0xff]
    %v1099 = vld [vmem:[%s1081 + $0x88] sm:$0xff]
    %v1100 = vld [vmem:[%s1081 + $0x90] sm:$0xff]
    %v1101 = vld [vmem:[%s1081 + $0x98] sm:$0xff]
    %v1102 = vld [vmem:[%s1081 + $0xa0] sm:$0xff]
    %v1103 = vld [vmem:[%s1081 + $0xa8] sm:$0xff]
    %v1104 = vld [vmem:[%s1081 + $0xb0] sm:$0xff]
    %v1105 = vld [vmem:[%s1081 + $0xb8] sm:$0xff]
    %v1106 = vld [vmem:[%s1081 + $0xc0] sm:$0xff]
    %v1107 = vld [vmem:[%s1081 + $0xc8] sm:$0xff]
    %v1108 = vld [vmem:[%s1081 + $0xd0] sm:$0xff]
    %v1109 = vld [vmem:[%s1081 + $0xd8] sm:$0xff]
    %v1110 = vld [vmem:[%s1081 + $0xe0] sm:$0xff]
    %v1111 = vld [vmem:[%s1081 + $0xe8] sm:$0xff]
    %v1112 = vld [vmem:[%s1081 + $0xf0] sm:$0xff]
    %v1113 = vld [vmem:[%s1081 + $0xf8] sm:$0xff]
    %v1114 = vld [vmem:[%s1081 + $0x100] sm:$0xff]
    %v1115 = vld [vmem:[%s1081 + $0x108] sm:$0xff]
    %v1116 = vld [vmem:[%s1081 + $0x110] sm:$0xff]
    %v1117 = vld [vmem:[%s1081 + $0x118] sm:$0xff]
    %v1118 = vld [vmem:[%s1081 + $0x120] sm:$0xff]
    %v1119 = vld [vmem:[%s1081 + $0x128] sm:$0xff]
    %v1120 = vld [vmem:[%s1081 + $0x130] sm:$0xff]
    %v1121 = vld [vmem:[%s1081 + $0x138] sm:$0xff]
    %v1122 = vld [vmem:[%s1081 + $0x140] sm:$0xff]
    %v1123 = vld [vmem:[%s1081 + $0x148] sm:$0xff]
    %v1124 = vld [vmem:[%s1081 + $0x150] sm:$0xff]
    %v1125 = vld [vmem:[%s1081 + $0x158] sm:$0xff]
    %v1126 = vld [vmem:[%s1081 + $0x160] sm:$0xff]
    %v1127 = vld [vmem:[%s1081 + $0x168] sm:$0xff]
    %v1128 = vld [vmem:[%s1081 + $0x170] sm:$0xff]
    %v1129 = vld [vmem:[%s1081 + $0x178] sm:$0xff]
    %v1130 = vld [vmem:[%s1081 + $0x180] sm:$0xff]
    %v1131 = vld [vmem:[%s1081 + $0x188] sm:$0xff]
    %v1132 = vld [vmem:[%s1081 + $0x190] sm:$0xff]
    %v1133 = vld [vmem:[%s1081 + $0x198] sm:$0xff]
    %v1134 = vld [vmem:[%s1081 + $0x1a0] sm:$0xff]
    %v1135 = vld [vmem:[%s1081 + $0x1a8] sm:$0xff]
    %v1136 = vld [vmem:[%s1081 + $0x1b0] sm:$0xff]
    %v1137 = vld [vmem:[%s1081 + $0x1b8] sm:$0xff]
    %v1138 = vld [vmem:[%s1081 + $0x1c0] sm:$0xff]
    %v1139 = vld [vmem:[%s1081 + $0x1c8] sm:$0xff]
    %v1140 = vld [vmem:[%s1081 + $0x1d0] sm:$0xff]
    %v1141 = vld [vmem:[%s1081 + $0x1d8] sm:$0xff]
    %v1142 = vrot.slane %v679, 2
    %v1143 = vrot.slane %v681, 2
    %v1144 = vsel %vm536, %v1142, %v1143
    %v1145 = vrot.slane %v680, 2
    %v1146 = vrot.slane %v682, 2
    %v1147 = vsel %vm536, %v1145, %v1146
    %v1148 = vrot.slane %v683, 2
    %v1149 = vsel %vm536, %v1143, %v1148
    %v1150 = vrot.slane %v684, 2
    %v1151 = vsel %vm536, %v1146, %v1150
    %v1152 = vrot.slane %v685, 2
    %v1153 = vsel %vm536, %v1148, %v1152
    %v1154 = vrot.slane %v686, 2
    %v1155 = vsel %vm536, %v1150, %v1154
    %v1159 = vsel %vm688, %v1147, 0
    %v1161 = vsel %vm688, %v1151, 0
    %v1163 = vsel %vm688, %v1155, 0
    %1165 = vmatpush.msra.mxu0 %v1112
    %1166 = vmatpush.msra.mxu0 %v1110
    %1167 = vmatpush.msra.mxu0 %v1108
    %1168 = vmatpush.msra.mxu0 %v1106
    %1169 = vmatpush.msra.mxu0 %v1104
    %1170 = vmatpush.msra.mxu0 %v1102
    %1171 = vmatpush.msra.mxu0 %v1100
    %1172 = vmatpush.msra.mxu0 %v1098
    %1173 = vmatpush.msra.mxu0 %v1096
    %1174 = vmatpush.msra.mxu0 %v1094
    %1175 = vmatpush.msra.mxu0 %v1092
    %1176 = vmatpush.msra.mxu0 %v1090
    %1177 = vmatpush.msra.mxu0 %v1088
    %1178 = vmatpush.msra.mxu0 %v1086
    %1179 = vmatpush.msra.mxu0 %v1084
    %1180 = vmatpush.msra.mxu0 %v1082
    %1181 = vmatmul.f32.gmra.mxu0 %v1144
    %v1182 = vpop.f32.mrf.mxu0
    %v1183 = vadd.f32 0.0, %v1182
    %1184 = vmatmul.f32.gmra.mxu0 %v1149
    %v1185 = vpop.f32.mrf.mxu0
    %v1186 = vadd.f32 0.0, %v1185
    %1187 = vmatmul.f32.gmra.mxu0 %v1153
    %v1188 = vpop.f32.mrf.mxu0
    %v1189 = vadd.f32 0.0, %v1188
    %1190 = vdwg.mxu0
    %1191 = vmatpush.msra.mxu0 0.0
    %1192 = vmatpush.msra.mxu0 0.0
    %1193 = vmatpush.msra.mxu0 %v1140
    %1194 = vmatpush.msra.mxu0 %v1138
    %1195 = vmatpush.msra.mxu0 %v1136
    %1196 = vmatpush.msra.mxu0 %v1134
    %1197 = vmatpush.msra.mxu0 %v1132
    %1198 = vmatpush.msra.mxu0 %v1130
    %1199 = vmatpush.msra.mxu0 %v1128
    %1200 = vmatpush.msra.mxu0 %v1126
    %1201 = vmatpush.msra.mxu0 %v1124
    %1202 = vmatpush.msra.mxu0 %v1122
    %1203 = vmatpush.msra.mxu0 %v1120
    %1204 = vmatpush.msra.mxu0 %v1118
    %1205 = vmatpush.msra.mxu0 %v1116
    %1206 = vmatpush.msra.mxu0 %v1114
    %1207 = vmatmul.f32.gmra.mxu0 %v1159
    %v1208 = vpop.f32.mrf.mxu0
    %v1209 = vadd.f32 %v1183, %v1208
    %1210 = vmatmul.f32.gmra.mxu0 %v1161
    %v1211 = vpop.f32.mrf.mxu0
    %v1212 = vadd.f32 %v1186, %v1211
    %1213 = vmatmul.f32.gmra.mxu0 %v1163
    %v1214 = vpop.f32.mrf.mxu0
    %v1215 = vadd.f32 %v1189, %v1214
    %1216 = vdwg.mxu0
    %1217 = vmatpush.msra.mxu0 %v1113
    %1218 = vmatpush.msra.mxu0 %v1111
    %1219 = vmatpush.msra.mxu0 %v1109
    %1220 = vmatpush.msra.mxu0 %v1107
    %1221 = vmatpush.msra.mxu0 %v1105
    %1222 = vmatpush.msra.mxu0 %v1103
    %1223 = vmatpush.msra.mxu0 %v1101
    %1224 = vmatpush.msra.mxu0 %v1099
    %1225 = vmatpush.msra.mxu0 %v1097
    %1226 = vmatpush.msra.mxu0 %v1095
    %1227 = vmatpush.msra.mxu0 %v1093
    %1228 = vmatpush.msra.mxu0 %v1091
    %1229 = vmatpush.msra.mxu0 %v1089
    %1230 = vmatpush.msra.mxu0 %v1087
    %1231 = vmatpush.msra.mxu0 %v1085
    %1232 = vmatpush.msra.mxu0 %v1083
    %1233 = vmatmul.f32.gmra.mxu0 %v1144
    %v1234 = vpop.f32.mrf.mxu0
    %v1235 = vadd.f32 0.0, %v1234
    %1236 = vmatmul.f32.gmra.mxu0 %v1149
    %v1237 = vpop.f32.mrf.mxu0
    %v1238 = vadd.f32 0.0, %v1237
    %1239 = vmatmul.f32.gmra.mxu0 %v1153
    %v1240 = vpop.f32.mrf.mxu0
    %v1241 = vadd.f32 0.0, %v1240
    %1242 = vdwg.mxu0
    %1243 = vmatpush.msra.mxu0 0.0
    %1244 = vmatpush.msra.mxu0 0.0
    %1245 = vmatpush.msra.mxu0 %v1141
    %1246 = vmatpush.msra.mxu0 %v1139
    %1247 = vmatpush.msra.mxu0 %v1137
    %1248 = vmatpush.msra.mxu0 %v1135
    %1249 = vmatpush.msra.mxu0 %v1133
    %1250 = vmatpush.msra.mxu0 %v1131
    %1251 = vmatpush.msra.mxu0 %v1129
    %1252 = vmatpush.msra.mxu0 %v1127
    %1253 = vmatpush.msra.mxu0 %v1125
    %1254 = vmatpush.msra.mxu0 %v1123
    %1255 = vmatpush.msra.mxu0 %v1121
    %1256 = vmatpush.msra.mxu0 %v1119
    %1257 = vmatpush.msra.mxu0 %v1117
    %1258 = vmatpush.msra.mxu0 %v1115
    %1259 = vmatmul.f32.gmra.mxu0 %v1159
    %v1260 = vpop.f32.mrf.mxu0
    %v1261 = vadd.f32 %v1235, %v1260
    %1262 = vmatmul.f32.gmra.mxu0 %v1161
    %v1263 = vpop.f32.mrf.mxu0
    %v1264 = vadd.f32 %v1238, %v1263
    %1265 = vmatmul.f32.gmra.mxu0 %v1163
    %v1266 = vpop.f32.mrf.mxu0
    %v1267 = vadd.f32 %v1241, %v1266
    %1268 = vdwg.mxu0
    %v1269 = vadd.f32 %v1075, %v1209
    %v1270 = vadd.f32 %v1076, %v1261
    %v1271 = vadd.f32 %v1077, %v1212
    %v1272 = vadd.f32 %v1078, %v1264
    %v1273 = vadd.f32 %v1079, %v1215
    %v1274 = vadd.f32 %v1080, %v1267
    %s1275 = scalar_lea.vmem %s3, 1440
    %v1276 = vld [vmem:[%s1275] sm:$0xff]
    %v1277 = vld [vmem:[%s1275 + $0x8] sm:$0xff]
    %v1278 = vld [vmem:[%s1275 + $0x10] sm:$0xff]
    %v1279 = vld [vmem:[%s1275 + $0x18] sm:$0xff]
    %v1280 = vld [vmem:[%s1275 + $0x20] sm:$0xff]
    %v1281 = vld [vmem:[%s1275 + $0x28] sm:$0xff]
    %v1282 = vld [vmem:[%s1275 + $0x30] sm:$0xff]
    %v1283 = vld [vmem:[%s1275 + $0x38] sm:$0xff]
    %v1284 = vld [vmem:[%s1275 + $0x40] sm:$0xff]
    %v1285 = vld [vmem:[%s1275 + $0x48] sm:$0xff]
    %v1286 = vld [vmem:[%s1275 + $0x50] sm:$0xff]
    %v1287 = vld [vmem:[%s1275 + $0x58] sm:$0xff]
    %v1288 = vld [vmem:[%s1275 + $0x60] sm:$0xff]
    %v1289 = vld [vmem:[%s1275 + $0x68] sm:$0xff]
    %v1290 = vld [vmem:[%s1275 + $0x70] sm:$0xff]
    %v1291 = vld [vmem:[%s1275 + $0x78] sm:$0xff]
    %v1292 = vld [vmem:[%s1275 + $0x80] sm:$0xff]
    %v1293 = vld [vmem:[%s1275 + $0x88] sm:$0xff]
    %v1294 = vld [vmem:[%s1275 + $0x90] sm:$0xff]
    %v1295 = vld [vmem:[%s1275 + $0x98] sm:$0xff]
    %v1296 = vld [vmem:[%s1275 + $0xa0] sm:$0xff]
    %v1297 = vld [vmem:[%s1275 + $0xa8] sm:$0xff]
    %v1298 = vld [vmem:[%s1275 + $0xb0] sm:$0xff]
    %v1299 = vld [vmem:[%s1275 + $0xb8] sm:$0xff]
    %v1300 = vld [vmem:[%s1275 + $0xc0] sm:$0xff]
    %v1301 = vld [vmem:[%s1275 + $0xc8] sm:$0xff]
    %v1302 = vld [vmem:[%s1275 + $0xd0] sm:$0xff]
    %v1303 = vld [vmem:[%s1275 + $0xd8] sm:$0xff]
    %v1304 = vld [vmem:[%s1275 + $0xe0] sm:$0xff]
    %v1305 = vld [vmem:[%s1275 + $0xe8] sm:$0xff]
    %v1306 = vld [vmem:[%s1275 + $0xf0] sm:$0xff]
    %v1307 = vld [vmem:[%s1275 + $0xf8] sm:$0xff]
    %v1308 = vld [vmem:[%s1275 + $0x100] sm:$0xff]
    %v1309 = vld [vmem:[%s1275 + $0x108] sm:$0xff]
    %v1310 = vld [vmem:[%s1275 + $0x110] sm:$0xff]
    %v1311 = vld [vmem:[%s1275 + $0x118] sm:$0xff]
    %v1312 = vld [vmem:[%s1275 + $0x120] sm:$0xff]
    %v1313 = vld [vmem:[%s1275 + $0x128] sm:$0xff]
    %v1314 = vld [vmem:[%s1275 + $0x130] sm:$0xff]
    %v1315 = vld [vmem:[%s1275 + $0x138] sm:$0xff]
    %v1316 = vld [vmem:[%s1275 + $0x140] sm:$0xff]
    %v1317 = vld [vmem:[%s1275 + $0x148] sm:$0xff]
    %v1318 = vld [vmem:[%s1275 + $0x150] sm:$0xff]
    %v1319 = vld [vmem:[%s1275 + $0x158] sm:$0xff]
    %v1320 = vld [vmem:[%s1275 + $0x160] sm:$0xff]
    %v1321 = vld [vmem:[%s1275 + $0x168] sm:$0xff]
    %v1322 = vld [vmem:[%s1275 + $0x170] sm:$0xff]
    %v1323 = vld [vmem:[%s1275 + $0x178] sm:$0xff]
    %v1324 = vld [vmem:[%s1275 + $0x180] sm:$0xff]
    %v1325 = vld [vmem:[%s1275 + $0x188] sm:$0xff]
    %v1326 = vld [vmem:[%s1275 + $0x190] sm:$0xff]
    %v1327 = vld [vmem:[%s1275 + $0x198] sm:$0xff]
    %v1328 = vld [vmem:[%s1275 + $0x1a0] sm:$0xff]
    %v1329 = vld [vmem:[%s1275 + $0x1a8] sm:$0xff]
    %v1330 = vld [vmem:[%s1275 + $0x1b0] sm:$0xff]
    %v1331 = vld [vmem:[%s1275 + $0x1b8] sm:$0xff]
    %v1332 = vld [vmem:[%s1275 + $0x1c0] sm:$0xff]
    %v1333 = vld [vmem:[%s1275 + $0x1c8] sm:$0xff]
    %v1334 = vld [vmem:[%s1275 + $0x1d0] sm:$0xff]
    %v1335 = vld [vmem:[%s1275 + $0x1d8] sm:$0xff]
    %vm1336 = vcmask 1044480
    %v1337 = vrot.slane %v679, 3
    %v1338 = vrot.slane %v681, 3
    %v1339 = vsel %vm1336, %v1337, %v1338
    %v1340 = vrot.slane %v680, 3
    %v1341 = vrot.slane %v682, 3
    %v1342 = vsel %vm1336, %v1340, %v1341
    %v1343 = vrot.slane %v683, 3
    %v1344 = vsel %vm1336, %v1338, %v1343
    %v1345 = vrot.slane %v684, 3
    %v1346 = vsel %vm1336, %v1341, %v1345
    %v1347 = vrot.slane %v685, 3
    %v1348 = vsel %vm1336, %v1343, %v1347
    %v1349 = vrot.slane %v686, 3
    %v1350 = vsel %vm1336, %v1345, %v1349
    %v1354 = vsel %vm688, %v1342, 0
    %v1356 = vsel %vm688, %v1346, 0
    %v1358 = vsel %vm688, %v1350, 0
    %1360 = vmatpush.msra.mxu0 %v1306
    %1361 = vmatpush.msra.mxu0 %v1304
    %1362 = vmatpush.msra.mxu0 %v1302
    %1363 = vmatpush.msra.mxu0 %v1300
    %1364 = vmatpush.msra.mxu0 %v1298
    %1365 = vmatpush.msra.mxu0 %v1296
    %1366 = vmatpush.msra.mxu0 %v1294
    %1367 = vmatpush.msra.mxu0 %v1292
    %1368 = vmatpush.msra.mxu0 %v1290
    %1369 = vmatpush.msra.mxu0 %v1288
    %1370 = vmatpush.msra.mxu0 %v1286
    %1371 = vmatpush.msra.mxu0 %v1284
    %1372 = vmatpush.msra.mxu0 %v1282
    %1373 = vmatpush.msra.mxu0 %v1280
    %1374 = vmatpush.msra.mxu0 %v1278
    %1375 = vmatpush.msra.mxu0 %v1276
    %1376 = vmatmul.f32.gmra.mxu0 %v1339
    %v1377 = vpop.f32.mrf.mxu0
    %v1378 = vadd.f32 0.0, %v1377
    %1379 = vmatmul.f32.gmra.mxu0 %v1344
    %v1380 = vpop.f32.mrf.mxu0
    %v1381 = vadd.f32 0.0, %v1380
    %1382 = vmatmul.f32.gmra.mxu0 %v1348
    %v1383 = vpop.f32.mrf.mxu0
    %v1384 = vadd.f32 0.0, %v1383
    %1385 = vdwg.mxu0
    %1386 = vmatpush.msra.mxu0 0.0
    %1387 = vmatpush.msra.mxu0 0.0
    %1388 = vmatpush.msra.mxu0 %v1334
    %1389 = vmatpush.msra.mxu0 %v1332
    %1390 = vmatpush.msra.mxu0 %v1330
    %1391 = vmatpush.msra.mxu0 %v1328
    %1392 = vmatpush.msra.mxu0 %v1326
    %1393 = vmatpush.msra.mxu0 %v1324
    %1394 = vmatpush.msra.mxu0 %v1322
    %1395 = vmatpush.msra.mxu0 %v1320
    %1396 = vmatpush.msra.mxu0 %v1318
    %1397 = vmatpush.msra.mxu0 %v1316
    %1398 = vmatpush.msra.mxu0 %v1314
    %1399 = vmatpush.msra.mxu0 %v1312
    %1400 = vmatpush.msra.mxu0 %v1310
    %1401 = vmatpush.msra.mxu0 %v1308
    %1402 = vmatmul.f32.gmra.mxu0 %v1354
    %v1403 = vpop.f32.mrf.mxu0
    %v1404 = vadd.f32 %v1378, %v1403
    %1405 = vmatmul.f32.gmra.mxu0 %v1356
    %v1406 = vpop.f32.mrf.mxu0
    %v1407 = vadd.f32 %v1381, %v1406
    %1408 = vmatmul.f32.gmra.mxu0 %v1358
    %v1409 = vpop.f32.mrf.mxu0
    %v1410 = vadd.f32 %v1384, %v1409
    %1411 = vdwg.mxu0
    %1412 = vmatpush.msra.mxu0 %v1307
    %1413 = vmatpush.msra.mxu0 %v1305
    %1414 = vmatpush.msra.mxu0 %v1303
    %1415 = vmatpush.msra.mxu0 %v1301
    %1416 = vmatpush.msra.mxu0 %v1299
    %1417 = vmatpush.msra.mxu0 %v1297
    %1418 = vmatpush.msra.mxu0 %v1295
    %1419 = vmatpush.msra.mxu0 %v1293
    %1420 = vmatpush.msra.mxu0 %v1291
    %1421 = vmatpush.msra.mxu0 %v1289
    %1422 = vmatpush.msra.mxu0 %v1287
    %1423 = vmatpush.msra.mxu0 %v1285
    %1424 = vmatpush.msra.mxu0 %v1283
    %1425 = vmatpush.msra.mxu0 %v1281
    %1426 = vmatpush.msra.mxu0 %v1279
    %1427 = vmatpush.msra.mxu0 %v1277
    %1428 = vmatmul.f32.gmra.mxu0 %v1339
    %v1429 = vpop.f32.mrf.mxu0
    %v1430 = vadd.f32 0.0, %v1429
    %1431 = vmatmul.f32.gmra.mxu0 %v1344
    %v1432 = vpop.f32.mrf.mxu0
    %v1433 = vadd.f32 0.0, %v1432
    %1434 = vmatmul.f32.gmra.mxu0 %v1348
    %v1435 = vpop.f32.mrf.mxu0
    %v1436 = vadd.f32 0.0, %v1435
    %1437 = vdwg.mxu0
    %1438 = vmatpush.msra.mxu0 0.0
    %1439 = vmatpush.msra.mxu0 0.0
    %1440 = vmatpush.msra.mxu0 %v1335
    %1441 = vmatpush.msra.mxu0 %v1333
    %1442 = vmatpush.msra.mxu0 %v1331
    %1443 = vmatpush.msra.mxu0 %v1329
    %1444 = vmatpush.msra.mxu0 %v1327
    %1445 = vmatpush.msra.mxu0 %v1325
    %1446 = vmatpush.msra.mxu0 %v1323
    %1447 = vmatpush.msra.mxu0 %v1321
    %1448 = vmatpush.msra.mxu0 %v1319
    %1449 = vmatpush.msra.mxu0 %v1317
    %1450 = vmatpush.msra.mxu0 %v1315
    %1451 = vmatpush.msra.mxu0 %v1313
    %1452 = vmatpush.msra.mxu0 %v1311
    %1453 = vmatpush.msra.mxu0 %v1309
    %1454 = vmatmul.f32.gmra.mxu0 %v1354
    %v1455 = vpop.f32.mrf.mxu0
    %v1456 = vadd.f32 %v1430, %v1455
    %1457 = vmatmul.f32.gmra.mxu0 %v1356
    %v1458 = vpop.f32.mrf.mxu0
    %v1459 = vadd.f32 %v1433, %v1458
    %1460 = vmatmul.f32.gmra.mxu0 %v1358
    %v1461 = vpop.f32.mrf.mxu0
    %v1462 = vadd.f32 %v1436, %v1461
    %1463 = vdwg.mxu0
    %v1464 = vadd.f32 %v1269, %v1404
    %v1465 = vadd.f32 %v1270, %v1456
    %v1466 = vadd.f32 %v1271, %v1407
    %v1467 = vadd.f32 %v1272, %v1459
    %v1468 = vadd.f32 %v1273, %v1410
    %v1469 = vadd.f32 %v1274, %v1462
    %s1470 = scalar_lea.vmem %s3, 1920
    %v1471 = vld [vmem:[%s1470] sm:$0xff]
    %v1472 = vld [vmem:[%s1470 + $0x8] sm:$0xff]
    %v1473 = vld [vmem:[%s1470 + $0x10] sm:$0xff]
    %v1474 = vld [vmem:[%s1470 + $0x18] sm:$0xff]
    %v1475 = vld [vmem:[%s1470 + $0x20] sm:$0xff]
    %v1476 = vld [vmem:[%s1470 + $0x28] sm:$0xff]
    %v1477 = vld [vmem:[%s1470 + $0x30] sm:$0xff]
    %v1478 = vld [vmem:[%s1470 + $0x38] sm:$0xff]
    %v1479 = vld [vmem:[%s1470 + $0x40] sm:$0xff]
    %v1480 = vld [vmem:[%s1470 + $0x48] sm:$0xff]
    %v1481 = vld [vmem:[%s1470 + $0x50] sm:$0xff]
    %v1482 = vld [vmem:[%s1470 + $0x58] sm:$0xff]
    %v1483 = vld [vmem:[%s1470 + $0x60] sm:$0xff]
    %v1484 = vld [vmem:[%s1470 + $0x68] sm:$0xff]
    %v1485 = vld [vmem:[%s1470 + $0x70] sm:$0xff]
    %v1486 = vld [vmem:[%s1470 + $0x78] sm:$0xff]
    %v1487 = vld [vmem:[%s1470 + $0x80] sm:$0xff]
    %v1488 = vld [vmem:[%s1470 + $0x88] sm:$0xff]
    %v1489 = vld [vmem:[%s1470 + $0x90] sm:$0xff]
    %v1490 = vld [vmem:[%s1470 + $0x98] sm:$0xff]
    %v1491 = vld [vmem:[%s1470 + $0xa0] sm:$0xff]
    %v1492 = vld [vmem:[%s1470 + $0xa8] sm:$0xff]
    %v1493 = vld [vmem:[%s1470 + $0xb0] sm:$0xff]
    %v1494 = vld [vmem:[%s1470 + $0xb8] sm:$0xff]
    %v1495 = vld [vmem:[%s1470 + $0xc0] sm:$0xff]
    %v1496 = vld [vmem:[%s1470 + $0xc8] sm:$0xff]
    %v1497 = vld [vmem:[%s1470 + $0xd0] sm:$0xff]
    %v1498 = vld [vmem:[%s1470 + $0xd8] sm:$0xff]
    %v1499 = vld [vmem:[%s1470 + $0xe0] sm:$0xff]
    %v1500 = vld [vmem:[%s1470 + $0xe8] sm:$0xff]
    %v1501 = vld [vmem:[%s1470 + $0xf0] sm:$0xff]
    %v1502 = vld [vmem:[%s1470 + $0xf8] sm:$0xff]
    %v1503 = vld [vmem:[%s1470 + $0x100] sm:$0xff]
    %v1504 = vld [vmem:[%s1470 + $0x108] sm:$0xff]
    %v1505 = vld [vmem:[%s1470 + $0x110] sm:$0xff]
    %v1506 = vld [vmem:[%s1470 + $0x118] sm:$0xff]
    %v1507 = vld [vmem:[%s1470 + $0x120] sm:$0xff]
    %v1508 = vld [vmem:[%s1470 + $0x128] sm:$0xff]
    %v1509 = vld [vmem:[%s1470 + $0x130] sm:$0xff]
    %v1510 = vld [vmem:[%s1470 + $0x138] sm:$0xff]
    %v1511 = vld [vmem:[%s1470 + $0x140] sm:$0xff]
    %v1512 = vld [vmem:[%s1470 + $0x148] sm:$0xff]
    %v1513 = vld [vmem:[%s1470 + $0x150] sm:$0xff]
    %v1514 = vld [vmem:[%s1470 + $0x158] sm:$0xff]
    %v1515 = vld [vmem:[%s1470 + $0x160] sm:$0xff]
    %v1516 = vld [vmem:[%s1470 + $0x168] sm:$0xff]
    %v1517 = vld [vmem:[%s1470 + $0x170] sm:$0xff]
    %v1518 = vld [vmem:[%s1470 + $0x178] sm:$0xff]
    %v1519 = vld [vmem:[%s1470 + $0x180] sm:$0xff]
    %v1520 = vld [vmem:[%s1470 + $0x188] sm:$0xff]
    %v1521 = vld [vmem:[%s1470 + $0x190] sm:$0xff]
    %v1522 = vld [vmem:[%s1470 + $0x198] sm:$0xff]
    %v1523 = vld [vmem:[%s1470 + $0x1a0] sm:$0xff]
    %v1524 = vld [vmem:[%s1470 + $0x1a8] sm:$0xff]
    %v1525 = vld [vmem:[%s1470 + $0x1b0] sm:$0xff]
    %v1526 = vld [vmem:[%s1470 + $0x1b8] sm:$0xff]
    %v1527 = vld [vmem:[%s1470 + $0x1c0] sm:$0xff]
    %v1528 = vld [vmem:[%s1470 + $0x1c8] sm:$0xff]
    %v1529 = vld [vmem:[%s1470 + $0x1d0] sm:$0xff]
    %v1530 = vld [vmem:[%s1470 + $0x1d8] sm:$0xff]
    %vm1531 = vcmask 1043456
    %v1532 = vrot.slane %v679, 4
    %v1533 = vrot.slane %v681, 4
    %v1534 = vsel %vm1531, %v1532, %v1533
    %v1535 = vrot.slane %v680, 4
    %v1536 = vrot.slane %v682, 4
    %v1537 = vsel %vm1531, %v1535, %v1536
    %v1538 = vrot.slane %v683, 4
    %v1539 = vsel %vm1531, %v1533, %v1538
    %v1540 = vrot.slane %v684, 4
    %v1541 = vsel %vm1531, %v1536, %v1540
    %v1542 = vrot.slane %v685, 4
    %v1543 = vsel %vm1531, %v1538, %v1542
    %v1544 = vrot.slane %v686, 4
    %v1545 = vsel %vm1531, %v1540, %v1544
    %v1549 = vsel %vm688, %v1537, 0
    %v1551 = vsel %vm688, %v1541, 0
    %v1553 = vsel %vm688, %v1545, 0
    %1555 = vmatpush.msra.mxu0 %v1501
    %1556 = vmatpush.msra.mxu0 %v1499
    %1557 = vmatpush.msra.mxu0 %v1497
    %1558 = vmatpush.msra.mxu0 %v1495
    %1559 = vmatpush.msra.mxu0 %v1493
    %1560 = vmatpush.msra.mxu0 %v1491
    %1561 = vmatpush.msra.mxu0 %v1489
    %1562 = vmatpush.msra.mxu0 %v1487
    %1563 = vmatpush.msra.mxu0 %v1485
    %1564 = vmatpush.msra.mxu0 %v1483
    %1565 = vmatpush.msra.mxu0 %v1481
    %1566 = vmatpush.msra.mxu0 %v1479
    %1567 = vmatpush.msra.mxu0 %v1477
    %1568 = vmatpush.msra.mxu0 %v1475
    %1569 = vmatpush.msra.mxu0 %v1473
    %1570 = vmatpush.msra.mxu0 %v1471
    %1571 = vmatmul.f32.gmra.mxu0 %v1534
    %v1572 = vpop.f32.mrf.mxu0
    %v1573 = vadd.f32 0.0, %v1572
    %1574 = vmatmul.f32.gmra.mxu0 %v1539
    %v1575 = vpop.f32.mrf.mxu0
    %v1576 = vadd.f32 0.0, %v1575
    %1577 = vmatmul.f32.gmra.mxu0 %v1543
    %v1578 = vpop.f32.mrf.mxu0
    %v1579 = vadd.f32 0.0, %v1578
    %1580 = vdwg.mxu0
    %1581 = vmatpush.msra.mxu0 0.0
    %1582 = vmatpush.msra.mxu0 0.0
    %1583 = vmatpush.msra.mxu0 %v1529
    %1584 = vmatpush.msra.mxu0 %v1527
    %1585 = vmatpush.msra.mxu0 %v1525
    %1586 = vmatpush.msra.mxu0 %v1523
    %1587 = vmatpush.msra.mxu0 %v1521
    %1588 = vmatpush.msra.mxu0 %v1519
    %1589 = vmatpush.msra.mxu0 %v1517
    %1590 = vmatpush.msra.mxu0 %v1515
    %1591 = vmatpush.msra.mxu0 %v1513
    %1592 = vmatpush.msra.mxu0 %v1511
    %1593 = vmatpush.msra.mxu0 %v1509
    %1594 = vmatpush.msra.mxu0 %v1507
    %1595 = vmatpush.msra.mxu0 %v1505
    %1596 = vmatpush.msra.mxu0 %v1503
    %1597 = vmatmul.f32.gmra.mxu0 %v1549
    %v1598 = vpop.f32.mrf.mxu0
    %v1599 = vadd.f32 %v1573, %v1598
    %1600 = vmatmul.f32.gmra.mxu0 %v1551
    %v1601 = vpop.f32.mrf.mxu0
    %v1602 = vadd.f32 %v1576, %v1601
    %1603 = vmatmul.f32.gmra.mxu0 %v1553
    %v1604 = vpop.f32.mrf.mxu0
    %v1605 = vadd.f32 %v1579, %v1604
    %1606 = vdwg.mxu0
    %1607 = vmatpush.msra.mxu0 %v1502
    %1608 = vmatpush.msra.mxu0 %v1500
    %1609 = vmatpush.msra.mxu0 %v1498
    %1610 = vmatpush.msra.mxu0 %v1496
    %1611 = vmatpush.msra.mxu0 %v1494
    %1612 = vmatpush.msra.mxu0 %v1492
    %1613 = vmatpush.msra.mxu0 %v1490
    %1614 = vmatpush.msra.mxu0 %v1488
    %1615 = vmatpush.msra.mxu0 %v1486
    %1616 = vmatpush.msra.mxu0 %v1484
    %1617 = vmatpush.msra.mxu0 %v1482
    %1618 = vmatpush.msra.mxu0 %v1480
    %1619 = vmatpush.msra.mxu0 %v1478
    %1620 = vmatpush.msra.mxu0 %v1476
    %1621 = vmatpush.msra.mxu0 %v1474
    %1622 = vmatpush.msra.mxu0 %v1472
    %1623 = vmatmul.f32.gmra.mxu0 %v1534
    %v1624 = vpop.f32.mrf.mxu0
    %v1625 = vadd.f32 0.0, %v1624
    %1626 = vmatmul.f32.gmra.mxu0 %v1539
    %v1627 = vpop.f32.mrf.mxu0
    %v1628 = vadd.f32 0.0, %v1627
    %1629 = vmatmul.f32.gmra.mxu0 %v1543
    %v1630 = vpop.f32.mrf.mxu0
    %v1631 = vadd.f32 0.0, %v1630
    %1632 = vdwg.mxu0
    %1633 = vmatpush.msra.mxu0 0.0
    %1634 = vmatpush.msra.mxu0 0.0
    %1635 = vmatpush.msra.mxu0 %v1530
    %1636 = vmatpush.msra.mxu0 %v1528
    %1637 = vmatpush.msra.mxu0 %v1526
    %1638 = vmatpush.msra.mxu0 %v1524
    %1639 = vmatpush.msra.mxu0 %v1522
    %1640 = vmatpush.msra.mxu0 %v1520
    %1641 = vmatpush.msra.mxu0 %v1518
    %1642 = vmatpush.msra.mxu0 %v1516
    %1643 = vmatpush.msra.mxu0 %v1514
    %1644 = vmatpush.msra.mxu0 %v1512
    %1645 = vmatpush.msra.mxu0 %v1510
    %1646 = vmatpush.msra.mxu0 %v1508
    %1647 = vmatpush.msra.mxu0 %v1506
    %1648 = vmatpush.msra.mxu0 %v1504
    %1649 = vmatmul.f32.gmra.mxu0 %v1549
    %v1650 = vpop.f32.mrf.mxu0
    %v1651 = vadd.f32 %v1625, %v1650
    %1652 = vmatmul.f32.gmra.mxu0 %v1551
    %v1653 = vpop.f32.mrf.mxu0
    %v1654 = vadd.f32 %v1628, %v1653
    %1655 = vmatmul.f32.gmra.mxu0 %v1553
    %v1656 = vpop.f32.mrf.mxu0
    %v1657 = vadd.f32 %v1631, %v1656
    %1658 = vdwg.mxu0
    %v1659 = vadd.f32 %v1464, %v1599
    %v1660 = vadd.f32 %v1465, %v1651
    %v1661 = vadd.f32 %v1466, %v1602
    %v1662 = vadd.f32 %v1467, %v1654
    %v1663 = vadd.f32 %v1468, %v1605
    %v1664 = vadd.f32 %v1469, %v1657
    %s1665 = scalar_lea.vmem %s3, 2400
    %v1666 = vld [vmem:[%s1665] sm:$0xff]
    %v1667 = vld [vmem:[%s1665 + $0x8] sm:$0xff]
    %v1668 = vld [vmem:[%s1665 + $0x10] sm:$0xff]
    %v1669 = vld [vmem:[%s1665 + $0x18] sm:$0xff]
    %v1670 = vld [vmem:[%s1665 + $0x20] sm:$0xff]
    %v1671 = vld [vmem:[%s1665 + $0x28] sm:$0xff]
    %v1672 = vld [vmem:[%s1665 + $0x30] sm:$0xff]
    %v1673 = vld [vmem:[%s1665 + $0x38] sm:$0xff]
    %v1674 = vld [vmem:[%s1665 + $0x40] sm:$0xff]
    %v1675 = vld [vmem:[%s1665 + $0x48] sm:$0xff]
    %v1676 = vld [vmem:[%s1665 + $0x50] sm:$0xff]
    %v1677 = vld [vmem:[%s1665 + $0x58] sm:$0xff]
    %v1678 = vld [vmem:[%s1665 + $0x60] sm:$0xff]
    %v1679 = vld [vmem:[%s1665 + $0x68] sm:$0xff]
    %v1680 = vld [vmem:[%s1665 + $0x70] sm:$0xff]
    %v1681 = vld [vmem:[%s1665 + $0x78] sm:$0xff]
    %v1682 = vld [vmem:[%s1665 + $0x80] sm:$0xff]
    %v1683 = vld [vmem:[%s1665 + $0x88] sm:$0xff]
    %v1684 = vld [vmem:[%s1665 + $0x90] sm:$0xff]
    %v1685 = vld [vmem:[%s1665 + $0x98] sm:$0xff]
    %v1686 = vld [vmem:[%s1665 + $0xa0] sm:$0xff]
    %v1687 = vld [vmem:[%s1665 + $0xa8] sm:$0xff]
    %v1688 = vld [vmem:[%s1665 + $0xb0] sm:$0xff]
    %v1689 = vld [vmem:[%s1665 + $0xb8] sm:$0xff]
    %v1690 = vld [vmem:[%s1665 + $0xc0] sm:$0xff]
    %v1691 = vld [vmem:[%s1665 + $0xc8] sm:$0xff]
    %v1692 = vld [vmem:[%s1665 + $0xd0] sm:$0xff]
    %v1693 = vld [vmem:[%s1665 + $0xd8] sm:$0xff]
    %v1694 = vld [vmem:[%s1665 + $0xe0] sm:$0xff]
    %v1695 = vld [vmem:[%s1665 + $0xe8] sm:$0xff]
    %v1696 = vld [vmem:[%s1665 + $0xf0] sm:$0xff]
    %v1697 = vld [vmem:[%s1665 + $0xf8] sm:$0xff]
    %v1698 = vld [vmem:[%s1665 + $0x100] sm:$0xff]
    %v1699 = vld [vmem:[%s1665 + $0x108] sm:$0xff]
    %v1700 = vld [vmem:[%s1665 + $0x110] sm:$0xff]
    %v1701 = vld [vmem:[%s1665 + $0x118] sm:$0xff]
    %v1702 = vld [vmem:[%s1665 + $0x120] sm:$0xff]
    %v1703 = vld [vmem:[%s1665 + $0x128] sm:$0xff]
    %v1704 = vld [vmem:[%s1665 + $0x130] sm:$0xff]
    %v1705 = vld [vmem:[%s1665 + $0x138] sm:$0xff]
    %v1706 = vld [vmem:[%s1665 + $0x140] sm:$0xff]
    %v1707 = vld [vmem:[%s1665 + $0x148] sm:$0xff]
    %v1708 = vld [vmem:[%s1665 + $0x150] sm:$0xff]
    %v1709 = vld [vmem:[%s1665 + $0x158] sm:$0xff]
    %v1710 = vld [vmem:[%s1665 + $0x160] sm:$0xff]
    %v1711 = vld [vmem:[%s1665 + $0x168] sm:$0xff]
    %v1712 = vld [vmem:[%s1665 + $0x170] sm:$0xff]
    %v1713 = vld [vmem:[%s1665 + $0x178] sm:$0xff]
    %v1714 = vld [vmem:[%s1665 + $0x180] sm:$0xff]
    %v1715 = vld [vmem:[%s1665 + $0x188] sm:$0xff]
    %v1716 = vld [vmem:[%s1665 + $0x190] sm:$0xff]
    %v1717 = vld [vmem:[%s1665 + $0x198] sm:$0xff]
    %v1718 = vld [vmem:[%s1665 + $0x1a0] sm:$0xff]
    %v1719 = vld [vmem:[%s1665 + $0x1a8] sm:$0xff]
    %v1720 = vld [vmem:[%s1665 + $0x1b0] sm:$0xff]
    %v1721 = vld [vmem:[%s1665 + $0x1b8] sm:$0xff]
    %v1722 = vld [vmem:[%s1665 + $0x1c0] sm:$0xff]
    %v1723 = vld [vmem:[%s1665 + $0x1c8] sm:$0xff]
    %v1724 = vld [vmem:[%s1665 + $0x1d0] sm:$0xff]
    %v1725 = vld [vmem:[%s1665 + $0x1d8] sm:$0xff]
    %vm1726 = vcmask 1042432
    %v1727 = vrot.slane %v679, 5
    %v1728 = vrot.slane %v681, 5
    %v1729 = vsel %vm1726, %v1727, %v1728
    %v1730 = vrot.slane %v680, 5
    %v1731 = vrot.slane %v682, 5
    %v1732 = vsel %vm1726, %v1730, %v1731
    %v1733 = vrot.slane %v683, 5
    %v1734 = vsel %vm1726, %v1728, %v1733
    %v1735 = vrot.slane %v684, 5
    %v1736 = vsel %vm1726, %v1731, %v1735
    %v1737 = vrot.slane %v685, 5
    %v1738 = vsel %vm1726, %v1733, %v1737
    %v1739 = vrot.slane %v686, 5
    %v1740 = vsel %vm1726, %v1735, %v1739
    %v1744 = vsel %vm688, %v1732, 0
    %v1746 = vsel %vm688, %v1736, 0
    %v1748 = vsel %vm688, %v1740, 0
    %1750 = vmatpush.msra.mxu0 %v1696
    %1751 = vmatpush.msra.mxu0 %v1694
    %1752 = vmatpush.msra.mxu0 %v1692
    %1753 = vmatpush.msra.mxu0 %v1690
    %1754 = vmatpush.msra.mxu0 %v1688
    %1755 = vmatpush.msra.mxu0 %v1686
    %1756 = vmatpush.msra.mxu0 %v1684
    %1757 = vmatpush.msra.mxu0 %v1682
    %1758 = vmatpush.msra.mxu0 %v1680
    %1759 = vmatpush.msra.mxu0 %v1678
    %1760 = vmatpush.msra.mxu0 %v1676
    %1761 = vmatpush.msra.mxu0 %v1674
    %1762 = vmatpush.msra.mxu0 %v1672
    %1763 = vmatpush.msra.mxu0 %v1670
    %1764 = vmatpush.msra.mxu0 %v1668
    %1765 = vmatpush.msra.mxu0 %v1666
    %1766 = vmatmul.f32.gmra.mxu0 %v1729
    %v1767 = vpop.f32.mrf.mxu0
    %v1768 = vadd.f32 0.0, %v1767
    %1769 = vmatmul.f32.gmra.mxu0 %v1734
    %v1770 = vpop.f32.mrf.mxu0
    %v1771 = vadd.f32 0.0, %v1770
    %1772 = vmatmul.f32.gmra.mxu0 %v1738
    %v1773 = vpop.f32.mrf.mxu0
    %v1774 = vadd.f32 0.0, %v1773
    %1775 = vdwg.mxu0
    %1776 = vmatpush.msra.mxu0 0.0
    %1777 = vmatpush.msra.mxu0 0.0
    %1778 = vmatpush.msra.mxu0 %v1724
    %1779 = vmatpush.msra.mxu0 %v1722
    %1780 = vmatpush.msra.mxu0 %v1720
    %1781 = vmatpush.msra.mxu0 %v1718
    %1782 = vmatpush.msra.mxu0 %v1716
    %1783 = vmatpush.msra.mxu0 %v1714
    %1784 = vmatpush.msra.mxu0 %v1712
    %1785 = vmatpush.msra.mxu0 %v1710
    %1786 = vmatpush.msra.mxu0 %v1708
    %1787 = vmatpush.msra.mxu0 %v1706
    %1788 = vmatpush.msra.mxu0 %v1704
    %1789 = vmatpush.msra.mxu0 %v1702
    %1790 = vmatpush.msra.mxu0 %v1700
    %1791 = vmatpush.msra.mxu0 %v1698
    %1792 = vmatmul.f32.gmra.mxu0 %v1744
    %v1793 = vpop.f32.mrf.mxu0
    %v1794 = vadd.f32 %v1768, %v1793
    %1795 = vmatmul.f32.gmra.mxu0 %v1746
    %v1796 = vpop.f32.mrf.mxu0
    %v1797 = vadd.f32 %v1771, %v1796
    %1798 = vmatmul.f32.gmra.mxu0 %v1748
    %v1799 = vpop.f32.mrf.mxu0
    %v1800 = vadd.f32 %v1774, %v1799
    %1801 = vdwg.mxu0
    %1802 = vmatpush.msra.mxu0 %v1697
    %1803 = vmatpush.msra.mxu0 %v1695
    %1804 = vmatpush.msra.mxu0 %v1693
    %1805 = vmatpush.msra.mxu0 %v1691
    %1806 = vmatpush.msra.mxu0 %v1689
    %1807 = vmatpush.msra.mxu0 %v1687
    %1808 = vmatpush.msra.mxu0 %v1685
    %1809 = vmatpush.msra.mxu0 %v1683
    %1810 = vmatpush.msra.mxu0 %v1681
    %1811 = vmatpush.msra.mxu0 %v1679
    %1812 = vmatpush.msra.mxu0 %v1677
    %1813 = vmatpush.msra.mxu0 %v1675
    %1814 = vmatpush.msra.mxu0 %v1673
    %1815 = vmatpush.msra.mxu0 %v1671
    %1816 = vmatpush.msra.mxu0 %v1669
    %1817 = vmatpush.msra.mxu0 %v1667
    %1818 = vmatmul.f32.gmra.mxu0 %v1729
    %v1819 = vpop.f32.mrf.mxu0
    %v1820 = vadd.f32 0.0, %v1819
    %1821 = vmatmul.f32.gmra.mxu0 %v1734
    %v1822 = vpop.f32.mrf.mxu0
    %v1823 = vadd.f32 0.0, %v1822
    %1824 = vmatmul.f32.gmra.mxu0 %v1738
    %v1825 = vpop.f32.mrf.mxu0
    %v1826 = vadd.f32 0.0, %v1825
    %1827 = vdwg.mxu0
    %1828 = vmatpush.msra.mxu0 0.0
    %1829 = vmatpush.msra.mxu0 0.0
    %1830 = vmatpush.msra.mxu0 %v1725
    %1831 = vmatpush.msra.mxu0 %v1723
    %1832 = vmatpush.msra.mxu0 %v1721
    %1833 = vmatpush.msra.mxu0 %v1719
    %1834 = vmatpush.msra.mxu0 %v1717
    %1835 = vmatpush.msra.mxu0 %v1715
    %1836 = vmatpush.msra.mxu0 %v1713
    %1837 = vmatpush.msra.mxu0 %v1711
    %1838 = vmatpush.msra.mxu0 %v1709
    %1839 = vmatpush.msra.mxu0 %v1707
    %1840 = vmatpush.msra.mxu0 %v1705
    %1841 = vmatpush.msra.mxu0 %v1703
    %1842 = vmatpush.msra.mxu0 %v1701
    %1843 = vmatpush.msra.mxu0 %v1699
    %1844 = vmatmul.f32.gmra.mxu0 %v1744
    %v1845 = vpop.f32.mrf.mxu0
    %v1846 = vadd.f32 %v1820, %v1845
    %1847 = vmatmul.f32.gmra.mxu0 %v1746
    %v1848 = vpop.f32.mrf.mxu0
    %v1849 = vadd.f32 %v1823, %v1848
    %1850 = vmatmul.f32.gmra.mxu0 %v1748
    %v1851 = vpop.f32.mrf.mxu0
    %v1852 = vadd.f32 %v1826, %v1851
    %1853 = vdwg.mxu0
    %v1854 = vadd.f32 %v1659, %v1794
    %v1855 = vadd.f32 %v1660, %v1846
    %v1856 = vadd.f32 %v1661, %v1797
    %v1857 = vadd.f32 %v1662, %v1849
    %v1858 = vadd.f32 %v1663, %v1800
    %v1859 = vadd.f32 %v1664, %v1852
    %s1860 = scalar_lea.vmem %s3, 2880
    %v1861 = vld [vmem:[%s1860] sm:$0xff]
    %v1862 = vld [vmem:[%s1860 + $0x8] sm:$0xff]
    %v1863 = vld [vmem:[%s1860 + $0x10] sm:$0xff]
    %v1864 = vld [vmem:[%s1860 + $0x18] sm:$0xff]
    %v1865 = vld [vmem:[%s1860 + $0x20] sm:$0xff]
    %v1866 = vld [vmem:[%s1860 + $0x28] sm:$0xff]
    %v1867 = vld [vmem:[%s1860 + $0x30] sm:$0xff]
    %v1868 = vld [vmem:[%s1860 + $0x38] sm:$0xff]
    %v1869 = vld [vmem:[%s1860 + $0x40] sm:$0xff]
    %v1870 = vld [vmem:[%s1860 + $0x48] sm:$0xff]
    %v1871 = vld [vmem:[%s1860 + $0x50] sm:$0xff]
    %v1872 = vld [vmem:[%s1860 + $0x58] sm:$0xff]
    %v1873 = vld [vmem:[%s1860 + $0x60] sm:$0xff]
    %v1874 = vld [vmem:[%s1860 + $0x68] sm:$0xff]
    %v1875 = vld [vmem:[%s1860 + $0x70] sm:$0xff]
    %v1876 = vld [vmem:[%s1860 + $0x78] sm:$0xff]
    %v1877 = vld [vmem:[%s1860 + $0x80] sm:$0xff]
    %v1878 = vld [vmem:[%s1860 + $0x88] sm:$0xff]
    %v1879 = vld [vmem:[%s1860 + $0x90] sm:$0xff]
    %v1880 = vld [vmem:[%s1860 + $0x98] sm:$0xff]
    %v1881 = vld [vmem:[%s1860 + $0xa0] sm:$0xff]
    %v1882 = vld [vmem:[%s1860 + $0xa8] sm:$0xff]
    %v1883 = vld [vmem:[%s1860 + $0xb0] sm:$0xff]
    %v1884 = vld [vmem:[%s1860 + $0xb8] sm:$0xff]
    %v1885 = vld [vmem:[%s1860 + $0xc0] sm:$0xff]
    %v1886 = vld [vmem:[%s1860 + $0xc8] sm:$0xff]
    %v1887 = vld [vmem:[%s1860 + $0xd0] sm:$0xff]
    %v1888 = vld [vmem:[%s1860 + $0xd8] sm:$0xff]
    %v1889 = vld [vmem:[%s1860 + $0xe0] sm:$0xff]
    %v1890 = vld [vmem:[%s1860 + $0xe8] sm:$0xff]
    %v1891 = vld [vmem:[%s1860 + $0xf0] sm:$0xff]
    %v1892 = vld [vmem:[%s1860 + $0xf8] sm:$0xff]
    %v1893 = vld [vmem:[%s1860 + $0x100] sm:$0xff]
    %v1894 = vld [vmem:[%s1860 + $0x108] sm:$0xff]
    %v1895 = vld [vmem:[%s1860 + $0x110] sm:$0xff]
    %v1896 = vld [vmem:[%s1860 + $0x118] sm:$0xff]
    %v1897 = vld [vmem:[%s1860 + $0x120] sm:$0xff]
    %v1898 = vld [vmem:[%s1860 + $0x128] sm:$0xff]
    %v1899 = vld [vmem:[%s1860 + $0x130] sm:$0xff]
    %v1900 = vld [vmem:[%s1860 + $0x138] sm:$0xff]
    %v1901 = vld [vmem:[%s1860 + $0x140] sm:$0xff]
    %v1902 = vld [vmem:[%s1860 + $0x148] sm:$0xff]
    %v1903 = vld [vmem:[%s1860 + $0x150] sm:$0xff]
    %v1904 = vld [vmem:[%s1860 + $0x158] sm:$0xff]
    %v1905 = vld [vmem:[%s1860 + $0x160] sm:$0xff]
    %v1906 = vld [vmem:[%s1860 + $0x168] sm:$0xff]
    %v1907 = vld [vmem:[%s1860 + $0x170] sm:$0xff]
    %v1908 = vld [vmem:[%s1860 + $0x178] sm:$0xff]
    %v1909 = vld [vmem:[%s1860 + $0x180] sm:$0xff]
    %v1910 = vld [vmem:[%s1860 + $0x188] sm:$0xff]
    %v1911 = vld [vmem:[%s1860 + $0x190] sm:$0xff]
    %v1912 = vld [vmem:[%s1860 + $0x198] sm:$0xff]
    %v1913 = vld [vmem:[%s1860 + $0x1a0] sm:$0xff]
    %v1914 = vld [vmem:[%s1860 + $0x1a8] sm:$0xff]
    %v1915 = vld [vmem:[%s1860 + $0x1b0] sm:$0xff]
    %v1916 = vld [vmem:[%s1860 + $0x1b8] sm:$0xff]
    %v1917 = vld [vmem:[%s1860 + $0x1c0] sm:$0xff]
    %v1918 = vld [vmem:[%s1860 + $0x1c8] sm:$0xff]
    %v1919 = vld [vmem:[%s1860 + $0x1d0] sm:$0xff]
    %v1920 = vld [vmem:[%s1860 + $0x1d8] sm:$0xff]
    %vm1921 = vcmask 1041408
    %v1922 = vrot.slane %v679, 6
    %v1923 = vrot.slane %v681, 6
    %v1924 = vsel %vm1921, %v1922, %v1923
    %v1925 = vrot.slane %v680, 6
    %v1926 = vrot.slane %v682, 6
    %v1927 = vsel %vm1921, %v1925, %v1926
    %v1928 = vrot.slane %v683, 6
    %v1929 = vsel %vm1921, %v1923, %v1928
    %v1930 = vrot.slane %v684, 6
    %v1931 = vsel %vm1921, %v1926, %v1930
    %v1932 = vrot.slane %v685, 6
    %v1933 = vsel %vm1921, %v1928, %v1932
    %v1934 = vrot.slane %v686, 6
    %v1935 = vsel %vm1921, %v1930, %v1934
    %v1939 = vsel %vm688, %v1927, 0
    %v1941 = vsel %vm688, %v1931, 0
    %v1943 = vsel %vm688, %v1935, 0
    %1945 = vmatpush.msra.mxu0 %v1891
    %1946 = vmatpush.msra.mxu0 %v1889
    %1947 = vmatpush.msra.mxu0 %v1887
    %1948 = vmatpush.msra.mxu0 %v1885
    %1949 = vmatpush.msra.mxu0 %v1883
    %1950 = vmatpush.msra.mxu0 %v1881
    %1951 = vmatpush.msra.mxu0 %v1879
    %1952 = vmatpush.msra.mxu0 %v1877
    %1953 = vmatpush.msra.mxu0 %v1875
    %1954 = vmatpush.msra.mxu0 %v1873
    %1955 = vmatpush.msra.mxu0 %v1871
    %1956 = vmatpush.msra.mxu0 %v1869
    %1957 = vmatpush.msra.mxu0 %v1867
    %1958 = vmatpush.msra.mxu0 %v1865
    %1959 = vmatpush.msra.mxu0 %v1863
    %1960 = vmatpush.msra.mxu0 %v1861
    %1961 = vmatmul.f32.gmra.mxu0 %v1924
    %v1962 = vpop.f32.mrf.mxu0
    %v1963 = vadd.f32 0.0, %v1962
    %1964 = vmatmul.f32.gmra.mxu0 %v1929
    %v1965 = vpop.f32.mrf.mxu0
    %v1966 = vadd.f32 0.0, %v1965
    %1967 = vmatmul.f32.gmra.mxu0 %v1933
    %v1968 = vpop.f32.mrf.mxu0
    %v1969 = vadd.f32 0.0, %v1968
    %1970 = vdwg.mxu0
    %1971 = vmatpush.msra.mxu0 0.0
    %1972 = vmatpush.msra.mxu0 0.0
    %1973 = vmatpush.msra.mxu0 %v1919
    %1974 = vmatpush.msra.mxu0 %v1917
    %1975 = vmatpush.msra.mxu0 %v1915
    %1976 = vmatpush.msra.mxu0 %v1913
    %1977 = vmatpush.msra.mxu0 %v1911
    %1978 = vmatpush.msra.mxu0 %v1909
    %1979 = vmatpush.msra.mxu0 %v1907
    %1980 = vmatpush.msra.mxu0 %v1905
    %1981 = vmatpush.msra.mxu0 %v1903
    %1982 = vmatpush.msra.mxu0 %v1901
    %1983 = vmatpush.msra.mxu0 %v1899
    %1984 = vmatpush.msra.mxu0 %v1897
    %1985 = vmatpush.msra.mxu0 %v1895
    %1986 = vmatpush.msra.mxu0 %v1893
    %1987 = vmatmul.f32.gmra.mxu0 %v1939
    %v1988 = vpop.f32.mrf.mxu0
    %v1989 = vadd.f32 %v1963, %v1988
    %1990 = vmatmul.f32.gmra.mxu0 %v1941
    %v1991 = vpop.f32.mrf.mxu0
    %v1992 = vadd.f32 %v1966, %v1991
    %1993 = vmatmul.f32.gmra.mxu0 %v1943
    %v1994 = vpop.f32.mrf.mxu0
    %v1995 = vadd.f32 %v1969, %v1994
    %1996 = vdwg.mxu0
    %1997 = vmatpush.msra.mxu0 %v1892
    %1998 = vmatpush.msra.mxu0 %v1890
    %1999 = vmatpush.msra.mxu0 %v1888
    %2000 = vmatpush.msra.mxu0 %v1886
    %2001 = vmatpush.msra.mxu0 %v1884
    %2002 = vmatpush.msra.mxu0 %v1882
    %2003 = vmatpush.msra.mxu0 %v1880
    %2004 = vmatpush.msra.mxu0 %v1878
    %2005 = vmatpush.msra.mxu0 %v1876
    %2006 = vmatpush.msra.mxu0 %v1874
    %2007 = vmatpush.msra.mxu0 %v1872
    %2008 = vmatpush.msra.mxu0 %v1870
    %2009 = vmatpush.msra.mxu0 %v1868
    %2010 = vmatpush.msra.mxu0 %v1866
    %2011 = vmatpush.msra.mxu0 %v1864
    %2012 = vmatpush.msra.mxu0 %v1862
    %2013 = vmatmul.f32.gmra.mxu0 %v1924
    %v2014 = vpop.f32.mrf.mxu0
    %v2015 = vadd.f32 0.0, %v2014
    %2016 = vmatmul.f32.gmra.mxu0 %v1929
    %v2017 = vpop.f32.mrf.mxu0
    %v2018 = vadd.f32 0.0, %v2017
    %2019 = vmatmul.f32.gmra.mxu0 %v1933
    %v2020 = vpop.f32.mrf.mxu0
    %v2021 = vadd.f32 0.0, %v2020
    %2022 = vdwg.mxu0
    %2023 = vmatpush.msra.mxu0 0.0
    %2024 = vmatpush.msra.mxu0 0.0
    %2025 = vmatpush.msra.mxu0 %v1920
    %2026 = vmatpush.msra.mxu0 %v1918
    %2027 = vmatpush.msra.mxu0 %v1916
    %2028 = vmatpush.msra.mxu0 %v1914
    %2029 = vmatpush.msra.mxu0 %v1912
    %2030 = vmatpush.msra.mxu0 %v1910
    %2031 = vmatpush.msra.mxu0 %v1908
    %2032 = vmatpush.msra.mxu0 %v1906
    %2033 = vmatpush.msra.mxu0 %v1904
    %2034 = vmatpush.msra.mxu0 %v1902
    %2035 = vmatpush.msra.mxu0 %v1900
    %2036 = vmatpush.msra.mxu0 %v1898
    %2037 = vmatpush.msra.mxu0 %v1896
    %2038 = vmatpush.msra.mxu0 %v1894
    %2039 = vmatmul.f32.gmra.mxu0 %v1939
    %v2040 = vpop.f32.mrf.mxu0
    %v2041 = vadd.f32 %v2015, %v2040
    %2042 = vmatmul.f32.gmra.mxu0 %v1941
    %v2043 = vpop.f32.mrf.mxu0
    %v2044 = vadd.f32 %v2018, %v2043
    %2045 = vmatmul.f32.gmra.mxu0 %v1943
    %v2046 = vpop.f32.mrf.mxu0
    %v2047 = vadd.f32 %v2021, %v2046
    %2048 = vdwg.mxu0
    %v2049 = vadd.f32 %v1854, %v1989
    %v2050 = vadd.f32 %v1855, %v2041
    %v2051 = vadd.f32 %v1856, %v1992
    %v2052 = vadd.f32 %v1857, %v2044
    %v2053 = vadd.f32 %v1858, %v1995
    %v2054 = vadd.f32 %v1859, %v2047
    %2055 = vst [vmem:[%s8] sm:$0xff] %v2049
    %vm2056 = vcmask 130048
    %2057 = vst.msk [vmem:[%s8 + $0x8] sm:$0xff] %vm2056, %v2050
    %2058 = vst [vmem:[%s8 + $0x10] sm:$0xff] %v2051
    %2059 = vst.msk [vmem:[%s8 + $0x18] sm:$0xff] %vm2056, %v2052
    %2060 = vst [vmem:[%s8 + $0x20] sm:$0xff] %v2053
    %2061 = vst.msk [vmem:[%s8 + $0x28] sm:$0xff] %vm2056, %v2054
    %v2068 = vrot.slane %v2049, 1
    %v2069 = vrot.slane %v2051, 1
    %v2070 = vsel %vm320, %v2068, %v2069
    %v2071 = vrot.slane %v2050, 1
    %v2072 = vrot.slane %v2052, 1
    %v2073 = vsel %vm320, %v2071, %v2072
    %v2074 = vrot.slane %v2053, 1
    %v2075 = vsel %vm320, %v2069, %v2074
    %v2076 = vrot.slane %v2054, 1
    %v2077 = vsel %vm320, %v2072, %v2076
    %v2082 = vsel %vm320, %v2074, 0.0
    %v2083 = vsel %vm320, %v2076, 0.0
    %v2084 = vld [vmem:[%s6] sm:$0x1f]
    %v2086 = vperm.slane %v2084, 0
    %v2087 = vperm.slane %v2084, 1
    %v2088 = vperm.slane %v2084, 2
    %v2089 = vperm.slane %v2084, 3
    %v2090 = vperm.slane %v2084, 4
    %s2096 = scalar_lea.vmem [#allocation2], 1440
    %v2097 = vld [vmem:[%s2096] sm:$0xff]
    %v2098 = vld [vmem:[%s2096 + $0x8] sm:$0xff]
    %v2099 = vld [vmem:[%s2096 + $0x10] sm:$0xff]
    %v2100 = vld [vmem:[%s2096 + $0x18] sm:$0xff]
    %v2101 = vld [vmem:[%s2096 + $0x20] sm:$0xff]
    %v2102 = vld [vmem:[%s2096 + $0x28] sm:$0xff]
    %v2103 = vld [vmem:[%s2096 + $0x30] sm:$0xff]
    %v2104 = vld [vmem:[%s2096 + $0x38] sm:$0xff]
    %v2105 = vld [vmem:[%s2096 + $0x40] sm:$0xff]
    %v2106 = vld [vmem:[%s2096 + $0x48] sm:$0xff]
    %v2107 = vld [vmem:[%s2096 + $0x50] sm:$0xff]
    %v2108 = vld [vmem:[%s2096 + $0x58] sm:$0xff]
    %v2109 = vld [vmem:[%s2096 + $0x60] sm:$0xff]
    %v2110 = vld [vmem:[%s2096 + $0x68] sm:$0xff]
    %v2111 = vld [vmem:[%s2096 + $0x70] sm:$0xff]
    %v2112 = vld [vmem:[%s2096 + $0x78] sm:$0xff]
    %v2113 = vld [vmem:[%s2096 + $0x80] sm:$0xff]
    %v2114 = vld [vmem:[%s2096 + $0x88] sm:$0xff]
    %v2115 = vld [vmem:[%s2096 + $0x90] sm:$0xff]
    %v2116 = vld [vmem:[%s2096 + $0x98] sm:$0xff]
    %v2117 = vld [vmem:[%s2096 + $0xa0] sm:$0xff]
    %v2118 = vld [vmem:[%s2096 + $0xa8] sm:$0xff]
    %v2119 = vld [vmem:[%s2096 + $0xb0] sm:$0xff]
    %v2120 = vld [vmem:[%s2096 + $0xb8] sm:$0xff]
    %v2121 = vld [vmem:[%s2096 + $0xc0] sm:$0xff]
    %v2122 = vld [vmem:[%s2096 + $0xc8] sm:$0xff]
    %v2123 = vld [vmem:[%s2096 + $0xd0] sm:$0xff]
    %v2124 = vld [vmem:[%s2096 + $0xd8] sm:$0xff]
    %v2125 = vld [vmem:[%s2096 + $0xe0] sm:$0xff]
    %v2126 = vld [vmem:[%s2096 + $0xe8] sm:$0xff]
    %v2127 = vld [vmem:[%s2096 + $0xf0] sm:$0xff]
    %v2128 = vld [vmem:[%s2096 + $0xf8] sm:$0xff]
    %v2129 = vld [vmem:[%s2096 + $0x100] sm:$0xff]
    %v2130 = vld [vmem:[%s2096 + $0x108] sm:$0xff]
    %v2131 = vld [vmem:[%s2096 + $0x110] sm:$0xff]
    %v2132 = vld [vmem:[%s2096 + $0x118] sm:$0xff]
    %v2133 = vld [vmem:[%s2096 + $0x120] sm:$0xff]
    %v2134 = vld [vmem:[%s2096 + $0x128] sm:$0xff]
    %v2135 = vld [vmem:[%s2096 + $0x130] sm:$0xff]
    %v2136 = vld [vmem:[%s2096 + $0x138] sm:$0xff]
    %v2137 = vld [vmem:[%s2096 + $0x140] sm:$0xff]
    %v2138 = vld [vmem:[%s2096 + $0x148] sm:$0xff]
    %v2139 = vld [vmem:[%s2096 + $0x150] sm:$0xff]
    %v2140 = vld [vmem:[%s2096 + $0x158] sm:$0xff]
    %v2141 = vld [vmem:[%s2096 + $0x160] sm:$0xff]
    %v2142 = vld [vmem:[%s2096 + $0x168] sm:$0xff]
    %v2143 = vld [vmem:[%s2096 + $0x170] sm:$0xff]
    %v2144 = vld [vmem:[%s2096 + $0x178] sm:$0xff]
    %v2145 = vld [vmem:[%s2096 + $0x180] sm:$0xff]
    %v2146 = vld [vmem:[%s2096 + $0x188] sm:$0xff]
    %v2147 = vld [vmem:[%s2096 + $0x190] sm:$0xff]
    %v2148 = vld [vmem:[%s2096 + $0x198] sm:$0xff]
    %v2149 = vld [vmem:[%s2096 + $0x1a0] sm:$0xff]
    %v2150 = vld [vmem:[%s2096 + $0x1a8] sm:$0xff]
    %v2151 = vld [vmem:[%s2096 + $0x1b0] sm:$0xff]
    %v2152 = vld [vmem:[%s2096 + $0x1b8] sm:$0xff]
    %v2153 = vld [vmem:[%s2096 + $0x1c0] sm:$0xff]
    %v2154 = vld [vmem:[%s2096 + $0x1c8] sm:$0xff]
    %v2155 = vld [vmem:[%s2096 + $0x1d0] sm:$0xff]
    %v2156 = vld [vmem:[%s2096 + $0x1d8] sm:$0xff]
    %v2157 = vld [vmem:[%s2096 + $0x1e0] sm:$0xff]
    %v2158 = vld [vmem:[%s2096 + $0x1e8] sm:$0xff]
    %v2159 = vld [vmem:[%s2096 + $0x1f0] sm:$0xff]
    %v2160 = vld [vmem:[%s2096 + $0x1f8] sm:$0xff]
    %v2161 = vld [vmem:[%s2096 + $0x200] sm:$0xff]
    %v2162 = vld [vmem:[%s2096 + $0x208] sm:$0xff]
    %v2163 = vld [vmem:[%s2096 + $0x210] sm:$0xff]
    %v2164 = vld [vmem:[%s2096 + $0x218] sm:$0xff]
    %v2165 = vld [vmem:[%s2096 + $0x220] sm:$0xff]
    %v2166 = vld [vmem:[%s2096 + $0x228] sm:$0xff]
    %v2167 = vld [vmem:[%s2096 + $0x230] sm:$0xff]
    %v2168 = vld [vmem:[%s2096 + $0x238] sm:$0xff]
    %v2169 = vld [vmem:[%s2096 + $0x240] sm:$0xff]
    %v2170 = vld [vmem:[%s2096 + $0x248] sm:$0xff]
    %v2171 = vld [vmem:[%s2096 + $0x250] sm:$0xff]
    %v2172 = vld [vmem:[%s2096 + $0x258] sm:$0xff]
    %v2173 = vld [vmem:[%s2096 + $0x260] sm:$0xff]
    %v2174 = vld [vmem:[%s2096 + $0x268] sm:$0xff]
    %v2175 = vld [vmem:[%s2096 + $0x270] sm:$0xff]
    %v2176 = vld [vmem:[%s2096 + $0x278] sm:$0xff]
    %v2177 = vld [vmem:[%s2096 + $0x280] sm:$0xff]
    %v2178 = vld [vmem:[%s2096 + $0x288] sm:$0xff]
    %v2179 = vld [vmem:[%s2096 + $0x290] sm:$0xff]
    %v2180 = vld [vmem:[%s2096 + $0x298] sm:$0xff]
    %v2181 = vld [vmem:[%s2096 + $0x2a0] sm:$0xff]
    %v2182 = vld [vmem:[%s2096 + $0x2a8] sm:$0xff]
    %v2183 = vld [vmem:[%s2096 + $0x2b0] sm:$0xff]
    %v2184 = vld [vmem:[%s2096 + $0x2b8] sm:$0xff]
    %v2185 = vld [vmem:[%s2096 + $0x2c0] sm:$0xff]
    %v2186 = vld [vmem:[%s2096 + $0x2c8] sm:$0xff]
    %v2187 = vsel %vm2056, %v2050, 0
    %v2189 = vsel %vm2056, %v2052, 0
    %v2191 = vsel %vm2056, %v2054, 0
    %2193 = vmatpush.msra.mxu0 %v2172
    %2194 = vmatpush.msra.mxu0 %v2167
    %2195 = vmatpush.msra.mxu0 %v2162
    %2196 = vmatpush.msra.mxu0 %v2157
    %2197 = vmatpush.msra.mxu0 %v2152
    %2198 = vmatpush.msra.mxu0 %v2147
    %2199 = vmatpush.msra.mxu0 %v2142
    %2200 = vmatpush.msra.mxu0 %v2137
    %2201 = vmatpush.msra.mxu0 %v2132
    %2202 = vmatpush.msra.mxu0 %v2127
    %2203 = vmatpush.msra.mxu0 %v2122
    %2204 = vmatpush.msra.mxu0 %v2117
    %2205 = vmatpush.msra.mxu0 %v2112
    %2206 = vmatpush.msra.mxu0 %v2107
    %2207 = vmatpush.msra.mxu0 %v2102
    %2208 = vmatpush.msra.mxu0 %v2097
    %2209 = vmatmul.f32.gmra.mxu0 %v2049
    %v2210 = vpop.f32.mrf.mxu0
    %v2211 = vadd.f32 0.0, %v2210
    %2212 = vmatmul.f32.gmra.mxu0 %v2051
    %v2213 = vpop.f32.mrf.mxu0
    %v2214 = vadd.f32 0.0, %v2213
    %2215 = vmatmul.f32.gmra.mxu0 %v2053
    %v2216 = vpop.f32.mrf.mxu0
    %v2217 = vadd.f32 0.0, %v2216
    %2218 = vdwg.mxu0
    %2219 = vmatpush.msra.mxu0 0.0
    %2220 = vmatpush.msra.mxu0 0.0
    %2221 = vmatpush.msra.mxu0 0.0
    %2222 = vmatpush.msra.mxu0 0.0
    %2223 = vmatpush.msra.mxu0 0.0
    %2224 = vmatpush.msra.mxu0 0.0
    %2225 = vmatpush.msra.mxu0 0.0
    %2226 = vmatpush.msra.mxu0 0.0
    %2227 = vmatpush.msra.mxu0 0.0
    %2228 = vmatpush.msra.mxu0 0.0
    %2229 = vmatpush.msra.mxu0 0.0
    %2230 = vmatpush.msra.mxu0 0.0
    %2231 = vmatpush.msra.mxu0 0.0
    %2232 = vmatpush.msra.mxu0 0.0
    %2233 = vmatpush.msra.mxu0 %v2182
    %2234 = vmatpush.msra.mxu0 %v2177
    %2235 = vmatmul.f32.gmra.mxu0 %v2187
    %v2236 = vpop.f32.mrf.mxu0
    %v2237 = vadd.f32 %v2211, %v2236
    %2238 = vmatmul.f32.gmra.mxu0 %v2189
    %v2239 = vpop.f32.mrf.mxu0
    %v2240 = vadd.f32 %v2214, %v2239
    %2241 = vmatmul.f32.gmra.mxu0 %v2191
    %v2242 = vpop.f32.mrf.mxu0
    %v2243 = vadd.f32 %v2217, %v2242
    %2244 = vdwg.mxu0
    %2245 = vmatpush.msra.mxu0 %v2173
    %2246 = vmatpush.msra.mxu0 %v2168
    %2247 = vmatpush.msra.mxu0 %v2163
    %2248 = vmatpush.msra.mxu0 %v2158
    %2249 = vmatpush.msra.mxu0 %v2153
    %2250 = vmatpush.msra.mxu0 %v2148
    %2251 = vmatpush.msra.mxu0 %v2143
    %2252 = vmatpush.msra.mxu0 %v2138
    %2253 = vmatpush.msra.mxu0 %v2133
    %2254 = vmatpush.msra.mxu0 %v2128
    %2255 = vmatpush.msra.mxu0 %v2123
    %2256 = vmatpush.msra.mxu0 %v2118
    %2257 = vmatpush.msra.mxu0 %v2113
    %2258 = vmatpush.msra.mxu0 %v2108
    %2259 = vmatpush.msra.mxu0 %v2103
    %2260 = vmatpush.msra.mxu0 %v2098
    %2261 = vmatmul.f32.gmra.mxu0 %v2049
    %v2262 = vpop.f32.mrf.mxu0
    %v2263 = vadd.f32 0.0, %v2262
    %2264 = vmatmul.f32.gmra.mxu0 %v2051
    %v2265 = vpop.f32.mrf.mxu0
    %v2266 = vadd.f32 0.0, %v2265
    %2267 = vmatmul.f32.gmra.mxu0 %v2053
    %v2268 = vpop.f32.mrf.mxu0
    %v2269 = vadd.f32 0.0, %v2268
    %2270 = vdwg.mxu0
    %2271 = vmatpush.msra.mxu0 0.0
    %2272 = vmatpush.msra.mxu0 0.0
    %2273 = vmatpush.msra.mxu0 0.0
    %2274 = vmatpush.msra.mxu0 0.0
    %2275 = vmatpush.msra.mxu0 0.0
    %2276 = vmatpush.msra.mxu0 0.0
    %2277 = vmatpush.msra.mxu0 0.0
    %2278 = vmatpush.msra.mxu0 0.0
    %2279 = vmatpush.msra.mxu0 0.0
    %2280 = vmatpush.msra.mxu0 0.0
    %2281 = vmatpush.msra.mxu0 0.0
    %2282 = vmatpush.msra.mxu0 0.0
    %2283 = vmatpush.msra.mxu0 0.0
    %2284 = vmatpush.msra.mxu0 0.0
    %2285 = vmatpush.msra.mxu0 %v2183
    %2286 = vmatpush.msra.mxu0 %v2178
    %2287 = vmatmul.f32.gmra.mxu0 %v2187
    %v2288 = vpop.f32.mrf.mxu0
    %v2289 = vadd.f32 %v2263, %v2288
    %2290 = vmatmul.f32.gmra.mxu0 %v2189
    %v2291 = vpop.f32.mrf.mxu0
    %v2292 = vadd.f32 %v2266, %v2291
    %2293 = vmatmul.f32.gmra.mxu0 %v2191
    %v2294 = vpop.f32.mrf.mxu0
    %v2295 = vadd.f32 %v2269, %v2294
    %2296 = vdwg.mxu0
    %2297 = vmatpush.msra.mxu0 %v2174
    %2298 = vmatpush.msra.mxu0 %v2169
    %2299 = vmatpush.msra.mxu0 %v2164
    %2300 = vmatpush.msra.mxu0 %v2159
    %2301 = vmatpush.msra.mxu0 %v2154
    %2302 = vmatpush.msra.mxu0 %v2149
    %2303 = vmatpush.msra.mxu0 %v2144
    %2304 = vmatpush.msra.mxu0 %v2139
    %2305 = vmatpush.msra.mxu0 %v2134
    %2306 = vmatpush.msra.mxu0 %v2129
    %2307 = vmatpush.msra.mxu0 %v2124
    %2308 = vmatpush.msra.mxu0 %v2119
    %2309 = vmatpush.msra.mxu0 %v2114
    %2310 = vmatpush.msra.mxu0 %v2109
    %2311 = vmatpush.msra.mxu0 %v2104
    %2312 = vmatpush.msra.mxu0 %v2099
    %2313 = vmatmul.f32.gmra.mxu0 %v2049
    %v2314 = vpop.f32.mrf.mxu0
    %v2315 = vadd.f32 0.0, %v2314
    %2316 = vmatmul.f32.gmra.mxu0 %v2051
    %v2317 = vpop.f32.mrf.mxu0
    %v2318 = vadd.f32 0.0, %v2317
    %2319 = vmatmul.f32.gmra.mxu0 %v2053
    %v2320 = vpop.f32.mrf.mxu0
    %v2321 = vadd.f32 0.0, %v2320
    %2322 = vdwg.mxu0
    %2323 = vmatpush.msra.mxu0 0.0
    %2324 = vmatpush.msra.mxu0 0.0
    %2325 = vmatpush.msra.mxu0 0.0
    %2326 = vmatpush.msra.mxu0 0.0
    %2327 = vmatpush.msra.mxu0 0.0
    %2328 = vmatpush.msra.mxu0 0.0
    %2329 = vmatpush.msra.mxu0 0.0
    %2330 = vmatpush.msra.mxu0 0.0
    %2331 = vmatpush.msra.mxu0 0.0
    %2332 = vmatpush.msra.mxu0 0.0
    %2333 = vmatpush.msra.mxu0 0.0
    %2334 = vmatpush.msra.mxu0 0.0
    %2335 = vmatpush.msra.mxu0 0.0
    %2336 = vmatpush.msra.mxu0 0.0
    %2337 = vmatpush.msra.mxu0 %v2184
    %2338 = vmatpush.msra.mxu0 %v2179
    %2339 = vmatmul.f32.gmra.mxu0 %v2187
    %v2340 = vpop.f32.mrf.mxu0
    %v2341 = vadd.f32 %v2315, %v2340
    %2342 = vmatmul.f32.gmra.mxu0 %v2189
    %v2343 = vpop.f32.mrf.mxu0
    %v2344 = vadd.f32 %v2318, %v2343
    %2345 = vmatmul.f32.gmra.mxu0 %v2191
    %v2346 = vpop.f32.mrf.mxu0
    %v2347 = vadd.f32 %v2321, %v2346
    %2348 = vdwg.mxu0
    %2349 = vmatpush.msra.mxu0 %v2175
    %2350 = vmatpush.msra.mxu0 %v2170
    %2351 = vmatpush.msra.mxu0 %v2165
    %2352 = vmatpush.msra.mxu0 %v2160
    %2353 = vmatpush.msra.mxu0 %v2155
    %2354 = vmatpush.msra.mxu0 %v2150
    %2355 = vmatpush.msra.mxu0 %v2145
    %2356 = vmatpush.msra.mxu0 %v2140
    %2357 = vmatpush.msra.mxu0 %v2135
    %2358 = vmatpush.msra.mxu0 %v2130
    %2359 = vmatpush.msra.mxu0 %v2125
    %2360 = vmatpush.msra.mxu0 %v2120
    %2361 = vmatpush.msra.mxu0 %v2115
    %2362 = vmatpush.msra.mxu0 %v2110
    %2363 = vmatpush.msra.mxu0 %v2105
    %2364 = vmatpush.msra.mxu0 %v2100
    %2365 = vmatmul.f32.gmra.mxu0 %v2049
    %v2366 = vpop.f32.mrf.mxu0
    %v2367 = vadd.f32 0.0, %v2366
    %2368 = vmatmul.f32.gmra.mxu0 %v2051
    %v2369 = vpop.f32.mrf.mxu0
    %v2370 = vadd.f32 0.0, %v2369
    %2371 = vmatmul.f32.gmra.mxu0 %v2053
    %v2372 = vpop.f32.mrf.mxu0
    %v2373 = vadd.f32 0.0, %v2372
    %2374 = vdwg.mxu0
    %2375 = vmatpush.msra.mxu0 0.0
    %2376 = vmatpush.msra.mxu0 0.0
    %2377 = vmatpush.msra.mxu0 0.0
    %2378 = vmatpush.msra.mxu0 0.0
    %2379 = vmatpush.msra.mxu0 0.0
    %2380 = vmatpush.msra.mxu0 0.0
    %2381 = vmatpush.msra.mxu0 0.0
    %2382 = vmatpush.msra.mxu0 0.0
    %2383 = vmatpush.msra.mxu0 0.0
    %2384 = vmatpush.msra.mxu0 0.0
    %2385 = vmatpush.msra.mxu0 0.0
    %2386 = vmatpush.msra.mxu0 0.0
    %2387 = vmatpush.msra.mxu0 0.0
    %2388 = vmatpush.msra.mxu0 0.0
    %2389 = vmatpush.msra.mxu0 %v2185
    %2390 = vmatpush.msra.mxu0 %v2180
    %2391 = vmatmul.f32.gmra.mxu0 %v2187
    %v2392 = vpop.f32.mrf.mxu0
    %v2393 = vadd.f32 %v2367, %v2392
    %2394 = vmatmul.f32.gmra.mxu0 %v2189
    %v2395 = vpop.f32.mrf.mxu0
    %v2396 = vadd.f32 %v2370, %v2395
    %2397 = vmatmul.f32.gmra.mxu0 %v2191
    %v2398 = vpop.f32.mrf.mxu0
    %v2399 = vadd.f32 %v2373, %v2398
    %2400 = vdwg.mxu0
    %2401 = vmatpush.msra.mxu0 %v2176
    %2402 = vmatpush.msra.mxu0 %v2171
    %2403 = vmatpush.msra.mxu0 %v2166
    %2404 = vmatpush.msra.mxu0 %v2161
    %2405 = vmatpush.msra.mxu0 %v2156
    %2406 = vmatpush.msra.mxu0 %v2151
    %2407 = vmatpush.msra.mxu0 %v2146
    %2408 = vmatpush.msra.mxu0 %v2141
    %2409 = vmatpush.msra.mxu0 %v2136
    %2410 = vmatpush.msra.mxu0 %v2131
    %2411 = vmatpush.msra.mxu0 %v2126
    %2412 = vmatpush.msra.mxu0 %v2121
    %2413 = vmatpush.msra.mxu0 %v2116
    %2414 = vmatpush.msra.mxu0 %v2111
    %2415 = vmatpush.msra.mxu0 %v2106
    %2416 = vmatpush.msra.mxu0 %v2101
    %2417 = vmatmul.f32.gmra.mxu0 %v2049
    %v2418 = vpop.f32.mrf.mxu0
    %v2419 = vadd.f32 0.0, %v2418
    %2420 = vmatmul.f32.gmra.mxu0 %v2051
    %v2421 = vpop.f32.mrf.mxu0
    %v2422 = vadd.f32 0.0, %v2421
    %2423 = vmatmul.f32.gmra.mxu0 %v2053
    %v2424 = vpop.f32.mrf.mxu0
    %v2425 = vadd.f32 0.0, %v2424
    %2426 = vdwg.mxu0
    %2427 = vmatpush.msra.mxu0 0.0
    %2428 = vmatpush.msra.mxu0 0.0
    %2429 = vmatpush.msra.mxu0 0.0
    %2430 = vmatpush.msra.mxu0 0.0
    %2431 = vmatpush.msra.mxu0 0.0
    %2432 = vmatpush.msra.mxu0 0.0
    %2433 = vmatpush.msra.mxu0 0.0
    %2434 = vmatpush.msra.mxu0 0.0
    %2435 = vmatpush.msra.mxu0 0.0
    %2436 = vmatpush.msra.mxu0 0.0
    %2437 = vmatpush.msra.mxu0 0.0
    %2438 = vmatpush.msra.mxu0 0.0
    %2439 = vmatpush.msra.mxu0 0.0
    %2440 = vmatpush.msra.mxu0 0.0
    %2441 = vmatpush.msra.mxu0 %v2186
    %2442 = vmatpush.msra.mxu0 %v2181
    %2443 = vmatmul.f32.gmra.mxu0 %v2187
    %v2444 = vpop.f32.mrf.mxu0
    %v2445 = vadd.f32 %v2419, %v2444
    %2446 = vmatmul.f32.gmra.mxu0 %v2189
    %v2447 = vpop.f32.mrf.mxu0
    %v2448 = vadd.f32 %v2422, %v2447
    %2449 = vmatmul.f32.gmra.mxu0 %v2191
    %v2450 = vpop.f32.mrf.mxu0
    %v2451 = vadd.f32 %v2425, %v2450
    %2452 = vdwg.mxu0
    %v2453 = vadd.f32 %v2086, %v2237
    %v2454 = vadd.f32 %v2087, %v2289
    %v2455 = vadd.f32 %v2088, %v2341
    %v2456 = vadd.f32 %v2089, %v2393
    %v2457 = vadd.f32 %v2090, %v2445
    %v2458 = vadd.f32 %v2086, %v2240
    %v2459 = vadd.f32 %v2087, %v2292
    %v2460 = vadd.f32 %v2088, %v2344
    %v2461 = vadd.f32 %v2089, %v2396
    %v2462 = vadd.f32 %v2090, %v2448
    %v2463 = vadd.f32 %v2086, %v2243
    %v2464 = vadd.f32 %v2087, %v2295
    %v2465 = vadd.f32 %v2088, %v2347
    %v2466 = vadd.f32 %v2089, %v2399
    %v2467 = vadd.f32 %v2090, %v2451
    %2468 = vst [vmem:[%s9] sm:$0xff] %v2453
    %2469 = vst [vmem:[%s9 + $0x8] sm:$0xff] %v2454
    %2470 = vst [vmem:[%s9 + $0x10] sm:$0xff] %v2455
    %2471 = vst [vmem:[%s9 + $0x18] sm:$0xff] %v2456
    %vm2472 = vcmask 523264
    %2473 = vst.msk [vmem:[%s9 + $0x20] sm:$0xff] %vm2472, %v2457
    %2474 = vst [vmem:[%s9 + $0x28] sm:$0xff] %v2458
    %2475 = vst [vmem:[%s9 + $0x30] sm:$0xff] %v2459
    %2476 = vst [vmem:[%s9 + $0x38] sm:$0xff] %v2460
    %2477 = vst [vmem:[%s9 + $0x40] sm:$0xff] %v2461
    %2478 = vst.msk [vmem:[%s9 + $0x48] sm:$0xff] %vm2472, %v2462
    %2479 = vst [vmem:[%s9 + $0x50] sm:$0xff] %v2463
    %2480 = vst [vmem:[%s9 + $0x58] sm:$0xff] %v2464
    %2481 = vst [vmem:[%s9 + $0x60] sm:$0xff] %v2465
    %2482 = vst [vmem:[%s9 + $0x68] sm:$0xff] %v2466
    %2483 = vst.msk [vmem:[%s9 + $0x70] sm:$0xff] %vm2472, %v2467
    %v2484 = vsub.f32 0.0, %v2453
    %v2485 = vsub.f32 0.0, %v2454
    %v2486 = vsub.f32 0.0, %v2455
    %v2487 = vsub.f32 0.0, %v2456
    %v2488 = vsub.f32 0.0, %v2457
    %v2489 = vsub.f32 0.0, %v2458
    %v2490 = vsub.f32 0.0, %v2459
    %v2491 = vsub.f32 0.0, %v2460
    %v2492 = vsub.f32 0.0, %v2461
    %v2493 = vsub.f32 0.0, %v2462
    %v2494 = vsub.f32 0.0, %v2463
    %v2495 = vsub.f32 0.0, %v2464
    %v2496 = vsub.f32 0.0, %v2465
    %v2497 = vsub.f32 0.0, %v2466
    %v2498 = vsub.f32 0.0, %v2467
    %v2499 = vmul.f32 %v2484, 1.442695
    %v2500 = vpow.pop %v2499
    %v2501 = vmul.f32 %v2485, 1.442695
    %v2502 = vpow.pop %v2501
    %v2503 = vmul.f32 %v2486, 1.442695
    %v2504 = vpow.pop %v2503
    %v2505 = vmul.f32 %v2487, 1.442695
    %v2506 = vpow.pop %v2505
    %v2507 = vmul.f32 %v2488, 1.442695
    %v2508 = vpow.pop %v2507
    %v2509 = vmul.f32 %v2489, 1.442695
    %v2510 = vpow.pop %v2509
    %v2511 = vmul.f32 %v2490, 1.442695
    %v2512 = vpow.pop %v2511
    %v2513 = vmul.f32 %v2491, 1.442695
    %v2514 = vpow.pop %v2513
    %v2515 = vmul.f32 %v2492, 1.442695
    %v2516 = vpow.pop %v2515
    %v2517 = vmul.f32 %v2493, 1.442695
    %v2518 = vpow.pop %v2517
    %v2519 = vmul.f32 %v2494, 1.442695
    %v2520 = vpow.pop %v2519
    %v2521 = vmul.f32 %v2495, 1.442695
    %v2522 = vpow.pop %v2521
    %v2523 = vmul.f32 %v2496, 1.442695
    %v2524 = vpow.pop %v2523
    %v2525 = vmul.f32 %v2497, 1.442695
    %v2526 = vpow.pop %v2525
    %v2527 = vmul.f32 %v2498, 1.442695
    %v2528 = vpow.pop %v2527
    %v2529 = vadd.f32 %v2500, 1.0
    %v2530 = vadd.f32 %v2502, 1.0
    %v2531 = vadd.f32 %v2504, 1.0
    %v2532 = vadd.f32 %v2506, 1.0
    %v2533 = vadd.f32 %v2508, 1.0
    %v2534 = vadd.f32 %v2510, 1.0
    %v2535 = vadd.f32 %v2512, 1.0
    %v2536 = vadd.f32 %v2514, 1.0
    %v2537 = vadd.f32 %v2516, 1.0
    %v2538 = vadd.f32 %v2518, 1.0
    %v2539 = vadd.f32 %v2520, 1.0
    %v2540 = vadd.f32 %v2522, 1.0
    %v2541 = vadd.f32 %v2524, 1.0
    %v2542 = vadd.f32 %v2526, 1.0
    %v2543 = vadd.f32 %v2528, 1.0
    %v2544 = vrcp.pop %v2529
    %v2545 = vrcp.pop %v2530
    %v2546 = vrcp.pop %v2531
    %v2547 = vrcp.pop %v2532
    %v2548 = vrcp.pop %v2533
    %v2549 = vrcp.pop %v2534
    %v2550 = vrcp.pop %v2535
    %v2551 = vrcp.pop %v2536
    %v2552 = vrcp.pop %v2537
    %v2553 = vrcp.pop %v2538
    %v2554 = vrcp.pop %v2539
    %v2555 = vrcp.pop %v2540
    %v2556 = vrcp.pop %v2541
    %v2557 = vrcp.pop %v2542
    %v2558 = vrcp.pop %v2543
    %v2559 = vmul.f32 %v2453, %v2544
    %v2560 = vmul.f32 %v2454, %v2545
    %v2561 = vmul.f32 %v2455, %v2546
    %v2562 = vmul.f32 %v2456, %v2547
    %v2563 = vmul.f32 %v2457, %v2548
    %v2564 = vmul.f32 %v2458, %v2549
    %v2565 = vmul.f32 %v2459, %v2550
    %v2566 = vmul.f32 %v2460, %v2551
    %v2567 = vmul.f32 %v2461, %v2552
    %v2568 = vmul.f32 %v2462, %v2553
    %v2569 = vmul.f32 %v2463, %v2554
    %v2570 = vmul.f32 %v2464, %v2555
    %v2571 = vmul.f32 %v2465, %v2556
    %v2572 = vmul.f32 %v2466, %v2557
    %v2573 = vmul.f32 %v2467, %v2558
    %2574 = vst [vmem:[%s10] sm:$0xff] %v2559
    %2575 = vst [vmem:[%s10 + $0x8] sm:$0xff] %v2560
    %2576 = vst [vmem:[%s10 + $0x10] sm:$0xff] %v2561
    %2577 = vst [vmem:[%s10 + $0x18] sm:$0xff] %v2562
    %2578 = vst.msk [vmem:[%s10 + $0x20] sm:$0xff] %vm2472, %v2563
    %2579 = vst [vmem:[%s10 + $0x28] sm:$0xff] %v2564
    %2580 = vst [vmem:[%s10 + $0x30] sm:$0xff] %v2565
    %2581 = vst [vmem:[%s10 + $0x38] sm:$0xff] %v2566
    %2582 = vst [vmem:[%s10 + $0x40] sm:$0xff] %v2567
    %2583 = vst.msk [vmem:[%s10 + $0x48] sm:$0xff] %vm2472, %v2568
    %2584 = vst [vmem:[%s10 + $0x50] sm:$0xff] %v2569
    %2585 = vst [vmem:[%s10 + $0x58] sm:$0xff] %v2570
    %2586 = vst [vmem:[%s10 + $0x60] sm:$0xff] %v2571
    %2587 = vst [vmem:[%s10 + $0x68] sm:$0xff] %v2572
    %2588 = vst.msk [vmem:[%s10 + $0x70] sm:$0xff] %vm2472, %v2573
    %s2589 = scalar_lea.vmem [#allocation2], 5040
    %v2590 = vld [vmem:[%s2589] sm:$0xff]
    %v2591 = vld [vmem:[%s2589 + $0x8] sm:$0xff]
    %v2592 = vld [vmem:[%s2589 + $0x10] sm:$0xff]
    %v2593 = vld [vmem:[%s2589 + $0x18] sm:$0xff]
    %v2594 = vld [vmem:[%s2589 + $0x20] sm:$0xff]
    %v2595 = vld [vmem:[%s2589 + $0x28] sm:$0xff]
    %v2596 = vld [vmem:[%s2589 + $0x30] sm:$0xff]
    %v2597 = vld [vmem:[%s2589 + $0x38] sm:$0xff]
    %v2598 = vld [vmem:[%s2589 + $0x40] sm:$0xff]
    %v2599 = vld [vmem:[%s2589 + $0x48] sm:$0xff]
    %v2600 = vld [vmem:[%s2589 + $0x50] sm:$0xff]
    %v2601 = vld [vmem:[%s2589 + $0x58] sm:$0xff]
    %v2602 = vld [vmem:[%s2589 + $0x60] sm:$0xff]
    %v2603 = vld [vmem:[%s2589 + $0x68] sm:$0xff]
    %v2604 = vld [vmem:[%s2589 + $0x70] sm:$0xff]
    %v2605 = vld [vmem:[%s2589 + $0x78] sm:$0xff]
    %v2606 = vld [vmem:[%s2589 + $0x80] sm:$0xff]
    %v2607 = vld [vmem:[%s2589 + $0x88] sm:$0xff]
    %v2608 = vld [vmem:[%s2589 + $0x90] sm:$0xff]
    %v2609 = vld [vmem:[%s2589 + $0x98] sm:$0xff]
    %v2610 = vld [vmem:[%s2589 + $0xa0] sm:$0xff]
    %v2611 = vld [vmem:[%s2589 + $0xa8] sm:$0xff]
    %v2612 = vld [vmem:[%s2589 + $0xb0] sm:$0xff]
    %v2613 = vld [vmem:[%s2589 + $0xb8] sm:$0xff]
    %v2614 = vld [vmem:[%s2589 + $0xc0] sm:$0xff]
    %v2615 = vld [vmem:[%s2589 + $0xc8] sm:$0xff]
    %v2616 = vld [vmem:[%s2589 + $0xd0] sm:$0xff]
    %v2617 = vld [vmem:[%s2589 + $0xd8] sm:$0xff]
    %v2618 = vld [vmem:[%s2589 + $0xe0] sm:$0xff]
    %v2619 = vld [vmem:[%s2589 + $0xe8] sm:$0xff]
    %v2620 = vld [vmem:[%s2589 + $0xf0] sm:$0xff]
    %v2621 = vld [vmem:[%s2589 + $0xf8] sm:$0xff]
    %v2622 = vld [vmem:[%s2589 + $0x100] sm:$0xff]
    %v2623 = vld [vmem:[%s2589 + $0x108] sm:$0xff]
    %v2624 = vld [vmem:[%s2589 + $0x110] sm:$0xff]
    %v2625 = vld [vmem:[%s2589 + $0x118] sm:$0xff]
    %v2626 = vld [vmem:[%s2589 + $0x120] sm:$0xff]
    %v2627 = vld [vmem:[%s2589 + $0x128] sm:$0xff]
    %v2628 = vld [vmem:[%s2589 + $0x130] sm:$0xff]
    %v2629 = vld [vmem:[%s2589 + $0x138] sm:$0xff]
    %v2630 = vld [vmem:[%s2589 + $0x140] sm:$0xff]
    %v2631 = vld [vmem:[%s2589 + $0x148] sm:$0xff]
    %v2632 = vld [vmem:[%s2589 + $0x150] sm:$0xff]
    %v2633 = vld [vmem:[%s2589 + $0x158] sm:$0xff]
    %v2634 = vld [vmem:[%s2589 + $0x160] sm:$0xff]
    %v2635 = vld [vmem:[%s2589 + $0x168] sm:$0xff]
    %v2636 = vld [vmem:[%s2589 + $0x170] sm:$0xff]
    %v2637 = vld [vmem:[%s2589 + $0x178] sm:$0xff]
    %v2638 = vld [vmem:[%s2589 + $0x180] sm:$0xff]
    %v2639 = vld [vmem:[%s2589 + $0x188] sm:$0xff]
    %v2640 = vld [vmem:[%s2589 + $0x190] sm:$0xff]
    %v2641 = vld [vmem:[%s2589 + $0x198] sm:$0xff]
    %v2642 = vld [vmem:[%s2589 + $0x1a0] sm:$0xff]
    %v2643 = vld [vmem:[%s2589 + $0x1a8] sm:$0xff]
    %v2644 = vld [vmem:[%s2589 + $0x1b0] sm:$0xff]
    %v2645 = vld [vmem:[%s2589 + $0x1b8] sm:$0xff]
    %v2646 = vld [vmem:[%s2589 + $0x1c0] sm:$0xff]
    %v2647 = vld [vmem:[%s2589 + $0x1c8] sm:$0xff]
    %v2648 = vld [vmem:[%s2589 + $0x1d0] sm:$0xff]
    %v2649 = vld [vmem:[%s2589 + $0x1d8] sm:$0xff]
    %v2650 = vld [vmem:[%s2589 + $0x1e0] sm:$0xff]
    %v2651 = vld [vmem:[%s2589 + $0x1e8] sm:$0xff]
    %v2652 = vld [vmem:[%s2589 + $0x1f0] sm:$0xff]
    %v2653 = vld [vmem:[%s2589 + $0x1f8] sm:$0xff]
    %v2654 = vld [vmem:[%s2589 + $0x200] sm:$0xff]
    %v2655 = vld [vmem:[%s2589 + $0x208] sm:$0xff]
    %v2656 = vld [vmem:[%s2589 + $0x210] sm:$0xff]
    %v2657 = vld [vmem:[%s2589 + $0x218] sm:$0xff]
    %v2658 = vld [vmem:[%s2589 + $0x220] sm:$0xff]
    %v2659 = vld [vmem:[%s2589 + $0x228] sm:$0xff]
    %v2660 = vld [vmem:[%s2589 + $0x230] sm:$0xff]
    %v2661 = vld [vmem:[%s2589 + $0x238] sm:$0xff]
    %v2662 = vld [vmem:[%s2589 + $0x240] sm:$0xff]
    %v2663 = vld [vmem:[%s2589 + $0x248] sm:$0xff]
    %v2664 = vld [vmem:[%s2589 + $0x250] sm:$0xff]
    %v2665 = vld [vmem:[%s2589 + $0x258] sm:$0xff]
    %v2666 = vld [vmem:[%s2589 + $0x260] sm:$0xff]
    %v2667 = vld [vmem:[%s2589 + $0x268] sm:$0xff]
    %v2668 = vld [vmem:[%s2589 + $0x270] sm:$0xff]
    %v2669 = vld [vmem:[%s2589 + $0x278] sm:$0xff]
    %v2670 = vld [vmem:[%s2589 + $0x280] sm:$0xff]
    %v2671 = vld [vmem:[%s2589 + $0x288] sm:$0xff]
    %v2672 = vld [vmem:[%s2589 + $0x290] sm:$0xff]
    %v2673 = vld [vmem:[%s2589 + $0x298] sm:$0xff]
    %v2674 = vld [vmem:[%s2589 + $0x2a0] sm:$0xff]
    %v2675 = vld [vmem:[%s2589 + $0x2a8] sm:$0xff]
    %v2676 = vld [vmem:[%s2589 + $0x2b0] sm:$0xff]
    %v2677 = vld [vmem:[%s2589 + $0x2b8] sm:$0xff]
    %v2678 = vld [vmem:[%s2589 + $0x2c0] sm:$0xff]
    %v2679 = vld [vmem:[%s2589 + $0x2c8] sm:$0xff]
    %2680 = vmatpush.msra.mxu0 %v2665
    %2681 = vmatpush.msra.mxu0 %v2660
    %2682 = vmatpush.msra.mxu0 %v2655
    %2683 = vmatpush.msra.mxu0 %v2650
    %2684 = vmatpush.msra.mxu0 %v2645
    %2685 = vmatpush.msra.mxu0 %v2640
    %2686 = vmatpush.msra.mxu0 %v2635
    %2687 = vmatpush.msra.mxu0 %v2630
    %2688 = vmatpush.msra.mxu0 %v2625
    %2689 = vmatpush.msra.mxu0 %v2620
    %2690 = vmatpush.msra.mxu0 %v2615
    %2691 = vmatpush.msra.mxu0 %v2610
    %2692 = vmatpush.msra.mxu0 %v2605
    %2693 = vmatpush.msra.mxu0 %v2600
    %2694 = vmatpush.msra.mxu0 %v2595
    %2695 = vmatpush.msra.mxu0 %v2590
    %2696 = vmatmul.f32.gmra.mxu0 %v2049
    %v2697 = vpop.f32.mrf.mxu0
    %v2698 = vadd.f32 0.0, %v2697
    %2699 = vmatmul.f32.gmra.mxu0 %v2051
    %v2700 = vpop.f32.mrf.mxu0
    %v2701 = vadd.f32 0.0, %v2700
    %2702 = vmatmul.f32.gmra.mxu0 %v2053
    %v2703 = vpop.f32.mrf.mxu0
    %v2704 = vadd.f32 0.0, %v2703
    %2705 = vdwg.mxu0
    %2706 = vmatpush.msra.mxu0 0.0
    %2707 = vmatpush.msra.mxu0 0.0
    %2708 = vmatpush.msra.mxu0 0.0
    %2709 = vmatpush.msra.mxu0 0.0
    %2710 = vmatpush.msra.mxu0 0.0
    %2711 = vmatpush.msra.mxu0 0.0
    %2712 = vmatpush.msra.mxu0 0.0
    %2713 = vmatpush.msra.mxu0 0.0
    %2714 = vmatpush.msra.mxu0 0.0
    %2715 = vmatpush.msra.mxu0 0.0
    %2716 = vmatpush.msra.mxu0 0.0
    %2717 = vmatpush.msra.mxu0 0.0
    %2718 = vmatpush.msra.mxu0 0.0
    %2719 = vmatpush.msra.mxu0 0.0
    %2720 = vmatpush.msra.mxu0 %v2675
    %2721 = vmatpush.msra.mxu0 %v2670
    %2722 = vmatmul.f32.gmra.mxu0 %v2187
    %v2723 = vpop.f32.mrf.mxu0
    %v2724 = vadd.f32 %v2698, %v2723
    %2725 = vmatmul.f32.gmra.mxu0 %v2189
    %v2726 = vpop.f32.mrf.mxu0
    %v2727 = vadd.f32 %v2701, %v2726
    %2728 = vmatmul.f32.gmra.mxu0 %v2191
    %v2729 = vpop.f32.mrf.mxu0
    %v2730 = vadd.f32 %v2704, %v2729
    %2731 = vdwg.mxu0
    %2732 = vmatpush.msra.mxu0 %v2666
    %2733 = vmatpush.msra.mxu0 %v2661
    %2734 = vmatpush.msra.mxu0 %v2656
    %2735 = vmatpush.msra.mxu0 %v2651
    %2736 = vmatpush.msra.mxu0 %v2646
    %2737 = vmatpush.msra.mxu0 %v2641
    %2738 = vmatpush.msra.mxu0 %v2636
    %2739 = vmatpush.msra.mxu0 %v2631
    %2740 = vmatpush.msra.mxu0 %v2626
    %2741 = vmatpush.msra.mxu0 %v2621
    %2742 = vmatpush.msra.mxu0 %v2616
    %2743 = vmatpush.msra.mxu0 %v2611
    %2744 = vmatpush.msra.mxu0 %v2606
    %2745 = vmatpush.msra.mxu0 %v2601
    %2746 = vmatpush.msra.mxu0 %v2596
    %2747 = vmatpush.msra.mxu0 %v2591
    %2748 = vmatmul.f32.gmra.mxu0 %v2049
    %v2749 = vpop.f32.mrf.mxu0
    %v2750 = vadd.f32 0.0, %v2749
    %2751 = vmatmul.f32.gmra.mxu0 %v2051
    %v2752 = vpop.f32.mrf.mxu0
    %v2753 = vadd.f32 0.0, %v2752
    %2754 = vmatmul.f32.gmra.mxu0 %v2053
    %v2755 = vpop.f32.mrf.mxu0
    %v2756 = vadd.f32 0.0, %v2755
    %2757 = vdwg.mxu0
    %2758 = vmatpush.msra.mxu0 0.0
    %2759 = vmatpush.msra.mxu0 0.0
    %2760 = vmatpush.msra.mxu0 0.0
    %2761 = vmatpush.msra.mxu0 0.0
    %2762 = vmatpush.msra.mxu0 0.0
    %2763 = vmatpush.msra.mxu0 0.0
    %2764 = vmatpush.msra.mxu0 0.0
    %2765 = vmatpush.msra.mxu0 0.0
    %2766 = vmatpush.msra.mxu0 0.0
    %2767 = vmatpush.msra.mxu0 0.0
    %2768 = vmatpush.msra.mxu0 0.0
    %2769 = vmatpush.msra.mxu0 0.0
    %2770 = vmatpush.msra.mxu0 0.0
    %2771 = vmatpush.msra.mxu0 0.0
    %2772 = vmatpush.msra.mxu0 %v2676
    %2773 = vmatpush.msra.mxu0 %v2671
    %2774 = vmatmul.f32.gmra.mxu0 %v2187
    %v2775 = vpop.f32.mrf.mxu0
    %v2776 = vadd.f32 %v2750, %v2775
    %2777 = vmatmul.f32.gmra.mxu0 %v2189
    %v2778 = vpop.f32.mrf.mxu0
    %v2779 = vadd.f32 %v2753, %v2778
    %2780 = vmatmul.f32.gmra.mxu0 %v2191
    %v2781 = vpop.f32.mrf.mxu0
    %v2782 = vadd.f32 %v2756, %v2781
    %2783 = vdwg.mxu0
    %2784 = vmatpush.msra.mxu0 %v2667
    %2785 = vmatpush.msra.mxu0 %v2662
    %2786 = vmatpush.msra.mxu0 %v2657
    %2787 = vmatpush.msra.mxu0 %v2652
    %2788 = vmatpush.msra.mxu0 %v2647
    %2789 = vmatpush.msra.mxu0 %v2642
    %2790 = vmatpush.msra.mxu0 %v2637
    %2791 = vmatpush.msra.mxu0 %v2632
    %2792 = vmatpush.msra.mxu0 %v2627
    %2793 = vmatpush.msra.mxu0 %v2622
    %2794 = vmatpush.msra.mxu0 %v2617
    %2795 = vmatpush.msra.mxu0 %v2612
    %2796 = vmatpush.msra.mxu0 %v2607
    %2797 = vmatpush.msra.mxu0 %v2602
    %2798 = vmatpush.msra.mxu0 %v2597
    %2799 = vmatpush.msra.mxu0 %v2592
    %2800 = vmatmul.f32.gmra.mxu0 %v2049
    %v2801 = vpop.f32.mrf.mxu0
    %v2802 = vadd.f32 0.0, %v2801
    %2803 = vmatmul.f32.gmra.mxu0 %v2051
    %v2804 = vpop.f32.mrf.mxu0
    %v2805 = vadd.f32 0.0, %v2804
    %2806 = vmatmul.f32.gmra.mxu0 %v2053
    %v2807 = vpop.f32.mrf.mxu0
    %v2808 = vadd.f32 0.0, %v2807
    %2809 = vdwg.mxu0
    %2810 = vmatpush.msra.mxu0 0.0
    %2811 = vmatpush.msra.mxu0 0.0
    %2812 = vmatpush.msra.mxu0 0.0
    %2813 = vmatpush.msra.mxu0 0.0
    %2814 = vmatpush.msra.mxu0 0.0
    %2815 = vmatpush.msra.mxu0 0.0
    %2816 = vmatpush.msra.mxu0 0.0
    %2817 = vmatpush.msra.mxu0 0.0
    %2818 = vmatpush.msra.mxu0 0.0
    %2819 = vmatpush.msra.mxu0 0.0
    %2820 = vmatpush.msra.mxu0 0.0
    %2821 = vmatpush.msra.mxu0 0.0
    %2822 = vmatpush.msra.mxu0 0.0
    %2823 = vmatpush.msra.mxu0 0.0
    %2824 = vmatpush.msra.mxu0 %v2677
    %2825 = vmatpush.msra.mxu0 %v2672
    %2826 = vmatmul.f32.gmra.mxu0 %v2187
    %v2827 = vpop.f32.mrf.mxu0
    %v2828 = vadd.f32 %v2802, %v2827
    %2829 = vmatmul.f32.gmra.mxu0 %v2189
    %v2830 = vpop.f32.mrf.mxu0
    %v2831 = vadd.f32 %v2805, %v2830
    %2832 = vmatmul.f32.gmra.mxu0 %v2191
    %v2833 = vpop.f32.mrf.mxu0
    %v2834 = vadd.f32 %v2808, %v2833
    %2835 = vdwg.mxu0
    %2836 = vmatpush.msra.mxu0 %v2668
    %2837 = vmatpush.msra.mxu0 %v2663
    %2838 = vmatpush.msra.mxu0 %v2658
    %2839 = vmatpush.msra.mxu0 %v2653
    %2840 = vmatpush.msra.mxu0 %v2648
    %2841 = vmatpush.msra.mxu0 %v2643
    %2842 = vmatpush.msra.mxu0 %v2638
    %2843 = vmatpush.msra.mxu0 %v2633
    %2844 = vmatpush.msra.mxu0 %v2628
    %2845 = vmatpush.msra.mxu0 %v2623
    %2846 = vmatpush.msra.mxu0 %v2618
    %2847 = vmatpush.msra.mxu0 %v2613
    %2848 = vmatpush.msra.mxu0 %v2608
    %2849 = vmatpush.msra.mxu0 %v2603
    %2850 = vmatpush.msra.mxu0 %v2598
    %2851 = vmatpush.msra.mxu0 %v2593
    %2852 = vmatmul.f32.gmra.mxu0 %v2049
    %v2853 = vpop.f32.mrf.mxu0
    %v2854 = vadd.f32 0.0, %v2853
    %2855 = vmatmul.f32.gmra.mxu0 %v2051
    %v2856 = vpop.f32.mrf.mxu0
    %v2857 = vadd.f32 0.0, %v2856
    %2858 = vmatmul.f32.gmra.mxu0 %v2053
    %v2859 = vpop.f32.mrf.mxu0
    %v2860 = vadd.f32 0.0, %v2859
    %2861 = vdwg.mxu0
    %2862 = vmatpush.msra.mxu0 0.0
    %2863 = vmatpush.msra.mxu0 0.0
    %2864 = vmatpush.msra.mxu0 0.0
    %2865 = vmatpush.msra.mxu0 0.0
    %2866 = vmatpush.msra.mxu0 0.0
    %2867 = vmatpush.msra.mxu0 0.0
    %2868 = vmatpush.msra.mxu0 0.0
    %2869 = vmatpush.msra.mxu0 0.0
    %2870 = vmatpush.msra.mxu0 0.0
    %2871 = vmatpush.msra.mxu0 0.0
    %2872 = vmatpush.msra.mxu0 0.0
    %2873 = vmatpush.msra.mxu0 0.0
    %2874 = vmatpush.msra.mxu0 0.0
    %2875 = vmatpush.msra.mxu0 0.0
    %2876 = vmatpush.msra.mxu0 %v2678
    %2877 = vmatpush.msra.mxu0 %v2673
    %2878 = vmatmul.f32.gmra.mxu0 %v2187
    %v2879 = vpop.f32.mrf.mxu0
    %v2880 = vadd.f32 %v2854, %v2879
    %2881 = vmatmul.f32.gmra.mxu0 %v2189
    %v2882 = vpop.f32.mrf.mxu0
    %v2883 = vadd.f32 %v2857, %v2882
    %2884 = vmatmul.f32.gmra.mxu0 %v2191
    %v2885 = vpop.f32.mrf.mxu0
    %v2886 = vadd.f32 %v2860, %v2885
    %2887 = vdwg.mxu0
    %2888 = vmatpush.msra.mxu0 %v2669
    %2889 = vmatpush.msra.mxu0 %v2664
    %2890 = vmatpush.msra.mxu0 %v2659
    %2891 = vmatpush.msra.mxu0 %v2654
    %2892 = vmatpush.msra.mxu0 %v2649
    %2893 = vmatpush.msra.mxu0 %v2644
    %2894 = vmatpush.msra.mxu0 %v2639
    %2895 = vmatpush.msra.mxu0 %v2634
    %2896 = vmatpush.msra.mxu0 %v2629
    %2897 = vmatpush.msra.mxu0 %v2624
    %2898 = vmatpush.msra.mxu0 %v2619
    %2899 = vmatpush.msra.mxu0 %v2614
    %2900 = vmatpush.msra.mxu0 %v2609
    %2901 = vmatpush.msra.mxu0 %v2604
    %2902 = vmatpush.msra.mxu0 %v2599
    %2903 = vmatpush.msra.mxu0 %v2594
    %2904 = vmatmul.f32.gmra.mxu0 %v2049
    %v2905 = vpop.f32.mrf.mxu0
    %v2906 = vadd.f32 0.0, %v2905
    %2907 = vmatmul.f32.gmra.mxu0 %v2051
    %v2908 = vpop.f32.mrf.mxu0
    %v2909 = vadd.f32 0.0, %v2908
    %2910 = vmatmul.f32.gmra.mxu0 %v2053
    %v2911 = vpop.f32.mrf.mxu0
    %v2912 = vadd.f32 0.0, %v2911
    %2913 = vdwg.mxu0
    %2914 = vmatpush.msra.mxu0 0.0
    %2915 = vmatpush.msra.mxu0 0.0
    %2916 = vmatpush.msra.mxu0 0.0
    %2917 = vmatpush.msra.mxu0 0.0
    %2918 = vmatpush.msra.mxu0 0.0
    %2919 = vmatpush.msra.mxu0 0.0
    %2920 = vmatpush.msra.mxu0 0.0
    %2921 = vmatpush.msra.mxu0 0.0
    %2922 = vmatpush.msra.mxu0 0.0
    %2923 = vmatpush.msra.mxu0 0.0
    %2924 = vmatpush.msra.mxu0 0.0
    %2925 = vmatpush.msra.mxu0 0.0
    %2926 = vmatpush.msra.mxu0 0.0
    %2927 = vmatpush.msra.mxu0 0.0
    %2928 = vmatpush.msra.mxu0 %v2679
    %2929 = vmatpush.msra.mxu0 %v2674
    %2930 = vmatmul.f32.gmra.mxu0 %v2187
    %v2931 = vpop.f32.mrf.mxu0
    %v2932 = vadd.f32 %v2906, %v2931
    %2933 = vmatmul.f32.gmra.mxu0 %v2189
    %v2934 = vpop.f32.mrf.mxu0
    %v2935 = vadd.f32 %v2909, %v2934
    %2936 = vmatmul.f32.gmra.mxu0 %v2191
    %v2937 = vpop.f32.mrf.mxu0
    %v2938 = vadd.f32 %v2912, %v2937
    %2939 = vdwg.mxu0
    %v2940 = vadd.f32 %v2086, %v2724
    %v2941 = vadd.f32 %v2087, %v2776
    %v2942 = vadd.f32 %v2088, %v2828
    %v2943 = vadd.f32 %v2089, %v2880
    %v2944 = vadd.f32 %v2090, %v2932
    %v2945 = vadd.f32 %v2086, %v2727
    %v2946 = vadd.f32 %v2087, %v2779
    %v2947 = vadd.f32 %v2088, %v2831
    %v2948 = vadd.f32 %v2089, %v2883
    %v2949 = vadd.f32 %v2090, %v2935
    %v2950 = vadd.f32 %v2086, %v2730
    %v2951 = vadd.f32 %v2087, %v2782
    %v2952 = vadd.f32 %v2088, %v2834
    %v2953 = vadd.f32 %v2089, %v2886
    %v2954 = vadd.f32 %v2090, %v2938
    %s2955 = scalar_lea.vmem %s9, 120
    %2956 = vst [vmem:[%s2955] sm:$0xff] %v2940
    %2957 = vst [vmem:[%s2955 + $0x8] sm:$0xff] %v2941
    %2958 = vst [vmem:[%s2955 + $0x10] sm:$0xff] %v2942
    %2959 = vst [vmem:[%s2955 + $0x18] sm:$0xff] %v2943
    %2960 = vst.msk [vmem:[%s2955 + $0x20] sm:$0xff] %vm2472, %v2944
    %2961 = vst [vmem:[%s2955 + $0x28] sm:$0xff] %v2945
    %2962 = vst [vmem:[%s2955 + $0x30] sm:$0xff] %v2946
    %2963 = vst [vmem:[%s2955 + $0x38] sm:$0xff] %v2947
    %2964 = vst [vmem:[%s2955 + $0x40] sm:$0xff] %v2948
    %2965 = vst.msk [vmem:[%s2955 + $0x48] sm:$0xff] %vm2472, %v2949
    %2966 = vst [vmem:[%s2955 + $0x50] sm:$0xff] %v2950
    %2967 = vst [vmem:[%s2955 + $0x58] sm:$0xff] %v2951
    %2968 = vst [vmem:[%s2955 + $0x60] sm:$0xff] %v2952
    %2969 = vst [vmem:[%s2955 + $0x68] sm:$0xff] %v2953
    %2970 = vst.msk [vmem:[%s2955 + $0x70] sm:$0xff] %vm2472, %v2954
    %v2971 = vsub.f32 0.0, %v2940
    %v2972 = vsub.f32 0.0, %v2941
    %v2973 = vsub.f32 0.0, %v2942
    %v2974 = vsub.f32 0.0, %v2943
    %v2975 = vsub.f32 0.0, %v2944
    %v2976 = vsub.f32 0.0, %v2945
    %v2977 = vsub.f32 0.0, %v2946
    %v2978 = vsub.f32 0.0, %v2947
    %v2979 = vsub.f32 0.0, %v2948
    %v2980 = vsub.f32 0.0, %v2949
    %v2981 = vsub.f32 0.0, %v2950
    %v2982 = vsub.f32 0.0, %v2951
    %v2983 = vsub.f32 0.0, %v2952
    %v2984 = vsub.f32 0.0, %v2953
    %v2985 = vsub.f32 0.0, %v2954
    %v2986 = vmul.f32 %v2971, 1.442695
    %v2987 = vpow.pop %v2986
    %v2988 = vmul.f32 %v2972, 1.442695
    %v2989 = vpow.pop %v2988
    %v2990 = vmul.f32 %v2973, 1.442695
    %v2991 = vpow.pop %v2990
    %v2992 = vmul.f32 %v2974, 1.442695
    %v2993 = vpow.pop %v2992
    %v2994 = vmul.f32 %v2975, 1.442695
    %v2995 = vpow.pop %v2994
    %v2996 = vmul.f32 %v2976, 1.442695
    %v2997 = vpow.pop %v2996
    %v2998 = vmul.f32 %v2977, 1.442695
    %v2999 = vpow.pop %v2998
    %v3000 = vmul.f32 %v2978, 1.442695
    %v3001 = vpow.pop %v3000
    %v3002 = vmul.f32 %v2979, 1.442695
    %v3003 = vpow.pop %v3002
    %v3004 = vmul.f32 %v2980, 1.442695
    %v3005 = vpow.pop %v3004
    %v3006 = vmul.f32 %v2981, 1.442695
    %v3007 = vpow.pop %v3006
    %v3008 = vmul.f32 %v2982, 1.442695
    %v3009 = vpow.pop %v3008
    %v3010 = vmul.f32 %v2983, 1.442695
    %v3011 = vpow.pop %v3010
    %v3012 = vmul.f32 %v2984, 1.442695
    %v3013 = vpow.pop %v3012
    %v3014 = vmul.f32 %v2985, 1.442695
    %v3015 = vpow.pop %v3014
    %v3016 = vadd.f32 %v2987, 1.0
    %v3017 = vadd.f32 %v2989, 1.0
    %v3018 = vadd.f32 %v2991, 1.0
    %v3019 = vadd.f32 %v2993, 1.0
    %v3020 = vadd.f32 %v2995, 1.0
    %v3021 = vadd.f32 %v2997, 1.0
    %v3022 = vadd.f32 %v2999, 1.0
    %v3023 = vadd.f32 %v3001, 1.0
    %v3024 = vadd.f32 %v3003, 1.0
    %v3025 = vadd.f32 %v3005, 1.0
    %v3026 = vadd.f32 %v3007, 1.0
    %v3027 = vadd.f32 %v3009, 1.0
    %v3028 = vadd.f32 %v3011, 1.0
    %v3029 = vadd.f32 %v3013, 1.0
    %v3030 = vadd.f32 %v3015, 1.0
    %v3031 = vrcp.pop %v3016
    %v3032 = vrcp.pop %v3017
    %v3033 = vrcp.pop %v3018
    %v3034 = vrcp.pop %v3019
    %v3035 = vrcp.pop %v3020
    %v3036 = vrcp.pop %v3021
    %v3037 = vrcp.pop %v3022
    %v3038 = vrcp.pop %v3023
    %v3039 = vrcp.pop %v3024
    %v3040 = vrcp.pop %v3025
    %v3041 = vrcp.pop %v3026
    %v3042 = vrcp.pop %v3027
    %v3043 = vrcp.pop %v3028
    %v3044 = vrcp.pop %v3029
    %v3045 = vrcp.pop %v3030
    %v3046 = vmul.f32 %v2940, %v3031
    %v3047 = vmul.f32 %v2941, %v3032
    %v3048 = vmul.f32 %v2942, %v3033
    %v3049 = vmul.f32 %v2943, %v3034
    %v3050 = vmul.f32 %v2944, %v3035
    %v3051 = vmul.f32 %v2945, %v3036
    %v3052 = vmul.f32 %v2946, %v3037
    %v3053 = vmul.f32 %v2947, %v3038
    %v3054 = vmul.f32 %v2948, %v3039
    %v3055 = vmul.f32 %v2949, %v3040
    %v3056 = vmul.f32 %v2950, %v3041
    %v3057 = vmul.f32 %v2951, %v3042
    %v3058 = vmul.f32 %v2952, %v3043
    %v3059 = vmul.f32 %v2953, %v3044
    %v3060 = vmul.f32 %v2954, %v3045
    %s3061 = scalar_lea.vmem %s10, 120
    %3062 = vst [vmem:[%s3061] sm:$0xff] %v3046
    %3063 = vst [vmem:[%s3061 + $0x8] sm:$0xff] %v3047
    %3064 = vst [vmem:[%s3061 + $0x10] sm:$0xff] %v3048
    %3065 = vst [vmem:[%s3061 + $0x18] sm:$0xff] %v3049
    %3066 = vst.msk [vmem:[%s3061 + $0x20] sm:$0xff] %vm2472, %v3050
    %3067 = vst [vmem:[%s3061 + $0x28] sm:$0xff] %v3051
    %3068 = vst [vmem:[%s3061 + $0x30] sm:$0xff] %v3052
    %3069 = vst [vmem:[%s3061 + $0x38] sm:$0xff] %v3053
    %3070 = vst [vmem:[%s3061 + $0x40] sm:$0xff] %v3054
    %3071 = vst.msk [vmem:[%s3061 + $0x48] sm:$0xff] %vm2472, %v3055
    %3072 = vst [vmem:[%s3061 + $0x50] sm:$0xff] %v3056
    %3073 = vst [vmem:[%s3061 + $0x58] sm:$0xff] %v3057
    %3074 = vst [vmem:[%s3061 + $0x60] sm:$0xff] %v3058
    %3075 = vst [vmem:[%s3061 + $0x68] sm:$0xff] %v3059
    %3076 = vst.msk [vmem:[%s3061 + $0x70] sm:$0xff] %vm2472, %v3060
    %s3077 = scalar_lea.vmem [#allocation2], 8640
    %v3078 = vld [vmem:[%s3077] sm:$0xff]
    %v3079 = vld [vmem:[%s3077 + $0x8] sm:$0xff]
    %v3080 = vld [vmem:[%s3077 + $0x10] sm:$0xff]
    %v3081 = vld [vmem:[%s3077 + $0x18] sm:$0xff]
    %v3082 = vld [vmem:[%s3077 + $0x20] sm:$0xff]
    %v3083 = vld [vmem:[%s3077 + $0x28] sm:$0xff]
    %v3084 = vld [vmem:[%s3077 + $0x30] sm:$0xff]
    %v3085 = vld [vmem:[%s3077 + $0x38] sm:$0xff]
    %v3086 = vld [vmem:[%s3077 + $0x40] sm:$0xff]
    %v3087 = vld [vmem:[%s3077 + $0x48] sm:$0xff]
    %v3088 = vld [vmem:[%s3077 + $0x50] sm:$0xff]
    %v3089 = vld [vmem:[%s3077 + $0x58] sm:$0xff]
    %v3090 = vld [vmem:[%s3077 + $0x60] sm:$0xff]
    %v3091 = vld [vmem:[%s3077 + $0x68] sm:$0xff]
    %v3092 = vld [vmem:[%s3077 + $0x70] sm:$0xff]
    %v3093 = vld [vmem:[%s3077 + $0x78] sm:$0xff]
    %v3094 = vld [vmem:[%s3077 + $0x80] sm:$0xff]
    %v3095 = vld [vmem:[%s3077 + $0x88] sm:$0xff]
    %v3096 = vld [vmem:[%s3077 + $0x90] sm:$0xff]
    %v3097 = vld [vmem:[%s3077 + $0x98] sm:$0xff]
    %v3098 = vld [vmem:[%s3077 + $0xa0] sm:$0xff]
    %v3099 = vld [vmem:[%s3077 + $0xa8] sm:$0xff]
    %v3100 = vld [vmem:[%s3077 + $0xb0] sm:$0xff]
    %v3101 = vld [vmem:[%s3077 + $0xb8] sm:$0xff]
    %v3102 = vld [vmem:[%s3077 + $0xc0] sm:$0xff]
    %v3103 = vld [vmem:[%s3077 + $0xc8] sm:$0xff]
    %v3104 = vld [vmem:[%s3077 + $0xd0] sm:$0xff]
    %v3105 = vld [vmem:[%s3077 + $0xd8] sm:$0xff]
    %v3106 = vld [vmem:[%s3077 + $0xe0] sm:$0xff]
    %v3107 = vld [vmem:[%s3077 + $0xe8] sm:$0xff]
    %v3108 = vld [vmem:[%s3077 + $0xf0] sm:$0xff]
    %v3109 = vld [vmem:[%s3077 + $0xf8] sm:$0xff]
    %v3110 = vld [vmem:[%s3077 + $0x100] sm:$0xff]
    %v3111 = vld [vmem:[%s3077 + $0x108] sm:$0xff]
    %v3112 = vld [vmem:[%s3077 + $0x110] sm:$0xff]
    %v3113 = vld [vmem:[%s3077 + $0x118] sm:$0xff]
    %v3114 = vld [vmem:[%s3077 + $0x120] sm:$0xff]
    %v3115 = vld [vmem:[%s3077 + $0x128] sm:$0xff]
    %v3116 = vld [vmem:[%s3077 + $0x130] sm:$0xff]
    %v3117 = vld [vmem:[%s3077 + $0x138] sm:$0xff]
    %v3118 = vld [vmem:[%s3077 + $0x140] sm:$0xff]
    %v3119 = vld [vmem:[%s3077 + $0x148] sm:$0xff]
    %v3120 = vld [vmem:[%s3077 + $0x150] sm:$0xff]
    %v3121 = vld [vmem:[%s3077 + $0x158] sm:$0xff]
    %v3122 = vld [vmem:[%s3077 + $0x160] sm:$0xff]
    %v3123 = vld [vmem:[%s3077 + $0x168] sm:$0xff]
    %v3124 = vld [vmem:[%s3077 + $0x170] sm:$0xff]
    %v3125 = vld [vmem:[%s3077 + $0x178] sm:$0xff]
    %v3126 = vld [vmem:[%s3077 + $0x180] sm:$0xff]
    %v3127 = vld [vmem:[%s3077 + $0x188] sm:$0xff]
    %v3128 = vld [vmem:[%s3077 + $0x190] sm:$0xff]
    %v3129 = vld [vmem:[%s3077 + $0x198] sm:$0xff]
    %v3130 = vld [vmem:[%s3077 + $0x1a0] sm:$0xff]
    %v3131 = vld [vmem:[%s3077 + $0x1a8] sm:$0xff]
    %v3132 = vld [vmem:[%s3077 + $0x1b0] sm:$0xff]
    %v3133 = vld [vmem:[%s3077 + $0x1b8] sm:$0xff]
    %v3134 = vld [vmem:[%s3077 + $0x1c0] sm:$0xff]
    %v3135 = vld [vmem:[%s3077 + $0x1c8] sm:$0xff]
    %v3136 = vld [vmem:[%s3077 + $0x1d0] sm:$0xff]
    %v3137 = vld [vmem:[%s3077 + $0x1d8] sm:$0xff]
    %v3138 = vld [vmem:[%s3077 + $0x1e0] sm:$0xff]
    %v3139 = vld [vmem:[%s3077 + $0x1e8] sm:$0xff]
    %v3140 = vld [vmem:[%s3077 + $0x1f0] sm:$0xff]
    %v3141 = vld [vmem:[%s3077 + $0x1f8] sm:$0xff]
    %v3142 = vld [vmem:[%s3077 + $0x200] sm:$0xff]
    %v3143 = vld [vmem:[%s3077 + $0x208] sm:$0xff]
    %v3144 = vld [vmem:[%s3077 + $0x210] sm:$0xff]
    %v3145 = vld [vmem:[%s3077 + $0x218] sm:$0xff]
    %v3146 = vld [vmem:[%s3077 + $0x220] sm:$0xff]
    %v3147 = vld [vmem:[%s3077 + $0x228] sm:$0xff]
    %v3148 = vld [vmem:[%s3077 + $0x230] sm:$0xff]
    %v3149 = vld [vmem:[%s3077 + $0x238] sm:$0xff]
    %v3150 = vld [vmem:[%s3077 + $0x240] sm:$0xff]
    %v3151 = vld [vmem:[%s3077 + $0x248] sm:$0xff]
    %v3152 = vld [vmem:[%s3077 + $0x250] sm:$0xff]
    %v3153 = vld [vmem:[%s3077 + $0x258] sm:$0xff]
    %v3154 = vld [vmem:[%s3077 + $0x260] sm:$0xff]
    %v3155 = vld [vmem:[%s3077 + $0x268] sm:$0xff]
    %v3156 = vld [vmem:[%s3077 + $0x270] sm:$0xff]
    %v3157 = vld [vmem:[%s3077 + $0x278] sm:$0xff]
    %v3158 = vld [vmem:[%s3077 + $0x280] sm:$0xff]
    %v3159 = vld [vmem:[%s3077 + $0x288] sm:$0xff]
    %v3160 = vld [vmem:[%s3077 + $0x290] sm:$0xff]
    %v3161 = vld [vmem:[%s3077 + $0x298] sm:$0xff]
    %v3162 = vld [vmem:[%s3077 + $0x2a0] sm:$0xff]
    %v3163 = vld [vmem:[%s3077 + $0x2a8] sm:$0xff]
    %v3164 = vld [vmem:[%s3077 + $0x2b0] sm:$0xff]
    %v3165 = vld [vmem:[%s3077 + $0x2b8] sm:$0xff]
    %v3166 = vld [vmem:[%s3077 + $0x2c0] sm:$0xff]
    %v3167 = vld [vmem:[%s3077 + $0x2c8] sm:$0xff]
    %3168 = vmatpush.msra.mxu0 %v3153
    %3169 = vmatpush.msra.mxu0 %v3148
    %3170 = vmatpush.msra.mxu0 %v3143
    %3171 = vmatpush.msra.mxu0 %v3138
    %3172 = vmatpush.msra.mxu0 %v3133
    %3173 = vmatpush.msra.mxu0 %v3128
    %3174 = vmatpush.msra.mxu0 %v3123
    %3175 = vmatpush.msra.mxu0 %v3118
    %3176 = vmatpush.msra.mxu0 %v3113
    %3177 = vmatpush.msra.mxu0 %v3108
    %3178 = vmatpush.msra.mxu0 %v3103
    %3179 = vmatpush.msra.mxu0 %v3098
    %3180 = vmatpush.msra.mxu0 %v3093
    %3181 = vmatpush.msra.mxu0 %v3088
    %3182 = vmatpush.msra.mxu0 %v3083
    %3183 = vmatpush.msra.mxu0 %v3078
    %3184 = vmatmul.f32.gmra.mxu0 %v2049
    %v3185 = vpop.f32.mrf.mxu0
    %v3186 = vadd.f32 0.0, %v3185
    %3187 = vmatmul.f32.gmra.mxu0 %v2051
    %v3188 = vpop.f32.mrf.mxu0
    %v3189 = vadd.f32 0.0, %v3188
    %3190 = vmatmul.f32.gmra.mxu0 %v2053
    %v3191 = vpop.f32.mrf.mxu0
    %v3192 = vadd.f32 0.0, %v3191
    %3193 = vdwg.mxu0
    %3194 = vmatpush.msra.mxu0 0.0
    %3195 = vmatpush.msra.mxu0 0.0
    %3196 = vmatpush.msra.mxu0 0.0
    %3197 = vmatpush.msra.mxu0 0.0
    %3198 = vmatpush.msra.mxu0 0.0
    %3199 = vmatpush.msra.mxu0 0.0
    %3200 = vmatpush.msra.mxu0 0.0
    %3201 = vmatpush.msra.mxu0 0.0
    %3202 = vmatpush.msra.mxu0 0.0
    %3203 = vmatpush.msra.mxu0 0.0
    %3204 = vmatpush.msra.mxu0 0.0
    %3205 = vmatpush.msra.mxu0 0.0
    %3206 = vmatpush.msra.mxu0 0.0
    %3207 = vmatpush.msra.mxu0 0.0
    %3208 = vmatpush.msra.mxu0 %v3163
    %3209 = vmatpush.msra.mxu0 %v3158
    %3210 = vmatmul.f32.gmra.mxu0 %v2187
    %v3211 = vpop.f32.mrf.mxu0
    %v3212 = vadd.f32 %v3186, %v3211
    %3213 = vmatmul.f32.gmra.mxu0 %v2189
    %v3214 = vpop.f32.mrf.mxu0
    %v3215 = vadd.f32 %v3189, %v3214
    %3216 = vmatmul.f32.gmra.mxu0 %v2191
    %v3217 = vpop.f32.mrf.mxu0
    %v3218 = vadd.f32 %v3192, %v3217
    %3219 = vdwg.mxu0
    %3220 = vmatpush.msra.mxu0 %v3154
    %3221 = vmatpush.msra.mxu0 %v3149
    %3222 = vmatpush.msra.mxu0 %v3144
    %3223 = vmatpush.msra.mxu0 %v3139
    %3224 = vmatpush.msra.mxu0 %v3134
    %3225 = vmatpush.msra.mxu0 %v3129
    %3226 = vmatpush.msra.mxu0 %v3124
    %3227 = vmatpush.msra.mxu0 %v3119
    %3228 = vmatpush.msra.mxu0 %v3114
    %3229 = vmatpush.msra.mxu0 %v3109
    %3230 = vmatpush.msra.mxu0 %v3104
    %3231 = vmatpush.msra.mxu0 %v3099
    %3232 = vmatpush.msra.mxu0 %v3094
    %3233 = vmatpush.msra.mxu0 %v3089
    %3234 = vmatpush.msra.mxu0 %v3084
    %3235 = vmatpush.msra.mxu0 %v3079
    %3236 = vmatmul.f32.gmra.mxu0 %v2049
    %v3237 = vpop.f32.mrf.mxu0
    %v3238 = vadd.f32 0.0, %v3237
    %3239 = vmatmul.f32.gmra.mxu0 %v2051
    %v3240 = vpop.f32.mrf.mxu0
    %v3241 = vadd.f32 0.0, %v3240
    %3242 = vmatmul.f32.gmra.mxu0 %v2053
    %v3243 = vpop.f32.mrf.mxu0
    %v3244 = vadd.f32 0.0, %v3243
    %3245 = vdwg.mxu0
    %3246 = vmatpush.msra.mxu0 0.0
    %3247 = vmatpush.msra.mxu0 0.0
    %3248 = vmatpush.msra.mxu0 0.0
    %3249 = vmatpush.msra.mxu0 0.0
    %3250 = vmatpush.msra.mxu0 0.0
    %3251 = vmatpush.msra.mxu0 0.0
    %3252 = vmatpush.msra.mxu0 0.0
    %3253 = vmatpush.msra.mxu0 0.0
    %3254 = vmatpush.msra.mxu0 0.0
    %3255 = vmatpush.msra.mxu0 0.0
    %3256 = vmatpush.msra.mxu0 0.0
    %3257 = vmatpush.msra.mxu0 0.0
    %3258 = vmatpush.msra.mxu0 0.0
    %3259 = vmatpush.msra.mxu0 0.0
    %3260 = vmatpush.msra.mxu0 %v3164
    %3261 = vmatpush.msra.mxu0 %v3159
    %3262 = vmatmul.f32.gmra.mxu0 %v2187
    %v3263 = vpop.f32.mrf.mxu0
    %v3264 = vadd.f32 %v3238, %v3263
    %3265 = vmatmul.f32.gmra.mxu0 %v2189
    %v3266 = vpop.f32.mrf.mxu0
    %v3267 = vadd.f32 %v3241, %v3266
    %3268 = vmatmul.f32.gmra.mxu0 %v2191
    %v3269 = vpop.f32.mrf.mxu0
    %v3270 = vadd.f32 %v3244, %v3269
    %3271 = vdwg.mxu0
    %3272 = vmatpush.msra.mxu0 %v3155
    %3273 = vmatpush.msra.mxu0 %v3150
    %3274 = vmatpush.msra.mxu0 %v3145
    %3275 = vmatpush.msra.mxu0 %v3140
    %3276 = vmatpush.msra.mxu0 %v3135
    %3277 = vmatpush.msra.mxu0 %v3130
    %3278 = vmatpush.msra.mxu0 %v3125
    %3279 = vmatpush.msra.mxu0 %v3120
    %3280 = vmatpush.msra.mxu0 %v3115
    %3281 = vmatpush.msra.mxu0 %v3110
    %3282 = vmatpush.msra.mxu0 %v3105
    %3283 = vmatpush.msra.mxu0 %v3100
    %3284 = vmatpush.msra.mxu0 %v3095
    %3285 = vmatpush.msra.mxu0 %v3090
    %3286 = vmatpush.msra.mxu0 %v3085
    %3287 = vmatpush.msra.mxu0 %v3080
    %3288 = vmatmul.f32.gmra.mxu0 %v2049
    %v3289 = vpop.f32.mrf.mxu0
    %v3290 = vadd.f32 0.0, %v3289
    %3291 = vmatmul.f32.gmra.mxu0 %v2051
    %v3292 = vpop.f32.mrf.mxu0
    %v3293 = vadd.f32 0.0, %v3292
    %3294 = vmatmul.f32.gmra.mxu0 %v2053
    %v3295 = vpop.f32.mrf.mxu0
    %v3296 = vadd.f32 0.0, %v3295
    %3297 = vdwg.mxu0
    %3298 = vmatpush.msra.mxu0 0.0
    %3299 = vmatpush.msra.mxu0 0.0
    %3300 = vmatpush.msra.mxu0 0.0
    %3301 = vmatpush.msra.mxu0 0.0
    %3302 = vmatpush.msra.mxu0 0.0
    %3303 = vmatpush.msra.mxu0 0.0
    %3304 = vmatpush.msra.mxu0 0.0
    %3305 = vmatpush.msra.mxu0 0.0
    %3306 = vmatpush.msra.mxu0 0.0
    %3307 = vmatpush.msra.mxu0 0.0
    %3308 = vmatpush.msra.mxu0 0.0
    %3309 = vmatpush.msra.mxu0 0.0
    %3310 = vmatpush.msra.mxu0 0.0
    %3311 = vmatpush.msra.mxu0 0.0
    %3312 = vmatpush.msra.mxu0 %v3165
    %3313 = vmatpush.msra.mxu0 %v3160
    %3314 = vmatmul.f32.gmra.mxu0 %v2187
    %v3315 = vpop.f32.mrf.mxu0
    %v3316 = vadd.f32 %v3290, %v3315
    %3317 = vmatmul.f32.gmra.mxu0 %v2189
    %v3318 = vpop.f32.mrf.mxu0
    %v3319 = vadd.f32 %v3293, %v3318
    %3320 = vmatmul.f32.gmra.mxu0 %v2191
    %v3321 = vpop.f32.mrf.mxu0
    %v3322 = vadd.f32 %v3296, %v3321
    %3323 = vdwg.mxu0
    %3324 = vmatpush.msra.mxu0 %v3156
    %3325 = vmatpush.msra.mxu0 %v3151
    %3326 = vmatpush.msra.mxu0 %v3146
    %3327 = vmatpush.msra.mxu0 %v3141
    %3328 = vmatpush.msra.mxu0 %v3136
    %3329 = vmatpush.msra.mxu0 %v3131
    %3330 = vmatpush.msra.mxu0 %v3126
    %3331 = vmatpush.msra.mxu0 %v3121
    %3332 = vmatpush.msra.mxu0 %v3116
    %3333 = vmatpush.msra.mxu0 %v3111
    %3334 = vmatpush.msra.mxu0 %v3106
    %3335 = vmatpush.msra.mxu0 %v3101
    %3336 = vmatpush.msra.mxu0 %v3096
    %3337 = vmatpush.msra.mxu0 %v3091
    %3338 = vmatpush.msra.mxu0 %v3086
    %3339 = vmatpush.msra.mxu0 %v3081
    %3340 = vmatmul.f32.gmra.mxu0 %v2049
    %v3341 = vpop.f32.mrf.mxu0
    %v3342 = vadd.f32 0.0, %v3341
    %3343 = vmatmul.f32.gmra.mxu0 %v2051
    %v3344 = vpop.f32.mrf.mxu0
    %v3345 = vadd.f32 0.0, %v3344
    %3346 = vmatmul.f32.gmra.mxu0 %v2053
    %v3347 = vpop.f32.mrf.mxu0
    %v3348 = vadd.f32 0.0, %v3347
    %3349 = vdwg.mxu0
    %3350 = vmatpush.msra.mxu0 0.0
    %3351 = vmatpush.msra.mxu0 0.0
    %3352 = vmatpush.msra.mxu0 0.0
    %3353 = vmatpush.msra.mxu0 0.0
    %3354 = vmatpush.msra.mxu0 0.0
    %3355 = vmatpush.msra.mxu0 0.0
    %3356 = vmatpush.msra.mxu0 0.0
    %3357 = vmatpush.msra.mxu0 0.0
    %3358 = vmatpush.msra.mxu0 0.0
    %3359 = vmatpush.msra.mxu0 0.0
    %3360 = vmatpush.msra.mxu0 0.0
    %3361 = vmatpush.msra.mxu0 0.0
    %3362 = vmatpush.msra.mxu0 0.0
    %3363 = vmatpush.msra.mxu0 0.0
    %3364 = vmatpush.msra.mxu0 %v3166
    %3365 = vmatpush.msra.mxu0 %v3161
    %3366 = vmatmul.f32.gmra.mxu0 %v2187
    %v3367 = vpop.f32.mrf.mxu0
    %v3368 = vadd.f32 %v3342, %v3367
    %3369 = vmatmul.f32.gmra.mxu0 %v2189
    %v3370 = vpop.f32.mrf.mxu0
    %v3371 = vadd.f32 %v3345, %v3370
    %3372 = vmatmul.f32.gmra.mxu0 %v2191
    %v3373 = vpop.f32.mrf.mxu0
    %v3374 = vadd.f32 %v3348, %v3373
    %3375 = vdwg.mxu0
    %3376 = vmatpush.msra.mxu0 %v3157
    %3377 = vmatpush.msra.mxu0 %v3152
    %3378 = vmatpush.msra.mxu0 %v3147
    %3379 = vmatpush.msra.mxu0 %v3142
    %3380 = vmatpush.msra.mxu0 %v3137
    %3381 = vmatpush.msra.mxu0 %v3132
    %3382 = vmatpush.msra.mxu0 %v3127
    %3383 = vmatpush.msra.mxu0 %v3122
    %3384 = vmatpush.msra.mxu0 %v3117
    %3385 = vmatpush.msra.mxu0 %v3112
    %3386 = vmatpush.msra.mxu0 %v3107
    %3387 = vmatpush.msra.mxu0 %v3102
    %3388 = vmatpush.msra.mxu0 %v3097
    %3389 = vmatpush.msra.mxu0 %v3092
    %3390 = vmatpush.msra.mxu0 %v3087
    %3391 = vmatpush.msra.mxu0 %v3082
    %3392 = vmatmul.f32.gmra.mxu0 %v2049
    %v3393 = vpop.f32.mrf.mxu0
    %v3394 = vadd.f32 0.0, %v3393
    %3395 = vmatmul.f32.gmra.mxu0 %v2051
    %v3396 = vpop.f32.mrf.mxu0
    %v3397 = vadd.f32 0.0, %v3396
    %3398 = vmatmul.f32.gmra.mxu0 %v2053
    %v3399 = vpop.f32.mrf.mxu0
    %v3400 = vadd.f32 0.0, %v3399
    %3401 = vdwg.mxu0
    %3402 = vmatpush.msra.mxu0 0.0
    %3403 = vmatpush.msra.mxu0 0.0
    %3404 = vmatpush.msra.mxu0 0.0
    %3405 = vmatpush.msra.mxu0 0.0
    %3406 = vmatpush.msra.mxu0 0.0
    %3407 = vmatpush.msra.mxu0 0.0
    %3408 = vmatpush.msra.mxu0 0.0
    %3409 = vmatpush.msra.mxu0 0.0
    %3410 = vmatpush.msra.mxu0 0.0
    %3411 = vmatpush.msra.mxu0 0.0
    %3412 = vmatpush.msra.mxu0 0.0
    %3413 = vmatpush.msra.mxu0 0.0
    %3414 = vmatpush.msra.mxu0 0.0
    %3415 = vmatpush.msra.mxu0 0.0
    %3416 = vmatpush.msra.mxu0 %v3167
    %3417 = vmatpush.msra.mxu0 %v3162
    %3418 = vmatmul.f32.gmra.mxu0 %v2187
    %v3419 = vpop.f32.mrf.mxu0
    %v3420 = vadd.f32 %v3394, %v3419
    %3421 = vmatmul.f32.gmra.mxu0 %v2189
    %v3422 = vpop.f32.mrf.mxu0
    %v3423 = vadd.f32 %v3397, %v3422
    %3424 = vmatmul.f32.gmra.mxu0 %v2191
    %v3425 = vpop.f32.mrf.mxu0
    %v3426 = vadd.f32 %v3400, %v3425
    %3427 = vdwg.mxu0
    %v3428 = vadd.f32 %v2086, %v3212
    %v3429 = vadd.f32 %v2087, %v3264
    %v3430 = vadd.f32 %v2088, %v3316
    %v3431 = vadd.f32 %v2089, %v3368
    %v3432 = vadd.f32 %v2090, %v3420
    %v3433 = vadd.f32 %v2086, %v3215
    %v3434 = vadd.f32 %v2087, %v3267
    %v3435 = vadd.f32 %v2088, %v3319
    %v3436 = vadd.f32 %v2089, %v3371
    %v3437 = vadd.f32 %v2090, %v3423
    %v3438 = vadd.f32 %v2086, %v3218
    %v3439 = vadd.f32 %v2087, %v3270
    %v3440 = vadd.f32 %v2088, %v3322
    %v3441 = vadd.f32 %v2089, %v3374
    %v3442 = vadd.f32 %v2090, %v3426
    %s3443 = scalar_lea.vmem %s9, 240
    %3444 = vst [vmem:[%s3443] sm:$0xff] %v3428
    %3445 = vst [vmem:[%s3443 + $0x8] sm:$0xff] %v3429
    %3446 = vst [vmem:[%s3443 + $0x10] sm:$0xff] %v3430
    %3447 = vst [vmem:[%s3443 + $0x18] sm:$0xff] %v3431
    %3448 = vst.msk [vmem:[%s3443 + $0x20] sm:$0xff] %vm2472, %v3432
    %3449 = vst [vmem:[%s3443 + $0x28] sm:$0xff] %v3433
    %3450 = vst [vmem:[%s3443 + $0x30] sm:$0xff] %v3434
    %3451 = vst [vmem:[%s3443 + $0x38] sm:$0xff] %v3435
    %3452 = vst [vmem:[%s3443 + $0x40] sm:$0xff] %v3436
    %3453 = vst.msk [vmem:[%s3443 + $0x48] sm:$0xff] %vm2472, %v3437
    %3454 = vst [vmem:[%s3443 + $0x50] sm:$0xff] %v3438
    %3455 = vst [vmem:[%s3443 + $0x58] sm:$0xff] %v3439
    %3456 = vst [vmem:[%s3443 + $0x60] sm:$0xff] %v3440
    %3457 = vst [vmem:[%s3443 + $0x68] sm:$0xff] %v3441
    %3458 = vst.msk [vmem:[%s3443 + $0x70] sm:$0xff] %vm2472, %v3442
    %v3459 = vsub.f32 0.0, %v3428
    %v3460 = vsub.f32 0.0, %v3429
    %v3461 = vsub.f32 0.0, %v3430
    %v3462 = vsub.f32 0.0, %v3431
    %v3463 = vsub.f32 0.0, %v3432
    %v3464 = vsub.f32 0.0, %v3433
    %v3465 = vsub.f32 0.0, %v3434
    %v3466 = vsub.f32 0.0, %v3435
    %v3467 = vsub.f32 0.0, %v3436
    %v3468 = vsub.f32 0.0, %v3437
    %v3469 = vsub.f32 0.0, %v3438
    %v3470 = vsub.f32 0.0, %v3439
    %v3471 = vsub.f32 0.0, %v3440
    %v3472 = vsub.f32 0.0, %v3441
    %v3473 = vsub.f32 0.0, %v3442
    %v3474 = vmul.f32 %v3459, 1.442695
    %v3475 = vpow.pop %v3474
    %v3476 = vmul.f32 %v3460, 1.442695
    %v3477 = vpow.pop %v3476
    %v3478 = vmul.f32 %v3461, 1.442695
    %v3479 = vpow.pop %v3478
    %v3480 = vmul.f32 %v3462, 1.442695
    %v3481 = vpow.pop %v3480
    %v3482 = vmul.f32 %v3463, 1.442695
    %v3483 = vpow.pop %v3482
    %v3484 = vmul.f32 %v3464, 1.442695
    %v3485 = vpow.pop %v3484
    %v3486 = vmul.f32 %v3465, 1.442695
    %v3487 = vpow.pop %v3486
    %v3488 = vmul.f32 %v3466, 1.442695
    %v3489 = vpow.pop %v3488
    %v3490 = vmul.f32 %v3467, 1.442695
    %v3491 = vpow.pop %v3490
    %v3492 = vmul.f32 %v3468, 1.442695
    %v3493 = vpow.pop %v3492
    %v3494 = vmul.f32 %v3469, 1.442695
    %v3495 = vpow.pop %v3494
    %v3496 = vmul.f32 %v3470, 1.442695
    %v3497 = vpow.pop %v3496
    %v3498 = vmul.f32 %v3471, 1.442695
    %v3499 = vpow.pop %v3498
    %v3500 = vmul.f32 %v3472, 1.442695
    %v3501 = vpow.pop %v3500
    %v3502 = vmul.f32 %v3473, 1.442695
    %v3503 = vpow.pop %v3502
    %v3504 = vadd.f32 %v3475, 1.0
    %v3505 = vadd.f32 %v3477, 1.0
    %v3506 = vadd.f32 %v3479, 1.0
    %v3507 = vadd.f32 %v3481, 1.0
    %v3508 = vadd.f32 %v3483, 1.0
    %v3509 = vadd.f32 %v3485, 1.0
    %v3510 = vadd.f32 %v3487, 1.0
    %v3511 = vadd.f32 %v3489, 1.0
    %v3512 = vadd.f32 %v3491, 1.0
    %v3513 = vadd.f32 %v3493, 1.0
    %v3514 = vadd.f32 %v3495, 1.0
    %v3515 = vadd.f32 %v3497, 1.0
    %v3516 = vadd.f32 %v3499, 1.0
    %v3517 = vadd.f32 %v3501, 1.0
    %v3518 = vadd.f32 %v3503, 1.0
    %v3519 = vrcp.pop %v3504
    %v3520 = vrcp.pop %v3505
    %v3521 = vrcp.pop %v3506
    %v3522 = vrcp.pop %v3507
    %v3523 = vrcp.pop %v3508
    %v3524 = vrcp.pop %v3509
    %v3525 = vrcp.pop %v3510
    %v3526 = vrcp.pop %v3511
    %v3527 = vrcp.pop %v3512
    %v3528 = vrcp.pop %v3513
    %v3529 = vrcp.pop %v3514
    %v3530 = vrcp.pop %v3515
    %v3531 = vrcp.pop %v3516
    %v3532 = vrcp.pop %v3517
    %v3533 = vrcp.pop %v3518
    %v3534 = vmul.f32 %v3428, %v3519
    %v3535 = vmul.f32 %v3429, %v3520
    %v3536 = vmul.f32 %v3430, %v3521
    %v3537 = vmul.f32 %v3431, %v3522
    %v3538 = vmul.f32 %v3432, %v3523
    %v3539 = vmul.f32 %v3433, %v3524
    %v3540 = vmul.f32 %v3434, %v3525
    %v3541 = vmul.f32 %v3435, %v3526
    %v3542 = vmul.f32 %v3436, %v3527
    %v3543 = vmul.f32 %v3437, %v3528
    %v3544 = vmul.f32 %v3438, %v3529
    %v3545 = vmul.f32 %v3439, %v3530
    %v3546 = vmul.f32 %v3440, %v3531
    %v3547 = vmul.f32 %v3441, %v3532
    %v3548 = vmul.f32 %v3442, %v3533
    %s3549 = scalar_lea.vmem %s10, 240
    %3550 = vst [vmem:[%s3549] sm:$0xff] %v3534
    %3551 = vst [vmem:[%s3549 + $0x8] sm:$0xff] %v3535
    %3552 = vst [vmem:[%s3549 + $0x10] sm:$0xff] %v3536
    %3553 = vst [vmem:[%s3549 + $0x18] sm:$0xff] %v3537
    %3554 = vst.msk [vmem:[%s3549 + $0x20] sm:$0xff] %vm2472, %v3538
    %3555 = vst [vmem:[%s3549 + $0x28] sm:$0xff] %v3539
    %3556 = vst [vmem:[%s3549 + $0x30] sm:$0xff] %v3540
    %3557 = vst [vmem:[%s3549 + $0x38] sm:$0xff] %v3541
    %3558 = vst [vmem:[%s3549 + $0x40] sm:$0xff] %v3542
    %3559 = vst.msk [vmem:[%s3549 + $0x48] sm:$0xff] %vm2472, %v3543
    %3560 = vst [vmem:[%s3549 + $0x50] sm:$0xff] %v3544
    %3561 = vst [vmem:[%s3549 + $0x58] sm:$0xff] %v3545
    %3562 = vst [vmem:[%s3549 + $0x60] sm:$0xff] %v3546
    %3563 = vst [vmem:[%s3549 + $0x68] sm:$0xff] %v3547
    %3564 = vst.msk [vmem:[%s3549 + $0x70] sm:$0xff] %vm2472, %v3548
    %s3565 = scalar_lea.vmem [#allocation2], 720
    %v3566 = vld [vmem:[%s3565] sm:$0xff]
    %v3567 = vld [vmem:[%s3565 + $0x8] sm:$0xff]
    %v3568 = vld [vmem:[%s3565 + $0x10] sm:$0xff]
    %v3569 = vld [vmem:[%s3565 + $0x18] sm:$0xff]
    %v3570 = vld [vmem:[%s3565 + $0x20] sm:$0xff]
    %v3571 = vld [vmem:[%s3565 + $0x28] sm:$0xff]
    %v3572 = vld [vmem:[%s3565 + $0x30] sm:$0xff]
    %v3573 = vld [vmem:[%s3565 + $0x38] sm:$0xff]
    %v3574 = vld [vmem:[%s3565 + $0x40] sm:$0xff]
    %v3575 = vld [vmem:[%s3565 + $0x48] sm:$0xff]
    %v3576 = vld [vmem:[%s3565 + $0x50] sm:$0xff]
    %v3577 = vld [vmem:[%s3565 + $0x58] sm:$0xff]
    %v3578 = vld [vmem:[%s3565 + $0x60] sm:$0xff]
    %v3579 = vld [vmem:[%s3565 + $0x68] sm:$0xff]
    %v3580 = vld [vmem:[%s3565 + $0x70] sm:$0xff]
    %v3581 = vld [vmem:[%s3565 + $0x78] sm:$0xff]
    %v3582 = vld [vmem:[%s3565 + $0x80] sm:$0xff]
    %v3583 = vld [vmem:[%s3565 + $0x88] sm:$0xff]
    %v3584 = vld [vmem:[%s3565 + $0x90] sm:$0xff]
    %v3585 = vld [vmem:[%s3565 + $0x98] sm:$0xff]
    %v3586 = vld [vmem:[%s3565 + $0xa0] sm:$0xff]
    %v3587 = vld [vmem:[%s3565 + $0xa8] sm:$0xff]
    %v3588 = vld [vmem:[%s3565 + $0xb0] sm:$0xff]
    %v3589 = vld [vmem:[%s3565 + $0xb8] sm:$0xff]
    %v3590 = vld [vmem:[%s3565 + $0xc0] sm:$0xff]
    %v3591 = vld [vmem:[%s3565 + $0xc8] sm:$0xff]
    %v3592 = vld [vmem:[%s3565 + $0xd0] sm:$0xff]
    %v3593 = vld [vmem:[%s3565 + $0xd8] sm:$0xff]
    %v3594 = vld [vmem:[%s3565 + $0xe0] sm:$0xff]
    %v3595 = vld [vmem:[%s3565 + $0xe8] sm:$0xff]
    %v3596 = vld [vmem:[%s3565 + $0xf0] sm:$0xff]
    %v3597 = vld [vmem:[%s3565 + $0xf8] sm:$0xff]
    %v3598 = vld [vmem:[%s3565 + $0x100] sm:$0xff]
    %v3599 = vld [vmem:[%s3565 + $0x108] sm:$0xff]
    %v3600 = vld [vmem:[%s3565 + $0x110] sm:$0xff]
    %v3601 = vld [vmem:[%s3565 + $0x118] sm:$0xff]
    %v3602 = vld [vmem:[%s3565 + $0x120] sm:$0xff]
    %v3603 = vld [vmem:[%s3565 + $0x128] sm:$0xff]
    %v3604 = vld [vmem:[%s3565 + $0x130] sm:$0xff]
    %v3605 = vld [vmem:[%s3565 + $0x138] sm:$0xff]
    %v3606 = vld [vmem:[%s3565 + $0x140] sm:$0xff]
    %v3607 = vld [vmem:[%s3565 + $0x148] sm:$0xff]
    %v3608 = vld [vmem:[%s3565 + $0x150] sm:$0xff]
    %v3609 = vld [vmem:[%s3565 + $0x158] sm:$0xff]
    %v3610 = vld [vmem:[%s3565 + $0x160] sm:$0xff]
    %v3611 = vld [vmem:[%s3565 + $0x168] sm:$0xff]
    %v3612 = vld [vmem:[%s3565 + $0x170] sm:$0xff]
    %v3613 = vld [vmem:[%s3565 + $0x178] sm:$0xff]
    %v3614 = vld [vmem:[%s3565 + $0x180] sm:$0xff]
    %v3615 = vld [vmem:[%s3565 + $0x188] sm:$0xff]
    %v3616 = vld [vmem:[%s3565 + $0x190] sm:$0xff]
    %v3617 = vld [vmem:[%s3565 + $0x198] sm:$0xff]
    %v3618 = vld [vmem:[%s3565 + $0x1a0] sm:$0xff]
    %v3619 = vld [vmem:[%s3565 + $0x1a8] sm:$0xff]
    %v3620 = vld [vmem:[%s3565 + $0x1b0] sm:$0xff]
    %v3621 = vld [vmem:[%s3565 + $0x1b8] sm:$0xff]
    %v3622 = vld [vmem:[%s3565 + $0x1c0] sm:$0xff]
    %v3623 = vld [vmem:[%s3565 + $0x1c8] sm:$0xff]
    %v3624 = vld [vmem:[%s3565 + $0x1d0] sm:$0xff]
    %v3625 = vld [vmem:[%s3565 + $0x1d8] sm:$0xff]
    %v3626 = vld [vmem:[%s3565 + $0x1e0] sm:$0xff]
    %v3627 = vld [vmem:[%s3565 + $0x1e8] sm:$0xff]
    %v3628 = vld [vmem:[%s3565 + $0x1f0] sm:$0xff]
    %v3629 = vld [vmem:[%s3565 + $0x1f8] sm:$0xff]
    %v3630 = vld [vmem:[%s3565 + $0x200] sm:$0xff]
    %v3631 = vld [vmem:[%s3565 + $0x208] sm:$0xff]
    %v3632 = vld [vmem:[%s3565 + $0x210] sm:$0xff]
    %v3633 = vld [vmem:[%s3565 + $0x218] sm:$0xff]
    %v3634 = vld [vmem:[%s3565 + $0x220] sm:$0xff]
    %v3635 = vld [vmem:[%s3565 + $0x228] sm:$0xff]
    %v3636 = vld [vmem:[%s3565 + $0x230] sm:$0xff]
    %v3637 = vld [vmem:[%s3565 + $0x238] sm:$0xff]
    %v3638 = vld [vmem:[%s3565 + $0x240] sm:$0xff]
    %v3639 = vld [vmem:[%s3565 + $0x248] sm:$0xff]
    %v3640 = vld [vmem:[%s3565 + $0x250] sm:$0xff]
    %v3641 = vld [vmem:[%s3565 + $0x258] sm:$0xff]
    %v3642 = vld [vmem:[%s3565 + $0x260] sm:$0xff]
    %v3643 = vld [vmem:[%s3565 + $0x268] sm:$0xff]
    %v3644 = vld [vmem:[%s3565 + $0x270] sm:$0xff]
    %v3645 = vld [vmem:[%s3565 + $0x278] sm:$0xff]
    %v3646 = vld [vmem:[%s3565 + $0x280] sm:$0xff]
    %v3647 = vld [vmem:[%s3565 + $0x288] sm:$0xff]
    %v3648 = vld [vmem:[%s3565 + $0x290] sm:$0xff]
    %v3649 = vld [vmem:[%s3565 + $0x298] sm:$0xff]
    %v3650 = vld [vmem:[%s3565 + $0x2a0] sm:$0xff]
    %v3651 = vld [vmem:[%s3565 + $0x2a8] sm:$0xff]
    %v3652 = vld [vmem:[%s3565 + $0x2b0] sm:$0xff]
    %v3653 = vld [vmem:[%s3565 + $0x2b8] sm:$0xff]
    %v3654 = vld [vmem:[%s3565 + $0x2c0] sm:$0xff]
    %v3655 = vld [vmem:[%s3565 + $0x2c8] sm:$0xff]
    %3656 = vmatpush.msra.mxu0 %v3641
    %3657 = vmatpush.msra.mxu0 %v3636
    %3658 = vmatpush.msra.mxu0 %v3631
    %3659 = vmatpush.msra.mxu0 %v3626
    %3660 = vmatpush.msra.mxu0 %v3621
    %3661 = vmatpush.msra.mxu0 %v3616
    %3662 = vmatpush.msra.mxu0 %v3611
    %3663 = vmatpush.msra.mxu0 %v3606
    %3664 = vmatpush.msra.mxu0 %v3601
    %3665 = vmatpush.msra.mxu0 %v3596
    %3666 = vmatpush.msra.mxu0 %v3591
    %3667 = vmatpush.msra.mxu0 %v3586
    %3668 = vmatpush.msra.mxu0 %v3581
    %3669 = vmatpush.msra.mxu0 %v3576
    %3670 = vmatpush.msra.mxu0 %v3571
    %3671 = vmatpush.msra.mxu0 %v3566
    %3672 = vmatmul.f32.gmra.mxu0 %v2049
    %v3673 = vpop.f32.mrf.mxu0
    %v3674 = vadd.f32 0.0, %v3673
    %3675 = vmatmul.f32.gmra.mxu0 %v2051
    %v3676 = vpop.f32.mrf.mxu0
    %v3677 = vadd.f32 0.0, %v3676
    %3678 = vmatmul.f32.gmra.mxu0 %v2053
    %v3679 = vpop.f32.mrf.mxu0
    %v3680 = vadd.f32 0.0, %v3679
    %3681 = vdwg.mxu0
    %3682 = vmatpush.msra.mxu0 0.0
    %3683 = vmatpush.msra.mxu0 0.0
    %3684 = vmatpush.msra.mxu0 0.0
    %3685 = vmatpush.msra.mxu0 0.0
    %3686 = vmatpush.msra.mxu0 0.0
    %3687 = vmatpush.msra.mxu0 0.0
    %3688 = vmatpush.msra.mxu0 0.0
    %3689 = vmatpush.msra.mxu0 0.0
    %3690 = vmatpush.msra.mxu0 0.0
    %3691 = vmatpush.msra.mxu0 0.0
    %3692 = vmatpush.msra.mxu0 0.0
    %3693 = vmatpush.msra.mxu0 0.0
    %3694 = vmatpush.msra.mxu0 0.0
    %3695 = vmatpush.msra.mxu0 0.0
    %3696 = vmatpush.msra.mxu0 %v3651
    %3697 = vmatpush.msra.mxu0 %v3646
    %3698 = vmatmul.f32.gmra.mxu0 %v2187
    %v3699 = vpop.f32.mrf.mxu0
    %v3700 = vadd.f32 %v3674, %v3699
    %3701 = vmatmul.f32.gmra.mxu0 %v2189
    %v3702 = vpop.f32.mrf.mxu0
    %v3703 = vadd.f32 %v3677, %v3702
    %3704 = vmatmul.f32.gmra.mxu0 %v2191
    %v3705 = vpop.f32.mrf.mxu0
    %v3706 = vadd.f32 %v3680, %v3705
    %3707 = vdwg.mxu0
    %3708 = vmatpush.msra.mxu0 %v3642
    %3709 = vmatpush.msra.mxu0 %v3637
    %3710 = vmatpush.msra.mxu0 %v3632
    %3711 = vmatpush.msra.mxu0 %v3627
    %3712 = vmatpush.msra.mxu0 %v3622
    %3713 = vmatpush.msra.mxu0 %v3617
    %3714 = vmatpush.msra.mxu0 %v3612
    %3715 = vmatpush.msra.mxu0 %v3607
    %3716 = vmatpush.msra.mxu0 %v3602
    %3717 = vmatpush.msra.mxu0 %v3597
    %3718 = vmatpush.msra.mxu0 %v3592
    %3719 = vmatpush.msra.mxu0 %v3587
    %3720 = vmatpush.msra.mxu0 %v3582
    %3721 = vmatpush.msra.mxu0 %v3577
    %3722 = vmatpush.msra.mxu0 %v3572
    %3723 = vmatpush.msra.mxu0 %v3567
    %3724 = vmatmul.f32.gmra.mxu0 %v2049
    %v3725 = vpop.f32.mrf.mxu0
    %v3726 = vadd.f32 0.0, %v3725
    %3727 = vmatmul.f32.gmra.mxu0 %v2051
    %v3728 = vpop.f32.mrf.mxu0
    %v3729 = vadd.f32 0.0, %v3728
    %3730 = vmatmul.f32.gmra.mxu0 %v2053
    %v3731 = vpop.f32.mrf.mxu0
    %v3732 = vadd.f32 0.0, %v3731
    %3733 = vdwg.mxu0
    %3734 = vmatpush.msra.mxu0 0.0
    %3735 = vmatpush.msra.mxu0 0.0
    %3736 = vmatpush.msra.mxu0 0.0
    %3737 = vmatpush.msra.mxu0 0.0
    %3738 = vmatpush.msra.mxu0 0.0
    %3739 = vmatpush.msra.mxu0 0.0
    %3740 = vmatpush.msra.mxu0 0.0
    %3741 = vmatpush.msra.mxu0 0.0
    %3742 = vmatpush.msra.mxu0 0.0
    %3743 = vmatpush.msra.mxu0 0.0
    %3744 = vmatpush.msra.mxu0 0.0
    %3745 = vmatpush.msra.mxu0 0.0
    %3746 = vmatpush.msra.mxu0 0.0
    %3747 = vmatpush.msra.mxu0 0.0
    %3748 = vmatpush.msra.mxu0 %v3652
    %3749 = vmatpush.msra.mxu0 %v3647
    %3750 = vmatmul.f32.gmra.mxu0 %v2187
    %v3751 = vpop.f32.mrf.mxu0
    %v3752 = vadd.f32 %v3726, %v3751
    %3753 = vmatmul.f32.gmra.mxu0 %v2189
    %v3754 = vpop.f32.mrf.mxu0
    %v3755 = vadd.f32 %v3729, %v3754
    %3756 = vmatmul.f32.gmra.mxu0 %v2191
    %v3757 = vpop.f32.mrf.mxu0
    %v3758 = vadd.f32 %v3732, %v3757
    %3759 = vdwg.mxu0
    %3760 = vmatpush.msra.mxu0 %v3643
    %3761 = vmatpush.msra.mxu0 %v3638
    %3762 = vmatpush.msra.mxu0 %v3633
    %3763 = vmatpush.msra.mxu0 %v3628
    %3764 = vmatpush.msra.mxu0 %v3623
    %3765 = vmatpush.msra.mxu0 %v3618
    %3766 = vmatpush.msra.mxu0 %v3613
    %3767 = vmatpush.msra.mxu0 %v3608
    %3768 = vmatpush.msra.mxu0 %v3603
    %3769 = vmatpush.msra.mxu0 %v3598
    %3770 = vmatpush.msra.mxu0 %v3593
    %3771 = vmatpush.msra.mxu0 %v3588
    %3772 = vmatpush.msra.mxu0 %v3583
    %3773 = vmatpush.msra.mxu0 %v3578
    %3774 = vmatpush.msra.mxu0 %v3573
    %3775 = vmatpush.msra.mxu0 %v3568
    %3776 = vmatmul.f32.gmra.mxu0 %v2049
    %v3777 = vpop.f32.mrf.mxu0
    %v3778 = vadd.f32 0.0, %v3777
    %3779 = vmatmul.f32.gmra.mxu0 %v2051
    %v3780 = vpop.f32.mrf.mxu0
    %v3781 = vadd.f32 0.0, %v3780
    %3782 = vmatmul.f32.gmra.mxu0 %v2053
    %v3783 = vpop.f32.mrf.mxu0
    %v3784 = vadd.f32 0.0, %v3783
    %3785 = vdwg.mxu0
    %3786 = vmatpush.msra.mxu0 0.0
    %3787 = vmatpush.msra.mxu0 0.0
    %3788 = vmatpush.msra.mxu0 0.0
    %3789 = vmatpush.msra.mxu0 0.0
    %3790 = vmatpush.msra.mxu0 0.0
    %3791 = vmatpush.msra.mxu0 0.0
    %3792 = vmatpush.msra.mxu0 0.0
    %3793 = vmatpush.msra.mxu0 0.0
    %3794 = vmatpush.msra.mxu0 0.0
    %3795 = vmatpush.msra.mxu0 0.0
    %3796 = vmatpush.msra.mxu0 0.0
    %3797 = vmatpush.msra.mxu0 0.0
    %3798 = vmatpush.msra.mxu0 0.0
    %3799 = vmatpush.msra.mxu0 0.0
    %3800 = vmatpush.msra.mxu0 %v3653
    %3801 = vmatpush.msra.mxu0 %v3648
    %3802 = vmatmul.f32.gmra.mxu0 %v2187
    %v3803 = vpop.f32.mrf.mxu0
    %v3804 = vadd.f32 %v3778, %v3803
    %3805 = vmatmul.f32.gmra.mxu0 %v2189
    %v3806 = vpop.f32.mrf.mxu0
    %v3807 = vadd.f32 %v3781, %v3806
    %3808 = vmatmul.f32.gmra.mxu0 %v2191
    %v3809 = vpop.f32.mrf.mxu0
    %v3810 = vadd.f32 %v3784, %v3809
    %3811 = vdwg.mxu0
    %3812 = vmatpush.msra.mxu0 %v3644
    %3813 = vmatpush.msra.mxu0 %v3639
    %3814 = vmatpush.msra.mxu0 %v3634
    %3815 = vmatpush.msra.mxu0 %v3629
    %3816 = vmatpush.msra.mxu0 %v3624
    %3817 = vmatpush.msra.mxu0 %v3619
    %3818 = vmatpush.msra.mxu0 %v3614
    %3819 = vmatpush.msra.mxu0 %v3609
    %3820 = vmatpush.msra.mxu0 %v3604
    %3821 = vmatpush.msra.mxu0 %v3599
    %3822 = vmatpush.msra.mxu0 %v3594
    %3823 = vmatpush.msra.mxu0 %v3589
    %3824 = vmatpush.msra.mxu0 %v3584
    %3825 = vmatpush.msra.mxu0 %v3579
    %3826 = vmatpush.msra.mxu0 %v3574
    %3827 = vmatpush.msra.mxu0 %v3569
    %3828 = vmatmul.f32.gmra.mxu0 %v2049
    %v3829 = vpop.f32.mrf.mxu0
    %v3830 = vadd.f32 0.0, %v3829
    %3831 = vmatmul.f32.gmra.mxu0 %v2051
    %v3832 = vpop.f32.mrf.mxu0
    %v3833 = vadd.f32 0.0, %v3832
    %3834 = vmatmul.f32.gmra.mxu0 %v2053
    %v3835 = vpop.f32.mrf.mxu0
    %v3836 = vadd.f32 0.0, %v3835
    %3837 = vdwg.mxu0
    %3838 = vmatpush.msra.mxu0 0.0
    %3839 = vmatpush.msra.mxu0 0.0
    %3840 = vmatpush.msra.mxu0 0.0
    %3841 = vmatpush.msra.mxu0 0.0
    %3842 = vmatpush.msra.mxu0 0.0
    %3843 = vmatpush.msra.mxu0 0.0
    %3844 = vmatpush.msra.mxu0 0.0
    %3845 = vmatpush.msra.mxu0 0.0
    %3846 = vmatpush.msra.mxu0 0.0
    %3847 = vmatpush.msra.mxu0 0.0
    %3848 = vmatpush.msra.mxu0 0.0
    %3849 = vmatpush.msra.mxu0 0.0
    %3850 = vmatpush.msra.mxu0 0.0
    %3851 = vmatpush.msra.mxu0 0.0
    %3852 = vmatpush.msra.mxu0 %v3654
    %3853 = vmatpush.msra.mxu0 %v3649
    %3854 = vmatmul.f32.gmra.mxu0 %v2187
    %v3855 = vpop.f32.mrf.mxu0
    %v3856 = vadd.f32 %v3830, %v3855
    %3857 = vmatmul.f32.gmra.mxu0 %v2189
    %v3858 = vpop.f32.mrf.mxu0
    %v3859 = vadd.f32 %v3833, %v3858
    %3860 = vmatmul.f32.gmra.mxu0 %v2191
    %v3861 = vpop.f32.mrf.mxu0
    %v3862 = vadd.f32 %v3836, %v3861
    %3863 = vdwg.mxu0
    %3864 = vmatpush.msra.mxu0 %v3645
    %3865 = vmatpush.msra.mxu0 %v3640
    %3866 = vmatpush.msra.mxu0 %v3635
    %3867 = vmatpush.msra.mxu0 %v3630
    %3868 = vmatpush.msra.mxu0 %v3625
    %3869 = vmatpush.msra.mxu0 %v3620
    %3870 = vmatpush.msra.mxu0 %v3615
    %3871 = vmatpush.msra.mxu0 %v3610
    %3872 = vmatpush.msra.mxu0 %v3605
    %3873 = vmatpush.msra.mxu0 %v3600
    %3874 = vmatpush.msra.mxu0 %v3595
    %3875 = vmatpush.msra.mxu0 %v3590
    %3876 = vmatpush.msra.mxu0 %v3585
    %3877 = vmatpush.msra.mxu0 %v3580
    %3878 = vmatpush.msra.mxu0 %v3575
    %3879 = vmatpush.msra.mxu0 %v3570
    %3880 = vmatmul.f32.gmra.mxu0 %v2049
    %v3881 = vpop.f32.mrf.mxu0
    %v3882 = vadd.f32 0.0, %v3881
    %3883 = vmatmul.f32.gmra.mxu0 %v2051
    %v3884 = vpop.f32.mrf.mxu0
    %v3885 = vadd.f32 0.0, %v3884
    %3886 = vmatmul.f32.gmra.mxu0 %v2053
    %v3887 = vpop.f32.mrf.mxu0
    %v3888 = vadd.f32 0.0, %v3887
    %3889 = vdwg.mxu0
    %3890 = vmatpush.msra.mxu0 0.0
    %3891 = vmatpush.msra.mxu0 0.0
    %3892 = vmatpush.msra.mxu0 0.0
    %3893 = vmatpush.msra.mxu0 0.0
    %3894 = vmatpush.msra.mxu0 0.0
    %3895 = vmatpush.msra.mxu0 0.0
    %3896 = vmatpush.msra.mxu0 0.0
    %3897 = vmatpush.msra.mxu0 0.0
    %3898 = vmatpush.msra.mxu0 0.0
    %3899 = vmatpush.msra.mxu0 0.0
    %3900 = vmatpush.msra.mxu0 0.0
    %3901 = vmatpush.msra.mxu0 0.0
    %3902 = vmatpush.msra.mxu0 0.0
    %3903 = vmatpush.msra.mxu0 0.0
    %3904 = vmatpush.msra.mxu0 %v3655
    %3905 = vmatpush.msra.mxu0 %v3650
    %3906 = vmatmul.f32.gmra.mxu0 %v2187
    %v3907 = vpop.f32.mrf.mxu0
    %v3908 = vadd.f32 %v3882, %v3907
    %3909 = vmatmul.f32.gmra.mxu0 %v2189
    %v3910 = vpop.f32.mrf.mxu0
    %v3911 = vadd.f32 %v3885, %v3910
    %3912 = vmatmul.f32.gmra.mxu0 %v2191
    %v3913 = vpop.f32.mrf.mxu0
    %v3914 = vadd.f32 %v3888, %v3913
    %3915 = vdwg.mxu0
    %v3916 = vadd.f32 %v2086, %v3700
    %v3917 = vadd.f32 %v2087, %v3752
    %v3918 = vadd.f32 %v2088, %v3804
    %v3919 = vadd.f32 %v2089, %v3856
    %v3920 = vadd.f32 %v2090, %v3908
    %v3921 = vadd.f32 %v2086, %v3703
    %v3922 = vadd.f32 %v2087, %v3755
    %v3923 = vadd.f32 %v2088, %v3807
    %v3924 = vadd.f32 %v2089, %v3859
    %v3925 = vadd.f32 %v2090, %v3911
    %v3926 = vadd.f32 %v2086, %v3706
    %v3927 = vadd.f32 %v2087, %v3758
    %v3928 = vadd.f32 %v2088, %v3810
    %v3929 = vadd.f32 %v2089, %v3862
    %v3930 = vadd.f32 %v2090, %v3914
    %s3931 = scalar_lea.vmem [#allocation2], 2880
    %v3932 = vld [vmem:[%s3931] sm:$0xff]
    %v3933 = vld [vmem:[%s3931 + $0x8] sm:$0xff]
    %v3934 = vld [vmem:[%s3931 + $0x10] sm:$0xff]
    %v3935 = vld [vmem:[%s3931 + $0x18] sm:$0xff]
    %v3936 = vld [vmem:[%s3931 + $0x20] sm:$0xff]
    %v3937 = vld [vmem:[%s3931 + $0x28] sm:$0xff]
    %v3938 = vld [vmem:[%s3931 + $0x30] sm:$0xff]
    %v3939 = vld [vmem:[%s3931 + $0x38] sm:$0xff]
    %v3940 = vld [vmem:[%s3931 + $0x40] sm:$0xff]
    %v3941 = vld [vmem:[%s3931 + $0x48] sm:$0xff]
    %v3942 = vld [vmem:[%s3931 + $0x50] sm:$0xff]
    %v3943 = vld [vmem:[%s3931 + $0x58] sm:$0xff]
    %v3944 = vld [vmem:[%s3931 + $0x60] sm:$0xff]
    %v3945 = vld [vmem:[%s3931 + $0x68] sm:$0xff]
    %v3946 = vld [vmem:[%s3931 + $0x70] sm:$0xff]
    %v3947 = vld [vmem:[%s3931 + $0x78] sm:$0xff]
    %v3948 = vld [vmem:[%s3931 + $0x80] sm:$0xff]
    %v3949 = vld [vmem:[%s3931 + $0x88] sm:$0xff]
    %v3950 = vld [vmem:[%s3931 + $0x90] sm:$0xff]
    %v3951 = vld [vmem:[%s3931 + $0x98] sm:$0xff]
    %v3952 = vld [vmem:[%s3931 + $0xa0] sm:$0xff]
    %v3953 = vld [vmem:[%s3931 + $0xa8] sm:$0xff]
    %v3954 = vld [vmem:[%s3931 + $0xb0] sm:$0xff]
    %v3955 = vld [vmem:[%s3931 + $0xb8] sm:$0xff]
    %v3956 = vld [vmem:[%s3931 + $0xc0] sm:$0xff]
    %v3957 = vld [vmem:[%s3931 + $0xc8] sm:$0xff]
    %v3958 = vld [vmem:[%s3931 + $0xd0] sm:$0xff]
    %v3959 = vld [vmem:[%s3931 + $0xd8] sm:$0xff]
    %v3960 = vld [vmem:[%s3931 + $0xe0] sm:$0xff]
    %v3961 = vld [vmem:[%s3931 + $0xe8] sm:$0xff]
    %v3962 = vld [vmem:[%s3931 + $0xf0] sm:$0xff]
    %v3963 = vld [vmem:[%s3931 + $0xf8] sm:$0xff]
    %v3964 = vld [vmem:[%s3931 + $0x100] sm:$0xff]
    %v3965 = vld [vmem:[%s3931 + $0x108] sm:$0xff]
    %v3966 = vld [vmem:[%s3931 + $0x110] sm:$0xff]
    %v3967 = vld [vmem:[%s3931 + $0x118] sm:$0xff]
    %v3968 = vld [vmem:[%s3931 + $0x120] sm:$0xff]
    %v3969 = vld [vmem:[%s3931 + $0x128] sm:$0xff]
    %v3970 = vld [vmem:[%s3931 + $0x130] sm:$0xff]
    %v3971 = vld [vmem:[%s3931 + $0x138] sm:$0xff]
    %v3972 = vld [vmem:[%s3931 + $0x140] sm:$0xff]
    %v3973 = vld [vmem:[%s3931 + $0x148] sm:$0xff]
    %v3974 = vld [vmem:[%s3931 + $0x150] sm:$0xff]
    %v3975 = vld [vmem:[%s3931 + $0x158] sm:$0xff]
    %v3976 = vld [vmem:[%s3931 + $0x160] sm:$0xff]
    %v3977 = vld [vmem:[%s3931 + $0x168] sm:$0xff]
    %v3978 = vld [vmem:[%s3931 + $0x170] sm:$0xff]
    %v3979 = vld [vmem:[%s3931 + $0x178] sm:$0xff]
    %v3980 = vld [vmem:[%s3931 + $0x180] sm:$0xff]
    %v3981 = vld [vmem:[%s3931 + $0x188] sm:$0xff]
    %v3982 = vld [vmem:[%s3931 + $0x190] sm:$0xff]
    %v3983 = vld [vmem:[%s3931 + $0x198] sm:$0xff]
    %v3984 = vld [vmem:[%s3931 + $0x1a0] sm:$0xff]
    %v3985 = vld [vmem:[%s3931 + $0x1a8] sm:$0xff]
    %v3986 = vld [vmem:[%s3931 + $0x1b0] sm:$0xff]
    %v3987 = vld [vmem:[%s3931 + $0x1b8] sm:$0xff]
    %v3988 = vld [vmem:[%s3931 + $0x1c0] sm:$0xff]
    %v3989 = vld [vmem:[%s3931 + $0x1c8] sm:$0xff]
    %v3990 = vld [vmem:[%s3931 + $0x1d0] sm:$0xff]
    %v3991 = vld [vmem:[%s3931 + $0x1d8] sm:$0xff]
    %v3992 = vld [vmem:[%s3931 + $0x1e0] sm:$0xff]
    %v3993 = vld [vmem:[%s3931 + $0x1e8] sm:$0xff]
    %v3994 = vld [vmem:[%s3931 + $0x1f0] sm:$0xff]
    %v3995 = vld [vmem:[%s3931 + $0x1f8] sm:$0xff]
    %v3996 = vld [vmem:[%s3931 + $0x200] sm:$0xff]
    %v3997 = vld [vmem:[%s3931 + $0x208] sm:$0xff]
    %v3998 = vld [vmem:[%s3931 + $0x210] sm:$0xff]
    %v3999 = vld [vmem:[%s3931 + $0x218] sm:$0xff]
    %v4000 = vld [vmem:[%s3931 + $0x220] sm:$0xff]
    %v4001 = vld [vmem:[%s3931 + $0x228] sm:$0xff]
    %v4002 = vld [vmem:[%s3931 + $0x230] sm:$0xff]
    %v4003 = vld [vmem:[%s3931 + $0x238] sm:$0xff]
    %v4004 = vld [vmem:[%s3931 + $0x240] sm:$0xff]
    %v4005 = vld [vmem:[%s3931 + $0x248] sm:$0xff]
    %v4006 = vld [vmem:[%s3931 + $0x250] sm:$0xff]
    %v4007 = vld [vmem:[%s3931 + $0x258] sm:$0xff]
    %v4008 = vld [vmem:[%s3931 + $0x260] sm:$0xff]
    %v4009 = vld [vmem:[%s3931 + $0x268] sm:$0xff]
    %v4010 = vld [vmem:[%s3931 + $0x270] sm:$0xff]
    %v4011 = vld [vmem:[%s3931 + $0x278] sm:$0xff]
    %v4012 = vld [vmem:[%s3931 + $0x280] sm:$0xff]
    %v4013 = vld [vmem:[%s3931 + $0x288] sm:$0xff]
    %v4014 = vld [vmem:[%s3931 + $0x290] sm:$0xff]
    %v4015 = vld [vmem:[%s3931 + $0x298] sm:$0xff]
    %v4016 = vld [vmem:[%s3931 + $0x2a0] sm:$0xff]
    %v4017 = vld [vmem:[%s3931 + $0x2a8] sm:$0xff]
    %v4018 = vld [vmem:[%s3931 + $0x2b0] sm:$0xff]
    %v4019 = vld [vmem:[%s3931 + $0x2b8] sm:$0xff]
    %v4020 = vld [vmem:[%s3931 + $0x2c0] sm:$0xff]
    %v4021 = vld [vmem:[%s3931 + $0x2c8] sm:$0xff]
    %v4022 = vsel %vm2056, %v2073, 0
    %v4024 = vsel %vm2056, %v2077, 0
    %v4027 = vsel %vm2056, %v2083, 0
    %4029 = vmatpush.msra.mxu0 %v4007
    %4030 = vmatpush.msra.mxu0 %v4002
    %4031 = vmatpush.msra.mxu0 %v3997
    %4032 = vmatpush.msra.mxu0 %v3992
    %4033 = vmatpush.msra.mxu0 %v3987
    %4034 = vmatpush.msra.mxu0 %v3982
    %4035 = vmatpush.msra.mxu0 %v3977
    %4036 = vmatpush.msra.mxu0 %v3972
    %4037 = vmatpush.msra.mxu0 %v3967
    %4038 = vmatpush.msra.mxu0 %v3962
    %4039 = vmatpush.msra.mxu0 %v3957
    %4040 = vmatpush.msra.mxu0 %v3952
    %4041 = vmatpush.msra.mxu0 %v3947
    %4042 = vmatpush.msra.mxu0 %v3942
    %4043 = vmatpush.msra.mxu0 %v3937
    %4044 = vmatpush.msra.mxu0 %v3932
    %4045 = vmatmul.f32.gmra.mxu0 %v2070
    %v4046 = vpop.f32.mrf.mxu0
    %v4047 = vadd.f32 0.0, %v4046
    %4048 = vmatmul.f32.gmra.mxu0 %v2075
    %v4049 = vpop.f32.mrf.mxu0
    %v4050 = vadd.f32 0.0, %v4049
    %4051 = vmatmul.f32.gmra.mxu0 %v2082
    %v4052 = vpop.f32.mrf.mxu0
    %v4053 = vadd.f32 0.0, %v4052
    %4054 = vdwg.mxu0
    %4055 = vmatpush.msra.mxu0 0.0
    %4056 = vmatpush.msra.mxu0 0.0
    %4057 = vmatpush.msra.mxu0 0.0
    %4058 = vmatpush.msra.mxu0 0.0
    %4059 = vmatpush.msra.mxu0 0.0
    %4060 = vmatpush.msra.mxu0 0.0
    %4061 = vmatpush.msra.mxu0 0.0
    %4062 = vmatpush.msra.mxu0 0.0
    %4063 = vmatpush.msra.mxu0 0.0
    %4064 = vmatpush.msra.mxu0 0.0
    %4065 = vmatpush.msra.mxu0 0.0
    %4066 = vmatpush.msra.mxu0 0.0
    %4067 = vmatpush.msra.mxu0 0.0
    %4068 = vmatpush.msra.mxu0 0.0
    %4069 = vmatpush.msra.mxu0 %v4017
    %4070 = vmatpush.msra.mxu0 %v4012
    %4071 = vmatmul.f32.gmra.mxu0 %v4022
    %v4072 = vpop.f32.mrf.mxu0
    %v4073 = vadd.f32 %v4047, %v4072
    %4074 = vmatmul.f32.gmra.mxu0 %v4024
    %v4075 = vpop.f32.mrf.mxu0
    %v4076 = vadd.f32 %v4050, %v4075
    %4077 = vmatmul.f32.gmra.mxu0 %v4027
    %v4078 = vpop.f32.mrf.mxu0
    %v4079 = vadd.f32 %v4053, %v4078
    %4080 = vdwg.mxu0
    %4081 = vmatpush.msra.mxu0 %v4008
    %4082 = vmatpush.msra.mxu0 %v4003
    %4083 = vmatpush.msra.mxu0 %v3998
    %4084 = vmatpush.msra.mxu0 %v3993
    %4085 = vmatpush.msra.mxu0 %v3988
    %4086 = vmatpush.msra.mxu0 %v3983
    %4087 = vmatpush.msra.mxu0 %v3978
    %4088 = vmatpush.msra.mxu0 %v3973
    %4089 = vmatpush.msra.mxu0 %v3968
    %4090 = vmatpush.msra.mxu0 %v3963
    %4091 = vmatpush.msra.mxu0 %v3958
    %4092 = vmatpush.msra.mxu0 %v3953
    %4093 = vmatpush.msra.mxu0 %v3948
    %4094 = vmatpush.msra.mxu0 %v3943
    %4095 = vmatpush.msra.mxu0 %v3938
    %4096 = vmatpush.msra.mxu0 %v3933
    %4097 = vmatmul.f32.gmra.mxu0 %v2070
    %v4098 = vpop.f32.mrf.mxu0
    %v4099 = vadd.f32 0.0, %v4098
    %4100 = vmatmul.f32.gmra.mxu0 %v2075
    %v4101 = vpop.f32.mrf.mxu0
    %v4102 = vadd.f32 0.0, %v4101
    %4103 = vmatmul.f32.gmra.mxu0 %v2082
    %v4104 = vpop.f32.mrf.mxu0
    %v4105 = vadd.f32 0.0, %v4104
    %4106 = vdwg.mxu0
    %4107 = vmatpush.msra.mxu0 0.0
    %4108 = vmatpush.msra.mxu0 0.0
    %4109 = vmatpush.msra.mxu0 0.0
    %4110 = vmatpush.msra.mxu0 0.0
    %4111 = vmatpush.msra.mxu0 0.0
    %4112 = vmatpush.msra.mxu0 0.0
    %4113 = vmatpush.msra.mxu0 0.0
    %4114 = vmatpush.msra.mxu0 0.0
    %4115 = vmatpush.msra.mxu0 0.0
    %4116 = vmatpush.msra.mxu0 0.0
    %4117 = vmatpush.msra.mxu0 0.0
    %4118 = vmatpush.msra.mxu0 0.0
    %4119 = vmatpush.msra.mxu0 0.0
    %4120 = vmatpush.msra.mxu0 0.0
    %4121 = vmatpush.msra.mxu0 %v4018
    %4122 = vmatpush.msra.mxu0 %v4013
    %4123 = vmatmul.f32.gmra.mxu0 %v4022
    %v4124 = vpop.f32.mrf.mxu0
    %v4125 = vadd.f32 %v4099, %v4124
    %4126 = vmatmul.f32.gmra.mxu0 %v4024
    %v4127 = vpop.f32.mrf.mxu0
    %v4128 = vadd.f32 %v4102, %v4127
    %4129 = vmatmul.f32.gmra.mxu0 %v4027
    %v4130 = vpop.f32.mrf.mxu0
    %v4131 = vadd.f32 %v4105, %v4130
    %4132 = vdwg.mxu0
    %4133 = vmatpush.msra.mxu0 %v4009
    %4134 = vmatpush.msra.mxu0 %v4004
    %4135 = vmatpush.msra.mxu0 %v3999
    %4136 = vmatpush.msra.mxu0 %v3994
    %4137 = vmatpush.msra.mxu0 %v3989
    %4138 = vmatpush.msra.mxu0 %v3984
    %4139 = vmatpush.msra.mxu0 %v3979
    %4140 = vmatpush.msra.mxu0 %v3974
    %4141 = vmatpush.msra.mxu0 %v3969
    %4142 = vmatpush.msra.mxu0 %v3964
    %4143 = vmatpush.msra.mxu0 %v3959
    %4144 = vmatpush.msra.mxu0 %v3954
    %4145 = vmatpush.msra.mxu0 %v3949
    %4146 = vmatpush.msra.mxu0 %v3944
    %4147 = vmatpush.msra.mxu0 %v3939
    %4148 = vmatpush.msra.mxu0 %v3934
    %4149 = vmatmul.f32.gmra.mxu0 %v2070
    %v4150 = vpop.f32.mrf.mxu0
    %v4151 = vadd.f32 0.0, %v4150
    %4152 = vmatmul.f32.gmra.mxu0 %v2075
    %v4153 = vpop.f32.mrf.mxu0
    %v4154 = vadd.f32 0.0, %v4153
    %4155 = vmatmul.f32.gmra.mxu0 %v2082
    %v4156 = vpop.f32.mrf.mxu0
    %v4157 = vadd.f32 0.0, %v4156
    %4158 = vdwg.mxu0
    %4159 = vmatpush.msra.mxu0 0.0
    %4160 = vmatpush.msra.mxu0 0.0
    %4161 = vmatpush.msra.mxu0 0.0
    %4162 = vmatpush.msra.mxu0 0.0
    %4163 = vmatpush.msra.mxu0 0.0
    %4164 = vmatpush.msra.mxu0 0.0
    %4165 = vmatpush.msra.mxu0 0.0
    %4166 = vmatpush.msra.mxu0 0.0
    %4167 = vmatpush.msra.mxu0 0.0
    %4168 = vmatpush.msra.mxu0 0.0
    %4169 = vmatpush.msra.mxu0 0.0
    %4170 = vmatpush.msra.mxu0 0.0
    %4171 = vmatpush.msra.mxu0 0.0
    %4172 = vmatpush.msra.mxu0 0.0
    %4173 = vmatpush.msra.mxu0 %v4019
    %4174 = vmatpush.msra.mxu0 %v4014
    %4175 = vmatmul.f32.gmra.mxu0 %v4022
    %v4176 = vpop.f32.mrf.mxu0
    %v4177 = vadd.f32 %v4151, %v4176
    %4178 = vmatmul.f32.gmra.mxu0 %v4024
    %v4179 = vpop.f32.mrf.mxu0
    %v4180 = vadd.f32 %v4154, %v4179
    %4181 = vmatmul.f32.gmra.mxu0 %v4027
    %v4182 = vpop.f32.mrf.mxu0
    %v4183 = vadd.f32 %v4157, %v4182
    %4184 = vdwg.mxu0
    %4185 = vmatpush.msra.mxu0 %v4010
    %4186 = vmatpush.msra.mxu0 %v4005
    %4187 = vmatpush.msra.mxu0 %v4000
    %4188 = vmatpush.msra.mxu0 %v3995
    %4189 = vmatpush.msra.mxu0 %v3990
    %4190 = vmatpush.msra.mxu0 %v3985
    %4191 = vmatpush.msra.mxu0 %v3980
    %4192 = vmatpush.msra.mxu0 %v3975
    %4193 = vmatpush.msra.mxu0 %v3970
    %4194 = vmatpush.msra.mxu0 %v3965
    %4195 = vmatpush.msra.mxu0 %v3960
    %4196 = vmatpush.msra.mxu0 %v3955
    %4197 = vmatpush.msra.mxu0 %v3950
    %4198 = vmatpush.msra.mxu0 %v3945
    %4199 = vmatpush.msra.mxu0 %v3940
    %4200 = vmatpush.msra.mxu0 %v3935
    %4201 = vmatmul.f32.gmra.mxu0 %v2070
    %v4202 = vpop.f32.mrf.mxu0
    %v4203 = vadd.f32 0.0, %v4202
    %4204 = vmatmul.f32.gmra.mxu0 %v2075
    %v4205 = vpop.f32.mrf.mxu0
    %v4206 = vadd.f32 0.0, %v4205
    %4207 = vmatmul.f32.gmra.mxu0 %v2082
    %v4208 = vpop.f32.mrf.mxu0
    %v4209 = vadd.f32 0.0, %v4208
    %4210 = vdwg.mxu0
    %4211 = vmatpush.msra.mxu0 0.0
    %4212 = vmatpush.msra.mxu0 0.0
    %4213 = vmatpush.msra.mxu0 0.0
    %4214 = vmatpush.msra.mxu0 0.0
    %4215 = vmatpush.msra.mxu0 0.0
    %4216 = vmatpush.msra.mxu0 0.0
    %4217 = vmatpush.msra.mxu0 0.0
    %4218 = vmatpush.msra.mxu0 0.0
    %4219 = vmatpush.msra.mxu0 0.0
    %4220 = vmatpush.msra.mxu0 0.0
    %4221 = vmatpush.msra.mxu0 0.0
    %4222 = vmatpush.msra.mxu0 0.0
    %4223 = vmatpush.msra.mxu0 0.0
    %4224 = vmatpush.msra.mxu0 0.0
    %4225 = vmatpush.msra.mxu0 %v4020
    %4226 = vmatpush.msra.mxu0 %v4015
    %4227 = vmatmul.f32.gmra.mxu0 %v4022
    %v4228 = vpop.f32.mrf.mxu0
    %v4229 = vadd.f32 %v4203, %v4228
    %4230 = vmatmul.f32.gmra.mxu0 %v4024
    %v4231 = vpop.f32.mrf.mxu0
    %v4232 = vadd.f32 %v4206, %v4231
    %4233 = vmatmul.f32.gmra.mxu0 %v4027
    %v4234 = vpop.f32.mrf.mxu0
    %v4235 = vadd.f32 %v4209, %v4234
    %4236 = vdwg.mxu0
    %4237 = vmatpush.msra.mxu0 %v4011
    %4238 = vmatpush.msra.mxu0 %v4006
    %4239 = vmatpush.msra.mxu0 %v4001
    %4240 = vmatpush.msra.mxu0 %v3996
    %4241 = vmatpush.msra.mxu0 %v3991
    %4242 = vmatpush.msra.mxu0 %v3986
    %4243 = vmatpush.msra.mxu0 %v3981
    %4244 = vmatpush.msra.mxu0 %v3976
    %4245 = vmatpush.msra.mxu0 %v3971
    %4246 = vmatpush.msra.mxu0 %v3966
    %4247 = vmatpush.msra.mxu0 %v3961
    %4248 = vmatpush.msra.mxu0 %v3956
    %4249 = vmatpush.msra.mxu0 %v3951
    %4250 = vmatpush.msra.mxu0 %v3946
    %4251 = vmatpush.msra.mxu0 %v3941
    %4252 = vmatpush.msra.mxu0 %v3936
    %4253 = vmatmul.f32.gmra.mxu0 %v2070
    %v4254 = vpop.f32.mrf.mxu0
    %v4255 = vadd.f32 0.0, %v4254
    %4256 = vmatmul.f32.gmra.mxu0 %v2075
    %v4257 = vpop.f32.mrf.mxu0
    %v4258 = vadd.f32 0.0, %v4257
    %4259 = vmatmul.f32.gmra.mxu0 %v2082
    %v4260 = vpop.f32.mrf.mxu0
    %v4261 = vadd.f32 0.0, %v4260
    %4262 = vdwg.mxu0
    %4263 = vmatpush.msra.mxu0 0.0
    %4264 = vmatpush.msra.mxu0 0.0
    %4265 = vmatpush.msra.mxu0 0.0
    %4266 = vmatpush.msra.mxu0 0.0
    %4267 = vmatpush.msra.mxu0 0.0
    %4268 = vmatpush.msra.mxu0 0.0
    %4269 = vmatpush.msra.mxu0 0.0
    %4270 = vmatpush.msra.mxu0 0.0
    %4271 = vmatpush.msra.mxu0 0.0
    %4272 = vmatpush.msra.mxu0 0.0
    %4273 = vmatpush.msra.mxu0 0.0
    %4274 = vmatpush.msra.mxu0 0.0
    %4275 = vmatpush.msra.mxu0 0.0
    %4276 = vmatpush.msra.mxu0 0.0
    %4277 = vmatpush.msra.mxu0 %v4021
    %4278 = vmatpush.msra.mxu0 %v4016
    %4279 = vmatmul.f32.gmra.mxu0 %v4022
    %v4280 = vpop.f32.mrf.mxu0
    %v4281 = vadd.f32 %v4255, %v4280
    %4282 = vmatmul.f32.gmra.mxu0 %v4024
    %v4283 = vpop.f32.mrf.mxu0
    %v4284 = vadd.f32 %v4258, %v4283
    %4285 = vmatmul.f32.gmra.mxu0 %v4027
    %v4286 = vpop.f32.mrf.mxu0
    %v4287 = vadd.f32 %v4261, %v4286
    %4288 = vdwg.mxu0
    %v4289 = vadd.f32 %v3916, %v4073
    %v4290 = vadd.f32 %v3917, %v4125
    %v4291 = vadd.f32 %v3918, %v4177
    %v4292 = vadd.f32 %v3919, %v4229
    %v4293 = vadd.f32 %v3920, %v4281
    %v4294 = vadd.f32 %v3921, %v4076
    %v4295 = vadd.f32 %v3922, %v4128
    %v4296 = vadd.f32 %v3923, %v4180
    %v4297 = vadd.f32 %v3924, %v4232
    %v4298 = vadd.f32 %v3925, %v4284
    %v4299 = vadd.f32 %v3926, %v4079
    %v4300 = vadd.f32 %v3927, %v4131
    %v4301 = vadd.f32 %v3928, %v4183
    %v4302 = vadd.f32 %v3929, %v4235
    %v4303 = vadd.f32 %v3930, %v4287
    %s4304 = scalar_lea.vmem %s9, 360
    %4305 = vst [vmem:[%s4304] sm:$0xff] %v4289
    %4306 = vst [vmem:[%s4304 + $0x8] sm:$0xff] %v4290
    %4307 = vst [vmem:[%s4304 + $0x10] sm:$0xff] %v4291
    %4308 = vst [vmem:[%s4304 + $0x18] sm:$0xff] %v4292
    %4309 = vst.msk [vmem:[%s4304 + $0x20] sm:$0xff] %vm2472, %v4293
    %4310 = vst [vmem:[%s4304 + $0x28] sm:$0xff] %v4294
    %4311 = vst [vmem:[%s4304 + $0x30] sm:$0xff] %v4295
    %4312 = vst [vmem:[%s4304 + $0x38] sm:$0xff] %v4296
    %4313 = vst [vmem:[%s4304 + $0x40] sm:$0xff] %v4297
    %4314 = vst.msk [vmem:[%s4304 + $0x48] sm:$0xff] %vm2472, %v4298
    %4315 = vst [vmem:[%s4304 + $0x50] sm:$0xff] %v4299
    %4316 = vst [vmem:[%s4304 + $0x58] sm:$0xff] %v4300
    %4317 = vst [vmem:[%s4304 + $0x60] sm:$0xff] %v4301
    %4318 = vst [vmem:[%s4304 + $0x68] sm:$0xff] %v4302
    %4319 = vst.msk [vmem:[%s4304 + $0x70] sm:$0xff] %vm2472, %v4303
    %v4320 = vsub.f32 0.0, %v4289
    %v4321 = vsub.f32 0.0, %v4290
    %v4322 = vsub.f32 0.0, %v4291
    %v4323 = vsub.f32 0.0, %v4292
    %v4324 = vsub.f32 0.0, %v4293
    %v4325 = vsub.f32 0.0, %v4294
    %v4326 = vsub.f32 0.0, %v4295
    %v4327 = vsub.f32 0.0, %v4296
    %v4328 = vsub.f32 0.0, %v4297
    %v4329 = vsub.f32 0.0, %v4298
    %v4330 = vsub.f32 0.0, %v4299
    %v4331 = vsub.f32 0.0, %v4300
    %v4332 = vsub.f32 0.0, %v4301
    %v4333 = vsub.f32 0.0, %v4302
    %v4334 = vsub.f32 0.0, %v4303
    %v4335 = vmul.f32 %v4320, 1.442695
    %v4336 = vpow.pop %v4335
    %v4337 = vmul.f32 %v4321, 1.442695
    %v4338 = vpow.pop %v4337
    %v4339 = vmul.f32 %v4322, 1.442695
    %v4340 = vpow.pop %v4339
    %v4341 = vmul.f32 %v4323, 1.442695
    %v4342 = vpow.pop %v4341
    %v4343 = vmul.f32 %v4324, 1.442695
    %v4344 = vpow.pop %v4343
    %v4345 = vmul.f32 %v4325, 1.442695
    %v4346 = vpow.pop %v4345
    %v4347 = vmul.f32 %v4326, 1.442695
    %v4348 = vpow.pop %v4347
    %v4349 = vmul.f32 %v4327, 1.442695
    %v4350 = vpow.pop %v4349
    %v4351 = vmul.f32 %v4328, 1.442695
    %v4352 = vpow.pop %v4351
    %v4353 = vmul.f32 %v4329, 1.442695
    %v4354 = vpow.pop %v4353
    %v4355 = vmul.f32 %v4330, 1.442695
    %v4356 = vpow.pop %v4355
    %v4357 = vmul.f32 %v4331, 1.442695
    %v4358 = vpow.pop %v4357
    %v4359 = vmul.f32 %v4332, 1.442695
    %v4360 = vpow.pop %v4359
    %v4361 = vmul.f32 %v4333, 1.442695
    %v4362 = vpow.pop %v4361
    %v4363 = vmul.f32 %v4334, 1.442695
    %v4364 = vpow.pop %v4363
    %v4365 = vadd.f32 %v4336, 1.0
    %v4366 = vadd.f32 %v4338, 1.0
    %v4367 = vadd.f32 %v4340, 1.0
    %v4368 = vadd.f32 %v4342, 1.0
    %v4369 = vadd.f32 %v4344, 1.0
    %v4370 = vadd.f32 %v4346, 1.0
    %v4371 = vadd.f32 %v4348, 1.0
    %v4372 = vadd.f32 %v4350, 1.0
    %v4373 = vadd.f32 %v4352, 1.0
    %v4374 = vadd.f32 %v4354, 1.0
    %v4375 = vadd.f32 %v4356, 1.0
    %v4376 = vadd.f32 %v4358, 1.0
    %v4377 = vadd.f32 %v4360, 1.0
    %v4378 = vadd.f32 %v4362, 1.0
    %v4379 = vadd.f32 %v4364, 1.0
    %v4380 = vrcp.pop %v4365
    %v4381 = vrcp.pop %v4366
    %v4382 = vrcp.pop %v4367
    %v4383 = vrcp.pop %v4368
    %v4384 = vrcp.pop %v4369
    %v4385 = vrcp.pop %v4370
    %v4386 = vrcp.pop %v4371
    %v4387 = vrcp.pop %v4372
    %v4388 = vrcp.pop %v4373
    %v4389 = vrcp.pop %v4374
    %v4390 = vrcp.pop %v4375
    %v4391 = vrcp.pop %v4376
    %v4392 = vrcp.pop %v4377
    %v4393 = vrcp.pop %v4378
    %v4394 = vrcp.pop %v4379
    %v4395 = vmul.f32 %v4289, %v4380
    %v4396 = vmul.f32 %v4290, %v4381
    %v4397 = vmul.f32 %v4291, %v4382
    %v4398 = vmul.f32 %v4292, %v4383
    %v4399 = vmul.f32 %v4293, %v4384
    %v4400 = vmul.f32 %v4294, %v4385
    %v4401 = vmul.f32 %v4295, %v4386
    %v4402 = vmul.f32 %v4296, %v4387
    %v4403 = vmul.f32 %v4297, %v4388
    %v4404 = vmul.f32 %v4298, %v4389
    %v4405 = vmul.f32 %v4299, %v4390
    %v4406 = vmul.f32 %v4300, %v4391
    %v4407 = vmul.f32 %v4301, %v4392
    %v4408 = vmul.f32 %v4302, %v4393
    %v4409 = vmul.f32 %v4303, %v4394
    %s4410 = scalar_lea.vmem %s10, 360
    %4411 = vst [vmem:[%s4410] sm:$0xff] %v4395
    %4412 = vst [vmem:[%s4410 + $0x8] sm:$0xff] %v4396
    %4413 = vst [vmem:[%s4410 + $0x10] sm:$0xff] %v4397
    %4414 = vst [vmem:[%s4410 + $0x18] sm:$0xff] %v4398
    %4415 = vst.msk [vmem:[%s4410 + $0x20] sm:$0xff] %vm2472, %v4399
    %4416 = vst [vmem:[%s4410 + $0x28] sm:$0xff] %v4400
    %4417 = vst [vmem:[%s4410 + $0x30] sm:$0xff] %v4401
    %4418 = vst [vmem:[%s4410 + $0x38] sm:$0xff] %v4402
    %4419 = vst [vmem:[%s4410 + $0x40] sm:$0xff] %v4403
    %4420 = vst.msk [vmem:[%s4410 + $0x48] sm:$0xff] %vm2472, %v4404
    %4421 = vst [vmem:[%s4410 + $0x50] sm:$0xff] %v4405
    %4422 = vst [vmem:[%s4410 + $0x58] sm:$0xff] %v4406
    %4423 = vst [vmem:[%s4410 + $0x60] sm:$0xff] %v4407
    %4424 = vst [vmem:[%s4410 + $0x68] sm:$0xff] %v4408
    %4425 = vst.msk [vmem:[%s4410 + $0x70] sm:$0xff] %vm2472, %v4409
    %s4426 = scalar_lea.vmem [#allocation2], 4320
    %v4427 = vld [vmem:[%s4426] sm:$0xff]
    %v4428 = vld [vmem:[%s4426 + $0x8] sm:$0xff]
    %v4429 = vld [vmem:[%s4426 + $0x10] sm:$0xff]
    %v4430 = vld [vmem:[%s4426 + $0x18] sm:$0xff]
    %v4431 = vld [vmem:[%s4426 + $0x20] sm:$0xff]
    %v4432 = vld [vmem:[%s4426 + $0x28] sm:$0xff]
    %v4433 = vld [vmem:[%s4426 + $0x30] sm:$0xff]
    %v4434 = vld [vmem:[%s4426 + $0x38] sm:$0xff]
    %v4435 = vld [vmem:[%s4426 + $0x40] sm:$0xff]
    %v4436 = vld [vmem:[%s4426 + $0x48] sm:$0xff]
    %v4437 = vld [vmem:[%s4426 + $0x50] sm:$0xff]
    %v4438 = vld [vmem:[%s4426 + $0x58] sm:$0xff]
    %v4439 = vld [vmem:[%s4426 + $0x60] sm:$0xff]
    %v4440 = vld [vmem:[%s4426 + $0x68] sm:$0xff]
    %v4441 = vld [vmem:[%s4426 + $0x70] sm:$0xff]
    %v4442 = vld [vmem:[%s4426 + $0x78] sm:$0xff]
    %v4443 = vld [vmem:[%s4426 + $0x80] sm:$0xff]
    %v4444 = vld [vmem:[%s4426 + $0x88] sm:$0xff]
    %v4445 = vld [vmem:[%s4426 + $0x90] sm:$0xff]
    %v4446 = vld [vmem:[%s4426 + $0x98] sm:$0xff]
    %v4447 = vld [vmem:[%s4426 + $0xa0] sm:$0xff]
    %v4448 = vld [vmem:[%s4426 + $0xa8] sm:$0xff]
    %v4449 = vld [vmem:[%s4426 + $0xb0] sm:$0xff]
    %v4450 = vld [vmem:[%s4426 + $0xb8] sm:$0xff]
    %v4451 = vld [vmem:[%s4426 + $0xc0] sm:$0xff]
    %v4452 = vld [vmem:[%s4426 + $0xc8] sm:$0xff]
    %v4453 = vld [vmem:[%s4426 + $0xd0] sm:$0xff]
    %v4454 = vld [vmem:[%s4426 + $0xd8] sm:$0xff]
    %v4455 = vld [vmem:[%s4426 + $0xe0] sm:$0xff]
    %v4456 = vld [vmem:[%s4426 + $0xe8] sm:$0xff]
    %v4457 = vld [vmem:[%s4426 + $0xf0] sm:$0xff]
    %v4458 = vld [vmem:[%s4426 + $0xf8] sm:$0xff]
    %v4459 = vld [vmem:[%s4426 + $0x100] sm:$0xff]
    %v4460 = vld [vmem:[%s4426 + $0x108] sm:$0xff]
    %v4461 = vld [vmem:[%s4426 + $0x110] sm:$0xff]
    %v4462 = vld [vmem:[%s4426 + $0x118] sm:$0xff]
    %v4463 = vld [vmem:[%s4426 + $0x120] sm:$0xff]
    %v4464 = vld [vmem:[%s4426 + $0x128] sm:$0xff]
    %v4465 = vld [vmem:[%s4426 + $0x130] sm:$0xff]
    %v4466 = vld [vmem:[%s4426 + $0x138] sm:$0xff]
    %v4467 = vld [vmem:[%s4426 + $0x140] sm:$0xff]
    %v4468 = vld [vmem:[%s4426 + $0x148] sm:$0xff]
    %v4469 = vld [vmem:[%s4426 + $0x150] sm:$0xff]
    %v4470 = vld [vmem:[%s4426 + $0x158] sm:$0xff]
    %v4471 = vld [vmem:[%s4426 + $0x160] sm:$0xff]
    %v4472 = vld [vmem:[%s4426 + $0x168] sm:$0xff]
    %v4473 = vld [vmem:[%s4426 + $0x170] sm:$0xff]
    %v4474 = vld [vmem:[%s4426 + $0x178] sm:$0xff]
    %v4475 = vld [vmem:[%s4426 + $0x180] sm:$0xff]
    %v4476 = vld [vmem:[%s4426 + $0x188] sm:$0xff]
    %v4477 = vld [vmem:[%s4426 + $0x190] sm:$0xff]
    %v4478 = vld [vmem:[%s4426 + $0x198] sm:$0xff]
    %v4479 = vld [vmem:[%s4426 + $0x1a0] sm:$0xff]
    %v4480 = vld [vmem:[%s4426 + $0x1a8] sm:$0xff]
    %v4481 = vld [vmem:[%s4426 + $0x1b0] sm:$0xff]
    %v4482 = vld [vmem:[%s4426 + $0x1b8] sm:$0xff]
    %v4483 = vld [vmem:[%s4426 + $0x1c0] sm:$0xff]
    %v4484 = vld [vmem:[%s4426 + $0x1c8] sm:$0xff]
    %v4485 = vld [vmem:[%s4426 + $0x1d0] sm:$0xff]
    %v4486 = vld [vmem:[%s4426 + $0x1d8] sm:$0xff]
    %v4487 = vld [vmem:[%s4426 + $0x1e0] sm:$0xff]
    %v4488 = vld [vmem:[%s4426 + $0x1e8] sm:$0xff]
    %v4489 = vld [vmem:[%s4426 + $0x1f0] sm:$0xff]
    %v4490 = vld [vmem:[%s4426 + $0x1f8] sm:$0xff]
    %v4491 = vld [vmem:[%s4426 + $0x200] sm:$0xff]
    %v4492 = vld [vmem:[%s4426 + $0x208] sm:$0xff]
    %v4493 = vld [vmem:[%s4426 + $0x210] sm:$0xff]
    %v4494 = vld [vmem:[%s4426 + $0x218] sm:$0xff]
    %v4495 = vld [vmem:[%s4426 + $0x220] sm:$0xff]
    %v4496 = vld [vmem:[%s4426 + $0x228] sm:$0xff]
    %v4497 = vld [vmem:[%s4426 + $0x230] sm:$0xff]
    %v4498 = vld [vmem:[%s4426 + $0x238] sm:$0xff]
    %v4499 = vld [vmem:[%s4426 + $0x240] sm:$0xff]
    %v4500 = vld [vmem:[%s4426 + $0x248] sm:$0xff]
    %v4501 = vld [vmem:[%s4426 + $0x250] sm:$0xff]
    %v4502 = vld [vmem:[%s4426 + $0x258] sm:$0xff]
    %v4503 = vld [vmem:[%s4426 + $0x260] sm:$0xff]
    %v4504 = vld [vmem:[%s4426 + $0x268] sm:$0xff]
    %v4505 = vld [vmem:[%s4426 + $0x270] sm:$0xff]
    %v4506 = vld [vmem:[%s4426 + $0x278] sm:$0xff]
    %v4507 = vld [vmem:[%s4426 + $0x280] sm:$0xff]
    %v4508 = vld [vmem:[%s4426 + $0x288] sm:$0xff]
    %v4509 = vld [vmem:[%s4426 + $0x290] sm:$0xff]
    %v4510 = vld [vmem:[%s4426 + $0x298] sm:$0xff]
    %v4511 = vld [vmem:[%s4426 + $0x2a0] sm:$0xff]
    %v4512 = vld [vmem:[%s4426 + $0x2a8] sm:$0xff]
    %v4513 = vld [vmem:[%s4426 + $0x2b0] sm:$0xff]
    %v4514 = vld [vmem:[%s4426 + $0x2b8] sm:$0xff]
    %v4515 = vld [vmem:[%s4426 + $0x2c0] sm:$0xff]
    %v4516 = vld [vmem:[%s4426 + $0x2c8] sm:$0xff]
    %4517 = vmatpush.msra.mxu0 %v4502
    %4518 = vmatpush.msra.mxu0 %v4497
    %4519 = vmatpush.msra.mxu0 %v4492
    %4520 = vmatpush.msra.mxu0 %v4487
    %4521 = vmatpush.msra.mxu0 %v4482
    %4522 = vmatpush.msra.mxu0 %v4477
    %4523 = vmatpush.msra.mxu0 %v4472
    %4524 = vmatpush.msra.mxu0 %v4467
    %4525 = vmatpush.msra.mxu0 %v4462
    %4526 = vmatpush.msra.mxu0 %v4457
    %4527 = vmatpush.msra.mxu0 %v4452
    %4528 = vmatpush.msra.mxu0 %v4447
    %4529 = vmatpush.msra.mxu0 %v4442
    %4530 = vmatpush.msra.mxu0 %v4437
    %4531 = vmatpush.msra.mxu0 %v4432
    %4532 = vmatpush.msra.mxu0 %v4427
    %4533 = vmatmul.f32.gmra.mxu0 %v2049
    %v4534 = vpop.f32.mrf.mxu0
    %v4535 = vadd.f32 0.0, %v4534
    %4536 = vmatmul.f32.gmra.mxu0 %v2051
    %v4537 = vpop.f32.mrf.mxu0
    %v4538 = vadd.f32 0.0, %v4537
    %4539 = vmatmul.f32.gmra.mxu0 %v2053
    %v4540 = vpop.f32.mrf.mxu0
    %v4541 = vadd.f32 0.0, %v4540
    %4542 = vdwg.mxu0
    %4543 = vmatpush.msra.mxu0 0.0
    %4544 = vmatpush.msra.mxu0 0.0
    %4545 = vmatpush.msra.mxu0 0.0
    %4546 = vmatpush.msra.mxu0 0.0
    %4547 = vmatpush.msra.mxu0 0.0
    %4548 = vmatpush.msra.mxu0 0.0
    %4549 = vmatpush.msra.mxu0 0.0
    %4550 = vmatpush.msra.mxu0 0.0
    %4551 = vmatpush.msra.mxu0 0.0
    %4552 = vmatpush.msra.mxu0 0.0
    %4553 = vmatpush.msra.mxu0 0.0
    %4554 = vmatpush.msra.mxu0 0.0
    %4555 = vmatpush.msra.mxu0 0.0
    %4556 = vmatpush.msra.mxu0 0.0
    %4557 = vmatpush.msra.mxu0 %v4512
    %4558 = vmatpush.msra.mxu0 %v4507
    %4559 = vmatmul.f32.gmra.mxu0 %v2187
    %v4560 = vpop.f32.mrf.mxu0
    %v4561 = vadd.f32 %v4535, %v4560
    %4562 = vmatmul.f32.gmra.mxu0 %v2189
    %v4563 = vpop.f32.mrf.mxu0
    %v4564 = vadd.f32 %v4538, %v4563
    %4565 = vmatmul.f32.gmra.mxu0 %v2191
    %v4566 = vpop.f32.mrf.mxu0
    %v4567 = vadd.f32 %v4541, %v4566
    %4568 = vdwg.mxu0
    %4569 = vmatpush.msra.mxu0 %v4503
    %4570 = vmatpush.msra.mxu0 %v4498
    %4571 = vmatpush.msra.mxu0 %v4493
    %4572 = vmatpush.msra.mxu0 %v4488
    %4573 = vmatpush.msra.mxu0 %v4483
    %4574 = vmatpush.msra.mxu0 %v4478
    %4575 = vmatpush.msra.mxu0 %v4473
    %4576 = vmatpush.msra.mxu0 %v4468
    %4577 = vmatpush.msra.mxu0 %v4463
    %4578 = vmatpush.msra.mxu0 %v4458
    %4579 = vmatpush.msra.mxu0 %v4453
    %4580 = vmatpush.msra.mxu0 %v4448
    %4581 = vmatpush.msra.mxu0 %v4443
    %4582 = vmatpush.msra.mxu0 %v4438
    %4583 = vmatpush.msra.mxu0 %v4433
    %4584 = vmatpush.msra.mxu0 %v4428
    %4585 = vmatmul.f32.gmra.mxu0 %v2049
    %v4586 = vpop.f32.mrf.mxu0
    %v4587 = vadd.f32 0.0, %v4586
    %4588 = vmatmul.f32.gmra.mxu0 %v2051
    %v4589 = vpop.f32.mrf.mxu0
    %v4590 = vadd.f32 0.0, %v4589
    %4591 = vmatmul.f32.gmra.mxu0 %v2053
    %v4592 = vpop.f32.mrf.mxu0
    %v4593 = vadd.f32 0.0, %v4592
    %4594 = vdwg.mxu0
    %4595 = vmatpush.msra.mxu0 0.0
    %4596 = vmatpush.msra.mxu0 0.0
    %4597 = vmatpush.msra.mxu0 0.0
    %4598 = vmatpush.msra.mxu0 0.0
    %4599 = vmatpush.msra.mxu0 0.0
    %4600 = vmatpush.msra.mxu0 0.0
    %4601 = vmatpush.msra.mxu0 0.0
    %4602 = vmatpush.msra.mxu0 0.0
    %4603 = vmatpush.msra.mxu0 0.0
    %4604 = vmatpush.msra.mxu0 0.0
    %4605 = vmatpush.msra.mxu0 0.0
    %4606 = vmatpush.msra.mxu0 0.0
    %4607 = vmatpush.msra.mxu0 0.0
    %4608 = vmatpush.msra.mxu0 0.0
    %4609 = vmatpush.msra.mxu0 %v4513
    %4610 = vmatpush.msra.mxu0 %v4508
    %4611 = vmatmul.f32.gmra.mxu0 %v2187
    %v4612 = vpop.f32.mrf.mxu0
    %v4613 = vadd.f32 %v4587, %v4612
    %4614 = vmatmul.f32.gmra.mxu0 %v2189
    %v4615 = vpop.f32.mrf.mxu0
    %v4616 = vadd.f32 %v4590, %v4615
    %4617 = vmatmul.f32.gmra.mxu0 %v2191
    %v4618 = vpop.f32.mrf.mxu0
    %v4619 = vadd.f32 %v4593, %v4618
    %4620 = vdwg.mxu0
    %4621 = vmatpush.msra.mxu0 %v4504
    %4622 = vmatpush.msra.mxu0 %v4499
    %4623 = vmatpush.msra.mxu0 %v4494
    %4624 = vmatpush.msra.mxu0 %v4489
    %4625 = vmatpush.msra.mxu0 %v4484
    %4626 = vmatpush.msra.mxu0 %v4479
    %4627 = vmatpush.msra.mxu0 %v4474
    %4628 = vmatpush.msra.mxu0 %v4469
    %4629 = vmatpush.msra.mxu0 %v4464
    %4630 = vmatpush.msra.mxu0 %v4459
    %4631 = vmatpush.msra.mxu0 %v4454
    %4632 = vmatpush.msra.mxu0 %v4449
    %4633 = vmatpush.msra.mxu0 %v4444
    %4634 = vmatpush.msra.mxu0 %v4439
    %4635 = vmatpush.msra.mxu0 %v4434
    %4636 = vmatpush.msra.mxu0 %v4429
    %4637 = vmatmul.f32.gmra.mxu0 %v2049
    %v4638 = vpop.f32.mrf.mxu0
    %v4639 = vadd.f32 0.0, %v4638
    %4640 = vmatmul.f32.gmra.mxu0 %v2051
    %v4641 = vpop.f32.mrf.mxu0
    %v4642 = vadd.f32 0.0, %v4641
    %4643 = vmatmul.f32.gmra.mxu0 %v2053
    %v4644 = vpop.f32.mrf.mxu0
    %v4645 = vadd.f32 0.0, %v4644
    %4646 = vdwg.mxu0
    %4647 = vmatpush.msra.mxu0 0.0
    %4648 = vmatpush.msra.mxu0 0.0
    %4649 = vmatpush.msra.mxu0 0.0
    %4650 = vmatpush.msra.mxu0 0.0
    %4651 = vmatpush.msra.mxu0 0.0
    %4652 = vmatpush.msra.mxu0 0.0
    %4653 = vmatpush.msra.mxu0 0.0
    %4654 = vmatpush.msra.mxu0 0.0
    %4655 = vmatpush.msra.mxu0 0.0
    %4656 = vmatpush.msra.mxu0 0.0
    %4657 = vmatpush.msra.mxu0 0.0
    %4658 = vmatpush.msra.mxu0 0.0
    %4659 = vmatpush.msra.mxu0 0.0
    %4660 = vmatpush.msra.mxu0 0.0
    %4661 = vmatpush.msra.mxu0 %v4514
    %4662 = vmatpush.msra.mxu0 %v4509
    %4663 = vmatmul.f32.gmra.mxu0 %v2187
    %v4664 = vpop.f32.mrf.mxu0
    %v4665 = vadd.f32 %v4639, %v4664
    %4666 = vmatmul.f32.gmra.mxu0 %v2189
    %v4667 = vpop.f32.mrf.mxu0
    %v4668 = vadd.f32 %v4642, %v4667
    %4669 = vmatmul.f32.gmra.mxu0 %v2191
    %v4670 = vpop.f32.mrf.mxu0
    %v4671 = vadd.f32 %v4645, %v4670
    %4672 = vdwg.mxu0
    %4673 = vmatpush.msra.mxu0 %v4505
    %4674 = vmatpush.msra.mxu0 %v4500
    %4675 = vmatpush.msra.mxu0 %v4495
    %4676 = vmatpush.msra.mxu0 %v4490
    %4677 = vmatpush.msra.mxu0 %v4485
    %4678 = vmatpush.msra.mxu0 %v4480
    %4679 = vmatpush.msra.mxu0 %v4475
    %4680 = vmatpush.msra.mxu0 %v4470
    %4681 = vmatpush.msra.mxu0 %v4465
    %4682 = vmatpush.msra.mxu0 %v4460
    %4683 = vmatpush.msra.mxu0 %v4455
    %4684 = vmatpush.msra.mxu0 %v4450
    %4685 = vmatpush.msra.mxu0 %v4445
    %4686 = vmatpush.msra.mxu0 %v4440
    %4687 = vmatpush.msra.mxu0 %v4435
    %4688 = vmatpush.msra.mxu0 %v4430
    %4689 = vmatmul.f32.gmra.mxu0 %v2049
    %v4690 = vpop.f32.mrf.mxu0
    %v4691 = vadd.f32 0.0, %v4690
    %4692 = vmatmul.f32.gmra.mxu0 %v2051
    %v4693 = vpop.f32.mrf.mxu0
    %v4694 = vadd.f32 0.0, %v4693
    %4695 = vmatmul.f32.gmra.mxu0 %v2053
    %v4696 = vpop.f32.mrf.mxu0
    %v4697 = vadd.f32 0.0, %v4696
    %4698 = vdwg.mxu0
    %4699 = vmatpush.msra.mxu0 0.0
    %4700 = vmatpush.msra.mxu0 0.0
    %4701 = vmatpush.msra.mxu0 0.0
    %4702 = vmatpush.msra.mxu0 0.0
    %4703 = vmatpush.msra.mxu0 0.0
    %4704 = vmatpush.msra.mxu0 0.0
    %4705 = vmatpush.msra.mxu0 0.0
    %4706 = vmatpush.msra.mxu0 0.0
    %4707 = vmatpush.msra.mxu0 0.0
    %4708 = vmatpush.msra.mxu0 0.0
    %4709 = vmatpush.msra.mxu0 0.0
    %4710 = vmatpush.msra.mxu0 0.0
    %4711 = vmatpush.msra.mxu0 0.0
    %4712 = vmatpush.msra.mxu0 0.0
    %4713 = vmatpush.msra.mxu0 %v4515
    %4714 = vmatpush.msra.mxu0 %v4510
    %4715 = vmatmul.f32.gmra.mxu0 %v2187
    %v4716 = vpop.f32.mrf.mxu0
    %v4717 = vadd.f32 %v4691, %v4716
    %4718 = vmatmul.f32.gmra.mxu0 %v2189
    %v4719 = vpop.f32.mrf.mxu0
    %v4720 = vadd.f32 %v4694, %v4719
    %4721 = vmatmul.f32.gmra.mxu0 %v2191
    %v4722 = vpop.f32.mrf.mxu0
    %v4723 = vadd.f32 %v4697, %v4722
    %4724 = vdwg.mxu0
    %4725 = vmatpush.msra.mxu0 %v4506
    %4726 = vmatpush.msra.mxu0 %v4501
    %4727 = vmatpush.msra.mxu0 %v4496
    %4728 = vmatpush.msra.mxu0 %v4491
    %4729 = vmatpush.msra.mxu0 %v4486
    %4730 = vmatpush.msra.mxu0 %v4481
    %4731 = vmatpush.msra.mxu0 %v4476
    %4732 = vmatpush.msra.mxu0 %v4471
    %4733 = vmatpush.msra.mxu0 %v4466
    %4734 = vmatpush.msra.mxu0 %v4461
    %4735 = vmatpush.msra.mxu0 %v4456
    %4736 = vmatpush.msra.mxu0 %v4451
    %4737 = vmatpush.msra.mxu0 %v4446
    %4738 = vmatpush.msra.mxu0 %v4441
    %4739 = vmatpush.msra.mxu0 %v4436
    %4740 = vmatpush.msra.mxu0 %v4431
    %4741 = vmatmul.f32.gmra.mxu0 %v2049
    %v4742 = vpop.f32.mrf.mxu0
    %v4743 = vadd.f32 0.0, %v4742
    %4744 = vmatmul.f32.gmra.mxu0 %v2051
    %v4745 = vpop.f32.mrf.mxu0
    %v4746 = vadd.f32 0.0, %v4745
    %4747 = vmatmul.f32.gmra.mxu0 %v2053
    %v4748 = vpop.f32.mrf.mxu0
    %v4749 = vadd.f32 0.0, %v4748
    %4750 = vdwg.mxu0
    %4751 = vmatpush.msra.mxu0 0.0
    %4752 = vmatpush.msra.mxu0 0.0
    %4753 = vmatpush.msra.mxu0 0.0
    %4754 = vmatpush.msra.mxu0 0.0
    %4755 = vmatpush.msra.mxu0 0.0
    %4756 = vmatpush.msra.mxu0 0.0
    %4757 = vmatpush.msra.mxu0 0.0
    %4758 = vmatpush.msra.mxu0 0.0
    %4759 = vmatpush.msra.mxu0 0.0
    %4760 = vmatpush.msra.mxu0 0.0
    %4761 = vmatpush.msra.mxu0 0.0
    %4762 = vmatpush.msra.mxu0 0.0
    %4763 = vmatpush.msra.mxu0 0.0
    %4764 = vmatpush.msra.mxu0 0.0
    %4765 = vmatpush.msra.mxu0 %v4516
    %4766 = vmatpush.msra.mxu0 %v4511
    %4767 = vmatmul.f32.gmra.mxu0 %v2187
    %v4768 = vpop.f32.mrf.mxu0
    %v4769 = vadd.f32 %v4743, %v4768
    %4770 = vmatmul.f32.gmra.mxu0 %v2189
    %v4771 = vpop.f32.mrf.mxu0
    %v4772 = vadd.f32 %v4746, %v4771
    %4773 = vmatmul.f32.gmra.mxu0 %v2191
    %v4774 = vpop.f32.mrf.mxu0
    %v4775 = vadd.f32 %v4749, %v4774
    %4776 = vdwg.mxu0
    %v4777 = vadd.f32 %v2086, %v4561
    %v4778 = vadd.f32 %v2087, %v4613
    %v4779 = vadd.f32 %v2088, %v4665
    %v4780 = vadd.f32 %v2089, %v4717
    %v4781 = vadd.f32 %v2090, %v4769
    %v4782 = vadd.f32 %v2086, %v4564
    %v4783 = vadd.f32 %v2087, %v4616
    %v4784 = vadd.f32 %v2088, %v4668
    %v4785 = vadd.f32 %v2089, %v4720
    %v4786 = vadd.f32 %v2090, %v4772
    %v4787 = vadd.f32 %v2086, %v4567
    %v4788 = vadd.f32 %v2087, %v4619
    %v4789 = vadd.f32 %v2088, %v4671
    %v4790 = vadd.f32 %v2089, %v4723
    %v4791 = vadd.f32 %v2090, %v4775
    %s4792 = scalar_lea.vmem [#allocation2], 6480
    %v4793 = vld [vmem:[%s4792] sm:$0xff]
    %v4794 = vld [vmem:[%s4792 + $0x8] sm:$0xff]
    %v4795 = vld [vmem:[%s4792 + $0x10] sm:$0xff]
    %v4796 = vld [vmem:[%s4792 + $0x18] sm:$0xff]
    %v4797 = vld [vmem:[%s4792 + $0x20] sm:$0xff]
    %v4798 = vld [vmem:[%s4792 + $0x28] sm:$0xff]
    %v4799 = vld [vmem:[%s4792 + $0x30] sm:$0xff]
    %v4800 = vld [vmem:[%s4792 + $0x38] sm:$0xff]
    %v4801 = vld [vmem:[%s4792 + $0x40] sm:$0xff]
    %v4802 = vld [vmem:[%s4792 + $0x48] sm:$0xff]
    %v4803 = vld [vmem:[%s4792 + $0x50] sm:$0xff]
    %v4804 = vld [vmem:[%s4792 + $0x58] sm:$0xff]
    %v4805 = vld [vmem:[%s4792 + $0x60] sm:$0xff]
    %v4806 = vld [vmem:[%s4792 + $0x68] sm:$0xff]
    %v4807 = vld [vmem:[%s4792 + $0x70] sm:$0xff]
    %v4808 = vld [vmem:[%s4792 + $0x78] sm:$0xff]
    %v4809 = vld [vmem:[%s4792 + $0x80] sm:$0xff]
    %v4810 = vld [vmem:[%s4792 + $0x88] sm:$0xff]
    %v4811 = vld [vmem:[%s4792 + $0x90] sm:$0xff]
    %v4812 = vld [vmem:[%s4792 + $0x98] sm:$0xff]
    %v4813 = vld [vmem:[%s4792 + $0xa0] sm:$0xff]
    %v4814 = vld [vmem:[%s4792 + $0xa8] sm:$0xff]
    %v4815 = vld [vmem:[%s4792 + $0xb0] sm:$0xff]
    %v4816 = vld [vmem:[%s4792 + $0xb8] sm:$0xff]
    %v4817 = vld [vmem:[%s4792 + $0xc0] sm:$0xff]
    %v4818 = vld [vmem:[%s4792 + $0xc8] sm:$0xff]
    %v4819 = vld [vmem:[%s4792 + $0xd0] sm:$0xff]
    %v4820 = vld [vmem:[%s4792 + $0xd8] sm:$0xff]
    %v4821 = vld [vmem:[%s4792 + $0xe0] sm:$0xff]
    %v4822 = vld [vmem:[%s4792 + $0xe8] sm:$0xff]
    %v4823 = vld [vmem:[%s4792 + $0xf0] sm:$0xff]
    %v4824 = vld [vmem:[%s4792 + $0xf8] sm:$0xff]
    %v4825 = vld [vmem:[%s4792 + $0x100] sm:$0xff]
    %v4826 = vld [vmem:[%s4792 + $0x108] sm:$0xff]
    %v4827 = vld [vmem:[%s4792 + $0x110] sm:$0xff]
    %v4828 = vld [vmem:[%s4792 + $0x118] sm:$0xff]
    %v4829 = vld [vmem:[%s4792 + $0x120] sm:$0xff]
    %v4830 = vld [vmem:[%s4792 + $0x128] sm:$0xff]
    %v4831 = vld [vmem:[%s4792 + $0x130] sm:$0xff]
    %v4832 = vld [vmem:[%s4792 + $0x138] sm:$0xff]
    %v4833 = vld [vmem:[%s4792 + $0x140] sm:$0xff]
    %v4834 = vld [vmem:[%s4792 + $0x148] sm:$0xff]
    %v4835 = vld [vmem:[%s4792 + $0x150] sm:$0xff]
    %v4836 = vld [vmem:[%s4792 + $0x158] sm:$0xff]
    %v4837 = vld [vmem:[%s4792 + $0x160] sm:$0xff]
    %v4838 = vld [vmem:[%s4792 + $0x168] sm:$0xff]
    %v4839 = vld [vmem:[%s4792 + $0x170] sm:$0xff]
    %v4840 = vld [vmem:[%s4792 + $0x178] sm:$0xff]
    %v4841 = vld [vmem:[%s4792 + $0x180] sm:$0xff]
    %v4842 = vld [vmem:[%s4792 + $0x188] sm:$0xff]
    %v4843 = vld [vmem:[%s4792 + $0x190] sm:$0xff]
    %v4844 = vld [vmem:[%s4792 + $0x198] sm:$0xff]
    %v4845 = vld [vmem:[%s4792 + $0x1a0] sm:$0xff]
    %v4846 = vld [vmem:[%s4792 + $0x1a8] sm:$0xff]
    %v4847 = vld [vmem:[%s4792 + $0x1b0] sm:$0xff]
    %v4848 = vld [vmem:[%s4792 + $0x1b8] sm:$0xff]
    %v4849 = vld [vmem:[%s4792 + $0x1c0] sm:$0xff]
    %v4850 = vld [vmem:[%s4792 + $0x1c8] sm:$0xff]
    %v4851 = vld [vmem:[%s4792 + $0x1d0] sm:$0xff]
    %v4852 = vld [vmem:[%s4792 + $0x1d8] sm:$0xff]
    %v4853 = vld [vmem:[%s4792 + $0x1e0] sm:$0xff]
    %v4854 = vld [vmem:[%s4792 + $0x1e8] sm:$0xff]
    %v4855 = vld [vmem:[%s4792 + $0x1f0] sm:$0xff]
    %v4856 = vld [vmem:[%s4792 + $0x1f8] sm:$0xff]
    %v4857 = vld [vmem:[%s4792 + $0x200] sm:$0xff]
    %v4858 = vld [vmem:[%s4792 + $0x208] sm:$0xff]
    %v4859 = vld [vmem:[%s4792 + $0x210] sm:$0xff]
    %v4860 = vld [vmem:[%s4792 + $0x218] sm:$0xff]
    %v4861 = vld [vmem:[%s4792 + $0x220] sm:$0xff]
    %v4862 = vld [vmem:[%s4792 + $0x228] sm:$0xff]
    %v4863 = vld [vmem:[%s4792 + $0x230] sm:$0xff]
    %v4864 = vld [vmem:[%s4792 + $0x238] sm:$0xff]
    %v4865 = vld [vmem:[%s4792 + $0x240] sm:$0xff]
    %v4866 = vld [vmem:[%s4792 + $0x248] sm:$0xff]
    %v4867 = vld [vmem:[%s4792 + $0x250] sm:$0xff]
    %v4868 = vld [vmem:[%s4792 + $0x258] sm:$0xff]
    %v4869 = vld [vmem:[%s4792 + $0x260] sm:$0xff]
    %v4870 = vld [vmem:[%s4792 + $0x268] sm:$0xff]
    %v4871 = vld [vmem:[%s4792 + $0x270] sm:$0xff]
    %v4872 = vld [vmem:[%s4792 + $0x278] sm:$0xff]
    %v4873 = vld [vmem:[%s4792 + $0x280] sm:$0xff]
    %v4874 = vld [vmem:[%s4792 + $0x288] sm:$0xff]
    %v4875 = vld [vmem:[%s4792 + $0x290] sm:$0xff]
    %v4876 = vld [vmem:[%s4792 + $0x298] sm:$0xff]
    %v4877 = vld [vmem:[%s4792 + $0x2a0] sm:$0xff]
    %v4878 = vld [vmem:[%s4792 + $0x2a8] sm:$0xff]
    %v4879 = vld [vmem:[%s4792 + $0x2b0] sm:$0xff]
    %v4880 = vld [vmem:[%s4792 + $0x2b8] sm:$0xff]
    %v4881 = vld [vmem:[%s4792 + $0x2c0] sm:$0xff]
    %v4882 = vld [vmem:[%s4792 + $0x2c8] sm:$0xff]
    %4883 = vmatpush.msra.mxu0 %v4868
    %4884 = vmatpush.msra.mxu0 %v4863
    %4885 = vmatpush.msra.mxu0 %v4858
    %4886 = vmatpush.msra.mxu0 %v4853
    %4887 = vmatpush.msra.mxu0 %v4848
    %4888 = vmatpush.msra.mxu0 %v4843
    %4889 = vmatpush.msra.mxu0 %v4838
    %4890 = vmatpush.msra.mxu0 %v4833
    %4891 = vmatpush.msra.mxu0 %v4828
    %4892 = vmatpush.msra.mxu0 %v4823
    %4893 = vmatpush.msra.mxu0 %v4818
    %4894 = vmatpush.msra.mxu0 %v4813
    %4895 = vmatpush.msra.mxu0 %v4808
    %4896 = vmatpush.msra.mxu0 %v4803
    %4897 = vmatpush.msra.mxu0 %v4798
    %4898 = vmatpush.msra.mxu0 %v4793
    %4899 = vmatmul.f32.gmra.mxu0 %v2070
    %v4900 = vpop.f32.mrf.mxu0
    %v4901 = vadd.f32 0.0, %v4900
    %4902 = vmatmul.f32.gmra.mxu0 %v2075
    %v4903 = vpop.f32.mrf.mxu0
    %v4904 = vadd.f32 0.0, %v4903
    %4905 = vmatmul.f32.gmra.mxu0 %v2082
    %v4906 = vpop.f32.mrf.mxu0
    %v4907 = vadd.f32 0.0, %v4906
    %4908 = vdwg.mxu0
    %4909 = vmatpush.msra.mxu0 0.0
    %4910 = vmatpush.msra.mxu0 0.0
    %4911 = vmatpush.msra.mxu0 0.0
    %4912 = vmatpush.msra.mxu0 0.0
    %4913 = vmatpush.msra.mxu0 0.0
    %4914 = vmatpush.msra.mxu0 0.0
    %4915 = vmatpush.msra.mxu0 0.0
    %4916 = vmatpush.msra.mxu0 0.0
    %4917 = vmatpush.msra.mxu0 0.0
    %4918 = vmatpush.msra.mxu0 0.0
    %4919 = vmatpush.msra.mxu0 0.0
    %4920 = vmatpush.msra.mxu0 0.0
    %4921 = vmatpush.msra.mxu0 0.0
    %4922 = vmatpush.msra.mxu0 0.0
    %4923 = vmatpush.msra.mxu0 %v4878
    %4924 = vmatpush.msra.mxu0 %v4873
    %4925 = vmatmul.f32.gmra.mxu0 %v4022
    %v4926 = vpop.f32.mrf.mxu0
    %v4927 = vadd.f32 %v4901, %v4926
    %4928 = vmatmul.f32.gmra.mxu0 %v4024
    %v4929 = vpop.f32.mrf.mxu0
    %v4930 = vadd.f32 %v4904, %v4929
    %4931 = vmatmul.f32.gmra.mxu0 %v4027
    %v4932 = vpop.f32.mrf.mxu0
    %v4933 = vadd.f32 %v4907, %v4932
    %4934 = vdwg.mxu0
    %4935 = vmatpush.msra.mxu0 %v4869
    %4936 = vmatpush.msra.mxu0 %v4864
    %4937 = vmatpush.msra.mxu0 %v4859
    %4938 = vmatpush.msra.mxu0 %v4854
    %4939 = vmatpush.msra.mxu0 %v4849
    %4940 = vmatpush.msra.mxu0 %v4844
    %4941 = vmatpush.msra.mxu0 %v4839
    %4942 = vmatpush.msra.mxu0 %v4834
    %4943 = vmatpush.msra.mxu0 %v4829
    %4944 = vmatpush.msra.mxu0 %v4824
    %4945 = vmatpush.msra.mxu0 %v4819
    %4946 = vmatpush.msra.mxu0 %v4814
    %4947 = vmatpush.msra.mxu0 %v4809
    %4948 = vmatpush.msra.mxu0 %v4804
    %4949 = vmatpush.msra.mxu0 %v4799
    %4950 = vmatpush.msra.mxu0 %v4794
    %4951 = vmatmul.f32.gmra.mxu0 %v2070
    %v4952 = vpop.f32.mrf.mxu0
    %v4953 = vadd.f32 0.0, %v4952
    %4954 = vmatmul.f32.gmra.mxu0 %v2075
    %v4955 = vpop.f32.mrf.mxu0
    %v4956 = vadd.f32 0.0, %v4955
    %4957 = vmatmul.f32.gmra.mxu0 %v2082
    %v4958 = vpop.f32.mrf.mxu0
    %v4959 = vadd.f32 0.0, %v4958
    %4960 = vdwg.mxu0
    %4961 = vmatpush.msra.mxu0 0.0
    %4962 = vmatpush.msra.mxu0 0.0
    %4963 = vmatpush.msra.mxu0 0.0
    %4964 = vmatpush.msra.mxu0 0.0
    %4965 = vmatpush.msra.mxu0 0.0
    %4966 = vmatpush.msra.mxu0 0.0
    %4967 = vmatpush.msra.mxu0 0.0
    %4968 = vmatpush.msra.mxu0 0.0
    %4969 = vmatpush.msra.mxu0 0.0
    %4970 = vmatpush.msra.mxu0 0.0
    %4971 = vmatpush.msra.mxu0 0.0
    %4972 = vmatpush.msra.mxu0 0.0
    %4973 = vmatpush.msra.mxu0 0.0
    %4974 = vmatpush.msra.mxu0 0.0
    %4975 = vmatpush.msra.mxu0 %v4879
    %4976 = vmatpush.msra.mxu0 %v4874
    %4977 = vmatmul.f32.gmra.mxu0 %v4022
    %v4978 = vpop.f32.mrf.mxu0
    %v4979 = vadd.f32 %v4953, %v4978
    %4980 = vmatmul.f32.gmra.mxu0 %v4024
    %v4981 = vpop.f32.mrf.mxu0
    %v4982 = vadd.f32 %v4956, %v4981
    %4983 = vmatmul.f32.gmra.mxu0 %v4027
    %v4984 = vpop.f32.mrf.mxu0
    %v4985 = vadd.f32 %v4959, %v4984
    %4986 = vdwg.mxu0
    %4987 = vmatpush.msra.mxu0 %v4870
    %4988 = vmatpush.msra.mxu0 %v4865
    %4989 = vmatpush.msra.mxu0 %v4860
    %4990 = vmatpush.msra.mxu0 %v4855
    %4991 = vmatpush.msra.mxu0 %v4850
    %4992 = vmatpush.msra.mxu0 %v4845
    %4993 = vmatpush.msra.mxu0 %v4840
    %4994 = vmatpush.msra.mxu0 %v4835
    %4995 = vmatpush.msra.mxu0 %v4830
    %4996 = vmatpush.msra.mxu0 %v4825
    %4997 = vmatpush.msra.mxu0 %v4820
    %4998 = vmatpush.msra.mxu0 %v4815
    %4999 = vmatpush.msra.mxu0 %v4810
    %5000 = vmatpush.msra.mxu0 %v4805
    %5001 = vmatpush.msra.mxu0 %v4800
    %5002 = vmatpush.msra.mxu0 %v4795
    %5003 = vmatmul.f32.gmra.mxu0 %v2070
    %v5004 = vpop.f32.mrf.mxu0
    %v5005 = vadd.f32 0.0, %v5004
    %5006 = vmatmul.f32.gmra.mxu0 %v2075
    %v5007 = vpop.f32.mrf.mxu0
    %v5008 = vadd.f32 0.0, %v5007
    %5009 = vmatmul.f32.gmra.mxu0 %v2082
    %v5010 = vpop.f32.mrf.mxu0
    %v5011 = vadd.f32 0.0, %v5010
    %5012 = vdwg.mxu0
    %5013 = vmatpush.msra.mxu0 0.0
    %5014 = vmatpush.msra.mxu0 0.0
    %5015 = vmatpush.msra.mxu0 0.0
    %5016 = vmatpush.msra.mxu0 0.0
    %5017 = vmatpush.msra.mxu0 0.0
    %5018 = vmatpush.msra.mxu0 0.0
    %5019 = vmatpush.msra.mxu0 0.0
    %5020 = vmatpush.msra.mxu0 0.0
    %5021 = vmatpush.msra.mxu0 0.0
    %5022 = vmatpush.msra.mxu0 0.0
    %5023 = vmatpush.msra.mxu0 0.0
    %5024 = vmatpush.msra.mxu0 0.0
    %5025 = vmatpush.msra.mxu0 0.0
    %5026 = vmatpush.msra.mxu0 0.0
    %5027 = vmatpush.msra.mxu0 %v4880
    %5028 = vmatpush.msra.mxu0 %v4875
    %5029 = vmatmul.f32.gmra.mxu0 %v4022
    %v5030 = vpop.f32.mrf.mxu0
    %v5031 = vadd.f32 %v5005, %v5030
    %5032 = vmatmul.f32.gmra.mxu0 %v4024
    %v5033 = vpop.f32.mrf.mxu0
    %v5034 = vadd.f32 %v5008, %v5033
    %5035 = vmatmul.f32.gmra.mxu0 %v4027
    %v5036 = vpop.f32.mrf.mxu0
    %v5037 = vadd.f32 %v5011, %v5036
    %5038 = vdwg.mxu0
    %5039 = vmatpush.msra.mxu0 %v4871
    %5040 = vmatpush.msra.mxu0 %v4866
    %5041 = vmatpush.msra.mxu0 %v4861
    %5042 = vmatpush.msra.mxu0 %v4856
    %5043 = vmatpush.msra.mxu0 %v4851
    %5044 = vmatpush.msra.mxu0 %v4846
    %5045 = vmatpush.msra.mxu0 %v4841
    %5046 = vmatpush.msra.mxu0 %v4836
    %5047 = vmatpush.msra.mxu0 %v4831
    %5048 = vmatpush.msra.mxu0 %v4826
    %5049 = vmatpush.msra.mxu0 %v4821
    %5050 = vmatpush.msra.mxu0 %v4816
    %5051 = vmatpush.msra.mxu0 %v4811
    %5052 = vmatpush.msra.mxu0 %v4806
    %5053 = vmatpush.msra.mxu0 %v4801
    %5054 = vmatpush.msra.mxu0 %v4796
    %5055 = vmatmul.f32.gmra.mxu0 %v2070
    %v5056 = vpop.f32.mrf.mxu0
    %v5057 = vadd.f32 0.0, %v5056
    %5058 = vmatmul.f32.gmra.mxu0 %v2075
    %v5059 = vpop.f32.mrf.mxu0
    %v5060 = vadd.f32 0.0, %v5059
    %5061 = vmatmul.f32.gmra.mxu0 %v2082
    %v5062 = vpop.f32.mrf.mxu0
    %v5063 = vadd.f32 0.0, %v5062
    %5064 = vdwg.mxu0
    %5065 = vmatpush.msra.mxu0 0.0
    %5066 = vmatpush.msra.mxu0 0.0
    %5067 = vmatpush.msra.mxu0 0.0
    %5068 = vmatpush.msra.mxu0 0.0
    %5069 = vmatpush.msra.mxu0 0.0
    %5070 = vmatpush.msra.mxu0 0.0
    %5071 = vmatpush.msra.mxu0 0.0
    %5072 = vmatpush.msra.mxu0 0.0
    %5073 = vmatpush.msra.mxu0 0.0
    %5074 = vmatpush.msra.mxu0 0.0
    %5075 = vmatpush.msra.mxu0 0.0
    %5076 = vmatpush.msra.mxu0 0.0
    %5077 = vmatpush.msra.mxu0 0.0
    %5078 = vmatpush.msra.mxu0 0.0
    %5079 = vmatpush.msra.mxu0 %v4881
    %5080 = vmatpush.msra.mxu0 %v4876
    %5081 = vmatmul.f32.gmra.mxu0 %v4022
    %v5082 = vpop.f32.mrf.mxu0
    %v5083 = vadd.f32 %v5057, %v5082
    %5084 = vmatmul.f32.gmra.mxu0 %v4024
    %v5085 = vpop.f32.mrf.mxu0
    %v5086 = vadd.f32 %v5060, %v5085
    %5087 = vmatmul.f32.gmra.mxu0 %v4027
    %v5088 = vpop.f32.mrf.mxu0
    %v5089 = vadd.f32 %v5063, %v5088
    %5090 = vdwg.mxu0
    %5091 = vmatpush.msra.mxu0 %v4872
    %5092 = vmatpush.msra.mxu0 %v4867
    %5093 = vmatpush.msra.mxu0 %v4862
    %5094 = vmatpush.msra.mxu0 %v4857
    %5095 = vmatpush.msra.mxu0 %v4852
    %5096 = vmatpush.msra.mxu0 %v4847
    %5097 = vmatpush.msra.mxu0 %v4842
    %5098 = vmatpush.msra.mxu0 %v4837
    %5099 = vmatpush.msra.mxu0 %v4832
    %5100 = vmatpush.msra.mxu0 %v4827
    %5101 = vmatpush.msra.mxu0 %v4822
    %5102 = vmatpush.msra.mxu0 %v4817
    %5103 = vmatpush.msra.mxu0 %v4812
    %5104 = vmatpush.msra.mxu0 %v4807
    %5105 = vmatpush.msra.mxu0 %v4802
    %5106 = vmatpush.msra.mxu0 %v4797
    %5107 = vmatmul.f32.gmra.mxu0 %v2070
    %v5108 = vpop.f32.mrf.mxu0
    %v5109 = vadd.f32 0.0, %v5108
    %5110 = vmatmul.f32.gmra.mxu0 %v2075
    %v5111 = vpop.f32.mrf.mxu0
    %v5112 = vadd.f32 0.0, %v5111
    %5113 = vmatmul.f32.gmra.mxu0 %v2082
    %v5114 = vpop.f32.mrf.mxu0
    %v5115 = vadd.f32 0.0, %v5114
    %5116 = vdwg.mxu0
    %5117 = vmatpush.msra.mxu0 0.0
    %5118 = vmatpush.msra.mxu0 0.0
    %5119 = vmatpush.msra.mxu0 0.0
    %5120 = vmatpush.msra.mxu0 0.0
    %5121 = vmatpush.msra.mxu0 0.0
    %5122 = vmatpush.msra.mxu0 0.0
    %5123 = vmatpush.msra.mxu0 0.0
    %5124 = vmatpush.msra.mxu0 0.0
    %5125 = vmatpush.msra.mxu0 0.0
    %5126 = vmatpush.msra.mxu0 0.0
    %5127 = vmatpush.msra.mxu0 0.0
    %5128 = vmatpush.msra.mxu0 0.0
    %5129 = vmatpush.msra.mxu0 0.0
    %5130 = vmatpush.msra.mxu0 0.0
    %5131 = vmatpush.msra.mxu0 %v4882
    %5132 = vmatpush.msra.mxu0 %v4877
    %5133 = vmatmul.f32.gmra.mxu0 %v4022
    %v5134 = vpop.f32.mrf.mxu0
    %v5135 = vadd.f32 %v5109, %v5134
    %5136 = vmatmul.f32.gmra.mxu0 %v4024
    %v5137 = vpop.f32.mrf.mxu0
    %v5138 = vadd.f32 %v5112, %v5137
    %5139 = vmatmul.f32.gmra.mxu0 %v4027
    %v5140 = vpop.f32.mrf.mxu0
    %v5141 = vadd.f32 %v5115, %v5140
    %5142 = vdwg.mxu0
    %v5143 = vadd.f32 %v4777, %v4927
    %v5144 = vadd.f32 %v4778, %v4979
    %v5145 = vadd.f32 %v4779, %v5031
    %v5146 = vadd.f32 %v4780, %v5083
    %v5147 = vadd.f32 %v4781, %v5135
    %v5148 = vadd.f32 %v4782, %v4930
    %v5149 = vadd.f32 %v4783, %v4982
    %v5150 = vadd.f32 %v4784, %v5034
    %v5151 = vadd.f32 %v4785, %v5086
    %v5152 = vadd.f32 %v4786, %v5138
    %v5153 = vadd.f32 %v4787, %v4933
    %v5154 = vadd.f32 %v4788, %v4985
    %v5155 = vadd.f32 %v4789, %v5037
    %v5156 = vadd.f32 %v4790, %v5089
    %v5157 = vadd.f32 %v4791, %v5141
    %s5158 = scalar_lea.vmem %s9, 480
    %5159 = vst [vmem:[%s5158] sm:$0xff] %v5143
    %5160 = vst [vmem:[%s5158 + $0x8] sm:$0xff] %v5144
    %5161 = vst [vmem:[%s5158 + $0x10] sm:$0xff] %v5145
    %5162 = vst [vmem:[%s5158 + $0x18] sm:$0xff] %v5146
    %5163 = vst.msk [vmem:[%s5158 + $0x20] sm:$0xff] %vm2472, %v5147
    %5164 = vst [vmem:[%s5158 + $0x28] sm:$0xff] %v5148
    %5165 = vst [vmem:[%s5158 + $0x30] sm:$0xff] %v5149
    %5166 = vst [vmem:[%s5158 + $0x38] sm:$0xff] %v5150
    %5167 = vst [vmem:[%s5158 + $0x40] sm:$0xff] %v5151
    %5168 = vst.msk [vmem:[%s5158 + $0x48] sm:$0xff] %vm2472, %v5152
    %5169 = vst [vmem:[%s5158 + $0x50] sm:$0xff] %v5153
    %5170 = vst [vmem:[%s5158 + $0x58] sm:$0xff] %v5154
    %5171 = vst [vmem:[%s5158 + $0x60] sm:$0xff] %v5155
    %5172 = vst [vmem:[%s5158 + $0x68] sm:$0xff] %v5156
    %5173 = vst.msk [vmem:[%s5158 + $0x70] sm:$0xff] %vm2472, %v5157
    %v5174 = vsub.f32 0.0, %v5143
    %v5175 = vsub.f32 0.0, %v5144
    %v5176 = vsub.f32 0.0, %v5145
    %v5177 = vsub.f32 0.0, %v5146
    %v5178 = vsub.f32 0.0, %v5147
    %v5179 = vsub.f32 0.0, %v5148
    %v5180 = vsub.f32 0.0, %v5149
    %v5181 = vsub.f32 0.0, %v5150
    %v5182 = vsub.f32 0.0, %v5151
    %v5183 = vsub.f32 0.0, %v5152
    %v5184 = vsub.f32 0.0, %v5153
    %v5185 = vsub.f32 0.0, %v5154
    %v5186 = vsub.f32 0.0, %v5155
    %v5187 = vsub.f32 0.0, %v5156
    %v5188 = vsub.f32 0.0, %v5157
    %v5189 = vmul.f32 %v5174, 1.442695
    %v5190 = vpow.pop %v5189
    %v5191 = vmul.f32 %v5175, 1.442695
    %v5192 = vpow.pop %v5191
    %v5193 = vmul.f32 %v5176, 1.442695
    %v5194 = vpow.pop %v5193
    %v5195 = vmul.f32 %v5177, 1.442695
    %v5196 = vpow.pop %v5195
    %v5197 = vmul.f32 %v5178, 1.442695
    %v5198 = vpow.pop %v5197
    %v5199 = vmul.f32 %v5179, 1.442695
    %v5200 = vpow.pop %v5199
    %v5201 = vmul.f32 %v5180, 1.442695
    %v5202 = vpow.pop %v5201
    %v5203 = vmul.f32 %v5181, 1.442695
    %v5204 = vpow.pop %v5203
    %v5205 = vmul.f32 %v5182, 1.442695
    %v5206 = vpow.pop %v5205
    %v5207 = vmul.f32 %v5183, 1.442695
    %v5208 = vpow.pop %v5207
    %v5209 = vmul.f32 %v5184, 1.442695
    %v5210 = vpow.pop %v5209
    %v5211 = vmul.f32 %v5185, 1.442695
    %v5212 = vpow.pop %v5211
    %v5213 = vmul.f32 %v5186, 1.442695
    %v5214 = vpow.pop %v5213
    %v5215 = vmul.f32 %v5187, 1.442695
    %v5216 = vpow.pop %v5215
    %v5217 = vmul.f32 %v5188, 1.442695
    %v5218 = vpow.pop %v5217
    %v5219 = vadd.f32 %v5190, 1.0
    %v5220 = vadd.f32 %v5192, 1.0
    %v5221 = vadd.f32 %v5194, 1.0
    %v5222 = vadd.f32 %v5196, 1.0
    %v5223 = vadd.f32 %v5198, 1.0
    %v5224 = vadd.f32 %v5200, 1.0
    %v5225 = vadd.f32 %v5202, 1.0
    %v5226 = vadd.f32 %v5204, 1.0
    %v5227 = vadd.f32 %v5206, 1.0
    %v5228 = vadd.f32 %v5208, 1.0
    %v5229 = vadd.f32 %v5210, 1.0
    %v5230 = vadd.f32 %v5212, 1.0
    %v5231 = vadd.f32 %v5214, 1.0
    %v5232 = vadd.f32 %v5216, 1.0
    %v5233 = vadd.f32 %v5218, 1.0
    %v5234 = vrcp.pop %v5219
    %v5235 = vrcp.pop %v5220
    %v5236 = vrcp.pop %v5221
    %v5237 = vrcp.pop %v5222
    %v5238 = vrcp.pop %v5223
    %v5239 = vrcp.pop %v5224
    %v5240 = vrcp.pop %v5225
    %v5241 = vrcp.pop %v5226
    %v5242 = vrcp.pop %v5227
    %v5243 = vrcp.pop %v5228
    %v5244 = vrcp.pop %v5229
    %v5245 = vrcp.pop %v5230
    %v5246 = vrcp.pop %v5231
    %v5247 = vrcp.pop %v5232
    %v5248 = vrcp.pop %v5233
    %v5249 = vmul.f32 %v5143, %v5234
    %v5250 = vmul.f32 %v5144, %v5235
    %v5251 = vmul.f32 %v5145, %v5236
    %v5252 = vmul.f32 %v5146, %v5237
    %v5253 = vmul.f32 %v5147, %v5238
    %v5254 = vmul.f32 %v5148, %v5239
    %v5255 = vmul.f32 %v5149, %v5240
    %v5256 = vmul.f32 %v5150, %v5241
    %v5257 = vmul.f32 %v5151, %v5242
    %v5258 = vmul.f32 %v5152, %v5243
    %v5259 = vmul.f32 %v5153, %v5244
    %v5260 = vmul.f32 %v5154, %v5245
    %v5261 = vmul.f32 %v5155, %v5246
    %v5262 = vmul.f32 %v5156, %v5247
    %v5263 = vmul.f32 %v5157, %v5248
    %s5264 = scalar_lea.vmem %s10, 480
    %5265 = vst [vmem:[%s5264] sm:$0xff] %v5249
    %5266 = vst [vmem:[%s5264 + $0x8] sm:$0xff] %v5250
    %5267 = vst [vmem:[%s5264 + $0x10] sm:$0xff] %v5251
    %5268 = vst [vmem:[%s5264 + $0x18] sm:$0xff] %v5252
    %5269 = vst.msk [vmem:[%s5264 + $0x20] sm:$0xff] %vm2472, %v5253
    %5270 = vst [vmem:[%s5264 + $0x28] sm:$0xff] %v5254
    %5271 = vst [vmem:[%s5264 + $0x30] sm:$0xff] %v5255
    %5272 = vst [vmem:[%s5264 + $0x38] sm:$0xff] %v5256
    %5273 = vst [vmem:[%s5264 + $0x40] sm:$0xff] %v5257
    %5274 = vst.msk [vmem:[%s5264 + $0x48] sm:$0xff] %vm2472, %v5258
    %5275 = vst [vmem:[%s5264 + $0x50] sm:$0xff] %v5259
    %5276 = vst [vmem:[%s5264 + $0x58] sm:$0xff] %v5260
    %5277 = vst [vmem:[%s5264 + $0x60] sm:$0xff] %v5261
    %5278 = vst [vmem:[%s5264 + $0x68] sm:$0xff] %v5262
    %5279 = vst.msk [vmem:[%s5264 + $0x70] sm:$0xff] %vm2472, %v5263
    %s5280 = scalar_lea.vmem [#allocation2], 7920
    %v5281 = vld [vmem:[%s5280] sm:$0xff]
    %v5282 = vld [vmem:[%s5280 + $0x8] sm:$0xff]
    %v5283 = vld [vmem:[%s5280 + $0x10] sm:$0xff]
    %v5284 = vld [vmem:[%s5280 + $0x18] sm:$0xff]
    %v5285 = vld [vmem:[%s5280 + $0x20] sm:$0xff]
    %v5286 = vld [vmem:[%s5280 + $0x28] sm:$0xff]
    %v5287 = vld [vmem:[%s5280 + $0x30] sm:$0xff]
    %v5288 = vld [vmem:[%s5280 + $0x38] sm:$0xff]
    %v5289 = vld [vmem:[%s5280 + $0x40] sm:$0xff]
    %v5290 = vld [vmem:[%s5280 + $0x48] sm:$0xff]
    %v5291 = vld [vmem:[%s5280 + $0x50] sm:$0xff]
    %v5292 = vld [vmem:[%s5280 + $0x58] sm:$0xff]
    %v5293 = vld [vmem:[%s5280 + $0x60] sm:$0xff]
    %v5294 = vld [vmem:[%s5280 + $0x68] sm:$0xff]
    %v5295 = vld [vmem:[%s5280 + $0x70] sm:$0xff]
    %v5296 = vld [vmem:[%s5280 + $0x78] sm:$0xff]
    %v5297 = vld [vmem:[%s5280 + $0x80] sm:$0xff]
    %v5298 = vld [vmem:[%s5280 + $0x88] sm:$0xff]
    %v5299 = vld [vmem:[%s5280 + $0x90] sm:$0xff]
    %v5300 = vld [vmem:[%s5280 + $0x98] sm:$0xff]
    %v5301 = vld [vmem:[%s5280 + $0xa0] sm:$0xff]
    %v5302 = vld [vmem:[%s5280 + $0xa8] sm:$0xff]
    %v5303 = vld [vmem:[%s5280 + $0xb0] sm:$0xff]
    %v5304 = vld [vmem:[%s5280 + $0xb8] sm:$0xff]
    %v5305 = vld [vmem:[%s5280 + $0xc0] sm:$0xff]
    %v5306 = vld [vmem:[%s5280 + $0xc8] sm:$0xff]
    %v5307 = vld [vmem:[%s5280 + $0xd0] sm:$0xff]
    %v5308 = vld [vmem:[%s5280 + $0xd8] sm:$0xff]
    %v5309 = vld [vmem:[%s5280 + $0xe0] sm:$0xff]
    %v5310 = vld [vmem:[%s5280 + $0xe8] sm:$0xff]
    %v5311 = vld [vmem:[%s5280 + $0xf0] sm:$0xff]
    %v5312 = vld [vmem:[%s5280 + $0xf8] sm:$0xff]
    %v5313 = vld [vmem:[%s5280 + $0x100] sm:$0xff]
    %v5314 = vld [vmem:[%s5280 + $0x108] sm:$0xff]
    %v5315 = vld [vmem:[%s5280 + $0x110] sm:$0xff]
    %v5316 = vld [vmem:[%s5280 + $0x118] sm:$0xff]
    %v5317 = vld [vmem:[%s5280 + $0x120] sm:$0xff]
    %v5318 = vld [vmem:[%s5280 + $0x128] sm:$0xff]
    %v5319 = vld [vmem:[%s5280 + $0x130] sm:$0xff]
    %v5320 = vld [vmem:[%s5280 + $0x138] sm:$0xff]
    %v5321 = vld [vmem:[%s5280 + $0x140] sm:$0xff]
    %v5322 = vld [vmem:[%s5280 + $0x148] sm:$0xff]
    %v5323 = vld [vmem:[%s5280 + $0x150] sm:$0xff]
    %v5324 = vld [vmem:[%s5280 + $0x158] sm:$0xff]
    %v5325 = vld [vmem:[%s5280 + $0x160] sm:$0xff]
    %v5326 = vld [vmem:[%s5280 + $0x168] sm:$0xff]
    %v5327 = vld [vmem:[%s5280 + $0x170] sm:$0xff]
    %v5328 = vld [vmem:[%s5280 + $0x178] sm:$0xff]
    %v5329 = vld [vmem:[%s5280 + $0x180] sm:$0xff]
    %v5330 = vld [vmem:[%s5280 + $0x188] sm:$0xff]
    %v5331 = vld [vmem:[%s5280 + $0x190] sm:$0xff]
    %v5332 = vld [vmem:[%s5280 + $0x198] sm:$0xff]
    %v5333 = vld [vmem:[%s5280 + $0x1a0] sm:$0xff]
    %v5334 = vld [vmem:[%s5280 + $0x1a8] sm:$0xff]
    %v5335 = vld [vmem:[%s5280 + $0x1b0] sm:$0xff]
    %v5336 = vld [vmem:[%s5280 + $0x1b8] sm:$0xff]
    %v5337 = vld [vmem:[%s5280 + $0x1c0] sm:$0xff]
    %v5338 = vld [vmem:[%s5280 + $0x1c8] sm:$0xff]
    %v5339 = vld [vmem:[%s5280 + $0x1d0] sm:$0xff]
    %v5340 = vld [vmem:[%s5280 + $0x1d8] sm:$0xff]
    %v5341 = vld [vmem:[%s5280 + $0x1e0] sm:$0xff]
    %v5342 = vld [vmem:[%s5280 + $0x1e8] sm:$0xff]
    %v5343 = vld [vmem:[%s5280 + $0x1f0] sm:$0xff]
    %v5344 = vld [vmem:[%s5280 + $0x1f8] sm:$0xff]
    %v5345 = vld [vmem:[%s5280 + $0x200] sm:$0xff]
    %v5346 = vld [vmem:[%s5280 + $0x208] sm:$0xff]
    %v5347 = vld [vmem:[%s5280 + $0x210] sm:$0xff]
    %v5348 = vld [vmem:[%s5280 + $0x218] sm:$0xff]
    %v5349 = vld [vmem:[%s5280 + $0x220] sm:$0xff]
    %v5350 = vld [vmem:[%s5280 + $0x228] sm:$0xff]
    %v5351 = vld [vmem:[%s5280 + $0x230] sm:$0xff]
    %v5352 = vld [vmem:[%s5280 + $0x238] sm:$0xff]
    %v5353 = vld [vmem:[%s5280 + $0x240] sm:$0xff]
    %v5354 = vld [vmem:[%s5280 + $0x248] sm:$0xff]
    %v5355 = vld [vmem:[%s5280 + $0x250] sm:$0xff]
    %v5356 = vld [vmem:[%s5280 + $0x258] sm:$0xff]
    %v5357 = vld [vmem:[%s5280 + $0x260] sm:$0xff]
    %v5358 = vld [vmem:[%s5280 + $0x268] sm:$0xff]
    %v5359 = vld [vmem:[%s5280 + $0x270] sm:$0xff]
    %v5360 = vld [vmem:[%s5280 + $0x278] sm:$0xff]
    %v5361 = vld [vmem:[%s5280 + $0x280] sm:$0xff]
    %v5362 = vld [vmem:[%s5280 + $0x288] sm:$0xff]
    %v5363 = vld [vmem:[%s5280 + $0x290] sm:$0xff]
    %v5364 = vld [vmem:[%s5280 + $0x298] sm:$0xff]
    %v5365 = vld [vmem:[%s5280 + $0x2a0] sm:$0xff]
    %v5366 = vld [vmem:[%s5280 + $0x2a8] sm:$0xff]
    %v5367 = vld [vmem:[%s5280 + $0x2b0] sm:$0xff]
    %v5368 = vld [vmem:[%s5280 + $0x2b8] sm:$0xff]
    %v5369 = vld [vmem:[%s5280 + $0x2c0] sm:$0xff]
    %v5370 = vld [vmem:[%s5280 + $0x2c8] sm:$0xff]
    %5371 = vmatpush.msra.mxu0 %v5356
    %5372 = vmatpush.msra.mxu0 %v5351
    %5373 = vmatpush.msra.mxu0 %v5346
    %5374 = vmatpush.msra.mxu0 %v5341
    %5375 = vmatpush.msra.mxu0 %v5336
    %5376 = vmatpush.msra.mxu0 %v5331
    %5377 = vmatpush.msra.mxu0 %v5326
    %5378 = vmatpush.msra.mxu0 %v5321
    %5379 = vmatpush.msra.mxu0 %v5316
    %5380 = vmatpush.msra.mxu0 %v5311
    %5381 = vmatpush.msra.mxu0 %v5306
    %5382 = vmatpush.msra.mxu0 %v5301
    %5383 = vmatpush.msra.mxu0 %v5296
    %5384 = vmatpush.msra.mxu0 %v5291
    %5385 = vmatpush.msra.mxu0 %v5286
    %5386 = vmatpush.msra.mxu0 %v5281
    %5387 = vmatmul.f32.gmra.mxu0 %v2049
    %v5388 = vpop.f32.mrf.mxu0
    %v5389 = vadd.f32 0.0, %v5388
    %5390 = vmatmul.f32.gmra.mxu0 %v2051
    %v5391 = vpop.f32.mrf.mxu0
    %v5392 = vadd.f32 0.0, %v5391
    %5393 = vmatmul.f32.gmra.mxu0 %v2053
    %v5394 = vpop.f32.mrf.mxu0
    %v5395 = vadd.f32 0.0, %v5394
    %5396 = vdwg.mxu0
    %5397 = vmatpush.msra.mxu0 0.0
    %5398 = vmatpush.msra.mxu0 0.0
    %5399 = vmatpush.msra.mxu0 0.0
    %5400 = vmatpush.msra.mxu0 0.0
    %5401 = vmatpush.msra.mxu0 0.0
    %5402 = vmatpush.msra.mxu0 0.0
    %5403 = vmatpush.msra.mxu0 0.0
    %5404 = vmatpush.msra.mxu0 0.0
    %5405 = vmatpush.msra.mxu0 0.0
    %5406 = vmatpush.msra.mxu0 0.0
    %5407 = vmatpush.msra.mxu0 0.0
    %5408 = vmatpush.msra.mxu0 0.0
    %5409 = vmatpush.msra.mxu0 0.0
    %5410 = vmatpush.msra.mxu0 0.0
    %5411 = vmatpush.msra.mxu0 %v5366
    %5412 = vmatpush.msra.mxu0 %v5361
    %5413 = vmatmul.f32.gmra.mxu0 %v2187
    %v5414 = vpop.f32.mrf.mxu0
    %v5415 = vadd.f32 %v5389, %v5414
    %5416 = vmatmul.f32.gmra.mxu0 %v2189
    %v5417 = vpop.f32.mrf.mxu0
    %v5418 = vadd.f32 %v5392, %v5417
    %5419 = vmatmul.f32.gmra.mxu0 %v2191
    %v5420 = vpop.f32.mrf.mxu0
    %v5421 = vadd.f32 %v5395, %v5420
    %5422 = vdwg.mxu0
    %5423 = vmatpush.msra.mxu0 %v5357
    %5424 = vmatpush.msra.mxu0 %v5352
    %5425 = vmatpush.msra.mxu0 %v5347
    %5426 = vmatpush.msra.mxu0 %v5342
    %5427 = vmatpush.msra.mxu0 %v5337
    %5428 = vmatpush.msra.mxu0 %v5332
    %5429 = vmatpush.msra.mxu0 %v5327
    %5430 = vmatpush.msra.mxu0 %v5322
    %5431 = vmatpush.msra.mxu0 %v5317
    %5432 = vmatpush.msra.mxu0 %v5312
    %5433 = vmatpush.msra.mxu0 %v5307
    %5434 = vmatpush.msra.mxu0 %v5302
    %5435 = vmatpush.msra.mxu0 %v5297
    %5436 = vmatpush.msra.mxu0 %v5292
    %5437 = vmatpush.msra.mxu0 %v5287
    %5438 = vmatpush.msra.mxu0 %v5282
    %5439 = vmatmul.f32.gmra.mxu0 %v2049
    %v5440 = vpop.f32.mrf.mxu0
    %v5441 = vadd.f32 0.0, %v5440
    %5442 = vmatmul.f32.gmra.mxu0 %v2051
    %v5443 = vpop.f32.mrf.mxu0
    %v5444 = vadd.f32 0.0, %v5443
    %5445 = vmatmul.f32.gmra.mxu0 %v2053
    %v5446 = vpop.f32.mrf.mxu0
    %v5447 = vadd.f32 0.0, %v5446
    %5448 = vdwg.mxu0
    %5449 = vmatpush.msra.mxu0 0.0
    %5450 = vmatpush.msra.mxu0 0.0
    %5451 = vmatpush.msra.mxu0 0.0
    %5452 = vmatpush.msra.mxu0 0.0
    %5453 = vmatpush.msra.mxu0 0.0
    %5454 = vmatpush.msra.mxu0 0.0
    %5455 = vmatpush.msra.mxu0 0.0
    %5456 = vmatpush.msra.mxu0 0.0
    %5457 = vmatpush.msra.mxu0 0.0
    %5458 = vmatpush.msra.mxu0 0.0
    %5459 = vmatpush.msra.mxu0 0.0
    %5460 = vmatpush.msra.mxu0 0.0
    %5461 = vmatpush.msra.mxu0 0.0
    %5462 = vmatpush.msra.mxu0 0.0
    %5463 = vmatpush.msra.mxu0 %v5367
    %5464 = vmatpush.msra.mxu0 %v5362
    %5465 = vmatmul.f32.gmra.mxu0 %v2187
    %v5466 = vpop.f32.mrf.mxu0
    %v5467 = vadd.f32 %v5441, %v5466
    %5468 = vmatmul.f32.gmra.mxu0 %v2189
    %v5469 = vpop.f32.mrf.mxu0
    %v5470 = vadd.f32 %v5444, %v5469
    %5471 = vmatmul.f32.gmra.mxu0 %v2191
    %v5472 = vpop.f32.mrf.mxu0
    %v5473 = vadd.f32 %v5447, %v5472
    %5474 = vdwg.mxu0
    %5475 = vmatpush.msra.mxu0 %v5358
    %5476 = vmatpush.msra.mxu0 %v5353
    %5477 = vmatpush.msra.mxu0 %v5348
    %5478 = vmatpush.msra.mxu0 %v5343
    %5479 = vmatpush.msra.mxu0 %v5338
    %5480 = vmatpush.msra.mxu0 %v5333
    %5481 = vmatpush.msra.mxu0 %v5328
    %5482 = vmatpush.msra.mxu0 %v5323
    %5483 = vmatpush.msra.mxu0 %v5318
    %5484 = vmatpush.msra.mxu0 %v5313
    %5485 = vmatpush.msra.mxu0 %v5308
    %5486 = vmatpush.msra.mxu0 %v5303
    %5487 = vmatpush.msra.mxu0 %v5298
    %5488 = vmatpush.msra.mxu0 %v5293
    %5489 = vmatpush.msra.mxu0 %v5288
    %5490 = vmatpush.msra.mxu0 %v5283
    %5491 = vmatmul.f32.gmra.mxu0 %v2049
    %v5492 = vpop.f32.mrf.mxu0
    %v5493 = vadd.f32 0.0, %v5492
    %5494 = vmatmul.f32.gmra.mxu0 %v2051
    %v5495 = vpop.f32.mrf.mxu0
    %v5496 = vadd.f32 0.0, %v5495
    %5497 = vmatmul.f32.gmra.mxu0 %v2053
    %v5498 = vpop.f32.mrf.mxu0
    %v5499 = vadd.f32 0.0, %v5498
    %5500 = vdwg.mxu0
    %5501 = vmatpush.msra.mxu0 0.0
    %5502 = vmatpush.msra.mxu0 0.0
    %5503 = vmatpush.msra.mxu0 0.0
    %5504 = vmatpush.msra.mxu0 0.0
    %5505 = vmatpush.msra.mxu0 0.0
    %5506 = vmatpush.msra.mxu0 0.0
    %5507 = vmatpush.msra.mxu0 0.0
    %5508 = vmatpush.msra.mxu0 0.0
    %5509 = vmatpush.msra.mxu0 0.0
    %5510 = vmatpush.msra.mxu0 0.0
    %5511 = vmatpush.msra.mxu0 0.0
    %5512 = vmatpush.msra.mxu0 0.0
    %5513 = vmatpush.msra.mxu0 0.0
    %5514 = vmatpush.msra.mxu0 0.0
    %5515 = vmatpush.msra.mxu0 %v5368
    %5516 = vmatpush.msra.mxu0 %v5363
    %5517 = vmatmul.f32.gmra.mxu0 %v2187
    %v5518 = vpop.f32.mrf.mxu0
    %v5519 = vadd.f32 %v5493, %v5518
    %5520 = vmatmul.f32.gmra.mxu0 %v2189
    %v5521 = vpop.f32.mrf.mxu0
    %v5522 = vadd.f32 %v5496, %v5521
    %5523 = vmatmul.f32.gmra.mxu0 %v2191
    %v5524 = vpop.f32.mrf.mxu0
    %v5525 = vadd.f32 %v5499, %v5524
    %5526 = vdwg.mxu0
    %5527 = vmatpush.msra.mxu0 %v5359
    %5528 = vmatpush.msra.mxu0 %v5354
    %5529 = vmatpush.msra.mxu0 %v5349
    %5530 = vmatpush.msra.mxu0 %v5344
    %5531 = vmatpush.msra.mxu0 %v5339
    %5532 = vmatpush.msra.mxu0 %v5334
    %5533 = vmatpush.msra.mxu0 %v5329
    %5534 = vmatpush.msra.mxu0 %v5324
    %5535 = vmatpush.msra.mxu0 %v5319
    %5536 = vmatpush.msra.mxu0 %v5314
    %5537 = vmatpush.msra.mxu0 %v5309
    %5538 = vmatpush.msra.mxu0 %v5304
    %5539 = vmatpush.msra.mxu0 %v5299
    %5540 = vmatpush.msra.mxu0 %v5294
    %5541 = vmatpush.msra.mxu0 %v5289
    %5542 = vmatpush.msra.mxu0 %v5284
    %5543 = vmatmul.f32.gmra.mxu0 %v2049
    %v5544 = vpop.f32.mrf.mxu0
    %v5545 = vadd.f32 0.0, %v5544
    %5546 = vmatmul.f32.gmra.mxu0 %v2051
    %v5547 = vpop.f32.mrf.mxu0
    %v5548 = vadd.f32 0.0, %v5547
    %5549 = vmatmul.f32.gmra.mxu0 %v2053
    %v5550 = vpop.f32.mrf.mxu0
    %v5551 = vadd.f32 0.0, %v5550
    %5552 = vdwg.mxu0
    %5553 = vmatpush.msra.mxu0 0.0
    %5554 = vmatpush.msra.mxu0 0.0
    %5555 = vmatpush.msra.mxu0 0.0
    %5556 = vmatpush.msra.mxu0 0.0
    %5557 = vmatpush.msra.mxu0 0.0
    %5558 = vmatpush.msra.mxu0 0.0
    %5559 = vmatpush.msra.mxu0 0.0
    %5560 = vmatpush.msra.mxu0 0.0
    %5561 = vmatpush.msra.mxu0 0.0
    %5562 = vmatpush.msra.mxu0 0.0
    %5563 = vmatpush.msra.mxu0 0.0
    %5564 = vmatpush.msra.mxu0 0.0
    %5565 = vmatpush.msra.mxu0 0.0
    %5566 = vmatpush.msra.mxu0 0.0
    %5567 = vmatpush.msra.mxu0 %v5369
    %5568 = vmatpush.msra.mxu0 %v5364
    %5569 = vmatmul.f32.gmra.mxu0 %v2187
    %v5570 = vpop.f32.mrf.mxu0
    %v5571 = vadd.f32 %v5545, %v5570
    %5572 = vmatmul.f32.gmra.mxu0 %v2189
    %v5573 = vpop.f32.mrf.mxu0
    %v5574 = vadd.f32 %v5548, %v5573
    %5575 = vmatmul.f32.gmra.mxu0 %v2191
    %v5576 = vpop.f32.mrf.mxu0
    %v5577 = vadd.f32 %v5551, %v5576
    %5578 = vdwg.mxu0
    %5579 = vmatpush.msra.mxu0 %v5360
    %5580 = vmatpush.msra.mxu0 %v5355
    %5581 = vmatpush.msra.mxu0 %v5350
    %5582 = vmatpush.msra.mxu0 %v5345
    %5583 = vmatpush.msra.mxu0 %v5340
    %5584 = vmatpush.msra.mxu0 %v5335
    %5585 = vmatpush.msra.mxu0 %v5330
    %5586 = vmatpush.msra.mxu0 %v5325
    %5587 = vmatpush.msra.mxu0 %v5320
    %5588 = vmatpush.msra.mxu0 %v5315
    %5589 = vmatpush.msra.mxu0 %v5310
    %5590 = vmatpush.msra.mxu0 %v5305
    %5591 = vmatpush.msra.mxu0 %v5300
    %5592 = vmatpush.msra.mxu0 %v5295
    %5593 = vmatpush.msra.mxu0 %v5290
    %5594 = vmatpush.msra.mxu0 %v5285
    %5595 = vmatmul.f32.gmra.mxu0 %v2049
    %v5596 = vpop.f32.mrf.mxu0
    %v5597 = vadd.f32 0.0, %v5596
    %5598 = vmatmul.f32.gmra.mxu0 %v2051
    %v5599 = vpop.f32.mrf.mxu0
    %v5600 = vadd.f32 0.0, %v5599
    %5601 = vmatmul.f32.gmra.mxu0 %v2053
    %v5602 = vpop.f32.mrf.mxu0
    %v5603 = vadd.f32 0.0, %v5602
    %5604 = vdwg.mxu0
    %5605 = vmatpush.msra.mxu0 0.0
    %5606 = vmatpush.msra.mxu0 0.0
    %5607 = vmatpush.msra.mxu0 0.0
    %5608 = vmatpush.msra.mxu0 0.0
    %5609 = vmatpush.msra.mxu0 0.0
    %5610 = vmatpush.msra.mxu0 0.0
    %5611 = vmatpush.msra.mxu0 0.0
    %5612 = vmatpush.msra.mxu0 0.0
    %5613 = vmatpush.msra.mxu0 0.0
    %5614 = vmatpush.msra.mxu0 0.0
    %5615 = vmatpush.msra.mxu0 0.0
    %5616 = vmatpush.msra.mxu0 0.0
    %5617 = vmatpush.msra.mxu0 0.0
    %5618 = vmatpush.msra.mxu0 0.0
    %5619 = vmatpush.msra.mxu0 %v5370
    %5620 = vmatpush.msra.mxu0 %v5365
    %5621 = vmatmul.f32.gmra.mxu0 %v2187
    %v5622 = vpop.f32.mrf.mxu0
    %v5623 = vadd.f32 %v5597, %v5622
    %5624 = vmatmul.f32.gmra.mxu0 %v2189
    %v5625 = vpop.f32.mrf.mxu0
    %v5626 = vadd.f32 %v5600, %v5625
    %5627 = vmatmul.f32.gmra.mxu0 %v2191
    %v5628 = vpop.f32.mrf.mxu0
    %v5629 = vadd.f32 %v5603, %v5628
    %5630 = vdwg.mxu0
    %v5631 = vadd.f32 %v2086, %v5415
    %v5632 = vadd.f32 %v2087, %v5467
    %v5633 = vadd.f32 %v2088, %v5519
    %v5634 = vadd.f32 %v2089, %v5571
    %v5635 = vadd.f32 %v2090, %v5623
    %v5636 = vadd.f32 %v2086, %v5418
    %v5637 = vadd.f32 %v2087, %v5470
    %v5638 = vadd.f32 %v2088, %v5522
    %v5639 = vadd.f32 %v2089, %v5574
    %v5640 = vadd.f32 %v2090, %v5626
    %v5641 = vadd.f32 %v2086, %v5421
    %v5642 = vadd.f32 %v2087, %v5473
    %v5643 = vadd.f32 %v2088, %v5525
    %v5644 = vadd.f32 %v2089, %v5577
    %v5645 = vadd.f32 %v2090, %v5629
    %s5646 = scalar_lea.vmem [#allocation2], 10080
    %v5647 = vld [vmem:[%s5646] sm:$0xff]
    %v5648 = vld [vmem:[%s5646 + $0x8] sm:$0xff]
    %v5649 = vld [vmem:[%s5646 + $0x10] sm:$0xff]
    %v5650 = vld [vmem:[%s5646 + $0x18] sm:$0xff]
    %v5651 = vld [vmem:[%s5646 + $0x20] sm:$0xff]
    %v5652 = vld [vmem:[%s5646 + $0x28] sm:$0xff]
    %v5653 = vld [vmem:[%s5646 + $0x30] sm:$0xff]
    %v5654 = vld [vmem:[%s5646 + $0x38] sm:$0xff]
    %v5655 = vld [vmem:[%s5646 + $0x40] sm:$0xff]
    %v5656 = vld [vmem:[%s5646 + $0x48] sm:$0xff]
    %v5657 = vld [vmem:[%s5646 + $0x50] sm:$0xff]
    %v5658 = vld [vmem:[%s5646 + $0x58] sm:$0xff]
    %v5659 = vld [vmem:[%s5646 + $0x60] sm:$0xff]
    %v5660 = vld [vmem:[%s5646 + $0x68] sm:$0xff]
    %v5661 = vld [vmem:[%s5646 + $0x70] sm:$0xff]
    %v5662 = vld [vmem:[%s5646 + $0x78] sm:$0xff]
    %v5663 = vld [vmem:[%s5646 + $0x80] sm:$0xff]
    %v5664 = vld [vmem:[%s5646 + $0x88] sm:$0xff]
    %v5665 = vld [vmem:[%s5646 + $0x90] sm:$0xff]
    %v5666 = vld [vmem:[%s5646 + $0x98] sm:$0xff]
    %v5667 = vld [vmem:[%s5646 + $0xa0] sm:$0xff]
    %v5668 = vld [vmem:[%s5646 + $0xa8] sm:$0xff]
    %v5669 = vld [vmem:[%s5646 + $0xb0] sm:$0xff]
    %v5670 = vld [vmem:[%s5646 + $0xb8] sm:$0xff]
    %v5671 = vld [vmem:[%s5646 + $0xc0] sm:$0xff]
    %v5672 = vld [vmem:[%s5646 + $0xc8] sm:$0xff]
    %v5673 = vld [vmem:[%s5646 + $0xd0] sm:$0xff]
    %v5674 = vld [vmem:[%s5646 + $0xd8] sm:$0xff]
    %v5675 = vld [vmem:[%s5646 + $0xe0] sm:$0xff]
    %v5676 = vld [vmem:[%s5646 + $0xe8] sm:$0xff]
    %v5677 = vld [vmem:[%s5646 + $0xf0] sm:$0xff]
    %v5678 = vld [vmem:[%s5646 + $0xf8] sm:$0xff]
    %v5679 = vld [vmem:[%s5646 + $0x100] sm:$0xff]
    %v5680 = vld [vmem:[%s5646 + $0x108] sm:$0xff]
    %v5681 = vld [vmem:[%s5646 + $0x110] sm:$0xff]
    %v5682 = vld [vmem:[%s5646 + $0x118] sm:$0xff]
    %v5683 = vld [vmem:[%s5646 + $0x120] sm:$0xff]
    %v5684 = vld [vmem:[%s5646 + $0x128] sm:$0xff]
    %v5685 = vld [vmem:[%s5646 + $0x130] sm:$0xff]
    %v5686 = vld [vmem:[%s5646 + $0x138] sm:$0xff]
    %v5687 = vld [vmem:[%s5646 + $0x140] sm:$0xff]
    %v5688 = vld [vmem:[%s5646 + $0x148] sm:$0xff]
    %v5689 = vld [vmem:[%s5646 + $0x150] sm:$0xff]
    %v5690 = vld [vmem:[%s5646 + $0x158] sm:$0xff]
    %v5691 = vld [vmem:[%s5646 + $0x160] sm:$0xff]
    %v5692 = vld [vmem:[%s5646 + $0x168] sm:$0xff]
    %v5693 = vld [vmem:[%s5646 + $0x170] sm:$0xff]
    %v5694 = vld [vmem:[%s5646 + $0x178] sm:$0xff]
    %v5695 = vld [vmem:[%s5646 + $0x180] sm:$0xff]
    %v5696 = vld [vmem:[%s5646 + $0x188] sm:$0xff]
    %v5697 = vld [vmem:[%s5646 + $0x190] sm:$0xff]
    %v5698 = vld [vmem:[%s5646 + $0x198] sm:$0xff]
    %v5699 = vld [vmem:[%s5646 + $0x1a0] sm:$0xff]
    %v5700 = vld [vmem:[%s5646 + $0x1a8] sm:$0xff]
    %v5701 = vld [vmem:[%s5646 + $0x1b0] sm:$0xff]
    %v5702 = vld [vmem:[%s5646 + $0x1b8] sm:$0xff]
    %v5703 = vld [vmem:[%s5646 + $0x1c0] sm:$0xff]
    %v5704 = vld [vmem:[%s5646 + $0x1c8] sm:$0xff]
    %v5705 = vld [vmem:[%s5646 + $0x1d0] sm:$0xff]
    %v5706 = vld [vmem:[%s5646 + $0x1d8] sm:$0xff]
    %v5707 = vld [vmem:[%s5646 + $0x1e0] sm:$0xff]
    %v5708 = vld [vmem:[%s5646 + $0x1e8] sm:$0xff]
    %v5709 = vld [vmem:[%s5646 + $0x1f0] sm:$0xff]
    %v5710 = vld [vmem:[%s5646 + $0x1f8] sm:$0xff]
    %v5711 = vld [vmem:[%s5646 + $0x200] sm:$0xff]
    %v5712 = vld [vmem:[%s5646 + $0x208] sm:$0xff]
    %v5713 = vld [vmem:[%s5646 + $0x210] sm:$0xff]
    %v5714 = vld [vmem:[%s5646 + $0x218] sm:$0xff]
    %v5715 = vld [vmem:[%s5646 + $0x220] sm:$0xff]
    %v5716 = vld [vmem:[%s5646 + $0x228] sm:$0xff]
    %v5717 = vld [vmem:[%s5646 + $0x230] sm:$0xff]
    %v5718 = vld [vmem:[%s5646 + $0x238] sm:$0xff]
    %v5719 = vld [vmem:[%s5646 + $0x240] sm:$0xff]
    %v5720 = vld [vmem:[%s5646 + $0x248] sm:$0xff]
    %v5721 = vld [vmem:[%s5646 + $0x250] sm:$0xff]
    %v5722 = vld [vmem:[%s5646 + $0x258] sm:$0xff]
    %v5723 = vld [vmem:[%s5646 + $0x260] sm:$0xff]
    %v5724 = vld [vmem:[%s5646 + $0x268] sm:$0xff]
    %v5725 = vld [vmem:[%s5646 + $0x270] sm:$0xff]
    %v5726 = vld [vmem:[%s5646 + $0x278] sm:$0xff]
    %v5727 = vld [vmem:[%s5646 + $0x280] sm:$0xff]
    %v5728 = vld [vmem:[%s5646 + $0x288] sm:$0xff]
    %v5729 = vld [vmem:[%s5646 + $0x290] sm:$0xff]
    %v5730 = vld [vmem:[%s5646 + $0x298] sm:$0xff]
    %v5731 = vld [vmem:[%s5646 + $0x2a0] sm:$0xff]
    %v5732 = vld [vmem:[%s5646 + $0x2a8] sm:$0xff]
    %v5733 = vld [vmem:[%s5646 + $0x2b0] sm:$0xff]
    %v5734 = vld [vmem:[%s5646 + $0x2b8] sm:$0xff]
    %v5735 = vld [vmem:[%s5646 + $0x2c0] sm:$0xff]
    %v5736 = vld [vmem:[%s5646 + $0x2c8] sm:$0xff]
    %5737 = vmatpush.msra.mxu0 %v5722
    %5738 = vmatpush.msra.mxu0 %v5717
    %5739 = vmatpush.msra.mxu0 %v5712
    %5740 = vmatpush.msra.mxu0 %v5707
    %5741 = vmatpush.msra.mxu0 %v5702
    %5742 = vmatpush.msra.mxu0 %v5697
    %5743 = vmatpush.msra.mxu0 %v5692
    %5744 = vmatpush.msra.mxu0 %v5687
    %5745 = vmatpush.msra.mxu0 %v5682
    %5746 = vmatpush.msra.mxu0 %v5677
    %5747 = vmatpush.msra.mxu0 %v5672
    %5748 = vmatpush.msra.mxu0 %v5667
    %5749 = vmatpush.msra.mxu0 %v5662
    %5750 = vmatpush.msra.mxu0 %v5657
    %5751 = vmatpush.msra.mxu0 %v5652
    %5752 = vmatpush.msra.mxu0 %v5647
    %5753 = vmatmul.f32.gmra.mxu0 %v2070
    %v5754 = vpop.f32.mrf.mxu0
    %v5755 = vadd.f32 0.0, %v5754
    %5756 = vmatmul.f32.gmra.mxu0 %v2075
    %v5757 = vpop.f32.mrf.mxu0
    %v5758 = vadd.f32 0.0, %v5757
    %5759 = vmatmul.f32.gmra.mxu0 %v2082
    %v5760 = vpop.f32.mrf.mxu0
    %v5761 = vadd.f32 0.0, %v5760
    %5762 = vdwg.mxu0
    %5763 = vmatpush.msra.mxu0 0.0
    %5764 = vmatpush.msra.mxu0 0.0
    %5765 = vmatpush.msra.mxu0 0.0
    %5766 = vmatpush.msra.mxu0 0.0
    %5767 = vmatpush.msra.mxu0 0.0
    %5768 = vmatpush.msra.mxu0 0.0
    %5769 = vmatpush.msra.mxu0 0.0
    %5770 = vmatpush.msra.mxu0 0.0
    %5771 = vmatpush.msra.mxu0 0.0
    %5772 = vmatpush.msra.mxu0 0.0
    %5773 = vmatpush.msra.mxu0 0.0
    %5774 = vmatpush.msra.mxu0 0.0
    %5775 = vmatpush.msra.mxu0 0.0
    %5776 = vmatpush.msra.mxu0 0.0
    %5777 = vmatpush.msra.mxu0 %v5732
    %5778 = vmatpush.msra.mxu0 %v5727
    %5779 = vmatmul.f32.gmra.mxu0 %v4022
    %v5780 = vpop.f32.mrf.mxu0
    %v5781 = vadd.f32 %v5755, %v5780
    %5782 = vmatmul.f32.gmra.mxu0 %v4024
    %v5783 = vpop.f32.mrf.mxu0
    %v5784 = vadd.f32 %v5758, %v5783
    %5785 = vmatmul.f32.gmra.mxu0 %v4027
    %v5786 = vpop.f32.mrf.mxu0
    %v5787 = vadd.f32 %v5761, %v5786
    %5788 = vdwg.mxu0
    %5789 = vmatpush.msra.mxu0 %v5723
    %5790 = vmatpush.msra.mxu0 %v5718
    %5791 = vmatpush.msra.mxu0 %v5713
    %5792 = vmatpush.msra.mxu0 %v5708
    %5793 = vmatpush.msra.mxu0 %v5703
    %5794 = vmatpush.msra.mxu0 %v5698
    %5795 = vmatpush.msra.mxu0 %v5693
    %5796 = vmatpush.msra.mxu0 %v5688
    %5797 = vmatpush.msra.mxu0 %v5683
    %5798 = vmatpush.msra.mxu0 %v5678
    %5799 = vmatpush.msra.mxu0 %v5673
    %5800 = vmatpush.msra.mxu0 %v5668
    %5801 = vmatpush.msra.mxu0 %v5663
    %5802 = vmatpush.msra.mxu0 %v5658
    %5803 = vmatpush.msra.mxu0 %v5653
    %5804 = vmatpush.msra.mxu0 %v5648
    %5805 = vmatmul.f32.gmra.mxu0 %v2070
    %v5806 = vpop.f32.mrf.mxu0
    %v5807 = vadd.f32 0.0, %v5806
    %5808 = vmatmul.f32.gmra.mxu0 %v2075
    %v5809 = vpop.f32.mrf.mxu0
    %v5810 = vadd.f32 0.0, %v5809
    %5811 = vmatmul.f32.gmra.mxu0 %v2082
    %v5812 = vpop.f32.mrf.mxu0
    %v5813 = vadd.f32 0.0, %v5812
    %5814 = vdwg.mxu0
    %5815 = vmatpush.msra.mxu0 0.0
    %5816 = vmatpush.msra.mxu0 0.0
    %5817 = vmatpush.msra.mxu0 0.0
    %5818 = vmatpush.msra.mxu0 0.0
    %5819 = vmatpush.msra.mxu0 0.0
    %5820 = vmatpush.msra.mxu0 0.0
    %5821 = vmatpush.msra.mxu0 0.0
    %5822 = vmatpush.msra.mxu0 0.0
    %5823 = vmatpush.msra.mxu0 0.0
    %5824 = vmatpush.msra.mxu0 0.0
    %5825 = vmatpush.msra.mxu0 0.0
    %5826 = vmatpush.msra.mxu0 0.0
    %5827 = vmatpush.msra.mxu0 0.0
    %5828 = vmatpush.msra.mxu0 0.0
    %5829 = vmatpush.msra.mxu0 %v5733
    %5830 = vmatpush.msra.mxu0 %v5728
    %5831 = vmatmul.f32.gmra.mxu0 %v4022
    %v5832 = vpop.f32.mrf.mxu0
    %v5833 = vadd.f32 %v5807, %v5832
    %5834 = vmatmul.f32.gmra.mxu0 %v4024
    %v5835 = vpop.f32.mrf.mxu0
    %v5836 = vadd.f32 %v5810, %v5835
    %5837 = vmatmul.f32.gmra.mxu0 %v4027
    %v5838 = vpop.f32.mrf.mxu0
    %v5839 = vadd.f32 %v5813, %v5838
    %5840 = vdwg.mxu0
    %5841 = vmatpush.msra.mxu0 %v5724
    %5842 = vmatpush.msra.mxu0 %v5719
    %5843 = vmatpush.msra.mxu0 %v5714
    %5844 = vmatpush.msra.mxu0 %v5709
    %5845 = vmatpush.msra.mxu0 %v5704
    %5846 = vmatpush.msra.mxu0 %v5699
    %5847 = vmatpush.msra.mxu0 %v5694
    %5848 = vmatpush.msra.mxu0 %v5689
    %5849 = vmatpush.msra.mxu0 %v5684
    %5850 = vmatpush.msra.mxu0 %v5679
    %5851 = vmatpush.msra.mxu0 %v5674
    %5852 = vmatpush.msra.mxu0 %v5669
    %5853 = vmatpush.msra.mxu0 %v5664
    %5854 = vmatpush.msra.mxu0 %v5659
    %5855 = vmatpush.msra.mxu0 %v5654
    %5856 = vmatpush.msra.mxu0 %v5649
    %5857 = vmatmul.f32.gmra.mxu0 %v2070
    %v5858 = vpop.f32.mrf.mxu0
    %v5859 = vadd.f32 0.0, %v5858
    %5860 = vmatmul.f32.gmra.mxu0 %v2075
    %v5861 = vpop.f32.mrf.mxu0
    %v5862 = vadd.f32 0.0, %v5861
    %5863 = vmatmul.f32.gmra.mxu0 %v2082
    %v5864 = vpop.f32.mrf.mxu0
    %v5865 = vadd.f32 0.0, %v5864
    %5866 = vdwg.mxu0
    %5867 = vmatpush.msra.mxu0 0.0
    %5868 = vmatpush.msra.mxu0 0.0
    %5869 = vmatpush.msra.mxu0 0.0
    %5870 = vmatpush.msra.mxu0 0.0
    %5871 = vmatpush.msra.mxu0 0.0
    %5872 = vmatpush.msra.mxu0 0.0
    %5873 = vmatpush.msra.mxu0 0.0
    %5874 = vmatpush.msra.mxu0 0.0
    %5875 = vmatpush.msra.mxu0 0.0
    %5876 = vmatpush.msra.mxu0 0.0
    %5877 = vmatpush.msra.mxu0 0.0
    %5878 = vmatpush.msra.mxu0 0.0
    %5879 = vmatpush.msra.mxu0 0.0
    %5880 = vmatpush.msra.mxu0 0.0
    %5881 = vmatpush.msra.mxu0 %v5734
    %5882 = vmatpush.msra.mxu0 %v5729
    %5883 = vmatmul.f32.gmra.mxu0 %v4022
    %v5884 = vpop.f32.mrf.mxu0
    %v5885 = vadd.f32 %v5859, %v5884
    %5886 = vmatmul.f32.gmra.mxu0 %v4024
    %v5887 = vpop.f32.mrf.mxu0
    %v5888 = vadd.f32 %v5862, %v5887
    %5889 = vmatmul.f32.gmra.mxu0 %v4027
    %v5890 = vpop.f32.mrf.mxu0
    %v5891 = vadd.f32 %v5865, %v5890
    %5892 = vdwg.mxu0
    %5893 = vmatpush.msra.mxu0 %v5725
    %5894 = vmatpush.msra.mxu0 %v5720
    %5895 = vmatpush.msra.mxu0 %v5715
    %5896 = vmatpush.msra.mxu0 %v5710
    %5897 = vmatpush.msra.mxu0 %v5705
    %5898 = vmatpush.msra.mxu0 %v5700
    %5899 = vmatpush.msra.mxu0 %v5695
    %5900 = vmatpush.msra.mxu0 %v5690
    %5901 = vmatpush.msra.mxu0 %v5685
    %5902 = vmatpush.msra.mxu0 %v5680
    %5903 = vmatpush.msra.mxu0 %v5675
    %5904 = vmatpush.msra.mxu0 %v5670
    %5905 = vmatpush.msra.mxu0 %v5665
    %5906 = vmatpush.msra.mxu0 %v5660
    %5907 = vmatpush.msra.mxu0 %v5655
    %5908 = vmatpush.msra.mxu0 %v5650
    %5909 = vmatmul.f32.gmra.mxu0 %v2070
    %v5910 = vpop.f32.mrf.mxu0
    %v5911 = vadd.f32 0.0, %v5910
    %5912 = vmatmul.f32.gmra.mxu0 %v2075
    %v5913 = vpop.f32.mrf.mxu0
    %v5914 = vadd.f32 0.0, %v5913
    %5915 = vmatmul.f32.gmra.mxu0 %v2082
    %v5916 = vpop.f32.mrf.mxu0
    %v5917 = vadd.f32 0.0, %v5916
    %5918 = vdwg.mxu0
    %5919 = vmatpush.msra.mxu0 0.0
    %5920 = vmatpush.msra.mxu0 0.0
    %5921 = vmatpush.msra.mxu0 0.0
    %5922 = vmatpush.msra.mxu0 0.0
    %5923 = vmatpush.msra.mxu0 0.0
    %5924 = vmatpush.msra.mxu0 0.0
    %5925 = vmatpush.msra.mxu0 0.0
    %5926 = vmatpush.msra.mxu0 0.0
    %5927 = vmatpush.msra.mxu0 0.0
    %5928 = vmatpush.msra.mxu0 0.0
    %5929 = vmatpush.msra.mxu0 0.0
    %5930 = vmatpush.msra.mxu0 0.0
    %5931 = vmatpush.msra.mxu0 0.0
    %5932 = vmatpush.msra.mxu0 0.0
    %5933 = vmatpush.msra.mxu0 %v5735
    %5934 = vmatpush.msra.mxu0 %v5730
    %5935 = vmatmul.f32.gmra.mxu0 %v4022
    %v5936 = vpop.f32.mrf.mxu0
    %v5937 = vadd.f32 %v5911, %v5936
    %5938 = vmatmul.f32.gmra.mxu0 %v4024
    %v5939 = vpop.f32.mrf.mxu0
    %v5940 = vadd.f32 %v5914, %v5939
    %5941 = vmatmul.f32.gmra.mxu0 %v4027
    %v5942 = vpop.f32.mrf.mxu0
    %v5943 = vadd.f32 %v5917, %v5942
    %5944 = vdwg.mxu0
    %5945 = vmatpush.msra.mxu0 %v5726
    %5946 = vmatpush.msra.mxu0 %v5721
    %5947 = vmatpush.msra.mxu0 %v5716
    %5948 = vmatpush.msra.mxu0 %v5711
    %5949 = vmatpush.msra.mxu0 %v5706
    %5950 = vmatpush.msra.mxu0 %v5701
    %5951 = vmatpush.msra.mxu0 %v5696
    %5952 = vmatpush.msra.mxu0 %v5691
    %5953 = vmatpush.msra.mxu0 %v5686
    %5954 = vmatpush.msra.mxu0 %v5681
    %5955 = vmatpush.msra.mxu0 %v5676
    %5956 = vmatpush.msra.mxu0 %v5671
    %5957 = vmatpush.msra.mxu0 %v5666
    %5958 = vmatpush.msra.mxu0 %v5661
    %5959 = vmatpush.msra.mxu0 %v5656
    %5960 = vmatpush.msra.mxu0 %v5651
    %5961 = vmatmul.f32.gmra.mxu0 %v2070
    %v5962 = vpop.f32.mrf.mxu0
    %v5963 = vadd.f32 0.0, %v5962
    %5964 = vmatmul.f32.gmra.mxu0 %v2075
    %v5965 = vpop.f32.mrf.mxu0
    %v5966 = vadd.f32 0.0, %v5965
    %5967 = vmatmul.f32.gmra.mxu0 %v2082
    %v5968 = vpop.f32.mrf.mxu0
    %v5969 = vadd.f32 0.0, %v5968
    %5970 = vdwg.mxu0
    %5971 = vmatpush.msra.mxu0 0.0
    %5972 = vmatpush.msra.mxu0 0.0
    %5973 = vmatpush.msra.mxu0 0.0
    %5974 = vmatpush.msra.mxu0 0.0
    %5975 = vmatpush.msra.mxu0 0.0
    %5976 = vmatpush.msra.mxu0 0.0
    %5977 = vmatpush.msra.mxu0 0.0
    %5978 = vmatpush.msra.mxu0 0.0
    %5979 = vmatpush.msra.mxu0 0.0
    %5980 = vmatpush.msra.mxu0 0.0
    %5981 = vmatpush.msra.mxu0 0.0
    %5982 = vmatpush.msra.mxu0 0.0
    %5983 = vmatpush.msra.mxu0 0.0
    %5984 = vmatpush.msra.mxu0 0.0
    %5985 = vmatpush.msra.mxu0 %v5736
    %5986 = vmatpush.msra.mxu0 %v5731
    %5987 = vmatmul.f32.gmra.mxu0 %v4022
    %v5988 = vpop.f32.mrf.mxu0
    %v5989 = vadd.f32 %v5963, %v5988
    %5990 = vmatmul.f32.gmra.mxu0 %v4024
    %v5991 = vpop.f32.mrf.mxu0
    %v5992 = vadd.f32 %v5966, %v5991
    %5993 = vmatmul.f32.gmra.mxu0 %v4027
    %v5994 = vpop.f32.mrf.mxu0
    %v5995 = vadd.f32 %v5969, %v5994
    %5996 = vdwg.mxu0
    %v5997 = vadd.f32 %v5631, %v5781
    %v5998 = vadd.f32 %v5632, %v5833
    %v5999 = vadd.f32 %v5633, %v5885
    %v6000 = vadd.f32 %v5634, %v5937
    %v6001 = vadd.f32 %v5635, %v5989
    %v6002 = vadd.f32 %v5636, %v5784
    %v6003 = vadd.f32 %v5637, %v5836
    %v6004 = vadd.f32 %v5638, %v5888
    %v6005 = vadd.f32 %v5639, %v5940
    %v6006 = vadd.f32 %v5640, %v5992
    %v6007 = vadd.f32 %v5641, %v5787
    %v6008 = vadd.f32 %v5642, %v5839
    %v6009 = vadd.f32 %v5643, %v5891
    %v6010 = vadd.f32 %v5644, %v5943
    %v6011 = vadd.f32 %v5645, %v5995
    %s6012 = scalar_lea.vmem %s9, 600
    %6013 = vst [vmem:[%s6012] sm:$0xff] %v5997
    %6014 = vst [vmem:[%s6012 + $0x8] sm:$0xff] %v5998
    %6015 = vst [vmem:[%s6012 + $0x10] sm:$0xff] %v5999
    %6016 = vst [vmem:[%s6012 + $0x18] sm:$0xff] %v6000
    %6017 = vst.msk [vmem:[%s6012 + $0x20] sm:$0xff] %vm2472, %v6001
    %6018 = vst [vmem:[%s6012 + $0x28] sm:$0xff] %v6002
    %6019 = vst [vmem:[%s6012 + $0x30] sm:$0xff] %v6003
    %6020 = vst [vmem:[%s6012 + $0x38] sm:$0xff] %v6004
    %6021 = vst [vmem:[%s6012 + $0x40] sm:$0xff] %v6005
    %6022 = vst.msk [vmem:[%s6012 + $0x48] sm:$0xff] %vm2472, %v6006
    %6023 = vst [vmem:[%s6012 + $0x50] sm:$0xff] %v6007
    %6024 = vst [vmem:[%s6012 + $0x58] sm:$0xff] %v6008
    %6025 = vst [vmem:[%s6012 + $0x60] sm:$0xff] %v6009
    %6026 = vst [vmem:[%s6012 + $0x68] sm:$0xff] %v6010
    %6027 = vst.msk [vmem:[%s6012 + $0x70] sm:$0xff] %vm2472, %v6011
    %v6028 = vsub.f32 0.0, %v5997
    %v6029 = vsub.f32 0.0, %v5998
    %v6030 = vsub.f32 0.0, %v5999
    %v6031 = vsub.f32 0.0, %v6000
    %v6032 = vsub.f32 0.0, %v6001
    %v6033 = vsub.f32 0.0, %v6002
    %v6034 = vsub.f32 0.0, %v6003
    %v6035 = vsub.f32 0.0, %v6004
    %v6036 = vsub.f32 0.0, %v6005
    %v6037 = vsub.f32 0.0, %v6006
    %v6038 = vsub.f32 0.0, %v6007
    %v6039 = vsub.f32 0.0, %v6008
    %v6040 = vsub.f32 0.0, %v6009
    %v6041 = vsub.f32 0.0, %v6010
    %v6042 = vsub.f32 0.0, %v6011
    %v6043 = vmul.f32 %v6028, 1.442695
    %v6044 = vpow.pop %v6043
    %v6045 = vmul.f32 %v6029, 1.442695
    %v6046 = vpow.pop %v6045
    %v6047 = vmul.f32 %v6030, 1.442695
    %v6048 = vpow.pop %v6047
    %v6049 = vmul.f32 %v6031, 1.442695
    %v6050 = vpow.pop %v6049
    %v6051 = vmul.f32 %v6032, 1.442695
    %v6052 = vpow.pop %v6051
    %v6053 = vmul.f32 %v6033, 1.442695
    %v6054 = vpow.pop %v6053
    %v6055 = vmul.f32 %v6034, 1.442695
    %v6056 = vpow.pop %v6055
    %v6057 = vmul.f32 %v6035, 1.442695
    %v6058 = vpow.pop %v6057
    %v6059 = vmul.f32 %v6036, 1.442695
    %v6060 = vpow.pop %v6059
    %v6061 = vmul.f32 %v6037, 1.442695
    %v6062 = vpow.pop %v6061
    %v6063 = vmul.f32 %v6038, 1.442695
    %v6064 = vpow.pop %v6063
    %v6065 = vmul.f32 %v6039, 1.442695
    %v6066 = vpow.pop %v6065
    %v6067 = vmul.f32 %v6040, 1.442695
    %v6068 = vpow.pop %v6067
    %v6069 = vmul.f32 %v6041, 1.442695
    %v6070 = vpow.pop %v6069
    %v6071 = vmul.f32 %v6042, 1.442695
    %v6072 = vpow.pop %v6071
    %v6073 = vadd.f32 %v6044, 1.0
    %v6074 = vadd.f32 %v6046, 1.0
    %v6075 = vadd.f32 %v6048, 1.0
    %v6076 = vadd.f32 %v6050, 1.0
    %v6077 = vadd.f32 %v6052, 1.0
    %v6078 = vadd.f32 %v6054, 1.0
    %v6079 = vadd.f32 %v6056, 1.0
    %v6080 = vadd.f32 %v6058, 1.0
    %v6081 = vadd.f32 %v6060, 1.0
    %v6082 = vadd.f32 %v6062, 1.0
    %v6083 = vadd.f32 %v6064, 1.0
    %v6084 = vadd.f32 %v6066, 1.0
    %v6085 = vadd.f32 %v6068, 1.0
    %v6086 = vadd.f32 %v6070, 1.0
    %v6087 = vadd.f32 %v6072, 1.0
    %v6088 = vrcp.pop %v6073
    %v6089 = vrcp.pop %v6074
    %v6090 = vrcp.pop %v6075
    %v6091 = vrcp.pop %v6076
    %v6092 = vrcp.pop %v6077
    %v6093 = vrcp.pop %v6078
    %v6094 = vrcp.pop %v6079
    %v6095 = vrcp.pop %v6080
    %v6096 = vrcp.pop %v6081
    %v6097 = vrcp.pop %v6082
    %v6098 = vrcp.pop %v6083
    %v6099 = vrcp.pop %v6084
    %v6100 = vrcp.pop %v6085
    %v6101 = vrcp.pop %v6086
    %v6102 = vrcp.pop %v6087
    %v6103 = vmul.f32 %v5997, %v6088
    %v6104 = vmul.f32 %v5998, %v6089
    %v6105 = vmul.f32 %v5999, %v6090
    %v6106 = vmul.f32 %v6000, %v6091
    %v6107 = vmul.f32 %v6001, %v6092
    %v6108 = vmul.f32 %v6002, %v6093
    %v6109 = vmul.f32 %v6003, %v6094
    %v6110 = vmul.f32 %v6004, %v6095
    %v6111 = vmul.f32 %v6005, %v6096
    %v6112 = vmul.f32 %v6006, %v6097
    %v6113 = vmul.f32 %v6007, %v6098
    %v6114 = vmul.f32 %v6008, %v6099
    %v6115 = vmul.f32 %v6009, %v6100
    %v6116 = vmul.f32 %v6010, %v6101
    %v6117 = vmul.f32 %v6011, %v6102
    %s6118 = scalar_lea.vmem %s10, 600
    %6119 = vst [vmem:[%s6118] sm:$0xff] %v6103
    %6120 = vst [vmem:[%s6118 + $0x8] sm:$0xff] %v6104
    %6121 = vst [vmem:[%s6118 + $0x10] sm:$0xff] %v6105
    %6122 = vst [vmem:[%s6118 + $0x18] sm:$0xff] %v6106
    %6123 = vst.msk [vmem:[%s6118 + $0x20] sm:$0xff] %vm2472, %v6107
    %6124 = vst [vmem:[%s6118 + $0x28] sm:$0xff] %v6108
    %6125 = vst [vmem:[%s6118 + $0x30] sm:$0xff] %v6109
    %6126 = vst [vmem:[%s6118 + $0x38] sm:$0xff] %v6110
    %6127 = vst [vmem:[%s6118 + $0x40] sm:$0xff] %v6111
    %6128 = vst.msk [vmem:[%s6118 + $0x48] sm:$0xff] %vm2472, %v6112
    %6129 = vst [vmem:[%s6118 + $0x50] sm:$0xff] %v6113
    %6130 = vst [vmem:[%s6118 + $0x58] sm:$0xff] %v6114
    %6131 = vst [vmem:[%s6118 + $0x60] sm:$0xff] %v6115
    %6132 = vst [vmem:[%s6118 + $0x68] sm:$0xff] %v6116
    %6133 = vst.msk [vmem:[%s6118 + $0x70] sm:$0xff] %vm2472, %v6117
    %v6134 = vld [vmem:[#allocation2] sm:$0xff]
    %v6135 = vld [vmem:[#allocation2 + $0x8] sm:$0xff]
    %v6136 = vld [vmem:[#allocation2 + $0x10] sm:$0xff]
    %v6137 = vld [vmem:[#allocation2 + $0x18] sm:$0xff]
    %v6138 = vld [vmem:[#allocation2 + $0x20] sm:$0xff]
    %v6139 = vld [vmem:[#allocation2 + $0x28] sm:$0xff]
    %v6140 = vld [vmem:[#allocation2 + $0x30] sm:$0xff]
    %v6141 = vld [vmem:[#allocation2 + $0x38] sm:$0xff]
    %v6142 = vld [vmem:[#allocation2 + $0x40] sm:$0xff]
    %v6143 = vld [vmem:[#allocation2 + $0x48] sm:$0xff]
    %v6144 = vld [vmem:[#allocation2 + $0x50] sm:$0xff]
    %v6145 = vld [vmem:[#allocation2 + $0x58] sm:$0xff]
    %v6146 = vld [vmem:[#allocation2 + $0x60] sm:$0xff]
    %v6147 = vld [vmem:[#allocation2 + $0x68] sm:$0xff]
    %v6148 = vld [vmem:[#allocation2 + $0x70] sm:$0xff]
    %v6149 = vld [vmem:[#allocation2 + $0x78] sm:$0xff]
    %v6150 = vld [vmem:[#allocation2 + $0x80] sm:$0xff]
    %v6151 = vld [vmem:[#allocation2 + $0x88] sm:$0xff]
    %v6152 = vld [vmem:[#allocation2 + $0x90] sm:$0xff]
    %v6153 = vld [vmem:[#allocation2 + $0x98] sm:$0xff]
    %v6154 = vld [vmem:[#allocation2 + $0xa0] sm:$0xff]
    %v6155 = vld [vmem:[#allocation2 + $0xa8] sm:$0xff]
    %v6156 = vld [vmem:[#allocation2 + $0xb0] sm:$0xff]
    %v6157 = vld [vmem:[#allocation2 + $0xb8] sm:$0xff]
    %v6158 = vld [vmem:[#allocation2 + $0xc0] sm:$0xff]
    %v6159 = vld [vmem:[#allocation2 + $0xc8] sm:$0xff]
    %v6160 = vld [vmem:[#allocation2 + $0xd0] sm:$0xff]
    %v6161 = vld [vmem:[#allocation2 + $0xd8] sm:$0xff]
    %v6162 = vld [vmem:[#allocation2 + $0xe0] sm:$0xff]
    %v6163 = vld [vmem:[#allocation2 + $0xe8] sm:$0xff]
    %v6164 = vld [vmem:[#allocation2 + $0xf0] sm:$0xff]
    %v6165 = vld [vmem:[#allocation2 + $0xf8] sm:$0xff]
    %v6166 = vld [vmem:[#allocation2 + $0x100] sm:$0xff]
    %v6167 = vld [vmem:[#allocation2 + $0x108] sm:$0xff]
    %v6168 = vld [vmem:[#allocation2 + $0x110] sm:$0xff]
    %v6169 = vld [vmem:[#allocation2 + $0x118] sm:$0xff]
    %v6170 = vld [vmem:[#allocation2 + $0x120] sm:$0xff]
    %v6171 = vld [vmem:[#allocation2 + $0x128] sm:$0xff]
    %v6172 = vld [vmem:[#allocation2 + $0x130] sm:$0xff]
    %v6173 = vld [vmem:[#allocation2 + $0x138] sm:$0xff]
    %v6174 = vld [vmem:[#allocation2 + $0x140] sm:$0xff]
    %v6175 = vld [vmem:[#allocation2 + $0x148] sm:$0xff]
    %v6176 = vld [vmem:[#allocation2 + $0x150] sm:$0xff]
    %v6177 = vld [vmem:[#allocation2 + $0x158] sm:$0xff]
    %v6178 = vld [vmem:[#allocation2 + $0x160] sm:$0xff]
    %v6179 = vld [vmem:[#allocation2 + $0x168] sm:$0xff]
    %v6180 = vld [vmem:[#allocation2 + $0x170] sm:$0xff]
    %v6181 = vld [vmem:[#allocation2 + $0x178] sm:$0xff]
    %v6182 = vld [vmem:[#allocation2 + $0x180] sm:$0xff]
    %v6183 = vld [vmem:[#allocation2 + $0x188] sm:$0xff]
    %v6184 = vld [vmem:[#allocation2 + $0x190] sm:$0xff]
    %v6185 = vld [vmem:[#allocation2 + $0x198] sm:$0xff]
    %v6186 = vld [vmem:[#allocation2 + $0x1a0] sm:$0xff]
    %v6187 = vld [vmem:[#allocation2 + $0x1a8] sm:$0xff]
    %v6188 = vld [vmem:[#allocation2 + $0x1b0] sm:$0xff]
    %v6189 = vld [vmem:[#allocation2 + $0x1b8] sm:$0xff]
    %v6190 = vld [vmem:[#allocation2 + $0x1c0] sm:$0xff]
    %v6191 = vld [vmem:[#allocation2 + $0x1c8] sm:$0xff]
    %v6192 = vld [vmem:[#allocation2 + $0x1d0] sm:$0xff]
    %v6193 = vld [vmem:[#allocation2 + $0x1d8] sm:$0xff]
    %v6194 = vld [vmem:[#allocation2 + $0x1e0] sm:$0xff]
    %v6195 = vld [vmem:[#allocation2 + $0x1e8] sm:$0xff]
    %v6196 = vld [vmem:[#allocation2 + $0x1f0] sm:$0xff]
    %v6197 = vld [vmem:[#allocation2 + $0x1f8] sm:$0xff]
    %v6198 = vld [vmem:[#allocation2 + $0x200] sm:$0xff]
    %v6199 = vld [vmem:[#allocation2 + $0x208] sm:$0xff]
    %v6200 = vld [vmem:[#allocation2 + $0x210] sm:$0xff]
    %v6201 = vld [vmem:[#allocation2 + $0x218] sm:$0xff]
    %v6202 = vld [vmem:[#allocation2 + $0x220] sm:$0xff]
    %v6203 = vld [vmem:[#allocation2 + $0x228] sm:$0xff]
    %v6204 = vld [vmem:[#allocation2 + $0x230] sm:$0xff]
    %v6205 = vld [vmem:[#allocation2 + $0x238] sm:$0xff]
    %v6206 = vld [vmem:[#allocation2 + $0x240] sm:$0xff]
    %v6207 = vld [vmem:[#allocation2 + $0x248] sm:$0xff]
    %v6208 = vld [vmem:[#allocation2 + $0x250] sm:$0xff]
    %v6209 = vld [vmem:[#allocation2 + $0x258] sm:$0xff]
    %v6210 = vld [vmem:[#allocation2 + $0x260] sm:$0xff]
    %v6211 = vld [vmem:[#allocation2 + $0x268] sm:$0xff]
    %v6212 = vld [vmem:[#allocation2 + $0x270] sm:$0xff]
    %v6213 = vld [vmem:[#allocation2 + $0x278] sm:$0xff]
    %v6214 = vld [vmem:[#allocation2 + $0x280] sm:$0xff]
    %v6215 = vld [vmem:[#allocation2 + $0x288] sm:$0xff]
    %v6216 = vld [vmem:[#allocation2 + $0x290] sm:$0xff]
    %v6217 = vld [vmem:[#allocation2 + $0x298] sm:$0xff]
    %v6218 = vld [vmem:[#allocation2 + $0x2a0] sm:$0xff]
    %v6219 = vld [vmem:[#allocation2 + $0x2a8] sm:$0xff]
    %v6220 = vld [vmem:[#allocation2 + $0x2b0] sm:$0xff]
    %v6221 = vld [vmem:[#allocation2 + $0x2b8] sm:$0xff]
    %v6222 = vld [vmem:[#allocation2 + $0x2c0] sm:$0xff]
    %v6223 = vld [vmem:[#allocation2 + $0x2c8] sm:$0xff]
    %6224 = vmatpush.msra.mxu0 %v6209
    %6225 = vmatpush.msra.mxu0 %v6204
    %6226 = vmatpush.msra.mxu0 %v6199
    %6227 = vmatpush.msra.mxu0 %v6194
    %6228 = vmatpush.msra.mxu0 %v6189
    %6229 = vmatpush.msra.mxu0 %v6184
    %6230 = vmatpush.msra.mxu0 %v6179
    %6231 = vmatpush.msra.mxu0 %v6174
    %6232 = vmatpush.msra.mxu0 %v6169
    %6233 = vmatpush.msra.mxu0 %v6164
    %6234 = vmatpush.msra.mxu0 %v6159
    %6235 = vmatpush.msra.mxu0 %v6154
    %6236 = vmatpush.msra.mxu0 %v6149
    %6237 = vmatpush.msra.mxu0 %v6144
    %6238 = vmatpush.msra.mxu0 %v6139
    %6239 = vmatpush.msra.mxu0 %v6134
    %6240 = vmatmul.f32.gmra.mxu0 %v2049
    %v6241 = vpop.f32.mrf.mxu0
    %v6242 = vadd.f32 0.0, %v6241
    %6243 = vmatmul.f32.gmra.mxu0 %v2051
    %v6244 = vpop.f32.mrf.mxu0
    %v6245 = vadd.f32 0.0, %v6244
    %6246 = vmatmul.f32.gmra.mxu0 %v2053
    %v6247 = vpop.f32.mrf.mxu0
    %v6248 = vadd.f32 0.0, %v6247
    %6249 = vdwg.mxu0
    %6250 = vmatpush.msra.mxu0 0.0
    %6251 = vmatpush.msra.mxu0 0.0
    %6252 = vmatpush.msra.mxu0 0.0
    %6253 = vmatpush.msra.mxu0 0.0
    %6254 = vmatpush.msra.mxu0 0.0
    %6255 = vmatpush.msra.mxu0 0.0
    %6256 = vmatpush.msra.mxu0 0.0
    %6257 = vmatpush.msra.mxu0 0.0
    %6258 = vmatpush.msra.mxu0 0.0
    %6259 = vmatpush.msra.mxu0 0.0
    %6260 = vmatpush.msra.mxu0 0.0
    %6261 = vmatpush.msra.mxu0 0.0
    %6262 = vmatpush.msra.mxu0 0.0
    %6263 = vmatpush.msra.mxu0 0.0
    %6264 = vmatpush.msra.mxu0 %v6219
    %6265 = vmatpush.msra.mxu0 %v6214
    %6266 = vmatmul.f32.gmra.mxu0 %v2187
    %v6267 = vpop.f32.mrf.mxu0
    %v6268 = vadd.f32 %v6242, %v6267
    %6269 = vmatmul.f32.gmra.mxu0 %v2189
    %v6270 = vpop.f32.mrf.mxu0
    %v6271 = vadd.f32 %v6245, %v6270
    %6272 = vmatmul.f32.gmra.mxu0 %v2191
    %v6273 = vpop.f32.mrf.mxu0
    %v6274 = vadd.f32 %v6248, %v6273
    %6275 = vdwg.mxu0
    %6276 = vmatpush.msra.mxu0 %v6210
    %6277 = vmatpush.msra.mxu0 %v6205
    %6278 = vmatpush.msra.mxu0 %v6200
    %6279 = vmatpush.msra.mxu0 %v6195
    %6280 = vmatpush.msra.mxu0 %v6190
    %6281 = vmatpush.msra.mxu0 %v6185
    %6282 = vmatpush.msra.mxu0 %v6180
    %6283 = vmatpush.msra.mxu0 %v6175
    %6284 = vmatpush.msra.mxu0 %v6170
    %6285 = vmatpush.msra.mxu0 %v6165
    %6286 = vmatpush.msra.mxu0 %v6160
    %6287 = vmatpush.msra.mxu0 %v6155
    %6288 = vmatpush.msra.mxu0 %v6150
    %6289 = vmatpush.msra.mxu0 %v6145
    %6290 = vmatpush.msra.mxu0 %v6140
    %6291 = vmatpush.msra.mxu0 %v6135
    %6292 = vmatmul.f32.gmra.mxu0 %v2049
    %v6293 = vpop.f32.mrf.mxu0
    %v6294 = vadd.f32 0.0, %v6293
    %6295 = vmatmul.f32.gmra.mxu0 %v2051
    %v6296 = vpop.f32.mrf.mxu0
    %v6297 = vadd.f32 0.0, %v6296
    %6298 = vmatmul.f32.gmra.mxu0 %v2053
    %v6299 = vpop.f32.mrf.mxu0
    %v6300 = vadd.f32 0.0, %v6299
    %6301 = vdwg.mxu0
    %6302 = vmatpush.msra.mxu0 0.0
    %6303 = vmatpush.msra.mxu0 0.0
    %6304 = vmatpush.msra.mxu0 0.0
    %6305 = vmatpush.msra.mxu0 0.0
    %6306 = vmatpush.msra.mxu0 0.0
    %6307 = vmatpush.msra.mxu0 0.0
    %6308 = vmatpush.msra.mxu0 0.0
    %6309 = vmatpush.msra.mxu0 0.0
    %6310 = vmatpush.msra.mxu0 0.0
    %6311 = vmatpush.msra.mxu0 0.0
    %6312 = vmatpush.msra.mxu0 0.0
    %6313 = vmatpush.msra.mxu0 0.0
    %6314 = vmatpush.msra.mxu0 0.0
    %6315 = vmatpush.msra.mxu0 0.0
    %6316 = vmatpush.msra.mxu0 %v6220
    %6317 = vmatpush.msra.mxu0 %v6215
    %6318 = vmatmul.f32.gmra.mxu0 %v2187
    %v6319 = vpop.f32.mrf.mxu0
    %v6320 = vadd.f32 %v6294, %v6319
    %6321 = vmatmul.f32.gmra.mxu0 %v2189
    %v6322 = vpop.f32.mrf.mxu0
    %v6323 = vadd.f32 %v6297, %v6322
    %6324 = vmatmul.f32.gmra.mxu0 %v2191
    %v6325 = vpop.f32.mrf.mxu0
    %v6326 = vadd.f32 %v6300, %v6325
    %6327 = vdwg.mxu0
    %6328 = vmatpush.msra.mxu0 %v6211
    %6329 = vmatpush.msra.mxu0 %v6206
    %6330 = vmatpush.msra.mxu0 %v6201
    %6331 = vmatpush.msra.mxu0 %v6196
    %6332 = vmatpush.msra.mxu0 %v6191
    %6333 = vmatpush.msra.mxu0 %v6186
    %6334 = vmatpush.msra.mxu0 %v6181
    %6335 = vmatpush.msra.mxu0 %v6176
    %6336 = vmatpush.msra.mxu0 %v6171
    %6337 = vmatpush.msra.mxu0 %v6166
    %6338 = vmatpush.msra.mxu0 %v6161
    %6339 = vmatpush.msra.mxu0 %v6156
    %6340 = vmatpush.msra.mxu0 %v6151
    %6341 = vmatpush.msra.mxu0 %v6146
    %6342 = vmatpush.msra.mxu0 %v6141
    %6343 = vmatpush.msra.mxu0 %v6136
    %6344 = vmatmul.f32.gmra.mxu0 %v2049
    %v6345 = vpop.f32.mrf.mxu0
    %v6346 = vadd.f32 0.0, %v6345
    %6347 = vmatmul.f32.gmra.mxu0 %v2051
    %v6348 = vpop.f32.mrf.mxu0
    %v6349 = vadd.f32 0.0, %v6348
    %6350 = vmatmul.f32.gmra.mxu0 %v2053
    %v6351 = vpop.f32.mrf.mxu0
    %v6352 = vadd.f32 0.0, %v6351
    %6353 = vdwg.mxu0
    %6354 = vmatpush.msra.mxu0 0.0
    %6355 = vmatpush.msra.mxu0 0.0
    %6356 = vmatpush.msra.mxu0 0.0
    %6357 = vmatpush.msra.mxu0 0.0
    %6358 = vmatpush.msra.mxu0 0.0
    %6359 = vmatpush.msra.mxu0 0.0
    %6360 = vmatpush.msra.mxu0 0.0
    %6361 = vmatpush.msra.mxu0 0.0
    %6362 = vmatpush.msra.mxu0 0.0
    %6363 = vmatpush.msra.mxu0 0.0
    %6364 = vmatpush.msra.mxu0 0.0
    %6365 = vmatpush.msra.mxu0 0.0
    %6366 = vmatpush.msra.mxu0 0.0
    %6367 = vmatpush.msra.mxu0 0.0
    %6368 = vmatpush.msra.mxu0 %v6221
    %6369 = vmatpush.msra.mxu0 %v6216
    %6370 = vmatmul.f32.gmra.mxu0 %v2187
    %v6371 = vpop.f32.mrf.mxu0
    %v6372 = vadd.f32 %v6346, %v6371
    %6373 = vmatmul.f32.gmra.mxu0 %v2189
    %v6374 = vpop.f32.mrf.mxu0
    %v6375 = vadd.f32 %v6349, %v6374
    %6376 = vmatmul.f32.gmra.mxu0 %v2191
    %v6377 = vpop.f32.mrf.mxu0
    %v6378 = vadd.f32 %v6352, %v6377
    %6379 = vdwg.mxu0
    %6380 = vmatpush.msra.mxu0 %v6212
    %6381 = vmatpush.msra.mxu0 %v6207
    %6382 = vmatpush.msra.mxu0 %v6202
    %6383 = vmatpush.msra.mxu0 %v6197
    %6384 = vmatpush.msra.mxu0 %v6192
    %6385 = vmatpush.msra.mxu0 %v6187
    %6386 = vmatpush.msra.mxu0 %v6182
    %6387 = vmatpush.msra.mxu0 %v6177
    %6388 = vmatpush.msra.mxu0 %v6172
    %6389 = vmatpush.msra.mxu0 %v6167
    %6390 = vmatpush.msra.mxu0 %v6162
    %6391 = vmatpush.msra.mxu0 %v6157
    %6392 = vmatpush.msra.mxu0 %v6152
    %6393 = vmatpush.msra.mxu0 %v6147
    %6394 = vmatpush.msra.mxu0 %v6142
    %6395 = vmatpush.msra.mxu0 %v6137
    %6396 = vmatmul.f32.gmra.mxu0 %v2049
    %v6397 = vpop.f32.mrf.mxu0
    %v6398 = vadd.f32 0.0, %v6397
    %6399 = vmatmul.f32.gmra.mxu0 %v2051
    %v6400 = vpop.f32.mrf.mxu0
    %v6401 = vadd.f32 0.0, %v6400
    %6402 = vmatmul.f32.gmra.mxu0 %v2053
    %v6403 = vpop.f32.mrf.mxu0
    %v6404 = vadd.f32 0.0, %v6403
    %6405 = vdwg.mxu0
    %6406 = vmatpush.msra.mxu0 0.0
    %6407 = vmatpush.msra.mxu0 0.0
    %6408 = vmatpush.msra.mxu0 0.0
    %6409 = vmatpush.msra.mxu0 0.0
    %6410 = vmatpush.msra.mxu0 0.0
    %6411 = vmatpush.msra.mxu0 0.0
    %6412 = vmatpush.msra.mxu0 0.0
    %6413 = vmatpush.msra.mxu0 0.0
    %6414 = vmatpush.msra.mxu0 0.0
    %6415 = vmatpush.msra.mxu0 0.0
    %6416 = vmatpush.msra.mxu0 0.0
    %6417 = vmatpush.msra.mxu0 0.0
    %6418 = vmatpush.msra.mxu0 0.0
    %6419 = vmatpush.msra.mxu0 0.0
    %6420 = vmatpush.msra.mxu0 %v6222
    %6421 = vmatpush.msra.mxu0 %v6217
    %6422 = vmatmul.f32.gmra.mxu0 %v2187
    %v6423 = vpop.f32.mrf.mxu0
    %v6424 = vadd.f32 %v6398, %v6423
    %6425 = vmatmul.f32.gmra.mxu0 %v2189
    %v6426 = vpop.f32.mrf.mxu0
    %v6427 = vadd.f32 %v6401, %v6426
    %6428 = vmatmul.f32.gmra.mxu0 %v2191
    %v6429 = vpop.f32.mrf.mxu0
    %v6430 = vadd.f32 %v6404, %v6429
    %6431 = vdwg.mxu0
    %6432 = vmatpush.msra.mxu0 %v6213
    %6433 = vmatpush.msra.mxu0 %v6208
    %6434 = vmatpush.msra.mxu0 %v6203
    %6435 = vmatpush.msra.mxu0 %v6198
    %6436 = vmatpush.msra.mxu0 %v6193
    %6437 = vmatpush.msra.mxu0 %v6188
    %6438 = vmatpush.msra.mxu0 %v6183
    %6439 = vmatpush.msra.mxu0 %v6178
    %6440 = vmatpush.msra.mxu0 %v6173
    %6441 = vmatpush.msra.mxu0 %v6168
    %6442 = vmatpush.msra.mxu0 %v6163
    %6443 = vmatpush.msra.mxu0 %v6158
    %6444 = vmatpush.msra.mxu0 %v6153
    %6445 = vmatpush.msra.mxu0 %v6148
    %6446 = vmatpush.msra.mxu0 %v6143
    %6447 = vmatpush.msra.mxu0 %v6138
    %6448 = vmatmul.f32.gmra.mxu0 %v2049
    %v6449 = vpop.f32.mrf.mxu0
    %v6450 = vadd.f32 0.0, %v6449
    %6451 = vmatmul.f32.gmra.mxu0 %v2051
    %v6452 = vpop.f32.mrf.mxu0
    %v6453 = vadd.f32 0.0, %v6452
    %6454 = vmatmul.f32.gmra.mxu0 %v2053
    %v6455 = vpop.f32.mrf.mxu0
    %v6456 = vadd.f32 0.0, %v6455
    %6457 = vdwg.mxu0
    %6458 = vmatpush.msra.mxu0 0.0
    %6459 = vmatpush.msra.mxu0 0.0
    %6460 = vmatpush.msra.mxu0 0.0
    %6461 = vmatpush.msra.mxu0 0.0
    %6462 = vmatpush.msra.mxu0 0.0
    %6463 = vmatpush.msra.mxu0 0.0
    %6464 = vmatpush.msra.mxu0 0.0
    %6465 = vmatpush.msra.mxu0 0.0
    %6466 = vmatpush.msra.mxu0 0.0
    %6467 = vmatpush.msra.mxu0 0.0
    %6468 = vmatpush.msra.mxu0 0.0
    %6469 = vmatpush.msra.mxu0 0.0
    %6470 = vmatpush.msra.mxu0 0.0
    %6471 = vmatpush.msra.mxu0 0.0
    %6472 = vmatpush.msra.mxu0 %v6223
    %6473 = vmatpush.msra.mxu0 %v6218
    %6474 = vmatmul.f32.gmra.mxu0 %v2187
    %v6475 = vpop.f32.mrf.mxu0
    %v6476 = vadd.f32 %v6450, %v6475
    %6477 = vmatmul.f32.gmra.mxu0 %v2189
    %v6478 = vpop.f32.mrf.mxu0
    %v6479 = vadd.f32 %v6453, %v6478
    %6480 = vmatmul.f32.gmra.mxu0 %v2191
    %v6481 = vpop.f32.mrf.mxu0
    %v6482 = vadd.f32 %v6456, %v6481
    %6483 = vdwg.mxu0
    %v6484 = vadd.f32 %v2086, %v6268
    %v6485 = vadd.f32 %v2087, %v6320
    %v6486 = vadd.f32 %v2088, %v6372
    %v6487 = vadd.f32 %v2089, %v6424
    %v6488 = vadd.f32 %v2090, %v6476
    %v6489 = vadd.f32 %v2086, %v6271
    %v6490 = vadd.f32 %v2087, %v6323
    %v6491 = vadd.f32 %v2088, %v6375
    %v6492 = vadd.f32 %v2089, %v6427
    %v6493 = vadd.f32 %v2090, %v6479
    %v6494 = vadd.f32 %v2086, %v6274
    %v6495 = vadd.f32 %v2087, %v6326
    %v6496 = vadd.f32 %v2088, %v6378
    %v6497 = vadd.f32 %v2089, %v6430
    %v6498 = vadd.f32 %v2090, %v6482
    %s6499 = scalar_lea.vmem [#allocation2], 2160
    %v6500 = vld [vmem:[%s6499] sm:$0xff]
    %v6501 = vld [vmem:[%s6499 + $0x8] sm:$0xff]
    %v6502 = vld [vmem:[%s6499 + $0x10] sm:$0xff]
    %v6503 = vld [vmem:[%s6499 + $0x18] sm:$0xff]
    %v6504 = vld [vmem:[%s6499 + $0x20] sm:$0xff]
    %v6505 = vld [vmem:[%s6499 + $0x28] sm:$0xff]
    %v6506 = vld [vmem:[%s6499 + $0x30] sm:$0xff]
    %v6507 = vld [vmem:[%s6499 + $0x38] sm:$0xff]
    %v6508 = vld [vmem:[%s6499 + $0x40] sm:$0xff]
    %v6509 = vld [vmem:[%s6499 + $0x48] sm:$0xff]
    %v6510 = vld [vmem:[%s6499 + $0x50] sm:$0xff]
    %v6511 = vld [vmem:[%s6499 + $0x58] sm:$0xff]
    %v6512 = vld [vmem:[%s6499 + $0x60] sm:$0xff]
    %v6513 = vld [vmem:[%s6499 + $0x68] sm:$0xff]
    %v6514 = vld [vmem:[%s6499 + $0x70] sm:$0xff]
    %v6515 = vld [vmem:[%s6499 + $0x78] sm:$0xff]
    %v6516 = vld [vmem:[%s6499 + $0x80] sm:$0xff]
    %v6517 = vld [vmem:[%s6499 + $0x88] sm:$0xff]
    %v6518 = vld [vmem:[%s6499 + $0x90] sm:$0xff]
    %v6519 = vld [vmem:[%s6499 + $0x98] sm:$0xff]
    %v6520 = vld [vmem:[%s6499 + $0xa0] sm:$0xff]
    %v6521 = vld [vmem:[%s6499 + $0xa8] sm:$0xff]
    %v6522 = vld [vmem:[%s6499 + $0xb0] sm:$0xff]
    %v6523 = vld [vmem:[%s6499 + $0xb8] sm:$0xff]
    %v6524 = vld [vmem:[%s6499 + $0xc0] sm:$0xff]
    %v6525 = vld [vmem:[%s6499 + $0xc8] sm:$0xff]
    %v6526 = vld [vmem:[%s6499 + $0xd0] sm:$0xff]
    %v6527 = vld [vmem:[%s6499 + $0xd8] sm:$0xff]
    %v6528 = vld [vmem:[%s6499 + $0xe0] sm:$0xff]
    %v6529 = vld [vmem:[%s6499 + $0xe8] sm:$0xff]
    %v6530 = vld [vmem:[%s6499 + $0xf0] sm:$0xff]
    %v6531 = vld [vmem:[%s6499 + $0xf8] sm:$0xff]
    %v6532 = vld [vmem:[%s6499 + $0x100] sm:$0xff]
    %v6533 = vld [vmem:[%s6499 + $0x108] sm:$0xff]
    %v6534 = vld [vmem:[%s6499 + $0x110] sm:$0xff]
    %v6535 = vld [vmem:[%s6499 + $0x118] sm:$0xff]
    %v6536 = vld [vmem:[%s6499 + $0x120] sm:$0xff]
    %v6537 = vld [vmem:[%s6499 + $0x128] sm:$0xff]
    %v6538 = vld [vmem:[%s6499 + $0x130] sm:$0xff]
    %v6539 = vld [vmem:[%s6499 + $0x138] sm:$0xff]
    %v6540 = vld [vmem:[%s6499 + $0x140] sm:$0xff]
    %v6541 = vld [vmem:[%s6499 + $0x148] sm:$0xff]
    %v6542 = vld [vmem:[%s6499 + $0x150] sm:$0xff]
    %v6543 = vld [vmem:[%s6499 + $0x158] sm:$0xff]
    %v6544 = vld [vmem:[%s6499 + $0x160] sm:$0xff]
    %v6545 = vld [vmem:[%s6499 + $0x168] sm:$0xff]
    %v6546 = vld [vmem:[%s6499 + $0x170] sm:$0xff]
    %v6547 = vld [vmem:[%s6499 + $0x178] sm:$0xff]
    %v6548 = vld [vmem:[%s6499 + $0x180] sm:$0xff]
    %v6549 = vld [vmem:[%s6499 + $0x188] sm:$0xff]
    %v6550 = vld [vmem:[%s6499 + $0x190] sm:$0xff]
    %v6551 = vld [vmem:[%s6499 + $0x198] sm:$0xff]
    %v6552 = vld [vmem:[%s6499 + $0x1a0] sm:$0xff]
    %v6553 = vld [vmem:[%s6499 + $0x1a8] sm:$0xff]
    %v6554 = vld [vmem:[%s6499 + $0x1b0] sm:$0xff]
    %v6555 = vld [vmem:[%s6499 + $0x1b8] sm:$0xff]
    %v6556 = vld [vmem:[%s6499 + $0x1c0] sm:$0xff]
    %v6557 = vld [vmem:[%s6499 + $0x1c8] sm:$0xff]
    %v6558 = vld [vmem:[%s6499 + $0x1d0] sm:$0xff]
    %v6559 = vld [vmem:[%s6499 + $0x1d8] sm:$0xff]
    %v6560 = vld [vmem:[%s6499 + $0x1e0] sm:$0xff]
    %v6561 = vld [vmem:[%s6499 + $0x1e8] sm:$0xff]
    %v6562 = vld [vmem:[%s6499 + $0x1f0] sm:$0xff]
    %v6563 = vld [vmem:[%s6499 + $0x1f8] sm:$0xff]
    %v6564 = vld [vmem:[%s6499 + $0x200] sm:$0xff]
    %v6565 = vld [vmem:[%s6499 + $0x208] sm:$0xff]
    %v6566 = vld [vmem:[%s6499 + $0x210] sm:$0xff]
    %v6567 = vld [vmem:[%s6499 + $0x218] sm:$0xff]
    %v6568 = vld [vmem:[%s6499 + $0x220] sm:$0xff]
    %v6569 = vld [vmem:[%s6499 + $0x228] sm:$0xff]
    %v6570 = vld [vmem:[%s6499 + $0x230] sm:$0xff]
    %v6571 = vld [vmem:[%s6499 + $0x238] sm:$0xff]
    %v6572 = vld [vmem:[%s6499 + $0x240] sm:$0xff]
    %v6573 = vld [vmem:[%s6499 + $0x248] sm:$0xff]
    %v6574 = vld [vmem:[%s6499 + $0x250] sm:$0xff]
    %v6575 = vld [vmem:[%s6499 + $0x258] sm:$0xff]
    %v6576 = vld [vmem:[%s6499 + $0x260] sm:$0xff]
    %v6577 = vld [vmem:[%s6499 + $0x268] sm:$0xff]
    %v6578 = vld [vmem:[%s6499 + $0x270] sm:$0xff]
    %v6579 = vld [vmem:[%s6499 + $0x278] sm:$0xff]
    %v6580 = vld [vmem:[%s6499 + $0x280] sm:$0xff]
    %v6581 = vld [vmem:[%s6499 + $0x288] sm:$0xff]
    %v6582 = vld [vmem:[%s6499 + $0x290] sm:$0xff]
    %v6583 = vld [vmem:[%s6499 + $0x298] sm:$0xff]
    %v6584 = vld [vmem:[%s6499 + $0x2a0] sm:$0xff]
    %v6585 = vld [vmem:[%s6499 + $0x2a8] sm:$0xff]
    %v6586 = vld [vmem:[%s6499 + $0x2b0] sm:$0xff]
    %v6587 = vld [vmem:[%s6499 + $0x2b8] sm:$0xff]
    %v6588 = vld [vmem:[%s6499 + $0x2c0] sm:$0xff]
    %v6589 = vld [vmem:[%s6499 + $0x2c8] sm:$0xff]
    %6590 = vmatpush.msra.mxu0 %v6575
    %6591 = vmatpush.msra.mxu0 %v6570
    %6592 = vmatpush.msra.mxu0 %v6565
    %6593 = vmatpush.msra.mxu0 %v6560
    %6594 = vmatpush.msra.mxu0 %v6555
    %6595 = vmatpush.msra.mxu0 %v6550
    %6596 = vmatpush.msra.mxu0 %v6545
    %6597 = vmatpush.msra.mxu0 %v6540
    %6598 = vmatpush.msra.mxu0 %v6535
    %6599 = vmatpush.msra.mxu0 %v6530
    %6600 = vmatpush.msra.mxu0 %v6525
    %6601 = vmatpush.msra.mxu0 %v6520
    %6602 = vmatpush.msra.mxu0 %v6515
    %6603 = vmatpush.msra.mxu0 %v6510
    %6604 = vmatpush.msra.mxu0 %v6505
    %6605 = vmatpush.msra.mxu0 %v6500
    %6606 = vmatmul.f32.gmra.mxu0 %v2070
    %v6607 = vpop.f32.mrf.mxu0
    %v6608 = vadd.f32 0.0, %v6607
    %6609 = vmatmul.f32.gmra.mxu0 %v2075
    %v6610 = vpop.f32.mrf.mxu0
    %v6611 = vadd.f32 0.0, %v6610
    %6612 = vmatmul.f32.gmra.mxu0 %v2082
    %v6613 = vpop.f32.mrf.mxu0
    %v6614 = vadd.f32 0.0, %v6613
    %6615 = vdwg.mxu0
    %6616 = vmatpush.msra.mxu0 0.0
    %6617 = vmatpush.msra.mxu0 0.0
    %6618 = vmatpush.msra.mxu0 0.0
    %6619 = vmatpush.msra.mxu0 0.0
    %6620 = vmatpush.msra.mxu0 0.0
    %6621 = vmatpush.msra.mxu0 0.0
    %6622 = vmatpush.msra.mxu0 0.0
    %6623 = vmatpush.msra.mxu0 0.0
    %6624 = vmatpush.msra.mxu0 0.0
    %6625 = vmatpush.msra.mxu0 0.0
    %6626 = vmatpush.msra.mxu0 0.0
    %6627 = vmatpush.msra.mxu0 0.0
    %6628 = vmatpush.msra.mxu0 0.0
    %6629 = vmatpush.msra.mxu0 0.0
    %6630 = vmatpush.msra.mxu0 %v6585
    %6631 = vmatpush.msra.mxu0 %v6580
    %6632 = vmatmul.f32.gmra.mxu0 %v4022
    %v6633 = vpop.f32.mrf.mxu0
    %v6634 = vadd.f32 %v6608, %v6633
    %6635 = vmatmul.f32.gmra.mxu0 %v4024
    %v6636 = vpop.f32.mrf.mxu0
    %v6637 = vadd.f32 %v6611, %v6636
    %6638 = vmatmul.f32.gmra.mxu0 %v4027
    %v6639 = vpop.f32.mrf.mxu0
    %v6640 = vadd.f32 %v6614, %v6639
    %6641 = vdwg.mxu0
    %6642 = vmatpush.msra.mxu0 %v6576
    %6643 = vmatpush.msra.mxu0 %v6571
    %6644 = vmatpush.msra.mxu0 %v6566
    %6645 = vmatpush.msra.mxu0 %v6561
    %6646 = vmatpush.msra.mxu0 %v6556
    %6647 = vmatpush.msra.mxu0 %v6551
    %6648 = vmatpush.msra.mxu0 %v6546
    %6649 = vmatpush.msra.mxu0 %v6541
    %6650 = vmatpush.msra.mxu0 %v6536
    %6651 = vmatpush.msra.mxu0 %v6531
    %6652 = vmatpush.msra.mxu0 %v6526
    %6653 = vmatpush.msra.mxu0 %v6521
    %6654 = vmatpush.msra.mxu0 %v6516
    %6655 = vmatpush.msra.mxu0 %v6511
    %6656 = vmatpush.msra.mxu0 %v6506
    %6657 = vmatpush.msra.mxu0 %v6501
    %6658 = vmatmul.f32.gmra.mxu0 %v2070
    %v6659 = vpop.f32.mrf.mxu0
    %v6660 = vadd.f32 0.0, %v6659
    %6661 = vmatmul.f32.gmra.mxu0 %v2075
    %v6662 = vpop.f32.mrf.mxu0
    %v6663 = vadd.f32 0.0, %v6662
    %6664 = vmatmul.f32.gmra.mxu0 %v2082
    %v6665 = vpop.f32.mrf.mxu0
    %v6666 = vadd.f32 0.0, %v6665
    %6667 = vdwg.mxu0
    %6668 = vmatpush.msra.mxu0 0.0
    %6669 = vmatpush.msra.mxu0 0.0
    %6670 = vmatpush.msra.mxu0 0.0
    %6671 = vmatpush.msra.mxu0 0.0
    %6672 = vmatpush.msra.mxu0 0.0
    %6673 = vmatpush.msra.mxu0 0.0
    %6674 = vmatpush.msra.mxu0 0.0
    %6675 = vmatpush.msra.mxu0 0.0
    %6676 = vmatpush.msra.mxu0 0.0
    %6677 = vmatpush.msra.mxu0 0.0
    %6678 = vmatpush.msra.mxu0 0.0
    %6679 = vmatpush.msra.mxu0 0.0
    %6680 = vmatpush.msra.mxu0 0.0
    %6681 = vmatpush.msra.mxu0 0.0
    %6682 = vmatpush.msra.mxu0 %v6586
    %6683 = vmatpush.msra.mxu0 %v6581
    %6684 = vmatmul.f32.gmra.mxu0 %v4022
    %v6685 = vpop.f32.mrf.mxu0
    %v6686 = vadd.f32 %v6660, %v6685
    %6687 = vmatmul.f32.gmra.mxu0 %v4024
    %v6688 = vpop.f32.mrf.mxu0
    %v6689 = vadd.f32 %v6663, %v6688
    %6690 = vmatmul.f32.gmra.mxu0 %v4027
    %v6691 = vpop.f32.mrf.mxu0
    %v6692 = vadd.f32 %v6666, %v6691
    %6693 = vdwg.mxu0
    %6694 = vmatpush.msra.mxu0 %v6577
    %6695 = vmatpush.msra.mxu0 %v6572
    %6696 = vmatpush.msra.mxu0 %v6567
    %6697 = vmatpush.msra.mxu0 %v6562
    %6698 = vmatpush.msra.mxu0 %v6557
    %6699 = vmatpush.msra.mxu0 %v6552
    %6700 = vmatpush.msra.mxu0 %v6547
    %6701 = vmatpush.msra.mxu0 %v6542
    %6702 = vmatpush.msra.mxu0 %v6537
    %6703 = vmatpush.msra.mxu0 %v6532
    %6704 = vmatpush.msra.mxu0 %v6527
    %6705 = vmatpush.msra.mxu0 %v6522
    %6706 = vmatpush.msra.mxu0 %v6517
    %6707 = vmatpush.msra.mxu0 %v6512
    %6708 = vmatpush.msra.mxu0 %v6507
    %6709 = vmatpush.msra.mxu0 %v6502
    %6710 = vmatmul.f32.gmra.mxu0 %v2070
    %v6711 = vpop.f32.mrf.mxu0
    %v6712 = vadd.f32 0.0, %v6711
    %6713 = vmatmul.f32.gmra.mxu0 %v2075
    %v6714 = vpop.f32.mrf.mxu0
    %v6715 = vadd.f32 0.0, %v6714
    %6716 = vmatmul.f32.gmra.mxu0 %v2082
    %v6717 = vpop.f32.mrf.mxu0
    %v6718 = vadd.f32 0.0, %v6717
    %6719 = vdwg.mxu0
    %6720 = vmatpush.msra.mxu0 0.0
    %6721 = vmatpush.msra.mxu0 0.0
    %6722 = vmatpush.msra.mxu0 0.0
    %6723 = vmatpush.msra.mxu0 0.0
    %6724 = vmatpush.msra.mxu0 0.0
    %6725 = vmatpush.msra.mxu0 0.0
    %6726 = vmatpush.msra.mxu0 0.0
    %6727 = vmatpush.msra.mxu0 0.0
    %6728 = vmatpush.msra.mxu0 0.0
    %6729 = vmatpush.msra.mxu0 0.0
    %6730 = vmatpush.msra.mxu0 0.0
    %6731 = vmatpush.msra.mxu0 0.0
    %6732 = vmatpush.msra.mxu0 0.0
    %6733 = vmatpush.msra.mxu0 0.0
    %6734 = vmatpush.msra.mxu0 %v6587
    %6735 = vmatpush.msra.mxu0 %v6582
    %6736 = vmatmul.f32.gmra.mxu0 %v4022
    %v6737 = vpop.f32.mrf.mxu0
    %v6738 = vadd.f32 %v6712, %v6737
    %6739 = vmatmul.f32.gmra.mxu0 %v4024
    %v6740 = vpop.f32.mrf.mxu0
    %v6741 = vadd.f32 %v6715, %v6740
    %6742 = vmatmul.f32.gmra.mxu0 %v4027
    %v6743 = vpop.f32.mrf.mxu0
    %v6744 = vadd.f32 %v6718, %v6743
    %6745 = vdwg.mxu0
    %6746 = vmatpush.msra.mxu0 %v6578
    %6747 = vmatpush.msra.mxu0 %v6573
    %6748 = vmatpush.msra.mxu0 %v6568
    %6749 = vmatpush.msra.mxu0 %v6563
    %6750 = vmatpush.msra.mxu0 %v6558
    %6751 = vmatpush.msra.mxu0 %v6553
    %6752 = vmatpush.msra.mxu0 %v6548
    %6753 = vmatpush.msra.mxu0 %v6543
    %6754 = vmatpush.msra.mxu0 %v6538
    %6755 = vmatpush.msra.mxu0 %v6533
    %6756 = vmatpush.msra.mxu0 %v6528
    %6757 = vmatpush.msra.mxu0 %v6523
    %6758 = vmatpush.msra.mxu0 %v6518
    %6759 = vmatpush.msra.mxu0 %v6513
    %6760 = vmatpush.msra.mxu0 %v6508
    %6761 = vmatpush.msra.mxu0 %v6503
    %6762 = vmatmul.f32.gmra.mxu0 %v2070
    %v6763 = vpop.f32.mrf.mxu0
    %v6764 = vadd.f32 0.0, %v6763
    %6765 = vmatmul.f32.gmra.mxu0 %v2075
    %v6766 = vpop.f32.mrf.mxu0
    %v6767 = vadd.f32 0.0, %v6766
    %6768 = vmatmul.f32.gmra.mxu0 %v2082
    %v6769 = vpop.f32.mrf.mxu0
    %v6770 = vadd.f32 0.0, %v6769
    %6771 = vdwg.mxu0
    %6772 = vmatpush.msra.mxu0 0.0
    %6773 = vmatpush.msra.mxu0 0.0
    %6774 = vmatpush.msra.mxu0 0.0
    %6775 = vmatpush.msra.mxu0 0.0
    %6776 = vmatpush.msra.mxu0 0.0
    %6777 = vmatpush.msra.mxu0 0.0
    %6778 = vmatpush.msra.mxu0 0.0
    %6779 = vmatpush.msra.mxu0 0.0
    %6780 = vmatpush.msra.mxu0 0.0
    %6781 = vmatpush.msra.mxu0 0.0
    %6782 = vmatpush.msra.mxu0 0.0
    %6783 = vmatpush.msra.mxu0 0.0
    %6784 = vmatpush.msra.mxu0 0.0
    %6785 = vmatpush.msra.mxu0 0.0
    %6786 = vmatpush.msra.mxu0 %v6588
    %6787 = vmatpush.msra.mxu0 %v6583
    %6788 = vmatmul.f32.gmra.mxu0 %v4022
    %v6789 = vpop.f32.mrf.mxu0
    %v6790 = vadd.f32 %v6764, %v6789
    %6791 = vmatmul.f32.gmra.mxu0 %v4024
    %v6792 = vpop.f32.mrf.mxu0
    %v6793 = vadd.f32 %v6767, %v6792
    %6794 = vmatmul.f32.gmra.mxu0 %v4027
    %v6795 = vpop.f32.mrf.mxu0
    %v6796 = vadd.f32 %v6770, %v6795
    %6797 = vdwg.mxu0
    %6798 = vmatpush.msra.mxu0 %v6579
    %6799 = vmatpush.msra.mxu0 %v6574
    %6800 = vmatpush.msra.mxu0 %v6569
    %6801 = vmatpush.msra.mxu0 %v6564
    %6802 = vmatpush.msra.mxu0 %v6559
    %6803 = vmatpush.msra.mxu0 %v6554
    %6804 = vmatpush.msra.mxu0 %v6549
    %6805 = vmatpush.msra.mxu0 %v6544
    %6806 = vmatpush.msra.mxu0 %v6539
    %6807 = vmatpush.msra.mxu0 %v6534
    %6808 = vmatpush.msra.mxu0 %v6529
    %6809 = vmatpush.msra.mxu0 %v6524
    %6810 = vmatpush.msra.mxu0 %v6519
    %6811 = vmatpush.msra.mxu0 %v6514
    %6812 = vmatpush.msra.mxu0 %v6509
    %6813 = vmatpush.msra.mxu0 %v6504
    %6814 = vmatmul.f32.gmra.mxu0 %v2070
    %v6815 = vpop.f32.mrf.mxu0
    %v6816 = vadd.f32 0.0, %v6815
    %6817 = vmatmul.f32.gmra.mxu0 %v2075
    %v6818 = vpop.f32.mrf.mxu0
    %v6819 = vadd.f32 0.0, %v6818
    %6820 = vmatmul.f32.gmra.mxu0 %v2082
    %v6821 = vpop.f32.mrf.mxu0
    %v6822 = vadd.f32 0.0, %v6821
    %6823 = vdwg.mxu0
    %6824 = vmatpush.msra.mxu0 0.0
    %6825 = vmatpush.msra.mxu0 0.0
    %6826 = vmatpush.msra.mxu0 0.0
    %6827 = vmatpush.msra.mxu0 0.0
    %6828 = vmatpush.msra.mxu0 0.0
    %6829 = vmatpush.msra.mxu0 0.0
    %6830 = vmatpush.msra.mxu0 0.0
    %6831 = vmatpush.msra.mxu0 0.0
    %6832 = vmatpush.msra.mxu0 0.0
    %6833 = vmatpush.msra.mxu0 0.0
    %6834 = vmatpush.msra.mxu0 0.0
    %6835 = vmatpush.msra.mxu0 0.0
    %6836 = vmatpush.msra.mxu0 0.0
    %6837 = vmatpush.msra.mxu0 0.0
    %6838 = vmatpush.msra.mxu0 %v6589
    %6839 = vmatpush.msra.mxu0 %v6584
    %6840 = vmatmul.f32.gmra.mxu0 %v4022
    %v6841 = vpop.f32.mrf.mxu0
    %v6842 = vadd.f32 %v6816, %v6841
    %6843 = vmatmul.f32.gmra.mxu0 %v4024
    %v6844 = vpop.f32.mrf.mxu0
    %v6845 = vadd.f32 %v6819, %v6844
    %6846 = vmatmul.f32.gmra.mxu0 %v4027
    %v6847 = vpop.f32.mrf.mxu0
    %v6848 = vadd.f32 %v6822, %v6847
    %6849 = vdwg.mxu0
    %v6850 = vadd.f32 %v6484, %v6634
    %v6851 = vadd.f32 %v6485, %v6686
    %v6852 = vadd.f32 %v6486, %v6738
    %v6853 = vadd.f32 %v6487, %v6790
    %v6854 = vadd.f32 %v6488, %v6842
    %v6855 = vadd.f32 %v6489, %v6637
    %v6856 = vadd.f32 %v6490, %v6689
    %v6857 = vadd.f32 %v6491, %v6741
    %v6858 = vadd.f32 %v6492, %v6793
    %v6859 = vadd.f32 %v6493, %v6845
    %v6860 = vadd.f32 %v6494, %v6640
    %v6861 = vadd.f32 %v6495, %v6692
    %v6862 = vadd.f32 %v6496, %v6744
    %v6863 = vadd.f32 %v6497, %v6796
    %v6864 = vadd.f32 %v6498, %v6848
    %s6865 = scalar_lea.vmem %s9, 720
    %6866 = vst [vmem:[%s6865] sm:$0xff] %v6850
    %6867 = vst [vmem:[%s6865 + $0x8] sm:$0xff] %v6851
    %6868 = vst [vmem:[%s6865 + $0x10] sm:$0xff] %v6852
    %6869 = vst [vmem:[%s6865 + $0x18] sm:$0xff] %v6853
    %6870 = vst.msk [vmem:[%s6865 + $0x20] sm:$0xff] %vm2472, %v6854
    %6871 = vst [vmem:[%s6865 + $0x28] sm:$0xff] %v6855
    %6872 = vst [vmem:[%s6865 + $0x30] sm:$0xff] %v6856
    %6873 = vst [vmem:[%s6865 + $0x38] sm:$0xff] %v6857
    %6874 = vst [vmem:[%s6865 + $0x40] sm:$0xff] %v6858
    %6875 = vst.msk [vmem:[%s6865 + $0x48] sm:$0xff] %vm2472, %v6859
    %6876 = vst [vmem:[%s6865 + $0x50] sm:$0xff] %v6860
    %6877 = vst [vmem:[%s6865 + $0x58] sm:$0xff] %v6861
    %6878 = vst [vmem:[%s6865 + $0x60] sm:$0xff] %v6862
    %6879 = vst [vmem:[%s6865 + $0x68] sm:$0xff] %v6863
    %6880 = vst.msk [vmem:[%s6865 + $0x70] sm:$0xff] %vm2472, %v6864
    %v6881 = vsub.f32 0.0, %v6850
    %v6882 = vsub.f32 0.0, %v6851
    %v6883 = vsub.f32 0.0, %v6852
    %v6884 = vsub.f32 0.0, %v6853
    %v6885 = vsub.f32 0.0, %v6854
    %v6886 = vsub.f32 0.0, %v6855
    %v6887 = vsub.f32 0.0, %v6856
    %v6888 = vsub.f32 0.0, %v6857
    %v6889 = vsub.f32 0.0, %v6858
    %v6890 = vsub.f32 0.0, %v6859
    %v6891 = vsub.f32 0.0, %v6860
    %v6892 = vsub.f32 0.0, %v6861
    %v6893 = vsub.f32 0.0, %v6862
    %v6894 = vsub.f32 0.0, %v6863
    %v6895 = vsub.f32 0.0, %v6864
    %v6896 = vmul.f32 %v6881, 1.442695
    %v6897 = vpow.pop %v6896
    %v6898 = vmul.f32 %v6882, 1.442695
    %v6899 = vpow.pop %v6898
    %v6900 = vmul.f32 %v6883, 1.442695
    %v6901 = vpow.pop %v6900
    %v6902 = vmul.f32 %v6884, 1.442695
    %v6903 = vpow.pop %v6902
    %v6904 = vmul.f32 %v6885, 1.442695
    %v6905 = vpow.pop %v6904
    %v6906 = vmul.f32 %v6886, 1.442695
    %v6907 = vpow.pop %v6906
    %v6908 = vmul.f32 %v6887, 1.442695
    %v6909 = vpow.pop %v6908
    %v6910 = vmul.f32 %v6888, 1.442695
    %v6911 = vpow.pop %v6910
    %v6912 = vmul.f32 %v6889, 1.442695
    %v6913 = vpow.pop %v6912
    %v6914 = vmul.f32 %v6890, 1.442695
    %v6915 = vpow.pop %v6914
    %v6916 = vmul.f32 %v6891, 1.442695
    %v6917 = vpow.pop %v6916
    %v6918 = vmul.f32 %v6892, 1.442695
    %v6919 = vpow.pop %v6918
    %v6920 = vmul.f32 %v6893, 1.442695
    %v6921 = vpow.pop %v6920
    %v6922 = vmul.f32 %v6894, 1.442695
    %v6923 = vpow.pop %v6922
    %v6924 = vmul.f32 %v6895, 1.442695
    %v6925 = vpow.pop %v6924
    %v6926 = vadd.f32 %v6897, 1.0
    %v6927 = vadd.f32 %v6899, 1.0
    %v6928 = vadd.f32 %v6901, 1.0
    %v6929 = vadd.f32 %v6903, 1.0
    %v6930 = vadd.f32 %v6905, 1.0
    %v6931 = vadd.f32 %v6907, 1.0
    %v6932 = vadd.f32 %v6909, 1.0
    %v6933 = vadd.f32 %v6911, 1.0
    %v6934 = vadd.f32 %v6913, 1.0
    %v6935 = vadd.f32 %v6915, 1.0
    %v6936 = vadd.f32 %v6917, 1.0
    %v6937 = vadd.f32 %v6919, 1.0
    %v6938 = vadd.f32 %v6921, 1.0
    %v6939 = vadd.f32 %v6923, 1.0
    %v6940 = vadd.f32 %v6925, 1.0
    %v6941 = vrcp.pop %v6926
    %v6942 = vrcp.pop %v6927
    %v6943 = vrcp.pop %v6928
    %v6944 = vrcp.pop %v6929
    %v6945 = vrcp.pop %v6930
    %v6946 = vrcp.pop %v6931
    %v6947 = vrcp.pop %v6932
    %v6948 = vrcp.pop %v6933
    %v6949 = vrcp.pop %v6934
    %v6950 = vrcp.pop %v6935
    %v6951 = vrcp.pop %v6936
    %v6952 = vrcp.pop %v6937
    %v6953 = vrcp.pop %v6938
    %v6954 = vrcp.pop %v6939
    %v6955 = vrcp.pop %v6940
    %v6956 = vmul.f32 %v6850, %v6941
    %v6957 = vmul.f32 %v6851, %v6942
    %v6958 = vmul.f32 %v6852, %v6943
    %v6959 = vmul.f32 %v6853, %v6944
    %v6960 = vmul.f32 %v6854, %v6945
    %v6961 = vmul.f32 %v6855, %v6946
    %v6962 = vmul.f32 %v6856, %v6947
    %v6963 = vmul.f32 %v6857, %v6948
    %v6964 = vmul.f32 %v6858, %v6949
    %v6965 = vmul.f32 %v6859, %v6950
    %v6966 = vmul.f32 %v6860, %v6951
    %v6967 = vmul.f32 %v6861, %v6952
    %v6968 = vmul.f32 %v6862, %v6953
    %v6969 = vmul.f32 %v6863, %v6954
    %v6970 = vmul.f32 %v6864, %v6955
    %s6971 = scalar_lea.vmem %s10, 720
    %6972 = vst [vmem:[%s6971] sm:$0xff] %v6956
    %6973 = vst [vmem:[%s6971 + $0x8] sm:$0xff] %v6957
    %6974 = vst [vmem:[%s6971 + $0x10] sm:$0xff] %v6958
    %6975 = vst [vmem:[%s6971 + $0x18] sm:$0xff] %v6959
    %6976 = vst.msk [vmem:[%s6971 + $0x20] sm:$0xff] %vm2472, %v6960
    %6977 = vst [vmem:[%s6971 + $0x28] sm:$0xff] %v6961
    %6978 = vst [vmem:[%s6971 + $0x30] sm:$0xff] %v6962
    %6979 = vst [vmem:[%s6971 + $0x38] sm:$0xff] %v6963
    %6980 = vst [vmem:[%s6971 + $0x40] sm:$0xff] %v6964
    %6981 = vst.msk [vmem:[%s6971 + $0x48] sm:$0xff] %vm2472, %v6965
    %6982 = vst [vmem:[%s6971 + $0x50] sm:$0xff] %v6966
    %6983 = vst [vmem:[%s6971 + $0x58] sm:$0xff] %v6967
    %6984 = vst [vmem:[%s6971 + $0x60] sm:$0xff] %v6968
    %6985 = vst [vmem:[%s6971 + $0x68] sm:$0xff] %v6969
    %6986 = vst.msk [vmem:[%s6971 + $0x70] sm:$0xff] %vm2472, %v6970
    %s6987 = scalar_lea.vmem [#allocation2], 3600
    %v6988 = vld [vmem:[%s6987] sm:$0xff]
    %v6989 = vld [vmem:[%s6987 + $0x8] sm:$0xff]
    %v6990 = vld [vmem:[%s6987 + $0x10] sm:$0xff]
    %v6991 = vld [vmem:[%s6987 + $0x18] sm:$0xff]
    %v6992 = vld [vmem:[%s6987 + $0x20] sm:$0xff]
    %v6993 = vld [vmem:[%s6987 + $0x28] sm:$0xff]
    %v6994 = vld [vmem:[%s6987 + $0x30] sm:$0xff]
    %v6995 = vld [vmem:[%s6987 + $0x38] sm:$0xff]
    %v6996 = vld [vmem:[%s6987 + $0x40] sm:$0xff]
    %v6997 = vld [vmem:[%s6987 + $0x48] sm:$0xff]
    %v6998 = vld [vmem:[%s6987 + $0x50] sm:$0xff]
    %v6999 = vld [vmem:[%s6987 + $0x58] sm:$0xff]
    %v7000 = vld [vmem:[%s6987 + $0x60] sm:$0xff]
    %v7001 = vld [vmem:[%s6987 + $0x68] sm:$0xff]
    %v7002 = vld [vmem:[%s6987 + $0x70] sm:$0xff]
    %v7003 = vld [vmem:[%s6987 + $0x78] sm:$0xff]
    %v7004 = vld [vmem:[%s6987 + $0x80] sm:$0xff]
    %v7005 = vld [vmem:[%s6987 + $0x88] sm:$0xff]
    %v7006 = vld [vmem:[%s6987 + $0x90] sm:$0xff]
    %v7007 = vld [vmem:[%s6987 + $0x98] sm:$0xff]
    %v7008 = vld [vmem:[%s6987 + $0xa0] sm:$0xff]
    %v7009 = vld [vmem:[%s6987 + $0xa8] sm:$0xff]
    %v7010 = vld [vmem:[%s6987 + $0xb0] sm:$0xff]
    %v7011 = vld [vmem:[%s6987 + $0xb8] sm:$0xff]
    %v7012 = vld [vmem:[%s6987 + $0xc0] sm:$0xff]
    %v7013 = vld [vmem:[%s6987 + $0xc8] sm:$0xff]
    %v7014 = vld [vmem:[%s6987 + $0xd0] sm:$0xff]
    %v7015 = vld [vmem:[%s6987 + $0xd8] sm:$0xff]
    %v7016 = vld [vmem:[%s6987 + $0xe0] sm:$0xff]
    %v7017 = vld [vmem:[%s6987 + $0xe8] sm:$0xff]
    %v7018 = vld [vmem:[%s6987 + $0xf0] sm:$0xff]
    %v7019 = vld [vmem:[%s6987 + $0xf8] sm:$0xff]
    %v7020 = vld [vmem:[%s6987 + $0x100] sm:$0xff]
    %v7021 = vld [vmem:[%s6987 + $0x108] sm:$0xff]
    %v7022 = vld [vmem:[%s6987 + $0x110] sm:$0xff]
    %v7023 = vld [vmem:[%s6987 + $0x118] sm:$0xff]
    %v7024 = vld [vmem:[%s6987 + $0x120] sm:$0xff]
    %v7025 = vld [vmem:[%s6987 + $0x128] sm:$0xff]
    %v7026 = vld [vmem:[%s6987 + $0x130] sm:$0xff]
    %v7027 = vld [vmem:[%s6987 + $0x138] sm:$0xff]
    %v7028 = vld [vmem:[%s6987 + $0x140] sm:$0xff]
    %v7029 = vld [vmem:[%s6987 + $0x148] sm:$0xff]
    %v7030 = vld [vmem:[%s6987 + $0x150] sm:$0xff]
    %v7031 = vld [vmem:[%s6987 + $0x158] sm:$0xff]
    %v7032 = vld [vmem:[%s6987 + $0x160] sm:$0xff]
    %v7033 = vld [vmem:[%s6987 + $0x168] sm:$0xff]
    %v7034 = vld [vmem:[%s6987 + $0x170] sm:$0xff]
    %v7035 = vld [vmem:[%s6987 + $0x178] sm:$0xff]
    %v7036 = vld [vmem:[%s6987 + $0x180] sm:$0xff]
    %v7037 = vld [vmem:[%s6987 + $0x188] sm:$0xff]
    %v7038 = vld [vmem:[%s6987 + $0x190] sm:$0xff]
    %v7039 = vld [vmem:[%s6987 + $0x198] sm:$0xff]
    %v7040 = vld [vmem:[%s6987 + $0x1a0] sm:$0xff]
    %v7041 = vld [vmem:[%s6987 + $0x1a8] sm:$0xff]
    %v7042 = vld [vmem:[%s6987 + $0x1b0] sm:$0xff]
    %v7043 = vld [vmem:[%s6987 + $0x1b8] sm:$0xff]
    %v7044 = vld [vmem:[%s6987 + $0x1c0] sm:$0xff]
    %v7045 = vld [vmem:[%s6987 + $0x1c8] sm:$0xff]
    %v7046 = vld [vmem:[%s6987 + $0x1d0] sm:$0xff]
    %v7047 = vld [vmem:[%s6987 + $0x1d8] sm:$0xff]
    %v7048 = vld [vmem:[%s6987 + $0x1e0] sm:$0xff]
    %v7049 = vld [vmem:[%s6987 + $0x1e8] sm:$0xff]
    %v7050 = vld [vmem:[%s6987 + $0x1f0] sm:$0xff]
    %v7051 = vld [vmem:[%s6987 + $0x1f8] sm:$0xff]
    %v7052 = vld [vmem:[%s6987 + $0x200] sm:$0xff]
    %v7053 = vld [vmem:[%s6987 + $0x208] sm:$0xff]
    %v7054 = vld [vmem:[%s6987 + $0x210] sm:$0xff]
    %v7055 = vld [vmem:[%s6987 + $0x218] sm:$0xff]
    %v7056 = vld [vmem:[%s6987 + $0x220] sm:$0xff]
    %v7057 = vld [vmem:[%s6987 + $0x228] sm:$0xff]
    %v7058 = vld [vmem:[%s6987 + $0x230] sm:$0xff]
    %v7059 = vld [vmem:[%s6987 + $0x238] sm:$0xff]
    %v7060 = vld [vmem:[%s6987 + $0x240] sm:$0xff]
    %v7061 = vld [vmem:[%s6987 + $0x248] sm:$0xff]
    %v7062 = vld [vmem:[%s6987 + $0x250] sm:$0xff]
    %v7063 = vld [vmem:[%s6987 + $0x258] sm:$0xff]
    %v7064 = vld [vmem:[%s6987 + $0x260] sm:$0xff]
    %v7065 = vld [vmem:[%s6987 + $0x268] sm:$0xff]
    %v7066 = vld [vmem:[%s6987 + $0x270] sm:$0xff]
    %v7067 = vld [vmem:[%s6987 + $0x278] sm:$0xff]
    %v7068 = vld [vmem:[%s6987 + $0x280] sm:$0xff]
    %v7069 = vld [vmem:[%s6987 + $0x288] sm:$0xff]
    %v7070 = vld [vmem:[%s6987 + $0x290] sm:$0xff]
    %v7071 = vld [vmem:[%s6987 + $0x298] sm:$0xff]
    %v7072 = vld [vmem:[%s6987 + $0x2a0] sm:$0xff]
    %v7073 = vld [vmem:[%s6987 + $0x2a8] sm:$0xff]
    %v7074 = vld [vmem:[%s6987 + $0x2b0] sm:$0xff]
    %v7075 = vld [vmem:[%s6987 + $0x2b8] sm:$0xff]
    %v7076 = vld [vmem:[%s6987 + $0x2c0] sm:$0xff]
    %v7077 = vld [vmem:[%s6987 + $0x2c8] sm:$0xff]
    %7078 = vmatpush.msra.mxu0 %v7063
    %7079 = vmatpush.msra.mxu0 %v7058
    %7080 = vmatpush.msra.mxu0 %v7053
    %7081 = vmatpush.msra.mxu0 %v7048
    %7082 = vmatpush.msra.mxu0 %v7043
    %7083 = vmatpush.msra.mxu0 %v7038
    %7084 = vmatpush.msra.mxu0 %v7033
    %7085 = vmatpush.msra.mxu0 %v7028
    %7086 = vmatpush.msra.mxu0 %v7023
    %7087 = vmatpush.msra.mxu0 %v7018
    %7088 = vmatpush.msra.mxu0 %v7013
    %7089 = vmatpush.msra.mxu0 %v7008
    %7090 = vmatpush.msra.mxu0 %v7003
    %7091 = vmatpush.msra.mxu0 %v6998
    %7092 = vmatpush.msra.mxu0 %v6993
    %7093 = vmatpush.msra.mxu0 %v6988
    %7094 = vmatmul.f32.gmra.mxu0 %v2049
    %v7095 = vpop.f32.mrf.mxu0
    %v7096 = vadd.f32 0.0, %v7095
    %7097 = vmatmul.f32.gmra.mxu0 %v2051
    %v7098 = vpop.f32.mrf.mxu0
    %v7099 = vadd.f32 0.0, %v7098
    %7100 = vmatmul.f32.gmra.mxu0 %v2053
    %v7101 = vpop.f32.mrf.mxu0
    %v7102 = vadd.f32 0.0, %v7101
    %7103 = vdwg.mxu0
    %7104 = vmatpush.msra.mxu0 0.0
    %7105 = vmatpush.msra.mxu0 0.0
    %7106 = vmatpush.msra.mxu0 0.0
    %7107 = vmatpush.msra.mxu0 0.0
    %7108 = vmatpush.msra.mxu0 0.0
    %7109 = vmatpush.msra.mxu0 0.0
    %7110 = vmatpush.msra.mxu0 0.0
    %7111 = vmatpush.msra.mxu0 0.0
    %7112 = vmatpush.msra.mxu0 0.0
    %7113 = vmatpush.msra.mxu0 0.0
    %7114 = vmatpush.msra.mxu0 0.0
    %7115 = vmatpush.msra.mxu0 0.0
    %7116 = vmatpush.msra.mxu0 0.0
    %7117 = vmatpush.msra.mxu0 0.0
    %7118 = vmatpush.msra.mxu0 %v7073
    %7119 = vmatpush.msra.mxu0 %v7068
    %7120 = vmatmul.f32.gmra.mxu0 %v2187
    %v7121 = vpop.f32.mrf.mxu0
    %v7122 = vadd.f32 %v7096, %v7121
    %7123 = vmatmul.f32.gmra.mxu0 %v2189
    %v7124 = vpop.f32.mrf.mxu0
    %v7125 = vadd.f32 %v7099, %v7124
    %7126 = vmatmul.f32.gmra.mxu0 %v2191
    %v7127 = vpop.f32.mrf.mxu0
    %v7128 = vadd.f32 %v7102, %v7127
    %7129 = vdwg.mxu0
    %7130 = vmatpush.msra.mxu0 %v7064
    %7131 = vmatpush.msra.mxu0 %v7059
    %7132 = vmatpush.msra.mxu0 %v7054
    %7133 = vmatpush.msra.mxu0 %v7049
    %7134 = vmatpush.msra.mxu0 %v7044
    %7135 = vmatpush.msra.mxu0 %v7039
    %7136 = vmatpush.msra.mxu0 %v7034
    %7137 = vmatpush.msra.mxu0 %v7029
    %7138 = vmatpush.msra.mxu0 %v7024
    %7139 = vmatpush.msra.mxu0 %v7019
    %7140 = vmatpush.msra.mxu0 %v7014
    %7141 = vmatpush.msra.mxu0 %v7009
    %7142 = vmatpush.msra.mxu0 %v7004
    %7143 = vmatpush.msra.mxu0 %v6999
    %7144 = vmatpush.msra.mxu0 %v6994
    %7145 = vmatpush.msra.mxu0 %v6989
    %7146 = vmatmul.f32.gmra.mxu0 %v2049
    %v7147 = vpop.f32.mrf.mxu0
    %v7148 = vadd.f32 0.0, %v7147
    %7149 = vmatmul.f32.gmra.mxu0 %v2051
    %v7150 = vpop.f32.mrf.mxu0
    %v7151 = vadd.f32 0.0, %v7150
    %7152 = vmatmul.f32.gmra.mxu0 %v2053
    %v7153 = vpop.f32.mrf.mxu0
    %v7154 = vadd.f32 0.0, %v7153
    %7155 = vdwg.mxu0
    %7156 = vmatpush.msra.mxu0 0.0
    %7157 = vmatpush.msra.mxu0 0.0
    %7158 = vmatpush.msra.mxu0 0.0
    %7159 = vmatpush.msra.mxu0 0.0
    %7160 = vmatpush.msra.mxu0 0.0
    %7161 = vmatpush.msra.mxu0 0.0
    %7162 = vmatpush.msra.mxu0 0.0
    %7163 = vmatpush.msra.mxu0 0.0
    %7164 = vmatpush.msra.mxu0 0.0
    %7165 = vmatpush.msra.mxu0 0.0
    %7166 = vmatpush.msra.mxu0 0.0
    %7167 = vmatpush.msra.mxu0 0.0
    %7168 = vmatpush.msra.mxu0 0.0
    %7169 = vmatpush.msra.mxu0 0.0
    %7170 = vmatpush.msra.mxu0 %v7074
    %7171 = vmatpush.msra.mxu0 %v7069
    %7172 = vmatmul.f32.gmra.mxu0 %v2187
    %v7173 = vpop.f32.mrf.mxu0
    %v7174 = vadd.f32 %v7148, %v7173
    %7175 = vmatmul.f32.gmra.mxu0 %v2189
    %v7176 = vpop.f32.mrf.mxu0
    %v7177 = vadd.f32 %v7151, %v7176
    %7178 = vmatmul.f32.gmra.mxu0 %v2191
    %v7179 = vpop.f32.mrf.mxu0
    %v7180 = vadd.f32 %v7154, %v7179
    %7181 = vdwg.mxu0
    %7182 = vmatpush.msra.mxu0 %v7065
    %7183 = vmatpush.msra.mxu0 %v7060
    %7184 = vmatpush.msra.mxu0 %v7055
    %7185 = vmatpush.msra.mxu0 %v7050
    %7186 = vmatpush.msra.mxu0 %v7045
    %7187 = vmatpush.msra.mxu0 %v7040
    %7188 = vmatpush.msra.mxu0 %v7035
    %7189 = vmatpush.msra.mxu0 %v7030
    %7190 = vmatpush.msra.mxu0 %v7025
    %7191 = vmatpush.msra.mxu0 %v7020
    %7192 = vmatpush.msra.mxu0 %v7015
    %7193 = vmatpush.msra.mxu0 %v7010
    %7194 = vmatpush.msra.mxu0 %v7005
    %7195 = vmatpush.msra.mxu0 %v7000
    %7196 = vmatpush.msra.mxu0 %v6995
    %7197 = vmatpush.msra.mxu0 %v6990
    %7198 = vmatmul.f32.gmra.mxu0 %v2049
    %v7199 = vpop.f32.mrf.mxu0
    %v7200 = vadd.f32 0.0, %v7199
    %7201 = vmatmul.f32.gmra.mxu0 %v2051
    %v7202 = vpop.f32.mrf.mxu0
    %v7203 = vadd.f32 0.0, %v7202
    %7204 = vmatmul.f32.gmra.mxu0 %v2053
    %v7205 = vpop.f32.mrf.mxu0
    %v7206 = vadd.f32 0.0, %v7205
    %7207 = vdwg.mxu0
    %7208 = vmatpush.msra.mxu0 0.0
    %7209 = vmatpush.msra.mxu0 0.0
    %7210 = vmatpush.msra.mxu0 0.0
    %7211 = vmatpush.msra.mxu0 0.0
    %7212 = vmatpush.msra.mxu0 0.0
    %7213 = vmatpush.msra.mxu0 0.0
    %7214 = vmatpush.msra.mxu0 0.0
    %7215 = vmatpush.msra.mxu0 0.0
    %7216 = vmatpush.msra.mxu0 0.0
    %7217 = vmatpush.msra.mxu0 0.0
    %7218 = vmatpush.msra.mxu0 0.0
    %7219 = vmatpush.msra.mxu0 0.0
    %7220 = vmatpush.msra.mxu0 0.0
    %7221 = vmatpush.msra.mxu0 0.0
    %7222 = vmatpush.msra.mxu0 %v7075
    %7223 = vmatpush.msra.mxu0 %v7070
    %7224 = vmatmul.f32.gmra.mxu0 %v2187
    %v7225 = vpop.f32.mrf.mxu0
    %v7226 = vadd.f32 %v7200, %v7225
    %7227 = vmatmul.f32.gmra.mxu0 %v2189
    %v7228 = vpop.f32.mrf.mxu0
    %v7229 = vadd.f32 %v7203, %v7228
    %7230 = vmatmul.f32.gmra.mxu0 %v2191
    %v7231 = vpop.f32.mrf.mxu0
    %v7232 = vadd.f32 %v7206, %v7231
    %7233 = vdwg.mxu0
    %7234 = vmatpush.msra.mxu0 %v7066
    %7235 = vmatpush.msra.mxu0 %v7061
    %7236 = vmatpush.msra.mxu0 %v7056
    %7237 = vmatpush.msra.mxu0 %v7051
    %7238 = vmatpush.msra.mxu0 %v7046
    %7239 = vmatpush.msra.mxu0 %v7041
    %7240 = vmatpush.msra.mxu0 %v7036
    %7241 = vmatpush.msra.mxu0 %v7031
    %7242 = vmatpush.msra.mxu0 %v7026
    %7243 = vmatpush.msra.mxu0 %v7021
    %7244 = vmatpush.msra.mxu0 %v7016
    %7245 = vmatpush.msra.mxu0 %v7011
    %7246 = vmatpush.msra.mxu0 %v7006
    %7247 = vmatpush.msra.mxu0 %v7001
    %7248 = vmatpush.msra.mxu0 %v6996
    %7249 = vmatpush.msra.mxu0 %v6991
    %7250 = vmatmul.f32.gmra.mxu0 %v2049
    %v7251 = vpop.f32.mrf.mxu0
    %v7252 = vadd.f32 0.0, %v7251
    %7253 = vmatmul.f32.gmra.mxu0 %v2051
    %v7254 = vpop.f32.mrf.mxu0
    %v7255 = vadd.f32 0.0, %v7254
    %7256 = vmatmul.f32.gmra.mxu0 %v2053
    %v7257 = vpop.f32.mrf.mxu0
    %v7258 = vadd.f32 0.0, %v7257
    %7259 = vdwg.mxu0
    %7260 = vmatpush.msra.mxu0 0.0
    %7261 = vmatpush.msra.mxu0 0.0
    %7262 = vmatpush.msra.mxu0 0.0
    %7263 = vmatpush.msra.mxu0 0.0
    %7264 = vmatpush.msra.mxu0 0.0
    %7265 = vmatpush.msra.mxu0 0.0
    %7266 = vmatpush.msra.mxu0 0.0
    %7267 = vmatpush.msra.mxu0 0.0
    %7268 = vmatpush.msra.mxu0 0.0
    %7269 = vmatpush.msra.mxu0 0.0
    %7270 = vmatpush.msra.mxu0 0.0
    %7271 = vmatpush.msra.mxu0 0.0
    %7272 = vmatpush.msra.mxu0 0.0
    %7273 = vmatpush.msra.mxu0 0.0
    %7274 = vmatpush.msra.mxu0 %v7076
    %7275 = vmatpush.msra.mxu0 %v7071
    %7276 = vmatmul.f32.gmra.mxu0 %v2187
    %v7277 = vpop.f32.mrf.mxu0
    %v7278 = vadd.f32 %v7252, %v7277
    %7279 = vmatmul.f32.gmra.mxu0 %v2189
    %v7280 = vpop.f32.mrf.mxu0
    %v7281 = vadd.f32 %v7255, %v7280
    %7282 = vmatmul.f32.gmra.mxu0 %v2191
    %v7283 = vpop.f32.mrf.mxu0
    %v7284 = vadd.f32 %v7258, %v7283
    %7285 = vdwg.mxu0
    %7286 = vmatpush.msra.mxu0 %v7067
    %7287 = vmatpush.msra.mxu0 %v7062
    %7288 = vmatpush.msra.mxu0 %v7057
    %7289 = vmatpush.msra.mxu0 %v7052
    %7290 = vmatpush.msra.mxu0 %v7047
    %7291 = vmatpush.msra.mxu0 %v7042
    %7292 = vmatpush.msra.mxu0 %v7037
    %7293 = vmatpush.msra.mxu0 %v7032
    %7294 = vmatpush.msra.mxu0 %v7027
    %7295 = vmatpush.msra.mxu0 %v7022
    %7296 = vmatpush.msra.mxu0 %v7017
    %7297 = vmatpush.msra.mxu0 %v7012
    %7298 = vmatpush.msra.mxu0 %v7007
    %7299 = vmatpush.msra.mxu0 %v7002
    %7300 = vmatpush.msra.mxu0 %v6997
    %7301 = vmatpush.msra.mxu0 %v6992
    %7302 = vmatmul.f32.gmra.mxu0 %v2049
    %v7303 = vpop.f32.mrf.mxu0
    %v7304 = vadd.f32 0.0, %v7303
    %7305 = vmatmul.f32.gmra.mxu0 %v2051
    %v7306 = vpop.f32.mrf.mxu0
    %v7307 = vadd.f32 0.0, %v7306
    %7308 = vmatmul.f32.gmra.mxu0 %v2053
    %v7309 = vpop.f32.mrf.mxu0
    %v7310 = vadd.f32 0.0, %v7309
    %7311 = vdwg.mxu0
    %7312 = vmatpush.msra.mxu0 0.0
    %7313 = vmatpush.msra.mxu0 0.0
    %7314 = vmatpush.msra.mxu0 0.0
    %7315 = vmatpush.msra.mxu0 0.0
    %7316 = vmatpush.msra.mxu0 0.0
    %7317 = vmatpush.msra.mxu0 0.0
    %7318 = vmatpush.msra.mxu0 0.0
    %7319 = vmatpush.msra.mxu0 0.0
    %7320 = vmatpush.msra.mxu0 0.0
    %7321 = vmatpush.msra.mxu0 0.0
    %7322 = vmatpush.msra.mxu0 0.0
    %7323 = vmatpush.msra.mxu0 0.0
    %7324 = vmatpush.msra.mxu0 0.0
    %7325 = vmatpush.msra.mxu0 0.0
    %7326 = vmatpush.msra.mxu0 %v7077
    %7327 = vmatpush.msra.mxu0 %v7072
    %7328 = vmatmul.f32.gmra.mxu0 %v2187
    %v7329 = vpop.f32.mrf.mxu0
    %v7330 = vadd.f32 %v7304, %v7329
    %7331 = vmatmul.f32.gmra.mxu0 %v2189
    %v7332 = vpop.f32.mrf.mxu0
    %v7333 = vadd.f32 %v7307, %v7332
    %7334 = vmatmul.f32.gmra.mxu0 %v2191
    %v7335 = vpop.f32.mrf.mxu0
    %v7336 = vadd.f32 %v7310, %v7335
    %7337 = vdwg.mxu0
    %v7338 = vadd.f32 %v2086, %v7122
    %v7339 = vadd.f32 %v2087, %v7174
    %v7340 = vadd.f32 %v2088, %v7226
    %v7341 = vadd.f32 %v2089, %v7278
    %v7342 = vadd.f32 %v2090, %v7330
    %v7343 = vadd.f32 %v2086, %v7125
    %v7344 = vadd.f32 %v2087, %v7177
    %v7345 = vadd.f32 %v2088, %v7229
    %v7346 = vadd.f32 %v2089, %v7281
    %v7347 = vadd.f32 %v2090, %v7333
    %v7348 = vadd.f32 %v2086, %v7128
    %v7349 = vadd.f32 %v2087, %v7180
    %v7350 = vadd.f32 %v2088, %v7232
    %v7351 = vadd.f32 %v2089, %v7284
    %v7352 = vadd.f32 %v2090, %v7336
    %s7353 = scalar_lea.vmem [#allocation2], 5760
    %v7354 = vld [vmem:[%s7353] sm:$0xff]
    %v7355 = vld [vmem:[%s7353 + $0x8] sm:$0xff]
    %v7356 = vld [vmem:[%s7353 + $0x10] sm:$0xff]
    %v7357 = vld [vmem:[%s7353 + $0x18] sm:$0xff]
    %v7358 = vld [vmem:[%s7353 + $0x20] sm:$0xff]
    %v7359 = vld [vmem:[%s7353 + $0x28] sm:$0xff]
    %v7360 = vld [vmem:[%s7353 + $0x30] sm:$0xff]
    %v7361 = vld [vmem:[%s7353 + $0x38] sm:$0xff]
    %v7362 = vld [vmem:[%s7353 + $0x40] sm:$0xff]
    %v7363 = vld [vmem:[%s7353 + $0x48] sm:$0xff]
    %v7364 = vld [vmem:[%s7353 + $0x50] sm:$0xff]
    %v7365 = vld [vmem:[%s7353 + $0x58] sm:$0xff]
    %v7366 = vld [vmem:[%s7353 + $0x60] sm:$0xff]
    %v7367 = vld [vmem:[%s7353 + $0x68] sm:$0xff]
    %v7368 = vld [vmem:[%s7353 + $0x70] sm:$0xff]
    %v7369 = vld [vmem:[%s7353 + $0x78] sm:$0xff]
    %v7370 = vld [vmem:[%s7353 + $0x80] sm:$0xff]
    %v7371 = vld [vmem:[%s7353 + $0x88] sm:$0xff]
    %v7372 = vld [vmem:[%s7353 + $0x90] sm:$0xff]
    %v7373 = vld [vmem:[%s7353 + $0x98] sm:$0xff]
    %v7374 = vld [vmem:[%s7353 + $0xa0] sm:$0xff]
    %v7375 = vld [vmem:[%s7353 + $0xa8] sm:$0xff]
    %v7376 = vld [vmem:[%s7353 + $0xb0] sm:$0xff]
    %v7377 = vld [vmem:[%s7353 + $0xb8] sm:$0xff]
    %v7378 = vld [vmem:[%s7353 + $0xc0] sm:$0xff]
    %v7379 = vld [vmem:[%s7353 + $0xc8] sm:$0xff]
    %v7380 = vld [vmem:[%s7353 + $0xd0] sm:$0xff]
    %v7381 = vld [vmem:[%s7353 + $0xd8] sm:$0xff]
    %v7382 = vld [vmem:[%s7353 + $0xe0] sm:$0xff]
    %v7383 = vld [vmem:[%s7353 + $0xe8] sm:$0xff]
    %v7384 = vld [vmem:[%s7353 + $0xf0] sm:$0xff]
    %v7385 = vld [vmem:[%s7353 + $0xf8] sm:$0xff]
    %v7386 = vld [vmem:[%s7353 + $0x100] sm:$0xff]
    %v7387 = vld [vmem:[%s7353 + $0x108] sm:$0xff]
    %v7388 = vld [vmem:[%s7353 + $0x110] sm:$0xff]
    %v7389 = vld [vmem:[%s7353 + $0x118] sm:$0xff]
    %v7390 = vld [vmem:[%s7353 + $0x120] sm:$0xff]
    %v7391 = vld [vmem:[%s7353 + $0x128] sm:$0xff]
    %v7392 = vld [vmem:[%s7353 + $0x130] sm:$0xff]
    %v7393 = vld [vmem:[%s7353 + $0x138] sm:$0xff]
    %v7394 = vld [vmem:[%s7353 + $0x140] sm:$0xff]
    %v7395 = vld [vmem:[%s7353 + $0x148] sm:$0xff]
    %v7396 = vld [vmem:[%s7353 + $0x150] sm:$0xff]
    %v7397 = vld [vmem:[%s7353 + $0x158] sm:$0xff]
    %v7398 = vld [vmem:[%s7353 + $0x160] sm:$0xff]
    %v7399 = vld [vmem:[%s7353 + $0x168] sm:$0xff]
    %v7400 = vld [vmem:[%s7353 + $0x170] sm:$0xff]
    %v7401 = vld [vmem:[%s7353 + $0x178] sm:$0xff]
    %v7402 = vld [vmem:[%s7353 + $0x180] sm:$0xff]
    %v7403 = vld [vmem:[%s7353 + $0x188] sm:$0xff]
    %v7404 = vld [vmem:[%s7353 + $0x190] sm:$0xff]
    %v7405 = vld [vmem:[%s7353 + $0x198] sm:$0xff]
    %v7406 = vld [vmem:[%s7353 + $0x1a0] sm:$0xff]
    %v7407 = vld [vmem:[%s7353 + $0x1a8] sm:$0xff]
    %v7408 = vld [vmem:[%s7353 + $0x1b0] sm:$0xff]
    %v7409 = vld [vmem:[%s7353 + $0x1b8] sm:$0xff]
    %v7410 = vld [vmem:[%s7353 + $0x1c0] sm:$0xff]
    %v7411 = vld [vmem:[%s7353 + $0x1c8] sm:$0xff]
    %v7412 = vld [vmem:[%s7353 + $0x1d0] sm:$0xff]
    %v7413 = vld [vmem:[%s7353 + $0x1d8] sm:$0xff]
    %v7414 = vld [vmem:[%s7353 + $0x1e0] sm:$0xff]
    %v7415 = vld [vmem:[%s7353 + $0x1e8] sm:$0xff]
    %v7416 = vld [vmem:[%s7353 + $0x1f0] sm:$0xff]
    %v7417 = vld [vmem:[%s7353 + $0x1f8] sm:$0xff]
    %v7418 = vld [vmem:[%s7353 + $0x200] sm:$0xff]
    %v7419 = vld [vmem:[%s7353 + $0x208] sm:$0xff]
    %v7420 = vld [vmem:[%s7353 + $0x210] sm:$0xff]
    %v7421 = vld [vmem:[%s7353 + $0x218] sm:$0xff]
    %v7422 = vld [vmem:[%s7353 + $0x220] sm:$0xff]
    %v7423 = vld [vmem:[%s7353 + $0x228] sm:$0xff]
    %v7424 = vld [vmem:[%s7353 + $0x230] sm:$0xff]
    %v7425 = vld [vmem:[%s7353 + $0x238] sm:$0xff]
    %v7426 = vld [vmem:[%s7353 + $0x240] sm:$0xff]
    %v7427 = vld [vmem:[%s7353 + $0x248] sm:$0xff]
    %v7428 = vld [vmem:[%s7353 + $0x250] sm:$0xff]
    %v7429 = vld [vmem:[%s7353 + $0x258] sm:$0xff]
    %v7430 = vld [vmem:[%s7353 + $0x260] sm:$0xff]
    %v7431 = vld [vmem:[%s7353 + $0x268] sm:$0xff]
    %v7432 = vld [vmem:[%s7353 + $0x270] sm:$0xff]
    %v7433 = vld [vmem:[%s7353 + $0x278] sm:$0xff]
    %v7434 = vld [vmem:[%s7353 + $0x280] sm:$0xff]
    %v7435 = vld [vmem:[%s7353 + $0x288] sm:$0xff]
    %v7436 = vld [vmem:[%s7353 + $0x290] sm:$0xff]
    %v7437 = vld [vmem:[%s7353 + $0x298] sm:$0xff]
    %v7438 = vld [vmem:[%s7353 + $0x2a0] sm:$0xff]
    %v7439 = vld [vmem:[%s7353 + $0x2a8] sm:$0xff]
    %v7440 = vld [vmem:[%s7353 + $0x2b0] sm:$0xff]
    %v7441 = vld [vmem:[%s7353 + $0x2b8] sm:$0xff]
    %v7442 = vld [vmem:[%s7353 + $0x2c0] sm:$0xff]
    %v7443 = vld [vmem:[%s7353 + $0x2c8] sm:$0xff]
    %7444 = vmatpush.msra.mxu0 %v7429
    %7445 = vmatpush.msra.mxu0 %v7424
    %7446 = vmatpush.msra.mxu0 %v7419
    %7447 = vmatpush.msra.mxu0 %v7414
    %7448 = vmatpush.msra.mxu0 %v7409
    %7449 = vmatpush.msra.mxu0 %v7404
    %7450 = vmatpush.msra.mxu0 %v7399
    %7451 = vmatpush.msra.mxu0 %v7394
    %7452 = vmatpush.msra.mxu0 %v7389
    %7453 = vmatpush.msra.mxu0 %v7384
    %7454 = vmatpush.msra.mxu0 %v7379
    %7455 = vmatpush.msra.mxu0 %v7374
    %7456 = vmatpush.msra.mxu0 %v7369
    %7457 = vmatpush.msra.mxu0 %v7364
    %7458 = vmatpush.msra.mxu0 %v7359
    %7459 = vmatpush.msra.mxu0 %v7354
    %7460 = vmatmul.f32.gmra.mxu0 %v2070
    %v7461 = vpop.f32.mrf.mxu0
    %v7462 = vadd.f32 0.0, %v7461
    %7463 = vmatmul.f32.gmra.mxu0 %v2075
    %v7464 = vpop.f32.mrf.mxu0
    %v7465 = vadd.f32 0.0, %v7464
    %7466 = vmatmul.f32.gmra.mxu0 %v2082
    %v7467 = vpop.f32.mrf.mxu0
    %v7468 = vadd.f32 0.0, %v7467
    %7469 = vdwg.mxu0
    %7470 = vmatpush.msra.mxu0 0.0
    %7471 = vmatpush.msra.mxu0 0.0
    %7472 = vmatpush.msra.mxu0 0.0
    %7473 = vmatpush.msra.mxu0 0.0
    %7474 = vmatpush.msra.mxu0 0.0
    %7475 = vmatpush.msra.mxu0 0.0
    %7476 = vmatpush.msra.mxu0 0.0
    %7477 = vmatpush.msra.mxu0 0.0
    %7478 = vmatpush.msra.mxu0 0.0
    %7479 = vmatpush.msra.mxu0 0.0
    %7480 = vmatpush.msra.mxu0 0.0
    %7481 = vmatpush.msra.mxu0 0.0
    %7482 = vmatpush.msra.mxu0 0.0
    %7483 = vmatpush.msra.mxu0 0.0
    %7484 = vmatpush.msra.mxu0 %v7439
    %7485 = vmatpush.msra.mxu0 %v7434
    %7486 = vmatmul.f32.gmra.mxu0 %v4022
    %v7487 = vpop.f32.mrf.mxu0
    %v7488 = vadd.f32 %v7462, %v7487
    %7489 = vmatmul.f32.gmra.mxu0 %v4024
    %v7490 = vpop.f32.mrf.mxu0
    %v7491 = vadd.f32 %v7465, %v7490
    %7492 = vmatmul.f32.gmra.mxu0 %v4027
    %v7493 = vpop.f32.mrf.mxu0
    %v7494 = vadd.f32 %v7468, %v7493
    %7495 = vdwg.mxu0
    %7496 = vmatpush.msra.mxu0 %v7430
    %7497 = vmatpush.msra.mxu0 %v7425
    %7498 = vmatpush.msra.mxu0 %v7420
    %7499 = vmatpush.msra.mxu0 %v7415
    %7500 = vmatpush.msra.mxu0 %v7410
    %7501 = vmatpush.msra.mxu0 %v7405
    %7502 = vmatpush.msra.mxu0 %v7400
    %7503 = vmatpush.msra.mxu0 %v7395
    %7504 = vmatpush.msra.mxu0 %v7390
    %7505 = vmatpush.msra.mxu0 %v7385
    %7506 = vmatpush.msra.mxu0 %v7380
    %7507 = vmatpush.msra.mxu0 %v7375
    %7508 = vmatpush.msra.mxu0 %v7370
    %7509 = vmatpush.msra.mxu0 %v7365
    %7510 = vmatpush.msra.mxu0 %v7360
    %7511 = vmatpush.msra.mxu0 %v7355
    %7512 = vmatmul.f32.gmra.mxu0 %v2070
    %v7513 = vpop.f32.mrf.mxu0
    %v7514 = vadd.f32 0.0, %v7513
    %7515 = vmatmul.f32.gmra.mxu0 %v2075
    %v7516 = vpop.f32.mrf.mxu0
    %v7517 = vadd.f32 0.0, %v7516
    %7518 = vmatmul.f32.gmra.mxu0 %v2082
    %v7519 = vpop.f32.mrf.mxu0
    %v7520 = vadd.f32 0.0, %v7519
    %7521 = vdwg.mxu0
    %7522 = vmatpush.msra.mxu0 0.0
    %7523 = vmatpush.msra.mxu0 0.0
    %7524 = vmatpush.msra.mxu0 0.0
    %7525 = vmatpush.msra.mxu0 0.0
    %7526 = vmatpush.msra.mxu0 0.0
    %7527 = vmatpush.msra.mxu0 0.0
    %7528 = vmatpush.msra.mxu0 0.0
    %7529 = vmatpush.msra.mxu0 0.0
    %7530 = vmatpush.msra.mxu0 0.0
    %7531 = vmatpush.msra.mxu0 0.0
    %7532 = vmatpush.msra.mxu0 0.0
    %7533 = vmatpush.msra.mxu0 0.0
    %7534 = vmatpush.msra.mxu0 0.0
    %7535 = vmatpush.msra.mxu0 0.0
    %7536 = vmatpush.msra.mxu0 %v7440
    %7537 = vmatpush.msra.mxu0 %v7435
    %7538 = vmatmul.f32.gmra.mxu0 %v4022
    %v7539 = vpop.f32.mrf.mxu0
    %v7540 = vadd.f32 %v7514, %v7539
    %7541 = vmatmul.f32.gmra.mxu0 %v4024
    %v7542 = vpop.f32.mrf.mxu0
    %v7543 = vadd.f32 %v7517, %v7542
    %7544 = vmatmul.f32.gmra.mxu0 %v4027
    %v7545 = vpop.f32.mrf.mxu0
    %v7546 = vadd.f32 %v7520, %v7545
    %7547 = vdwg.mxu0
    %7548 = vmatpush.msra.mxu0 %v7431
    %7549 = vmatpush.msra.mxu0 %v7426
    %7550 = vmatpush.msra.mxu0 %v7421
    %7551 = vmatpush.msra.mxu0 %v7416
    %7552 = vmatpush.msra.mxu0 %v7411
    %7553 = vmatpush.msra.mxu0 %v7406
    %7554 = vmatpush.msra.mxu0 %v7401
    %7555 = vmatpush.msra.mxu0 %v7396
    %7556 = vmatpush.msra.mxu0 %v7391
    %7557 = vmatpush.msra.mxu0 %v7386
    %7558 = vmatpush.msra.mxu0 %v7381
    %7559 = vmatpush.msra.mxu0 %v7376
    %7560 = vmatpush.msra.mxu0 %v7371
    %7561 = vmatpush.msra.mxu0 %v7366
    %7562 = vmatpush.msra.mxu0 %v7361
    %7563 = vmatpush.msra.mxu0 %v7356
    %7564 = vmatmul.f32.gmra.mxu0 %v2070
    %v7565 = vpop.f32.mrf.mxu0
    %v7566 = vadd.f32 0.0, %v7565
    %7567 = vmatmul.f32.gmra.mxu0 %v2075
    %v7568 = vpop.f32.mrf.mxu0
    %v7569 = vadd.f32 0.0, %v7568
    %7570 = vmatmul.f32.gmra.mxu0 %v2082
    %v7571 = vpop.f32.mrf.mxu0
    %v7572 = vadd.f32 0.0, %v7571
    %7573 = vdwg.mxu0
    %7574 = vmatpush.msra.mxu0 0.0
    %7575 = vmatpush.msra.mxu0 0.0
    %7576 = vmatpush.msra.mxu0 0.0
    %7577 = vmatpush.msra.mxu0 0.0
    %7578 = vmatpush.msra.mxu0 0.0
    %7579 = vmatpush.msra.mxu0 0.0
    %7580 = vmatpush.msra.mxu0 0.0
    %7581 = vmatpush.msra.mxu0 0.0
    %7582 = vmatpush.msra.mxu0 0.0
    %7583 = vmatpush.msra.mxu0 0.0
    %7584 = vmatpush.msra.mxu0 0.0
    %7585 = vmatpush.msra.mxu0 0.0
    %7586 = vmatpush.msra.mxu0 0.0
    %7587 = vmatpush.msra.mxu0 0.0
    %7588 = vmatpush.msra.mxu0 %v7441
    %7589 = vmatpush.msra.mxu0 %v7436
    %7590 = vmatmul.f32.gmra.mxu0 %v4022
    %v7591 = vpop.f32.mrf.mxu0
    %v7592 = vadd.f32 %v7566, %v7591
    %7593 = vmatmul.f32.gmra.mxu0 %v4024
    %v7594 = vpop.f32.mrf.mxu0
    %v7595 = vadd.f32 %v7569, %v7594
    %7596 = vmatmul.f32.gmra.mxu0 %v4027
    %v7597 = vpop.f32.mrf.mxu0
    %v7598 = vadd.f32 %v7572, %v7597
    %7599 = vdwg.mxu0
    %7600 = vmatpush.msra.mxu0 %v7432
    %7601 = vmatpush.msra.mxu0 %v7427
    %7602 = vmatpush.msra.mxu0 %v7422
    %7603 = vmatpush.msra.mxu0 %v7417
    %7604 = vmatpush.msra.mxu0 %v7412
    %7605 = vmatpush.msra.mxu0 %v7407
    %7606 = vmatpush.msra.mxu0 %v7402
    %7607 = vmatpush.msra.mxu0 %v7397
    %7608 = vmatpush.msra.mxu0 %v7392
    %7609 = vmatpush.msra.mxu0 %v7387
    %7610 = vmatpush.msra.mxu0 %v7382
    %7611 = vmatpush.msra.mxu0 %v7377
    %7612 = vmatpush.msra.mxu0 %v7372
    %7613 = vmatpush.msra.mxu0 %v7367
    %7614 = vmatpush.msra.mxu0 %v7362
    %7615 = vmatpush.msra.mxu0 %v7357
    %7616 = vmatmul.f32.gmra.mxu0 %v2070
    %v7617 = vpop.f32.mrf.mxu0
    %v7618 = vadd.f32 0.0, %v7617
    %7619 = vmatmul.f32.gmra.mxu0 %v2075
    %v7620 = vpop.f32.mrf.mxu0
    %v7621 = vadd.f32 0.0, %v7620
    %7622 = vmatmul.f32.gmra.mxu0 %v2082
    %v7623 = vpop.f32.mrf.mxu0
    %v7624 = vadd.f32 0.0, %v7623
    %7625 = vdwg.mxu0
    %7626 = vmatpush.msra.mxu0 0.0
    %7627 = vmatpush.msra.mxu0 0.0
    %7628 = vmatpush.msra.mxu0 0.0
    %7629 = vmatpush.msra.mxu0 0.0
    %7630 = vmatpush.msra.mxu0 0.0
    %7631 = vmatpush.msra.mxu0 0.0
    %7632 = vmatpush.msra.mxu0 0.0
    %7633 = vmatpush.msra.mxu0 0.0
    %7634 = vmatpush.msra.mxu0 0.0
    %7635 = vmatpush.msra.mxu0 0.0
    %7636 = vmatpush.msra.mxu0 0.0
    %7637 = vmatpush.msra.mxu0 0.0
    %7638 = vmatpush.msra.mxu0 0.0
    %7639 = vmatpush.msra.mxu0 0.0
    %7640 = vmatpush.msra.mxu0 %v7442
    %7641 = vmatpush.msra.mxu0 %v7437
    %7642 = vmatmul.f32.gmra.mxu0 %v4022
    %v7643 = vpop.f32.mrf.mxu0
    %v7644 = vadd.f32 %v7618, %v7643
    %7645 = vmatmul.f32.gmra.mxu0 %v4024
    %v7646 = vpop.f32.mrf.mxu0
    %v7647 = vadd.f32 %v7621, %v7646
    %7648 = vmatmul.f32.gmra.mxu0 %v4027
    %v7649 = vpop.f32.mrf.mxu0
    %v7650 = vadd.f32 %v7624, %v7649
    %7651 = vdwg.mxu0
    %7652 = vmatpush.msra.mxu0 %v7433
    %7653 = vmatpush.msra.mxu0 %v7428
    %7654 = vmatpush.msra.mxu0 %v7423
    %7655 = vmatpush.msra.mxu0 %v7418
    %7656 = vmatpush.msra.mxu0 %v7413
    %7657 = vmatpush.msra.mxu0 %v7408
    %7658 = vmatpush.msra.mxu0 %v7403
    %7659 = vmatpush.msra.mxu0 %v7398
    %7660 = vmatpush.msra.mxu0 %v7393
    %7661 = vmatpush.msra.mxu0 %v7388
    %7662 = vmatpush.msra.mxu0 %v7383
    %7663 = vmatpush.msra.mxu0 %v7378
    %7664 = vmatpush.msra.mxu0 %v7373
    %7665 = vmatpush.msra.mxu0 %v7368
    %7666 = vmatpush.msra.mxu0 %v7363
    %7667 = vmatpush.msra.mxu0 %v7358
    %7668 = vmatmul.f32.gmra.mxu0 %v2070
    %v7669 = vpop.f32.mrf.mxu0
    %v7670 = vadd.f32 0.0, %v7669
    %7671 = vmatmul.f32.gmra.mxu0 %v2075
    %v7672 = vpop.f32.mrf.mxu0
    %v7673 = vadd.f32 0.0, %v7672
    %7674 = vmatmul.f32.gmra.mxu0 %v2082
    %v7675 = vpop.f32.mrf.mxu0
    %v7676 = vadd.f32 0.0, %v7675
    %7677 = vdwg.mxu0
    %7678 = vmatpush.msra.mxu0 0.0
    %7679 = vmatpush.msra.mxu0 0.0
    %7680 = vmatpush.msra.mxu0 0.0
    %7681 = vmatpush.msra.mxu0 0.0
    %7682 = vmatpush.msra.mxu0 0.0
    %7683 = vmatpush.msra.mxu0 0.0
    %7684 = vmatpush.msra.mxu0 0.0
    %7685 = vmatpush.msra.mxu0 0.0
    %7686 = vmatpush.msra.mxu0 0.0
    %7687 = vmatpush.msra.mxu0 0.0
    %7688 = vmatpush.msra.mxu0 0.0
    %7689 = vmatpush.msra.mxu0 0.0
    %7690 = vmatpush.msra.mxu0 0.0
    %7691 = vmatpush.msra.mxu0 0.0
    %7692 = vmatpush.msra.mxu0 %v7443
    %7693 = vmatpush.msra.mxu0 %v7438
    %7694 = vmatmul.f32.gmra.mxu0 %v4022
    %v7695 = vpop.f32.mrf.mxu0
    %v7696 = vadd.f32 %v7670, %v7695
    %7697 = vmatmul.f32.gmra.mxu0 %v4024
    %v7698 = vpop.f32.mrf.mxu0
    %v7699 = vadd.f32 %v7673, %v7698
    %7700 = vmatmul.f32.gmra.mxu0 %v4027
    %v7701 = vpop.f32.mrf.mxu0
    %v7702 = vadd.f32 %v7676, %v7701
    %7703 = vdwg.mxu0
    %v7704 = vadd.f32 %v7338, %v7488
    %v7705 = vadd.f32 %v7339, %v7540
    %v7706 = vadd.f32 %v7340, %v7592
    %v7707 = vadd.f32 %v7341, %v7644
    %v7708 = vadd.f32 %v7342, %v7696
    %v7709 = vadd.f32 %v7343, %v7491
    %v7710 = vadd.f32 %v7344, %v7543
    %v7711 = vadd.f32 %v7345, %v7595
    %v7712 = vadd.f32 %v7346, %v7647
    %v7713 = vadd.f32 %v7347, %v7699
    %v7714 = vadd.f32 %v7348, %v7494
    %v7715 = vadd.f32 %v7349, %v7546
    %v7716 = vadd.f32 %v7350, %v7598
    %v7717 = vadd.f32 %v7351, %v7650
    %v7718 = vadd.f32 %v7352, %v7702
    %s7719 = scalar_lea.vmem %s9, 840
    %7720 = vst [vmem:[%s7719] sm:$0xff] %v7704
    %7721 = vst [vmem:[%s7719 + $0x8] sm:$0xff] %v7705
    %7722 = vst [vmem:[%s7719 + $0x10] sm:$0xff] %v7706
    %7723 = vst [vmem:[%s7719 + $0x18] sm:$0xff] %v7707
    %7724 = vst.msk [vmem:[%s7719 + $0x20] sm:$0xff] %vm2472, %v7708
    %7725 = vst [vmem:[%s7719 + $0x28] sm:$0xff] %v7709
    %7726 = vst [vmem:[%s7719 + $0x30] sm:$0xff] %v7710
    %7727 = vst [vmem:[%s7719 + $0x38] sm:$0xff] %v7711
    %7728 = vst [vmem:[%s7719 + $0x40] sm:$0xff] %v7712
    %7729 = vst.msk [vmem:[%s7719 + $0x48] sm:$0xff] %vm2472, %v7713
    %7730 = vst [vmem:[%s7719 + $0x50] sm:$0xff] %v7714
    %7731 = vst [vmem:[%s7719 + $0x58] sm:$0xff] %v7715
    %7732 = vst [vmem:[%s7719 + $0x60] sm:$0xff] %v7716
    %7733 = vst [vmem:[%s7719 + $0x68] sm:$0xff] %v7717
    %7734 = vst.msk [vmem:[%s7719 + $0x70] sm:$0xff] %vm2472, %v7718
    %v7735 = vsub.f32 0.0, %v7704
    %v7736 = vsub.f32 0.0, %v7705
    %v7737 = vsub.f32 0.0, %v7706
    %v7738 = vsub.f32 0.0, %v7707
    %v7739 = vsub.f32 0.0, %v7708
    %v7740 = vsub.f32 0.0, %v7709
    %v7741 = vsub.f32 0.0, %v7710
    %v7742 = vsub.f32 0.0, %v7711
    %v7743 = vsub.f32 0.0, %v7712
    %v7744 = vsub.f32 0.0, %v7713
    %v7745 = vsub.f32 0.0, %v7714
    %v7746 = vsub.f32 0.0, %v7715
    %v7747 = vsub.f32 0.0, %v7716
    %v7748 = vsub.f32 0.0, %v7717
    %v7749 = vsub.f32 0.0, %v7718
    %v7750 = vmul.f32 %v7735, 1.442695
    %v7751 = vpow.pop %v7750
    %v7752 = vmul.f32 %v7736, 1.442695
    %v7753 = vpow.pop %v7752
    %v7754 = vmul.f32 %v7737, 1.442695
    %v7755 = vpow.pop %v7754
    %v7756 = vmul.f32 %v7738, 1.442695
    %v7757 = vpow.pop %v7756
    %v7758 = vmul.f32 %v7739, 1.442695
    %v7759 = vpow.pop %v7758
    %v7760 = vmul.f32 %v7740, 1.442695
    %v7761 = vpow.pop %v7760
    %v7762 = vmul.f32 %v7741, 1.442695
    %v7763 = vpow.pop %v7762
    %v7764 = vmul.f32 %v7742, 1.442695
    %v7765 = vpow.pop %v7764
    %v7766 = vmul.f32 %v7743, 1.442695
    %v7767 = vpow.pop %v7766
    %v7768 = vmul.f32 %v7744, 1.442695
    %v7769 = vpow.pop %v7768
    %v7770 = vmul.f32 %v7745, 1.442695
    %v7771 = vpow.pop %v7770
    %v7772 = vmul.f32 %v7746, 1.442695
    %v7773 = vpow.pop %v7772
    %v7774 = vmul.f32 %v7747, 1.442695
    %v7775 = vpow.pop %v7774
    %v7776 = vmul.f32 %v7748, 1.442695
    %v7777 = vpow.pop %v7776
    %v7778 = vmul.f32 %v7749, 1.442695
    %v7779 = vpow.pop %v7778
    %v7780 = vadd.f32 %v7751, 1.0
    %v7781 = vadd.f32 %v7753, 1.0
    %v7782 = vadd.f32 %v7755, 1.0
    %v7783 = vadd.f32 %v7757, 1.0
    %v7784 = vadd.f32 %v7759, 1.0
    %v7785 = vadd.f32 %v7761, 1.0
    %v7786 = vadd.f32 %v7763, 1.0
    %v7787 = vadd.f32 %v7765, 1.0
    %v7788 = vadd.f32 %v7767, 1.0
    %v7789 = vadd.f32 %v7769, 1.0
    %v7790 = vadd.f32 %v7771, 1.0
    %v7791 = vadd.f32 %v7773, 1.0
    %v7792 = vadd.f32 %v7775, 1.0
    %v7793 = vadd.f32 %v7777, 1.0
    %v7794 = vadd.f32 %v7779, 1.0
    %v7795 = vrcp.pop %v7780
    %v7796 = vrcp.pop %v7781
    %v7797 = vrcp.pop %v7782
    %v7798 = vrcp.pop %v7783
    %v7799 = vrcp.pop %v7784
    %v7800 = vrcp.pop %v7785
    %v7801 = vrcp.pop %v7786
    %v7802 = vrcp.pop %v7787
    %v7803 = vrcp.pop %v7788
    %v7804 = vrcp.pop %v7789
    %v7805 = vrcp.pop %v7790
    %v7806 = vrcp.pop %v7791
    %v7807 = vrcp.pop %v7792
    %v7808 = vrcp.pop %v7793
    %v7809 = vrcp.pop %v7794
    %v7810 = vmul.f32 %v7704, %v7795
    %v7811 = vmul.f32 %v7705, %v7796
    %v7812 = vmul.f32 %v7706, %v7797
    %v7813 = vmul.f32 %v7707, %v7798
    %v7814 = vmul.f32 %v7708, %v7799
    %v7815 = vmul.f32 %v7709, %v7800
    %v7816 = vmul.f32 %v7710, %v7801
    %v7817 = vmul.f32 %v7711, %v7802
    %v7818 = vmul.f32 %v7712, %v7803
    %v7819 = vmul.f32 %v7713, %v7804
    %v7820 = vmul.f32 %v7714, %v7805
    %v7821 = vmul.f32 %v7715, %v7806
    %v7822 = vmul.f32 %v7716, %v7807
    %v7823 = vmul.f32 %v7717, %v7808
    %v7824 = vmul.f32 %v7718, %v7809
    %s7825 = scalar_lea.vmem %s10, 840
    %7826 = vst [vmem:[%s7825] sm:$0xff] %v7810
    %7827 = vst [vmem:[%s7825 + $0x8] sm:$0xff] %v7811
    %7828 = vst [vmem:[%s7825 + $0x10] sm:$0xff] %v7812
    %7829 = vst [vmem:[%s7825 + $0x18] sm:$0xff] %v7813
    %7830 = vst.msk [vmem:[%s7825 + $0x20] sm:$0xff] %vm2472, %v7814
    %7831 = vst [vmem:[%s7825 + $0x28] sm:$0xff] %v7815
    %7832 = vst [vmem:[%s7825 + $0x30] sm:$0xff] %v7816
    %7833 = vst [vmem:[%s7825 + $0x38] sm:$0xff] %v7817
    %7834 = vst [vmem:[%s7825 + $0x40] sm:$0xff] %v7818
    %7835 = vst.msk [vmem:[%s7825 + $0x48] sm:$0xff] %vm2472, %v7819
    %7836 = vst [vmem:[%s7825 + $0x50] sm:$0xff] %v7820
    %7837 = vst [vmem:[%s7825 + $0x58] sm:$0xff] %v7821
    %7838 = vst [vmem:[%s7825 + $0x60] sm:$0xff] %v7822
    %7839 = vst [vmem:[%s7825 + $0x68] sm:$0xff] %v7823
    %7840 = vst.msk [vmem:[%s7825 + $0x70] sm:$0xff] %vm2472, %v7824
    %s7841 = scalar_lea.vmem [#allocation2], 7200
    %v7842 = vld [vmem:[%s7841] sm:$0xff]
    %v7843 = vld [vmem:[%s7841 + $0x8] sm:$0xff]
    %v7844 = vld [vmem:[%s7841 + $0x10] sm:$0xff]
    %v7845 = vld [vmem:[%s7841 + $0x18] sm:$0xff]
    %v7846 = vld [vmem:[%s7841 + $0x20] sm:$0xff]
    %v7847 = vld [vmem:[%s7841 + $0x28] sm:$0xff]
    %v7848 = vld [vmem:[%s7841 + $0x30] sm:$0xff]
    %v7849 = vld [vmem:[%s7841 + $0x38] sm:$0xff]
    %v7850 = vld [vmem:[%s7841 + $0x40] sm:$0xff]
    %v7851 = vld [vmem:[%s7841 + $0x48] sm:$0xff]
    %v7852 = vld [vmem:[%s7841 + $0x50] sm:$0xff]
    %v7853 = vld [vmem:[%s7841 + $0x58] sm:$0xff]
    %v7854 = vld [vmem:[%s7841 + $0x60] sm:$0xff]
    %v7855 = vld [vmem:[%s7841 + $0x68] sm:$0xff]
    %v7856 = vld [vmem:[%s7841 + $0x70] sm:$0xff]
    %v7857 = vld [vmem:[%s7841 + $0x78] sm:$0xff]
    %v7858 = vld [vmem:[%s7841 + $0x80] sm:$0xff]
    %v7859 = vld [vmem:[%s7841 + $0x88] sm:$0xff]
    %v7860 = vld [vmem:[%s7841 + $0x90] sm:$0xff]
    %v7861 = vld [vmem:[%s7841 + $0x98] sm:$0xff]
    %v7862 = vld [vmem:[%s7841 + $0xa0] sm:$0xff]
    %v7863 = vld [vmem:[%s7841 + $0xa8] sm:$0xff]
    %v7864 = vld [vmem:[%s7841 + $0xb0] sm:$0xff]
    %v7865 = vld [vmem:[%s7841 + $0xb8] sm:$0xff]
    %v7866 = vld [vmem:[%s7841 + $0xc0] sm:$0xff]
    %v7867 = vld [vmem:[%s7841 + $0xc8] sm:$0xff]
    %v7868 = vld [vmem:[%s7841 + $0xd0] sm:$0xff]
    %v7869 = vld [vmem:[%s7841 + $0xd8] sm:$0xff]
    %v7870 = vld [vmem:[%s7841 + $0xe0] sm:$0xff]
    %v7871 = vld [vmem:[%s7841 + $0xe8] sm:$0xff]
    %v7872 = vld [vmem:[%s7841 + $0xf0] sm:$0xff]
    %v7873 = vld [vmem:[%s7841 + $0xf8] sm:$0xff]
    %v7874 = vld [vmem:[%s7841 + $0x100] sm:$0xff]
    %v7875 = vld [vmem:[%s7841 + $0x108] sm:$0xff]
    %v7876 = vld [vmem:[%s7841 + $0x110] sm:$0xff]
    %v7877 = vld [vmem:[%s7841 + $0x118] sm:$0xff]
    %v7878 = vld [vmem:[%s7841 + $0x120] sm:$0xff]
    %v7879 = vld [vmem:[%s7841 + $0x128] sm:$0xff]
    %v7880 = vld [vmem:[%s7841 + $0x130] sm:$0xff]
    %v7881 = vld [vmem:[%s7841 + $0x138] sm:$0xff]
    %v7882 = vld [vmem:[%s7841 + $0x140] sm:$0xff]
    %v7883 = vld [vmem:[%s7841 + $0x148] sm:$0xff]
    %v7884 = vld [vmem:[%s7841 + $0x150] sm:$0xff]
    %v7885 = vld [vmem:[%s7841 + $0x158] sm:$0xff]
    %v7886 = vld [vmem:[%s7841 + $0x160] sm:$0xff]
    %v7887 = vld [vmem:[%s7841 + $0x168] sm:$0xff]
    %v7888 = vld [vmem:[%s7841 + $0x170] sm:$0xff]
    %v7889 = vld [vmem:[%s7841 + $0x178] sm:$0xff]
    %v7890 = vld [vmem:[%s7841 + $0x180] sm:$0xff]
    %v7891 = vld [vmem:[%s7841 + $0x188] sm:$0xff]
    %v7892 = vld [vmem:[%s7841 + $0x190] sm:$0xff]
    %v7893 = vld [vmem:[%s7841 + $0x198] sm:$0xff]
    %v7894 = vld [vmem:[%s7841 + $0x1a0] sm:$0xff]
    %v7895 = vld [vmem:[%s7841 + $0x1a8] sm:$0xff]
    %v7896 = vld [vmem:[%s7841 + $0x1b0] sm:$0xff]
    %v7897 = vld [vmem:[%s7841 + $0x1b8] sm:$0xff]
    %v7898 = vld [vmem:[%s7841 + $0x1c0] sm:$0xff]
    %v7899 = vld [vmem:[%s7841 + $0x1c8] sm:$0xff]
    %v7900 = vld [vmem:[%s7841 + $0x1d0] sm:$0xff]
    %v7901 = vld [vmem:[%s7841 + $0x1d8] sm:$0xff]
    %v7902 = vld [vmem:[%s7841 + $0x1e0] sm:$0xff]
    %v7903 = vld [vmem:[%s7841 + $0x1e8] sm:$0xff]
    %v7904 = vld [vmem:[%s7841 + $0x1f0] sm:$0xff]
    %v7905 = vld [vmem:[%s7841 + $0x1f8] sm:$0xff]
    %v7906 = vld [vmem:[%s7841 + $0x200] sm:$0xff]
    %v7907 = vld [vmem:[%s7841 + $0x208] sm:$0xff]
    %v7908 = vld [vmem:[%s7841 + $0x210] sm:$0xff]
    %v7909 = vld [vmem:[%s7841 + $0x218] sm:$0xff]
    %v7910 = vld [vmem:[%s7841 + $0x220] sm:$0xff]
    %v7911 = vld [vmem:[%s7841 + $0x228] sm:$0xff]
    %v7912 = vld [vmem:[%s7841 + $0x230] sm:$0xff]
    %v7913 = vld [vmem:[%s7841 + $0x238] sm:$0xff]
    %v7914 = vld [vmem:[%s7841 + $0x240] sm:$0xff]
    %v7915 = vld [vmem:[%s7841 + $0x248] sm:$0xff]
    %v7916 = vld [vmem:[%s7841 + $0x250] sm:$0xff]
    %v7917 = vld [vmem:[%s7841 + $0x258] sm:$0xff]
    %v7918 = vld [vmem:[%s7841 + $0x260] sm:$0xff]
    %v7919 = vld [vmem:[%s7841 + $0x268] sm:$0xff]
    %v7920 = vld [vmem:[%s7841 + $0x270] sm:$0xff]
    %v7921 = vld [vmem:[%s7841 + $0x278] sm:$0xff]
    %v7922 = vld [vmem:[%s7841 + $0x280] sm:$0xff]
    %v7923 = vld [vmem:[%s7841 + $0x288] sm:$0xff]
    %v7924 = vld [vmem:[%s7841 + $0x290] sm:$0xff]
    %v7925 = vld [vmem:[%s7841 + $0x298] sm:$0xff]
    %v7926 = vld [vmem:[%s7841 + $0x2a0] sm:$0xff]
    %v7927 = vld [vmem:[%s7841 + $0x2a8] sm:$0xff]
    %v7928 = vld [vmem:[%s7841 + $0x2b0] sm:$0xff]
    %v7929 = vld [vmem:[%s7841 + $0x2b8] sm:$0xff]
    %v7930 = vld [vmem:[%s7841 + $0x2c0] sm:$0xff]
    %v7931 = vld [vmem:[%s7841 + $0x2c8] sm:$0xff]
    %7932 = vmatpush.msra.mxu0 %v7917
    %7933 = vmatpush.msra.mxu0 %v7912
    %7934 = vmatpush.msra.mxu0 %v7907
    %7935 = vmatpush.msra.mxu0 %v7902
    %7936 = vmatpush.msra.mxu0 %v7897
    %7937 = vmatpush.msra.mxu0 %v7892
    %7938 = vmatpush.msra.mxu0 %v7887
    %7939 = vmatpush.msra.mxu0 %v7882
    %7940 = vmatpush.msra.mxu0 %v7877
    %7941 = vmatpush.msra.mxu0 %v7872
    %7942 = vmatpush.msra.mxu0 %v7867
    %7943 = vmatpush.msra.mxu0 %v7862
    %7944 = vmatpush.msra.mxu0 %v7857
    %7945 = vmatpush.msra.mxu0 %v7852
    %7946 = vmatpush.msra.mxu0 %v7847
    %7947 = vmatpush.msra.mxu0 %v7842
    %7948 = vmatmul.f32.gmra.mxu0 %v2049
    %v7949 = vpop.f32.mrf.mxu0
    %v7950 = vadd.f32 0.0, %v7949
    %7951 = vmatmul.f32.gmra.mxu0 %v2051
    %v7952 = vpop.f32.mrf.mxu0
    %v7953 = vadd.f32 0.0, %v7952
    %7954 = vmatmul.f32.gmra.mxu0 %v2053
    %v7955 = vpop.f32.mrf.mxu0
    %v7956 = vadd.f32 0.0, %v7955
    %7957 = vdwg.mxu0
    %7958 = vmatpush.msra.mxu0 0.0
    %7959 = vmatpush.msra.mxu0 0.0
    %7960 = vmatpush.msra.mxu0 0.0
    %7961 = vmatpush.msra.mxu0 0.0
    %7962 = vmatpush.msra.mxu0 0.0
    %7963 = vmatpush.msra.mxu0 0.0
    %7964 = vmatpush.msra.mxu0 0.0
    %7965 = vmatpush.msra.mxu0 0.0
    %7966 = vmatpush.msra.mxu0 0.0
    %7967 = vmatpush.msra.mxu0 0.0
    %7968 = vmatpush.msra.mxu0 0.0
    %7969 = vmatpush.msra.mxu0 0.0
    %7970 = vmatpush.msra.mxu0 0.0
    %7971 = vmatpush.msra.mxu0 0.0
    %7972 = vmatpush.msra.mxu0 %v7927
    %7973 = vmatpush.msra.mxu0 %v7922
    %7974 = vmatmul.f32.gmra.mxu0 %v2187
    %v7975 = vpop.f32.mrf.mxu0
    %v7976 = vadd.f32 %v7950, %v7975
    %7977 = vmatmul.f32.gmra.mxu0 %v2189
    %v7978 = vpop.f32.mrf.mxu0
    %v7979 = vadd.f32 %v7953, %v7978
    %7980 = vmatmul.f32.gmra.mxu0 %v2191
    %v7981 = vpop.f32.mrf.mxu0
    %v7982 = vadd.f32 %v7956, %v7981
    %7983 = vdwg.mxu0
    %7984 = vmatpush.msra.mxu0 %v7918
    %7985 = vmatpush.msra.mxu0 %v7913
    %7986 = vmatpush.msra.mxu0 %v7908
    %7987 = vmatpush.msra.mxu0 %v7903
    %7988 = vmatpush.msra.mxu0 %v7898
    %7989 = vmatpush.msra.mxu0 %v7893
    %7990 = vmatpush.msra.mxu0 %v7888
    %7991 = vmatpush.msra.mxu0 %v7883
    %7992 = vmatpush.msra.mxu0 %v7878
    %7993 = vmatpush.msra.mxu0 %v7873
    %7994 = vmatpush.msra.mxu0 %v7868
    %7995 = vmatpush.msra.mxu0 %v7863
    %7996 = vmatpush.msra.mxu0 %v7858
    %7997 = vmatpush.msra.mxu0 %v7853
    %7998 = vmatpush.msra.mxu0 %v7848
    %7999 = vmatpush.msra.mxu0 %v7843
    %8000 = vmatmul.f32.gmra.mxu0 %v2049
    %v8001 = vpop.f32.mrf.mxu0
    %v8002 = vadd.f32 0.0, %v8001
    %8003 = vmatmul.f32.gmra.mxu0 %v2051
    %v8004 = vpop.f32.mrf.mxu0
    %v8005 = vadd.f32 0.0, %v8004
    %8006 = vmatmul.f32.gmra.mxu0 %v2053
    %v8007 = vpop.f32.mrf.mxu0
    %v8008 = vadd.f32 0.0, %v8007
    %8009 = vdwg.mxu0
    %8010 = vmatpush.msra.mxu0 0.0
    %8011 = vmatpush.msra.mxu0 0.0
    %8012 = vmatpush.msra.mxu0 0.0
    %8013 = vmatpush.msra.mxu0 0.0
    %8014 = vmatpush.msra.mxu0 0.0
    %8015 = vmatpush.msra.mxu0 0.0
    %8016 = vmatpush.msra.mxu0 0.0
    %8017 = vmatpush.msra.mxu0 0.0
    %8018 = vmatpush.msra.mxu0 0.0
    %8019 = vmatpush.msra.mxu0 0.0
    %8020 = vmatpush.msra.mxu0 0.0
    %8021 = vmatpush.msra.mxu0 0.0
    %8022 = vmatpush.msra.mxu0 0.0
    %8023 = vmatpush.msra.mxu0 0.0
    %8024 = vmatpush.msra.mxu0 %v7928
    %8025 = vmatpush.msra.mxu0 %v7923
    %8026 = vmatmul.f32.gmra.mxu0 %v2187
    %v8027 = vpop.f32.mrf.mxu0
    %v8028 = vadd.f32 %v8002, %v8027
    %8029 = vmatmul.f32.gmra.mxu0 %v2189
    %v8030 = vpop.f32.mrf.mxu0
    %v8031 = vadd.f32 %v8005, %v8030
    %8032 = vmatmul.f32.gmra.mxu0 %v2191
    %v8033 = vpop.f32.mrf.mxu0
    %v8034 = vadd.f32 %v8008, %v8033
    %8035 = vdwg.mxu0
    %8036 = vmatpush.msra.mxu0 %v7919
    %8037 = vmatpush.msra.mxu0 %v7914
    %8038 = vmatpush.msra.mxu0 %v7909
    %8039 = vmatpush.msra.mxu0 %v7904
    %8040 = vmatpush.msra.mxu0 %v7899
    %8041 = vmatpush.msra.mxu0 %v7894
    %8042 = vmatpush.msra.mxu0 %v7889
    %8043 = vmatpush.msra.mxu0 %v7884
    %8044 = vmatpush.msra.mxu0 %v7879
    %8045 = vmatpush.msra.mxu0 %v7874
    %8046 = vmatpush.msra.mxu0 %v7869
    %8047 = vmatpush.msra.mxu0 %v7864
    %8048 = vmatpush.msra.mxu0 %v7859
    %8049 = vmatpush.msra.mxu0 %v7854
    %8050 = vmatpush.msra.mxu0 %v7849
    %8051 = vmatpush.msra.mxu0 %v7844
    %8052 = vmatmul.f32.gmra.mxu0 %v2049
    %v8053 = vpop.f32.mrf.mxu0
    %v8054 = vadd.f32 0.0, %v8053
    %8055 = vmatmul.f32.gmra.mxu0 %v2051
    %v8056 = vpop.f32.mrf.mxu0
    %v8057 = vadd.f32 0.0, %v8056
    %8058 = vmatmul.f32.gmra.mxu0 %v2053
    %v8059 = vpop.f32.mrf.mxu0
    %v8060 = vadd.f32 0.0, %v8059
    %8061 = vdwg.mxu0
    %8062 = vmatpush.msra.mxu0 0.0
    %8063 = vmatpush.msra.mxu0 0.0
    %8064 = vmatpush.msra.mxu0 0.0
    %8065 = vmatpush.msra.mxu0 0.0
    %8066 = vmatpush.msra.mxu0 0.0
    %8067 = vmatpush.msra.mxu0 0.0
    %8068 = vmatpush.msra.mxu0 0.0
    %8069 = vmatpush.msra.mxu0 0.0
    %8070 = vmatpush.msra.mxu0 0.0
    %8071 = vmatpush.msra.mxu0 0.0
    %8072 = vmatpush.msra.mxu0 0.0
    %8073 = vmatpush.msra.mxu0 0.0
    %8074 = vmatpush.msra.mxu0 0.0
    %8075 = vmatpush.msra.mxu0 0.0
    %8076 = vmatpush.msra.mxu0 %v7929
    %8077 = vmatpush.msra.mxu0 %v7924
    %8078 = vmatmul.f32.gmra.mxu0 %v2187
    %v8079 = vpop.f32.mrf.mxu0
    %v8080 = vadd.f32 %v8054, %v8079
    %8081 = vmatmul.f32.gmra.mxu0 %v2189
    %v8082 = vpop.f32.mrf.mxu0
    %v8083 = vadd.f32 %v8057, %v8082
    %8084 = vmatmul.f32.gmra.mxu0 %v2191
    %v8085 = vpop.f32.mrf.mxu0
    %v8086 = vadd.f32 %v8060, %v8085
    %8087 = vdwg.mxu0
    %8088 = vmatpush.msra.mxu0 %v7920
    %8089 = vmatpush.msra.mxu0 %v7915
    %8090 = vmatpush.msra.mxu0 %v7910
    %8091 = vmatpush.msra.mxu0 %v7905
    %8092 = vmatpush.msra.mxu0 %v7900
    %8093 = vmatpush.msra.mxu0 %v7895
    %8094 = vmatpush.msra.mxu0 %v7890
    %8095 = vmatpush.msra.mxu0 %v7885
    %8096 = vmatpush.msra.mxu0 %v7880
    %8097 = vmatpush.msra.mxu0 %v7875
    %8098 = vmatpush.msra.mxu0 %v7870
    %8099 = vmatpush.msra.mxu0 %v7865
    %8100 = vmatpush.msra.mxu0 %v7860
    %8101 = vmatpush.msra.mxu0 %v7855
    %8102 = vmatpush.msra.mxu0 %v7850
    %8103 = vmatpush.msra.mxu0 %v7845
    %8104 = vmatmul.f32.gmra.mxu0 %v2049
    %v8105 = vpop.f32.mrf.mxu0
    %v8106 = vadd.f32 0.0, %v8105
    %8107 = vmatmul.f32.gmra.mxu0 %v2051
    %v8108 = vpop.f32.mrf.mxu0
    %v8109 = vadd.f32 0.0, %v8108
    %8110 = vmatmul.f32.gmra.mxu0 %v2053
    %v8111 = vpop.f32.mrf.mxu0
    %v8112 = vadd.f32 0.0, %v8111
    %8113 = vdwg.mxu0
    %8114 = vmatpush.msra.mxu0 0.0
    %8115 = vmatpush.msra.mxu0 0.0
    %8116 = vmatpush.msra.mxu0 0.0
    %8117 = vmatpush.msra.mxu0 0.0
    %8118 = vmatpush.msra.mxu0 0.0
    %8119 = vmatpush.msra.mxu0 0.0
    %8120 = vmatpush.msra.mxu0 0.0
    %8121 = vmatpush.msra.mxu0 0.0
    %8122 = vmatpush.msra.mxu0 0.0
    %8123 = vmatpush.msra.mxu0 0.0
    %8124 = vmatpush.msra.mxu0 0.0
    %8125 = vmatpush.msra.mxu0 0.0
    %8126 = vmatpush.msra.mxu0 0.0
    %8127 = vmatpush.msra.mxu0 0.0
    %8128 = vmatpush.msra.mxu0 %v7930
    %8129 = vmatpush.msra.mxu0 %v7925
    %8130 = vmatmul.f32.gmra.mxu0 %v2187
    %v8131 = vpop.f32.mrf.mxu0
    %v8132 = vadd.f32 %v8106, %v8131
    %8133 = vmatmul.f32.gmra.mxu0 %v2189
    %v8134 = vpop.f32.mrf.mxu0
    %v8135 = vadd.f32 %v8109, %v8134
    %8136 = vmatmul.f32.gmra.mxu0 %v2191
    %v8137 = vpop.f32.mrf.mxu0
    %v8138 = vadd.f32 %v8112, %v8137
    %8139 = vdwg.mxu0
    %8140 = vmatpush.msra.mxu0 %v7921
    %8141 = vmatpush.msra.mxu0 %v7916
    %8142 = vmatpush.msra.mxu0 %v7911
    %8143 = vmatpush.msra.mxu0 %v7906
    %8144 = vmatpush.msra.mxu0 %v7901
    %8145 = vmatpush.msra.mxu0 %v7896
    %8146 = vmatpush.msra.mxu0 %v7891
    %8147 = vmatpush.msra.mxu0 %v7886
    %8148 = vmatpush.msra.mxu0 %v7881
    %8149 = vmatpush.msra.mxu0 %v7876
    %8150 = vmatpush.msra.mxu0 %v7871
    %8151 = vmatpush.msra.mxu0 %v7866
    %8152 = vmatpush.msra.mxu0 %v7861
    %8153 = vmatpush.msra.mxu0 %v7856
    %8154 = vmatpush.msra.mxu0 %v7851
    %8155 = vmatpush.msra.mxu0 %v7846
    %8156 = vmatmul.f32.gmra.mxu0 %v2049
    %v8157 = vpop.f32.mrf.mxu0
    %v8158 = vadd.f32 0.0, %v8157
    %8159 = vmatmul.f32.gmra.mxu0 %v2051
    %v8160 = vpop.f32.mrf.mxu0
    %v8161 = vadd.f32 0.0, %v8160
    %8162 = vmatmul.f32.gmra.mxu0 %v2053
    %v8163 = vpop.f32.mrf.mxu0
    %v8164 = vadd.f32 0.0, %v8163
    %8165 = vdwg.mxu0
    %8166 = vmatpush.msra.mxu0 0.0
    %8167 = vmatpush.msra.mxu0 0.0
    %8168 = vmatpush.msra.mxu0 0.0
    %8169 = vmatpush.msra.mxu0 0.0
    %8170 = vmatpush.msra.mxu0 0.0
    %8171 = vmatpush.msra.mxu0 0.0
    %8172 = vmatpush.msra.mxu0 0.0
    %8173 = vmatpush.msra.mxu0 0.0
    %8174 = vmatpush.msra.mxu0 0.0
    %8175 = vmatpush.msra.mxu0 0.0
    %8176 = vmatpush.msra.mxu0 0.0
    %8177 = vmatpush.msra.mxu0 0.0
    %8178 = vmatpush.msra.mxu0 0.0
    %8179 = vmatpush.msra.mxu0 0.0
    %8180 = vmatpush.msra.mxu0 %v7931
    %8181 = vmatpush.msra.mxu0 %v7926
    %8182 = vmatmul.f32.gmra.mxu0 %v2187
    %v8183 = vpop.f32.mrf.mxu0
    %v8184 = vadd.f32 %v8158, %v8183
    %8185 = vmatmul.f32.gmra.mxu0 %v2189
    %v8186 = vpop.f32.mrf.mxu0
    %v8187 = vadd.f32 %v8161, %v8186
    %8188 = vmatmul.f32.gmra.mxu0 %v2191
    %v8189 = vpop.f32.mrf.mxu0
    %v8190 = vadd.f32 %v8164, %v8189
    %8191 = vdwg.mxu0
    %v8192 = vadd.f32 %v2086, %v7976
    %v8193 = vadd.f32 %v2087, %v8028
    %v8194 = vadd.f32 %v2088, %v8080
    %v8195 = vadd.f32 %v2089, %v8132
    %v8196 = vadd.f32 %v2090, %v8184
    %v8197 = vadd.f32 %v2086, %v7979
    %v8198 = vadd.f32 %v2087, %v8031
    %v8199 = vadd.f32 %v2088, %v8083
    %v8200 = vadd.f32 %v2089, %v8135
    %v8201 = vadd.f32 %v2090, %v8187
    %v8202 = vadd.f32 %v2086, %v7982
    %v8203 = vadd.f32 %v2087, %v8034
    %v8204 = vadd.f32 %v2088, %v8086
    %v8205 = vadd.f32 %v2089, %v8138
    %v8206 = vadd.f32 %v2090, %v8190
    %s8207 = scalar_lea.vmem [#allocation2], 9360
    %v8208 = vld [vmem:[%s8207] sm:$0xff]
    %v8209 = vld [vmem:[%s8207 + $0x8] sm:$0xff]
    %v8210 = vld [vmem:[%s8207 + $0x10] sm:$0xff]
    %v8211 = vld [vmem:[%s8207 + $0x18] sm:$0xff]
    %v8212 = vld [vmem:[%s8207 + $0x20] sm:$0xff]
    %v8213 = vld [vmem:[%s8207 + $0x28] sm:$0xff]
    %v8214 = vld [vmem:[%s8207 + $0x30] sm:$0xff]
    %v8215 = vld [vmem:[%s8207 + $0x38] sm:$0xff]
    %v8216 = vld [vmem:[%s8207 + $0x40] sm:$0xff]
    %v8217 = vld [vmem:[%s8207 + $0x48] sm:$0xff]
    %v8218 = vld [vmem:[%s8207 + $0x50] sm:$0xff]
    %v8219 = vld [vmem:[%s8207 + $0x58] sm:$0xff]
    %v8220 = vld [vmem:[%s8207 + $0x60] sm:$0xff]
    %v8221 = vld [vmem:[%s8207 + $0x68] sm:$0xff]
    %v8222 = vld [vmem:[%s8207 + $0x70] sm:$0xff]
    %v8223 = vld [vmem:[%s8207 + $0x78] sm:$0xff]
    %v8224 = vld [vmem:[%s8207 + $0x80] sm:$0xff]
    %v8225 = vld [vmem:[%s8207 + $0x88] sm:$0xff]
    %v8226 = vld [vmem:[%s8207 + $0x90] sm:$0xff]
    %v8227 = vld [vmem:[%s8207 + $0x98] sm:$0xff]
    %v8228 = vld [vmem:[%s8207 + $0xa0] sm:$0xff]
    %v8229 = vld [vmem:[%s8207 + $0xa8] sm:$0xff]
    %v8230 = vld [vmem:[%s8207 + $0xb0] sm:$0xff]
    %v8231 = vld [vmem:[%s8207 + $0xb8] sm:$0xff]
    %v8232 = vld [vmem:[%s8207 + $0xc0] sm:$0xff]
    %v8233 = vld [vmem:[%s8207 + $0xc8] sm:$0xff]
    %v8234 = vld [vmem:[%s8207 + $0xd0] sm:$0xff]
    %v8235 = vld [vmem:[%s8207 + $0xd8] sm:$0xff]
    %v8236 = vld [vmem:[%s8207 + $0xe0] sm:$0xff]
    %v8237 = vld [vmem:[%s8207 + $0xe8] sm:$0xff]
    %v8238 = vld [vmem:[%s8207 + $0xf0] sm:$0xff]
    %v8239 = vld [vmem:[%s8207 + $0xf8] sm:$0xff]
    %v8240 = vld [vmem:[%s8207 + $0x100] sm:$0xff]
    %v8241 = vld [vmem:[%s8207 + $0x108] sm:$0xff]
    %v8242 = vld [vmem:[%s8207 + $0x110] sm:$0xff]
    %v8243 = vld [vmem:[%s8207 + $0x118] sm:$0xff]
    %v8244 = vld [vmem:[%s8207 + $0x120] sm:$0xff]
    %v8245 = vld [vmem:[%s8207 + $0x128] sm:$0xff]
    %v8246 = vld [vmem:[%s8207 + $0x130] sm:$0xff]
    %v8247 = vld [vmem:[%s8207 + $0x138] sm:$0xff]
    %v8248 = vld [vmem:[%s8207 + $0x140] sm:$0xff]
    %v8249 = vld [vmem:[%s8207 + $0x148] sm:$0xff]
    %v8250 = vld [vmem:[%s8207 + $0x150] sm:$0xff]
    %v8251 = vld [vmem:[%s8207 + $0x158] sm:$0xff]
    %v8252 = vld [vmem:[%s8207 + $0x160] sm:$0xff]
    %v8253 = vld [vmem:[%s8207 + $0x168] sm:$0xff]
    %v8254 = vld [vmem:[%s8207 + $0x170] sm:$0xff]
    %v8255 = vld [vmem:[%s8207 + $0x178] sm:$0xff]
    %v8256 = vld [vmem:[%s8207 + $0x180] sm:$0xff]
    %v8257 = vld [vmem:[%s8207 + $0x188] sm:$0xff]
    %v8258 = vld [vmem:[%s8207 + $0x190] sm:$0xff]
    %v8259 = vld [vmem:[%s8207 + $0x198] sm:$0xff]
    %v8260 = vld [vmem:[%s8207 + $0x1a0] sm:$0xff]
    %v8261 = vld [vmem:[%s8207 + $0x1a8] sm:$0xff]
    %v8262 = vld [vmem:[%s8207 + $0x1b0] sm:$0xff]
    %v8263 = vld [vmem:[%s8207 + $0x1b8] sm:$0xff]
    %v8264 = vld [vmem:[%s8207 + $0x1c0] sm:$0xff]
    %v8265 = vld [vmem:[%s8207 + $0x1c8] sm:$0xff]
    %v8266 = vld [vmem:[%s8207 + $0x1d0] sm:$0xff]
    %v8267 = vld [vmem:[%s8207 + $0x1d8] sm:$0xff]
    %v8268 = vld [vmem:[%s8207 + $0x1e0] sm:$0xff]
    %v8269 = vld [vmem:[%s8207 + $0x1e8] sm:$0xff]
    %v8270 = vld [vmem:[%s8207 + $0x1f0] sm:$0xff]
    %v8271 = vld [vmem:[%s8207 + $0x1f8] sm:$0xff]
    %v8272 = vld [vmem:[%s8207 + $0x200] sm:$0xff]
    %v8273 = vld [vmem:[%s8207 + $0x208] sm:$0xff]
    %v8274 = vld [vmem:[%s8207 + $0x210] sm:$0xff]
    %v8275 = vld [vmem:[%s8207 + $0x218] sm:$0xff]
    %v8276 = vld [vmem:[%s8207 + $0x220] sm:$0xff]
    %v8277 = vld [vmem:[%s8207 + $0x228] sm:$0xff]
    %v8278 = vld [vmem:[%s8207 + $0x230] sm:$0xff]
    %v8279 = vld [vmem:[%s8207 + $0x238] sm:$0xff]
    %v8280 = vld [vmem:[%s8207 + $0x240] sm:$0xff]
    %v8281 = vld [vmem:[%s8207 + $0x248] sm:$0xff]
    %v8282 = vld [vmem:[%s8207 + $0x250] sm:$0xff]
    %v8283 = vld [vmem:[%s8207 + $0x258] sm:$0xff]
    %v8284 = vld [vmem:[%s8207 + $0x260] sm:$0xff]
    %v8285 = vld [vmem:[%s8207 + $0x268] sm:$0xff]
    %v8286 = vld [vmem:[%s8207 + $0x270] sm:$0xff]
    %v8287 = vld [vmem:[%s8207 + $0x278] sm:$0xff]
    %v8288 = vld [vmem:[%s8207 + $0x280] sm:$0xff]
    %v8289 = vld [vmem:[%s8207 + $0x288] sm:$0xff]
    %v8290 = vld [vmem:[%s8207 + $0x290] sm:$0xff]
    %v8291 = vld [vmem:[%s8207 + $0x298] sm:$0xff]
    %v8292 = vld [vmem:[%s8207 + $0x2a0] sm:$0xff]
    %v8293 = vld [vmem:[%s8207 + $0x2a8] sm:$0xff]
    %v8294 = vld [vmem:[%s8207 + $0x2b0] sm:$0xff]
    %v8295 = vld [vmem:[%s8207 + $0x2b8] sm:$0xff]
    %v8296 = vld [vmem:[%s8207 + $0x2c0] sm:$0xff]
    %v8297 = vld [vmem:[%s8207 + $0x2c8] sm:$0xff]
    %8298 = vmatpush.msra.mxu0 %v8283
    %8299 = vmatpush.msra.mxu0 %v8278
    %8300 = vmatpush.msra.mxu0 %v8273
    %8301 = vmatpush.msra.mxu0 %v8268
    %8302 = vmatpush.msra.mxu0 %v8263
    %8303 = vmatpush.msra.mxu0 %v8258
    %8304 = vmatpush.msra.mxu0 %v8253
    %8305 = vmatpush.msra.mxu0 %v8248
    %8306 = vmatpush.msra.mxu0 %v8243
    %8307 = vmatpush.msra.mxu0 %v8238
    %8308 = vmatpush.msra.mxu0 %v8233
    %8309 = vmatpush.msra.mxu0 %v8228
    %8310 = vmatpush.msra.mxu0 %v8223
    %8311 = vmatpush.msra.mxu0 %v8218
    %8312 = vmatpush.msra.mxu0 %v8213
    %8313 = vmatpush.msra.mxu0 %v8208
    %8314 = vmatmul.f32.gmra.mxu0 %v2070
    %v8315 = vpop.f32.mrf.mxu0
    %v8316 = vadd.f32 0.0, %v8315
    %8317 = vmatmul.f32.gmra.mxu0 %v2075
    %v8318 = vpop.f32.mrf.mxu0
    %v8319 = vadd.f32 0.0, %v8318
    %8320 = vmatmul.f32.gmra.mxu0 %v2082
    %v8321 = vpop.f32.mrf.mxu0
    %v8322 = vadd.f32 0.0, %v8321
    %8323 = vdwg.mxu0
    %8324 = vmatpush.msra.mxu0 0.0
    %8325 = vmatpush.msra.mxu0 0.0
    %8326 = vmatpush.msra.mxu0 0.0
    %8327 = vmatpush.msra.mxu0 0.0
    %8328 = vmatpush.msra.mxu0 0.0
    %8329 = vmatpush.msra.mxu0 0.0
    %8330 = vmatpush.msra.mxu0 0.0
    %8331 = vmatpush.msra.mxu0 0.0
    %8332 = vmatpush.msra.mxu0 0.0
    %8333 = vmatpush.msra.mxu0 0.0
    %8334 = vmatpush.msra.mxu0 0.0
    %8335 = vmatpush.msra.mxu0 0.0
    %8336 = vmatpush.msra.mxu0 0.0
    %8337 = vmatpush.msra.mxu0 0.0
    %8338 = vmatpush.msra.mxu0 %v8293
    %8339 = vmatpush.msra.mxu0 %v8288
    %8340 = vmatmul.f32.gmra.mxu0 %v4022
    %v8341 = vpop.f32.mrf.mxu0
    %v8342 = vadd.f32 %v8316, %v8341
    %8343 = vmatmul.f32.gmra.mxu0 %v4024
    %v8344 = vpop.f32.mrf.mxu0
    %v8345 = vadd.f32 %v8319, %v8344
    %8346 = vmatmul.f32.gmra.mxu0 %v4027
    %v8347 = vpop.f32.mrf.mxu0
    %v8348 = vadd.f32 %v8322, %v8347
    %8349 = vdwg.mxu0
    %8350 = vmatpush.msra.mxu0 %v8284
    %8351 = vmatpush.msra.mxu0 %v8279
    %8352 = vmatpush.msra.mxu0 %v8274
    %8353 = vmatpush.msra.mxu0 %v8269
    %8354 = vmatpush.msra.mxu0 %v8264
    %8355 = vmatpush.msra.mxu0 %v8259
    %8356 = vmatpush.msra.mxu0 %v8254
    %8357 = vmatpush.msra.mxu0 %v8249
    %8358 = vmatpush.msra.mxu0 %v8244
    %8359 = vmatpush.msra.mxu0 %v8239
    %8360 = vmatpush.msra.mxu0 %v8234
    %8361 = vmatpush.msra.mxu0 %v8229
    %8362 = vmatpush.msra.mxu0 %v8224
    %8363 = vmatpush.msra.mxu0 %v8219
    %8364 = vmatpush.msra.mxu0 %v8214
    %8365 = vmatpush.msra.mxu0 %v8209
    %8366 = vmatmul.f32.gmra.mxu0 %v2070
    %v8367 = vpop.f32.mrf.mxu0
    %v8368 = vadd.f32 0.0, %v8367
    %8369 = vmatmul.f32.gmra.mxu0 %v2075
    %v8370 = vpop.f32.mrf.mxu0
    %v8371 = vadd.f32 0.0, %v8370
    %8372 = vmatmul.f32.gmra.mxu0 %v2082
    %v8373 = vpop.f32.mrf.mxu0
    %v8374 = vadd.f32 0.0, %v8373
    %8375 = vdwg.mxu0
    %8376 = vmatpush.msra.mxu0 0.0
    %8377 = vmatpush.msra.mxu0 0.0
    %8378 = vmatpush.msra.mxu0 0.0
    %8379 = vmatpush.msra.mxu0 0.0
    %8380 = vmatpush.msra.mxu0 0.0
    %8381 = vmatpush.msra.mxu0 0.0
    %8382 = vmatpush.msra.mxu0 0.0
    %8383 = vmatpush.msra.mxu0 0.0
    %8384 = vmatpush.msra.mxu0 0.0
    %8385 = vmatpush.msra.mxu0 0.0
    %8386 = vmatpush.msra.mxu0 0.0
    %8387 = vmatpush.msra.mxu0 0.0
    %8388 = vmatpush.msra.mxu0 0.0
    %8389 = vmatpush.msra.mxu0 0.0
    %8390 = vmatpush.msra.mxu0 %v8294
    %8391 = vmatpush.msra.mxu0 %v8289
    %8392 = vmatmul.f32.gmra.mxu0 %v4022
    %v8393 = vpop.f32.mrf.mxu0
    %v8394 = vadd.f32 %v8368, %v8393
    %8395 = vmatmul.f32.gmra.mxu0 %v4024
    %v8396 = vpop.f32.mrf.mxu0
    %v8397 = vadd.f32 %v8371, %v8396
    %8398 = vmatmul.f32.gmra.mxu0 %v4027
    %v8399 = vpop.f32.mrf.mxu0
    %v8400 = vadd.f32 %v8374, %v8399
    %8401 = vdwg.mxu0
    %8402 = vmatpush.msra.mxu0 %v8285
    %8403 = vmatpush.msra.mxu0 %v8280
    %8404 = vmatpush.msra.mxu0 %v8275
    %8405 = vmatpush.msra.mxu0 %v8270
    %8406 = vmatpush.msra.mxu0 %v8265
    %8407 = vmatpush.msra.mxu0 %v8260
    %8408 = vmatpush.msra.mxu0 %v8255
    %8409 = vmatpush.msra.mxu0 %v8250
    %8410 = vmatpush.msra.mxu0 %v8245
    %8411 = vmatpush.msra.mxu0 %v8240
    %8412 = vmatpush.msra.mxu0 %v8235
    %8413 = vmatpush.msra.mxu0 %v8230
    %8414 = vmatpush.msra.mxu0 %v8225
    %8415 = vmatpush.msra.mxu0 %v8220
    %8416 = vmatpush.msra.mxu0 %v8215
    %8417 = vmatpush.msra.mxu0 %v8210
    %8418 = vmatmul.f32.gmra.mxu0 %v2070
    %v8419 = vpop.f32.mrf.mxu0
    %v8420 = vadd.f32 0.0, %v8419
    %8421 = vmatmul.f32.gmra.mxu0 %v2075
    %v8422 = vpop.f32.mrf.mxu0
    %v8423 = vadd.f32 0.0, %v8422
    %8424 = vmatmul.f32.gmra.mxu0 %v2082
    %v8425 = vpop.f32.mrf.mxu0
    %v8426 = vadd.f32 0.0, %v8425
    %8427 = vdwg.mxu0
    %8428 = vmatpush.msra.mxu0 0.0
    %8429 = vmatpush.msra.mxu0 0.0
    %8430 = vmatpush.msra.mxu0 0.0
    %8431 = vmatpush.msra.mxu0 0.0
    %8432 = vmatpush.msra.mxu0 0.0
    %8433 = vmatpush.msra.mxu0 0.0
    %8434 = vmatpush.msra.mxu0 0.0
    %8435 = vmatpush.msra.mxu0 0.0
    %8436 = vmatpush.msra.mxu0 0.0
    %8437 = vmatpush.msra.mxu0 0.0
    %8438 = vmatpush.msra.mxu0 0.0
    %8439 = vmatpush.msra.mxu0 0.0
    %8440 = vmatpush.msra.mxu0 0.0
    %8441 = vmatpush.msra.mxu0 0.0
    %8442 = vmatpush.msra.mxu0 %v8295
    %8443 = vmatpush.msra.mxu0 %v8290
    %8444 = vmatmul.f32.gmra.mxu0 %v4022
    %v8445 = vpop.f32.mrf.mxu0
    %v8446 = vadd.f32 %v8420, %v8445
    %8447 = vmatmul.f32.gmra.mxu0 %v4024
    %v8448 = vpop.f32.mrf.mxu0
    %v8449 = vadd.f32 %v8423, %v8448
    %8450 = vmatmul.f32.gmra.mxu0 %v4027
    %v8451 = vpop.f32.mrf.mxu0
    %v8452 = vadd.f32 %v8426, %v8451
    %8453 = vdwg.mxu0
    %8454 = vmatpush.msra.mxu0 %v8286
    %8455 = vmatpush.msra.mxu0 %v8281
    %8456 = vmatpush.msra.mxu0 %v8276
    %8457 = vmatpush.msra.mxu0 %v8271
    %8458 = vmatpush.msra.mxu0 %v8266
    %8459 = vmatpush.msra.mxu0 %v8261
    %8460 = vmatpush.msra.mxu0 %v8256
    %8461 = vmatpush.msra.mxu0 %v8251
    %8462 = vmatpush.msra.mxu0 %v8246
    %8463 = vmatpush.msra.mxu0 %v8241
    %8464 = vmatpush.msra.mxu0 %v8236
    %8465 = vmatpush.msra.mxu0 %v8231
    %8466 = vmatpush.msra.mxu0 %v8226
    %8467 = vmatpush.msra.mxu0 %v8221
    %8468 = vmatpush.msra.mxu0 %v8216
    %8469 = vmatpush.msra.mxu0 %v8211
    %8470 = vmatmul.f32.gmra.mxu0 %v2070
    %v8471 = vpop.f32.mrf.mxu0
    %v8472 = vadd.f32 0.0, %v8471
    %8473 = vmatmul.f32.gmra.mxu0 %v2075
    %v8474 = vpop.f32.mrf.mxu0
    %v8475 = vadd.f32 0.0, %v8474
    %8476 = vmatmul.f32.gmra.mxu0 %v2082
    %v8477 = vpop.f32.mrf.mxu0
    %v8478 = vadd.f32 0.0, %v8477
    %8479 = vdwg.mxu0
    %8480 = vmatpush.msra.mxu0 0.0
    %8481 = vmatpush.msra.mxu0 0.0
    %8482 = vmatpush.msra.mxu0 0.0
    %8483 = vmatpush.msra.mxu0 0.0
    %8484 = vmatpush.msra.mxu0 0.0
    %8485 = vmatpush.msra.mxu0 0.0
    %8486 = vmatpush.msra.mxu0 0.0
    %8487 = vmatpush.msra.mxu0 0.0
    %8488 = vmatpush.msra.mxu0 0.0
    %8489 = vmatpush.msra.mxu0 0.0
    %8490 = vmatpush.msra.mxu0 0.0
    %8491 = vmatpush.msra.mxu0 0.0
    %8492 = vmatpush.msra.mxu0 0.0
    %8493 = vmatpush.msra.mxu0 0.0
    %8494 = vmatpush.msra.mxu0 %v8296
    %8495 = vmatpush.msra.mxu0 %v8291
    %8496 = vmatmul.f32.gmra.mxu0 %v4022
    %v8497 = vpop.f32.mrf.mxu0
    %v8498 = vadd.f32 %v8472, %v8497
    %8499 = vmatmul.f32.gmra.mxu0 %v4024
    %v8500 = vpop.f32.mrf.mxu0
    %v8501 = vadd.f32 %v8475, %v8500
    %8502 = vmatmul.f32.gmra.mxu0 %v4027
    %v8503 = vpop.f32.mrf.mxu0
    %v8504 = vadd.f32 %v8478, %v8503
    %8505 = vdwg.mxu0
    %8506 = vmatpush.msra.mxu0 %v8287
    %8507 = vmatpush.msra.mxu0 %v8282
    %8508 = vmatpush.msra.mxu0 %v8277
    %8509 = vmatpush.msra.mxu0 %v8272
    %8510 = vmatpush.msra.mxu0 %v8267
    %8511 = vmatpush.msra.mxu0 %v8262
    %8512 = vmatpush.msra.mxu0 %v8257
    %8513 = vmatpush.msra.mxu0 %v8252
    %8514 = vmatpush.msra.mxu0 %v8247
    %8515 = vmatpush.msra.mxu0 %v8242
    %8516 = vmatpush.msra.mxu0 %v8237
    %8517 = vmatpush.msra.mxu0 %v8232
    %8518 = vmatpush.msra.mxu0 %v8227
    %8519 = vmatpush.msra.mxu0 %v8222
    %8520 = vmatpush.msra.mxu0 %v8217
    %8521 = vmatpush.msra.mxu0 %v8212
    %8522 = vmatmul.f32.gmra.mxu0 %v2070
    %v8523 = vpop.f32.mrf.mxu0
    %v8524 = vadd.f32 0.0, %v8523
    %8525 = vmatmul.f32.gmra.mxu0 %v2075
    %v8526 = vpop.f32.mrf.mxu0
    %v8527 = vadd.f32 0.0, %v8526
    %8528 = vmatmul.f32.gmra.mxu0 %v2082
    %v8529 = vpop.f32.mrf.mxu0
    %v8530 = vadd.f32 0.0, %v8529
    %8531 = vdwg.mxu0
    %8532 = vmatpush.msra.mxu0 0.0
    %8533 = vmatpush.msra.mxu0 0.0
    %8534 = vmatpush.msra.mxu0 0.0
    %8535 = vmatpush.msra.mxu0 0.0
    %8536 = vmatpush.msra.mxu0 0.0
    %8537 = vmatpush.msra.mxu0 0.0
    %8538 = vmatpush.msra.mxu0 0.0
    %8539 = vmatpush.msra.mxu0 0.0
    %8540 = vmatpush.msra.mxu0 0.0
    %8541 = vmatpush.msra.mxu0 0.0
    %8542 = vmatpush.msra.mxu0 0.0
    %8543 = vmatpush.msra.mxu0 0.0
    %8544 = vmatpush.msra.mxu0 0.0
    %8545 = vmatpush.msra.mxu0 0.0
    %8546 = vmatpush.msra.mxu0 %v8297
    %8547 = vmatpush.msra.mxu0 %v8292
    %8548 = vmatmul.f32.gmra.mxu0 %v4022
    %v8549 = vpop.f32.mrf.mxu0
    %v8550 = vadd.f32 %v8524, %v8549
    %8551 = vmatmul.f32.gmra.mxu0 %v4024
    %v8552 = vpop.f32.mrf.mxu0
    %v8553 = vadd.f32 %v8527, %v8552
    %8554 = vmatmul.f32.gmra.mxu0 %v4027
    %v8555 = vpop.f32.mrf.mxu0
    %v8556 = vadd.f32 %v8530, %v8555
    %8557 = vdwg.mxu0
    %v8558 = vadd.f32 %v8192, %v8342
    %v8559 = vadd.f32 %v8193, %v8394
    %v8560 = vadd.f32 %v8194, %v8446
    %v8561 = vadd.f32 %v8195, %v8498
    %v8562 = vadd.f32 %v8196, %v8550
    %v8563 = vadd.f32 %v8197, %v8345
    %v8564 = vadd.f32 %v8198, %v8397
    %v8565 = vadd.f32 %v8199, %v8449
    %v8566 = vadd.f32 %v8200, %v8501
    %v8567 = vadd.f32 %v8201, %v8553
    %v8568 = vadd.f32 %v8202, %v8348
    %v8569 = vadd.f32 %v8203, %v8400
    %v8570 = vadd.f32 %v8204, %v8452
    %v8571 = vadd.f32 %v8205, %v8504
    %v8572 = vadd.f32 %v8206, %v8556
    %s8573 = scalar_lea.vmem %s9, 960
    %8574 = vst [vmem:[%s8573] sm:$0xff] %v8558
    %8575 = vst [vmem:[%s8573 + $0x8] sm:$0xff] %v8559
    %8576 = vst [vmem:[%s8573 + $0x10] sm:$0xff] %v8560
    %8577 = vst [vmem:[%s8573 + $0x18] sm:$0xff] %v8561
    %8578 = vst.msk [vmem:[%s8573 + $0x20] sm:$0xff] %vm2472, %v8562
    %8579 = vst [vmem:[%s8573 + $0x28] sm:$0xff] %v8563
    %8580 = vst [vmem:[%s8573 + $0x30] sm:$0xff] %v8564
    %8581 = vst [vmem:[%s8573 + $0x38] sm:$0xff] %v8565
    %8582 = vst [vmem:[%s8573 + $0x40] sm:$0xff] %v8566
    %8583 = vst.msk [vmem:[%s8573 + $0x48] sm:$0xff] %vm2472, %v8567
    %8584 = vst [vmem:[%s8573 + $0x50] sm:$0xff] %v8568
    %8585 = vst [vmem:[%s8573 + $0x58] sm:$0xff] %v8569
    %8586 = vst [vmem:[%s8573 + $0x60] sm:$0xff] %v8570
    %8587 = vst [vmem:[%s8573 + $0x68] sm:$0xff] %v8571
    %8588 = vst.msk [vmem:[%s8573 + $0x70] sm:$0xff] %vm2472, %v8572
    %v8589 = vsub.f32 0.0, %v8558
    %v8590 = vsub.f32 0.0, %v8559
    %v8591 = vsub.f32 0.0, %v8560
    %v8592 = vsub.f32 0.0, %v8561
    %v8593 = vsub.f32 0.0, %v8562
    %v8594 = vsub.f32 0.0, %v8563
    %v8595 = vsub.f32 0.0, %v8564
    %v8596 = vsub.f32 0.0, %v8565
    %v8597 = vsub.f32 0.0, %v8566
    %v8598 = vsub.f32 0.0, %v8567
    %v8599 = vsub.f32 0.0, %v8568
    %v8600 = vsub.f32 0.0, %v8569
    %v8601 = vsub.f32 0.0, %v8570
    %v8602 = vsub.f32 0.0, %v8571
    %v8603 = vsub.f32 0.0, %v8572
    %v8604 = vmul.f32 %v8589, 1.442695
    %v8605 = vpow.pop %v8604
    %v8606 = vmul.f32 %v8590, 1.442695
    %v8607 = vpow.pop %v8606
    %v8608 = vmul.f32 %v8591, 1.442695
    %v8609 = vpow.pop %v8608
    %v8610 = vmul.f32 %v8592, 1.442695
    %v8611 = vpow.pop %v8610
    %v8612 = vmul.f32 %v8593, 1.442695
    %v8613 = vpow.pop %v8612
    %v8614 = vmul.f32 %v8594, 1.442695
    %v8615 = vpow.pop %v8614
    %v8616 = vmul.f32 %v8595, 1.442695
    %v8617 = vpow.pop %v8616
    %v8618 = vmul.f32 %v8596, 1.442695
    %v8619 = vpow.pop %v8618
    %v8620 = vmul.f32 %v8597, 1.442695
    %v8621 = vpow.pop %v8620
    %v8622 = vmul.f32 %v8598, 1.442695
    %v8623 = vpow.pop %v8622
    %v8624 = vmul.f32 %v8599, 1.442695
    %v8625 = vpow.pop %v8624
    %v8626 = vmul.f32 %v8600, 1.442695
    %v8627 = vpow.pop %v8626
    %v8628 = vmul.f32 %v8601, 1.442695
    %v8629 = vpow.pop %v8628
    %v8630 = vmul.f32 %v8602, 1.442695
    %v8631 = vpow.pop %v8630
    %v8632 = vmul.f32 %v8603, 1.442695
    %v8633 = vpow.pop %v8632
    %v8634 = vadd.f32 %v8605, 1.0
    %v8635 = vadd.f32 %v8607, 1.0
    %v8636 = vadd.f32 %v8609, 1.0
    %v8637 = vadd.f32 %v8611, 1.0
    %v8638 = vadd.f32 %v8613, 1.0
    %v8639 = vadd.f32 %v8615, 1.0
    %v8640 = vadd.f32 %v8617, 1.0
    %v8641 = vadd.f32 %v8619, 1.0
    %v8642 = vadd.f32 %v8621, 1.0
    %v8643 = vadd.f32 %v8623, 1.0
    %v8644 = vadd.f32 %v8625, 1.0
    %v8645 = vadd.f32 %v8627, 1.0
    %v8646 = vadd.f32 %v8629, 1.0
    %v8647 = vadd.f32 %v8631, 1.0
    %v8648 = vadd.f32 %v8633, 1.0
    %v8649 = vrcp.pop %v8634
    %v8650 = vrcp.pop %v8635
    %v8651 = vrcp.pop %v8636
    %v8652 = vrcp.pop %v8637
    %v8653 = vrcp.pop %v8638
    %v8654 = vrcp.pop %v8639
    %v8655 = vrcp.pop %v8640
    %v8656 = vrcp.pop %v8641
    %v8657 = vrcp.pop %v8642
    %v8658 = vrcp.pop %v8643
    %v8659 = vrcp.pop %v8644
    %v8660 = vrcp.pop %v8645
    %v8661 = vrcp.pop %v8646
    %v8662 = vrcp.pop %v8647
    %v8663 = vrcp.pop %v8648
    %v8664 = vmul.f32 %v8558, %v8649
    %v8665 = vmul.f32 %v8559, %v8650
    %v8666 = vmul.f32 %v8560, %v8651
    %v8667 = vmul.f32 %v8561, %v8652
    %v8668 = vmul.f32 %v8562, %v8653
    %v8669 = vmul.f32 %v8563, %v8654
    %v8670 = vmul.f32 %v8564, %v8655
    %v8671 = vmul.f32 %v8565, %v8656
    %v8672 = vmul.f32 %v8566, %v8657
    %v8673 = vmul.f32 %v8567, %v8658
    %v8674 = vmul.f32 %v8568, %v8659
    %v8675 = vmul.f32 %v8569, %v8660
    %v8676 = vmul.f32 %v8570, %v8661
    %v8677 = vmul.f32 %v8571, %v8662
    %v8678 = vmul.f32 %v8572, %v8663
    %s8679 = scalar_lea.vmem %s10, 960
    %8680 = vst [vmem:[%s8679] sm:$0xff] %v8664
    %8681 = vst [vmem:[%s8679 + $0x8] sm:$0xff] %v8665
    %8682 = vst [vmem:[%s8679 + $0x10] sm:$0xff] %v8666
    %8683 = vst [vmem:[%s8679 + $0x18] sm:$0xff] %v8667
    %8684 = vst.msk [vmem:[%s8679 + $0x20] sm:$0xff] %vm2472, %v8668
    %8685 = vst [vmem:[%s8679 + $0x28] sm:$0xff] %v8669
    %8686 = vst [vmem:[%s8679 + $0x30] sm:$0xff] %v8670
    %8687 = vst [vmem:[%s8679 + $0x38] sm:$0xff] %v8671
    %8688 = vst [vmem:[%s8679 + $0x40] sm:$0xff] %v8672
    %8689 = vst.msk [vmem:[%s8679 + $0x48] sm:$0xff] %vm2472, %v8673
    %8690 = vst [vmem:[%s8679 + $0x50] sm:$0xff] %v8674
    %8691 = vst [vmem:[%s8679 + $0x58] sm:$0xff] %v8675
    %8692 = vst [vmem:[%s8679 + $0x60] sm:$0xff] %v8676
    %8693 = vst [vmem:[%s8679 + $0x68] sm:$0xff] %v8677
    %8694 = vst.msk [vmem:[%s8679 + $0x70] sm:$0xff] %vm2472, %v8678
    // Predicated region
    $region34: #{model_forward.1} parent=1 // pred_check
      _
    $region35: #{model_forward.1} parent=1 // pred_check_branch
      %8696 = sbr.rel (0) target = $region37
    $region36: #{model_forward.1} parent=1 // pred_region
      _
    $region37: #{model_forward.1} parent=1 // pred_fallthru
      _
    // Predicated region
    $region38: #{model_forward.1} parent=1 // pred_check
      _
    $region39: #{model_forward.1} parent=1 // pred_check_branch
      %8698 = sbr.rel (0) target = $region41
    $region40: #{model_forward.1} parent=1 // pred_region
      _
    $region41: #{model_forward.1} parent=1 // pred_fallthru
      _
    // Predicated region
    $region42: #{model_forward.1} parent=1 // pred_check
      _
    $region43: #{model_forward.1} parent=1 // pred_check_branch
      %8700 = sbr.rel (0) target = $region45
    $region44: #{model_forward.1} parent=1 // pred_region
      _
    $region45: #{model_forward.1} parent=1 // pred_fallthru
      _
    // Predicated region
    $region46: #{model_forward.1} parent=1 // pred_check
      _
    $region47: #{model_forward.1} parent=1 // pred_check_branch
      %8702 = sbr.rel (0) target = $region49
    $region48: #{model_forward.1} parent=1 // pred_region
      _
    $region49: #{model_forward.1} parent=1 // pred_fallthru
      _
    // Predicated region
    $region50: #{model_forward.1} parent=1 // pred_check
      _
    $region51: #{model_forward.1} parent=1 // pred_check_branch
      %8704 = sbr.rel (0) target = $region53
    $region52: #{model_forward.1} parent=1 // pred_region
      _
    $region53: #{model_forward.1} parent=1 // pred_fallthru
      _
    // Predicated region
    $region54: #{model_forward.1} parent=1 // pred_check
      _
    $region55: #{model_forward.1} parent=1 // pred_check_branch
      %8706 = sbr.rel (0) target = $region57
    $region56: #{model_forward.1} parent=1 // pred_region
      _
    $region57: #{model_forward.1} parent=1 // pred_fallthru
      _
    // Predicated region
    $region58: #{model_forward.1} parent=1 // pred_check
      _
    $region59: #{model_forward.1} parent=1 // pred_check_branch
      %8708 = sbr.rel (0) target = $region61
    $region60: #{model_forward.1} parent=1 // pred_region
      _
    $region61: #{model_forward.1} parent=1 // pred_fallthru
      _
    // Predicated region
    $region62: #{model_forward.1} parent=1 // pred_check
      _
    $region63: #{model_forward.1} parent=1 // pred_check_branch
      %8710 = sbr.rel (0) target = $region65
    $region64: #{model_forward.1} parent=1 // pred_region
      _
    $region65: #{model_forward.1} parent=1 // pred_fallthru
      _
    %8711 = vsyncpa [#allocation3], 1

</llo_original>
